<compile_context>
chip_gen: v7x
topology: tpu7x:2x2x1
jax: 0.10.0
libtpu: 0.0.40
codegen_flags: <defaults>
</compile_context>

<pallas_src>
import functools

import jax
import jax.numpy as jnp
from jax.experimental import pallas as pl
from jax.experimental.pallas import tpu as pltpu


def _round_up(a, b):
    return (a + b - 1) // b * b


def _mvv_kernel(w_ref, x_ref, h_ref, o_ref, slab_ref, *, k, c_blk,
                hw_stride, w_stride, tm, hb, tc):
    """One tile of `tm` flattened voxel base-positions.

    w_ref    [k^3, 3*c_blk, c_pad] bf16  per-offset fused weights (w1+base | w2 | w3)
    x_ref    [c_pad, tm]           bf16  log(x): channels on sublanes, voxels on lanes
    h_ref    [c_pad, hb]           bf16  halo: first `hb` voxels of the next tile
    o_ref    [c_blk, tm]           f32   exp(log1 + base + log2*log3)
    slab_ref [c_pad, tm+hb]        bf16  scratch: contiguous main|halo slab
    """
    # Assemble a contiguous slab so every shifted window is a plain static slice.
    slab_ref[:, :tm] = x_ref[...]
    slab_ref[:, tm:tm + hb] = h_ref[...]

    offsets = [dz * hw_stride + dy * w_stride + dx
               for dz in range(k) for dy in range(k) for dx in range(k)]

    # Lane-chunked compute + epilogue: per-chunk f32 accumulator fits in vregs.
    for c0 in range(0, tm, tc):
        acc = jnp.zeros((3 * c_blk, tc), jnp.float32)
        for j, off in enumerate(offsets):
            rhs = slab_ref[:, c0 + off:c0 + off + tc]          # static shifted window
            acc = acc + jnp.dot(w_ref[j], rhs,
                                preferred_element_type=jnp.float32)
        log1 = acc[0 * c_blk:1 * c_blk, :]      # already contains +base (folded into w1)
        log2 = acc[1 * c_blk:2 * c_blk, :]
        log3 = acc[2 * c_blk:3 * c_blk, :]
        o_ref[:, c0:c0 + tc] = jnp.exp(log1 + log2 * log3)     # MVCExp


def manifold_valued_volterra(x, w1, w2, w3, *, tile_m=2048):
    N, C_in, D, H, W = x.shape
    C_out, kz, ky, kx_, C_in_w = w1.shape
    assert kz == ky == kx_ and C_in_w == C_in
    k = kz
    Do, Ho, Wo = D - k + 1, H - k + 1, W - k + 1

    C_blk = _round_up(C_out, 8)               # sublane-aligned per-mask output block
    C_pad = _round_up(C_in, 8)                # sublane-aligned contraction (channel) dim
    M_in = N * D * H * W                      # all base positions; invalid ones discarded
    max_off = (k - 1) * (H * W + W + 1)       # largest flattened window offset

    # Tiling: lane chunk tc (register-resident epilogue), halo hb (pow2 multiple of 128
    # >= max_off so the halo block index is exact), tile tm a multiple of both; clamp tm
    # so the grid keeps >= 2 steps (v7x megacore sharding of the "parallel" axis).
    tc = 512
    hb = 128
    while hb < max_off:
        hb *= 2
    step = max(tc, hb)
    tm = max(step, min((tile_m // step) * step, _round_up(pl.cdiv(M_in, 2), step)))
    G = pl.cdiv(M_in, tm)
    W_pad = G * tm + hb                       # zero-pad only feeds invalid/discarded voxels

    # Log map, cast to bf16 BEFORE any rearrangement; flatten to [C, N*D*H*W] with the
    # voxel axis lane-minor; pad channels -> C_pad and lanes -> W_pad.
    logx = jnp.log(x).astype(jnp.bfloat16)
    logxT = jnp.transpose(logx, (1, 0, 2, 3, 4)).reshape(C_in, M_in)
    logxT = jnp.pad(logxT, ((0, C_pad - C_in), (0, W_pad - M_in)))

    # Fused per-offset weights [k^3, 3*C_blk, C_pad].  The Frechet-mean base point at the
    # window centre is folded into the w1 block (+1/C_in per real channel), so no bias
    # row / extra patch stream is needed.
    def blk(w):
        m = jnp.transpose(w, (1, 2, 3, 0, 4)).reshape(k * k * k, C_out, C_in)
        return jnp.pad(m, ((0, 0), (0, C_blk - C_out), (0, C_pad - C_in)))

    b1, b2, b3 = blk(w1), blk(w2), blk(w3)
    j_center = (k // 2) * (k * k + k + 1)     # (c0*k + c0)*k + c0
    base_fold = jnp.zeros_like(b1).at[j_center, :C_out, :C_in].add(1.0 / C_in)
    w_off = jnp.concatenate([b1 + base_fold, b2, b3], axis=1).astype(jnp.bfloat16)

    kernel = functools.partial(
        _mvv_kernel, k=k, c_blk=C_blk, hw_stride=H * W, w_stride=W,
        tm=tm, hb=hb, tc=tc)

    cost = pl.CostEstimate(
        flops=2 * G * tm * (k ** 3) * C_pad * 3 * C_blk,
        transcendentals=G * tm * C_blk,
        bytes_accessed=(C_pad * (tm + hb) * 2 + C_blk * tm * 4) * G
                       + (k ** 3) * 3 * C_blk * C_pad * 2,
    )

    out_flat = pl.pallas_call(
        kernel,
        out_shape=jax.ShapeDtypeStruct((C_blk, G * tm), jnp.float32),
        grid=(G,),
        in_specs=[
            pl.BlockSpec((k ** 3, 3 * C_blk, C_pad), lambda i: (0, 0, 0)),   # weights, resident
            pl.BlockSpec((C_pad, tm), lambda i: (0, i)),                     # main voxel tile
            pl.BlockSpec((C_pad, hb), lambda i: (0, (i + 1) * (tm // hb))),  # halo of next tile
        ],
        out_specs=pl.BlockSpec((C_blk, tm), lambda i: (0, i)),               # lane-dense output
        scratch_shapes=[pltpu.VMEM((C_pad, tm + hb), jnp.bfloat16)],
        compiler_params=pltpu.CompilerParams(
            dimension_semantics=("parallel",),
            vmem_limit_bytes=32 * 1024 * 1024,
        ),
        cost_estimate=cost,
    )(w_off, logxT, logxT)

    # Valid voxels: first C_out rows, first M_in lanes, cropped to the "valid"-conv extent.
    out = out_flat[:C_out, :M_in].reshape(C_out, N, D, H, W)[:, :, :Do, :Ho, :Wo]
    return jnp.transpose(out, (1, 0, 2, 3, 4))                # [N, C_out, Do, Ho, Wo]


def _reference(x, w1, w2, w3):
    """Pure-JAX f32 reference of the same semantics (sanity check)."""
    N, C, D, H, W = x.shape
    C_out, k = w1.shape[0], w1.shape[1]
    Do, Ho, Wo = D - k + 1, H - k + 1, W - k + 1
    logx = jnp.log(x)
    pat = jnp.stack([
        jnp.stack([
            jnp.stack([
                jnp.transpose(logx[:, :, dz:dz + Do, dy:dy + Ho, dx:dx + Wo], (0, 2, 3, 4, 1))
                for dx in range(k)], axis=4)
            for dy in range(k)], axis=4)
        for dz in range(k)], axis=4)                      # [N, Do, Ho, Wo, kz, ky, kx, C]
    conv = lambda w: jnp.einsum('ndhwzyxc,ozyxc->ndhwo', pat, w)
    l1, l2, l3 = conv(w1), conv(w2), conv(w3)
    c0 = k // 2
    base = jnp.mean(logx[:, :, c0:c0 + Do, c0:c0 + Ho, c0:c0 + Wo], axis=1)   # [N,Do,Ho,Wo]
    out = jnp.exp(l1 + l2 * l3 + base[..., None])
    return jnp.transpose(out, (0, 4, 1, 2, 3))            # [N, C_out, Do, Ho, Wo]


if __name__ == "__main__":
    key = jax.random.PRNGKey(0)
    k1, k2, k3, kx = jax.random.split(key, 4)

    N, C_in, C_out, ksz = 2, 4, 8, 3
    D = H = W = 10                      # -> Do=Ho=Wo=8, M_in = 2*1000 = 2000 (2 grid steps)

    # zero_init=False -> torch.rand (uniform [0,1)) init of the three weight masks.
    w1 = jax.random.uniform(k1, (C_out, ksz, ksz, ksz, C_in), jnp.float32)
    w2 = jax.random.uniform(k2, (C_out, ksz, ksz, ksz, C_in), jnp.float32)
    w3 = jax.random.uniform(k3, (C_out, ksz, ksz, ksz, C_in), jnp.float32)

    # Manifold-valued (positive) input near the identity so exp() stays finite & meaningful.
    x = jax.random.uniform(kx, (N, C_in, D, H, W), jnp.float32, minval=0.9, maxval=1.1)

    fwd = jax.jit(manifold_valued_volterra)
    out = jax.block_until_ready(fwd(x, w1, w2, w3))
    ref = jax.block_until_ready(_reference(x, w1, w2, w3))

    assert out.shape == (N, C_out, D - ksz + 1, H - ksz + 1, W - ksz + 1)
    # bf16 log/weight streams with f32 accumulation -> loosened tolerance vs f32 reference.
    rel_err = jnp.max(jnp.abs(out - ref) / (jnp.abs(ref) + 1e-3))
    assert bool(rel_err < 5e-2), f"mismatch vs JAX reference: max rel err {rel_err}"
    print("KERNEL_OK")
</pallas_src>

<mosaic_0001>
module attributes {stable_mosaic.version = 11 : i64} {
  func.func @_mvv_kernel(%arg0: i32, %arg1: memref<27x24x8xbf16, #tpu.memory_space<vmem>>, %arg2: memref<8x1024xbf16, #tpu.memory_space<vmem>>, %arg3: memref<8x256xbf16, #tpu.memory_space<vmem>>, %arg4: memref<8x1024xf32, #tpu.memory_space<vmem>>, %arg5: memref<8x1280xbf16, #tpu.memory_space<vmem>>) attributes {dimension_semantics = [#tpu.dimension_semantics<parallel>], iteration_bounds = array<i64: 2>, scalar_prefetch = 0 : i64, scratch_operands = 1 : i64, tpu.core_type = #tpu.core_type<tc>, window_params = [{pipeline_mode = #tpu.pipeline_mode<synchronous>, transform_indices = @transform_0, window_bounds = array<i64: 27, 24, 8>}, {transform_indices = @transform_1, window_bounds = array<i64: 8, 1024>}, {transform_indices = @transform_2, window_bounds = array<i64: 8, 256>}, {transform_indices = @transform_3, window_bounds = array<i64: 8, 1024>}]} {
    %c0 = arith.constant 0 : index
    %c0_0 = arith.constant 0 : index
    %0 = vector.load %arg2[%c0, %c0_0] : memref<8x1024xbf16, #tpu.memory_space<vmem>>, vector<8x1024xbf16>
    %c0_1 = arith.constant 0 : index
    %c0_2 = arith.constant 0 : index
    %1 = vector.load %arg5[%c0_1, %c0_2] : memref<8x1280xbf16, #tpu.memory_space<vmem>>, vector<8x1024xbf16>
    tpu.vector_store %arg5[%c0_1, %c0_2], %0 {strides = array<i32>} : memref<8x1280xbf16, #tpu.memory_space<vmem>>, vector<8x1024xbf16>,
    %c0_3 = arith.constant 0 : index
    %c0_4 = arith.constant 0 : index
    %2 = vector.load %arg3[%c0_3, %c0_4] : memref<8x256xbf16, #tpu.memory_space<vmem>>, vector<8x256xbf16>
    %c0_5 = arith.constant 0 : index
    %c1024 = arith.constant 1024 : index
    %3 = vector.load %arg5[%c0_5, %c1024] : memref<8x1280xbf16, #tpu.memory_space<vmem>>, vector<8x256xbf16>
    tpu.vector_store %arg5[%c0_5, %c1024], %2 {strides = array<i32>} : memref<8x1280xbf16, #tpu.memory_space<vmem>>, vector<8x256xbf16>,
    %cst = arith.constant 0.000000e+00 : f32
    %4 = vector.broadcast %cst : f32 to vector<24x512xf32>
    %c0_6 = arith.constant 0 : index
    %c0_7 = arith.constant 0 : index
    %5 = vector.load %arg5[%c0_6, %c0_7] : memref<8x1280xbf16, #tpu.memory_space<vmem>>, vector<8x512xbf16>
    %c0_8 = arith.constant 0 : index
    %c0_9 = arith.constant 0 : index
    %c0_10 = arith.constant 0 : index
    %6 = vector.load %arg1[%c0_8, %c0_9, %c0_10] : memref<27x24x8xbf16, #tpu.memory_space<vmem>>, vector<1x24x8xbf16>
    %7 = vector.shape_cast %6 : vector<1x24x8xbf16> to vector<24x8xbf16>
    %cst_11 = arith.constant dense<0.000000e+00> : vector<24x512xf32>
    %8 = tpu.matmul %7, %5, %cst_11 {dimension_numbers = #tpu.dot_dimension_numbers<[1], [0], [0], [1], [0, 0, 1, 1], [], []>} : vector<24x8xbf16>, vector<8x512xbf16>, vector<24x512xf32> -> vector<24x512xf32>
    %9 = arith.addf %4, %8 : vector<24x512xf32>
    %c0_12 = arith.constant 0 : index
    %c1 = arith.constant 1 : index
    %10 = vector.load %arg5[%c0_12, %c1] : memref<8x1280xbf16, #tpu.memory_space<vmem>>, vector<8x512xbf16>
    %c1_13 = arith.constant 1 : index
    %c0_14 = arith.constant 0 : index
    %c0_15 = arith.constant 0 : index
    %11 = vector.load %arg1[%c1_13, %c0_14, %c0_15] : memref<27x24x8xbf16, #tpu.memory_space<vmem>>, vector<1x24x8xbf16>
    %12 = vector.shape_cast %11 : vector<1x24x8xbf16> to vector<24x8xbf16>
    %cst_16 = arith.constant dense<0.000000e+00> : vector<24x512xf32>
    %13 = tpu.matmul %12, %10, %cst_16 {dimension_numbers = #tpu.dot_dimension_numbers<[1], [0], [0], [1], [0, 0, 1, 1], [], []>} : vector<24x8xbf16>, vector<8x512xbf16>, vector<24x512xf32> -> vector<24x512xf32>
    %14 = arith.addf %9, %13 : vector<24x512xf32>
    %c0_17 = arith.constant 0 : index
    %c2 = arith.constant 2 : index
    %15 = vector.load %arg5[%c0_17, %c2] : memref<8x1280xbf16, #tpu.memory_space<vmem>>, vector<8x512xbf16>
    %c2_18 = arith.constant 2 : index
    %c0_19 = arith.constant 0 : index
    %c0_20 = arith.constant 0 : index
    %16 = vector.load %arg1[%c2_18, %c0_19, %c0_20] : memref<27x24x8xbf16, #tpu.memory_space<vmem>>, vector<1x24x8xbf16>
    %17 = vector.shape_cast %16 : vector<1x24x8xbf16> to vector<24x8xbf16>
    %cst_21 = arith.constant dense<0.000000e+00> : vector<24x512xf32>
    %18 = tpu.matmul %17, %15, %cst_21 {dimension_numbers = #tpu.dot_dimension_numbers<[1], [0], [0], [1], [0, 0, 1, 1], [], []>} : vector<24x8xbf16>, vector<8x512xbf16>, vector<24x512xf32> -> vector<24x512xf32>
    %19 = arith.addf %14, %18 : vector<24x512xf32>
    %c0_22 = arith.constant 0 : index
    %c10 = arith.constant 10 : index
    %20 = vector.load %arg5[%c0_22, %c10] : memref<8x1280xbf16, #tpu.memory_space<vmem>>, vector<8x512xbf16>
    %c3 = arith.constant 3 : index
    %c0_23 = arith.constant 0 : index
    %c0_24 = arith.constant 0 : index
    %21 = vector.load %arg1[%c3, %c0_23, %c0_24] : memref<27x24x8xbf16, #tpu.memory_space<vmem>>, vector<1x24x8xbf16>
    %22 = vector.shape_cast %21 : vector<1x24x8xbf16> to vector<24x8xbf16>
    %cst_25 = arith.constant dense<0.000000e+00> : vector<24x512xf32>
    %23 = tpu.matmul %22, %20, %cst_25 {dimension_numbers = #tpu.dot_dimension_numbers<[1], [0], [0], [1], [0, 0, 1, 1], [], []>} : vector<24x8xbf16>, vector<8x512xbf16>, vector<24x512xf32> -> vector<24x512xf32>
    %24 = arith.addf %19, %23 : vector<24x512xf32>
    %c0_26 = arith.constant 0 : index
    %c11 = arith.constant 11 : index
    %25 = vector.load %arg5[%c0_26, %c11] : memref<8x1280xbf16, #tpu.memory_space<vmem>>, vector<8x512xbf16>
    %c4 = arith.constant 4 : index
    %c0_27 = arith.constant 0 : index
    %c0_28 = arith.constant 0 : index
    %26 = vector.load %arg1[%c4, %c0_27, %c0_28] : memref<27x24x8xbf16, #tpu.memory_space<vmem>>, vector<1x24x8xbf16>
    %27 = vector.shape_cast %26 : vector<1x24x8xbf16> to vector<24x8xbf16>
    %cst_29 = arith.constant dense<0.000000e+00> : vector<24x512xf32>
    %28 = tpu.matmul %27, %25, %cst_29 {dimension_numbers = #tpu.dot_dimension_numbers<[1], [0], [0], [1], [0, 0, 1, 1], [], []>} : vector<24x8xbf16>, vector<8x512xbf16>, vector<24x512xf32> -> vector<24x512xf32>
    %29 = arith.addf %24, %28 : vector<24x512xf32>
    %c0_30 = arith.constant 0 : index
    %c12 = arith.constant 12 : index
    %30 = vector.load %arg5[%c0_30, %c12] : memref<8x1280xbf16, #tpu.memory_space<vmem>>, vector<8x512xbf16>
    %c5 = arith.constant 5 : index
    %c0_31 = arith.constant 0 : index
    %c0_32 = arith.constant 0 : index
    %31 = vector.load %arg1[%c5, %c0_31, %c0_32] : memref<27x24x8xbf16, #tpu.memory_space<vmem>>, vector<1x24x8xbf16>
    %32 = vector.shape_cast %31 : vector<1x24x8xbf16> to vector<24x8xbf16>
    %cst_33 = arith.constant dense<0.000000e+00> : vector<24x512xf32>
    %33 = tpu.matmul %32, %30, %cst_33 {dimension_numbers = #tpu.dot_dimension_numbers<[1], [0], [0], [1], [0, 0, 1, 1], [], []>} : vector<24x8xbf16>, vector<8x512xbf16>, vector<24x512xf32> -> vector<24x512xf32>
    %34 = arith.addf %29, %33 : vector<24x512xf32>
    %c0_34 = arith.constant 0 : index
    %c20 = arith.constant 20 : index
    %35 = vector.load %arg5[%c0_34, %c20] : memref<8x1280xbf16, #tpu.memory_space<vmem>>, vector<8x512xbf16>
    %c6 = arith.constant 6 : index
    %c0_35 = arith.constant 0 : index
    %c0_36 = arith.constant 0 : index
    %36 = vector.load %arg1[%c6, %c0_35, %c0_36] : memref<27x24x8xbf16, #tpu.memory_space<vmem>>, vector<1x24x8xbf16>
    %37 = vector.shape_cast %36 : vector<1x24x8xbf16> to vector<24x8xbf16>
    %cst_37 = arith.constant dense<0.000000e+00> : vector<24x512xf32>
    %38 = tpu.matmul %37, %35, %cst_37 {dimension_numbers = #tpu.dot_dimension_numbers<[1], [0], [0], [1], [0, 0, 1, 1], [], []>} : vector<24x8xbf16>, vector<8x512xbf16>, vector<24x512xf32> -> vector<24x512xf32>
    %39 = arith.addf %34, %38 : vector<24x512xf32>
    %c0_38 = arith.constant 0 : index
    %c21 = arith.constant 21 : index
    %40 = vector.load %arg5[%c0_38, %c21] : memref<8x1280xbf16, #tpu.memory_space<vmem>>, vector<8x512xbf16>
    %c7 = arith.constant 7 : index
    %c0_39 = arith.constant 0 : index
    %c0_40 = arith.constant 0 : index
    %41 = vector.load %arg1[%c7, %c0_39, %c0_40] : memref<27x24x8xbf16, #tpu.memory_space<vmem>>, vector<1x24x8xbf16>
    %42 = vector.shape_cast %41 : vector<1x24x8xbf16> to vector<24x8xbf16>
    %cst_41 = arith.constant dense<0.000000e+00> : vector<24x512xf32>
    %43 = tpu.matmul %42, %40, %cst_41 {dimension_numbers = #tpu.dot_dimension_numbers<[1], [0], [0], [1], [0, 0, 1, 1], [], []>} : vector<24x8xbf16>, vector<8x512xbf16>, vector<24x512xf32> -> vector<24x512xf32>
    %44 = arith.addf %39, %43 : vector<24x512xf32>
    %c0_42 = arith.constant 0 : index
    %c22 = arith.constant 22 : index
    %45 = vector.load %arg5[%c0_42, %c22] : memref<8x1280xbf16, #tpu.memory_space<vmem>>, vector<8x512xbf16>
    %c8 = arith.constant 8 : index
    %c0_43 = arith.constant 0 : index
    %c0_44 = arith.constant 0 : index
    %46 = vector.load %arg1[%c8, %c0_43, %c0_44] : memref<27x24x8xbf16, #tpu.memory_space<vmem>>, vector<1x24x8xbf16>
    %47 = vector.shape_cast %46 : vector<1x24x8xbf16> to vector<24x8xbf16>
    %cst_45 = arith.constant dense<0.000000e+00> : vector<24x512xf32>
    %48 = tpu.matmul %47, %45, %cst_45 {dimension_numbers = #tpu.dot_dimension_numbers<[1], [0], [0], [1], [0, 0, 1, 1], [], []>} : vector<24x8xbf16>, vector<8x512xbf16>, vector<24x512xf32> -> vector<24x512xf32>
    %49 = arith.addf %44, %48 : vector<24x512xf32>
    %c0_46 = arith.constant 0 : index
    %c100 = arith.constant 100 : index
    %50 = vector.load %arg5[%c0_46, %c100] : memref<8x1280xbf16, #tpu.memory_space<vmem>>, vector<8x512xbf16>
    %c9 = arith.constant 9 : index
    %c0_47 = arith.constant 0 : index
    %c0_48 = arith.constant 0 : index
    %51 = vector.load %arg1[%c9, %c0_47, %c0_48] : memref<27x24x8xbf16, #tpu.memory_space<vmem>>, vector<1x24x8xbf16>
    %52 = vector.shape_cast %51 : vector<1x24x8xbf16> to vector<24x8xbf16>
    %cst_49 = arith.constant dense<0.000000e+00> : vector<24x512xf32>
    %53 = tpu.matmul %52, %50, %cst_49 {dimension_numbers = #tpu.dot_dimension_numbers<[1], [0], [0], [1], [0, 0, 1, 1], [], []>} : vector<24x8xbf16>, vector<8x512xbf16>, vector<24x512xf32> -> vector<24x512xf32>
    %54 = arith.addf %49, %53 : vector<24x512xf32>
    %c0_50 = arith.constant 0 : index
    %c101 = arith.constant 101 : index
    %55 = vector.load %arg5[%c0_50, %c101] : memref<8x1280xbf16, #tpu.memory_space<vmem>>, vector<8x512xbf16>
    %c10_51 = arith.constant 10 : index
    %c0_52 = arith.constant 0 : index
    %c0_53 = arith.constant 0 : index
    %56 = vector.load %arg1[%c10_51, %c0_52, %c0_53] : memref<27x24x8xbf16, #tpu.memory_space<vmem>>, vector<1x24x8xbf16>
    %57 = vector.shape_cast %56 : vector<1x24x8xbf16> to vector<24x8xbf16>
    %cst_54 = arith.constant dense<0.000000e+00> : vector<24x512xf32>
    %58 = tpu.matmul %57, %55, %cst_54 {dimension_numbers = #tpu.dot_dimension_numbers<[1], [0], [0], [1], [0, 0, 1, 1], [], []>} : vector<24x8xbf16>, vector<8x512xbf16>, vector<24x512xf32> -> vector<24x512xf32>
    %59 = arith.addf %54, %58 : vector<24x512xf32>
    %c0_55 = arith.constant 0 : index
    %c102 = arith.constant 102 : index
    %60 = vector.load %arg5[%c0_55, %c102] : memref<8x1280xbf16, #tpu.memory_space<vmem>>, vector<8x512xbf16>
    %c11_56 = arith.constant 11 : index
    %c0_57 = arith.constant 0 : index
    %c0_58 = arith.constant 0 : index
    %61 = vector.load %arg1[%c11_56, %c0_57, %c0_58] : memref<27x24x8xbf16, #tpu.memory_space<vmem>>, vector<1x24x8xbf16>
    %62 = vector.shape_cast %61 : vector<1x24x8xbf16> to vector<24x8xbf16>
    %cst_59 = arith.constant dense<0.000000e+00> : vector<24x512xf32>
    %63 = tpu.matmul %62, %60, %cst_59 {dimension_numbers = #tpu.dot_dimension_numbers<[1], [0], [0], [1], [0, 0, 1, 1], [], []>} : vector<24x8xbf16>, vector<8x512xbf16>, vector<24x512xf32> -> vector<24x512xf32>
    %64 = arith.addf %59, %63 : vector<24x512xf32>
    %c0_60 = arith.constant 0 : index
    %c110 = arith.constant 110 : index
    %65 = vector.load %arg5[%c0_60, %c110] : memref<8x1280xbf16, #tpu.memory_space<vmem>>, vector<8x512xbf16>
    %c12_61 = arith.constant 12 : index
    %c0_62 = arith.constant 0 : index
    %c0_63 = arith.constant 0 : index
    %66 = vector.load %arg1[%c12_61, %c0_62, %c0_63] : memref<27x24x8xbf16, #tpu.memory_space<vmem>>, vector<1x24x8xbf16>
    %67 = vector.shape_cast %66 : vector<1x24x8xbf16> to vector<24x8xbf16>
    %cst_64 = arith.constant dense<0.000000e+00> : vector<24x512xf32>
    %68 = tpu.matmul %67, %65, %cst_64 {dimension_numbers = #tpu.dot_dimension_numbers<[1], [0], [0], [1], [0, 0, 1, 1], [], []>} : vector<24x8xbf16>, vector<8x512xbf16>, vector<24x512xf32> -> vector<24x512xf32>
    %69 = arith.addf %64, %68 : vector<24x512xf32>
    %c0_65 = arith.constant 0 : index
    %c111 = arith.constant 111 : index
    %70 = vector.load %arg5[%c0_65, %c111] : memref<8x1280xbf16, #tpu.memory_space<vmem>>, vector<8x512xbf16>
    %c13 = arith.constant 13 : index
    %c0_66 = arith.constant 0 : index
    %c0_67 = arith.constant 0 : index
    %71 = vector.load %arg1[%c13, %c0_66, %c0_67] : memref<27x24x8xbf16, #tpu.memory_space<vmem>>, vector<1x24x8xbf16>
    %72 = vector.shape_cast %71 : vector<1x24x8xbf16> to vector<24x8xbf16>
    %cst_68 = arith.constant dense<0.000000e+00> : vector<24x512xf32>
    %73 = tpu.matmul %72, %70, %cst_68 {dimension_numbers = #tpu.dot_dimension_numbers<[1], [0], [0], [1], [0, 0, 1, 1], [], []>} : vector<24x8xbf16>, vector<8x512xbf16>, vector<24x512xf32> -> vector<24x512xf32>
    %74 = arith.addf %69, %73 : vector<24x512xf32>
    %c0_69 = arith.constant 0 : index
    %c112 = arith.constant 112 : index
    %75 = vector.load %arg5[%c0_69, %c112] : memref<8x1280xbf16, #tpu.memory_space<vmem>>, vector<8x512xbf16>
    %c14 = arith.constant 14 : index
    %c0_70 = arith.constant 0 : index
    %c0_71 = arith.constant 0 : index
    %76 = vector.load %arg1[%c14, %c0_70, %c0_71] : memref<27x24x8xbf16, #tpu.memory_space<vmem>>, vector<1x24x8xbf16>
    %77 = vector.shape_cast %76 : vector<1x24x8xbf16> to vector<24x8xbf16>
    %cst_72 = arith.constant dense<0.000000e+00> : vector<24x512xf32>
    %78 = tpu.matmul %77, %75, %cst_72 {dimension_numbers = #tpu.dot_dimension_numbers<[1], [0], [0], [1], [0, 0, 1, 1], [], []>} : vector<24x8xbf16>, vector<8x512xbf16>, vector<24x512xf32> -> vector<24x512xf32>
    %79 = arith.addf %74, %78 : vector<24x512xf32>
    %c0_73 = arith.constant 0 : index
    %c120 = arith.constant 120 : index
    %80 = vector.load %arg5[%c0_73, %c120] : memref<8x1280xbf16, #tpu.memory_space<vmem>>, vector<8x512xbf16>
    %c15 = arith.constant 15 : index
    %c0_74 = arith.constant 0 : index
    %c0_75 = arith.constant 0 : index
    %81 = vector.load %arg1[%c15, %c0_74, %c0_75] : memref<27x24x8xbf16, #tpu.memory_space<vmem>>, vector<1x24x8xbf16>
    %82 = vector.shape_cast %81 : vector<1x24x8xbf16> to vector<24x8xbf16>
    %cst_76 = arith.constant dense<0.000000e+00> : vector<24x512xf32>
    %83 = tpu.matmul %82, %80, %cst_76 {dimension_numbers = #tpu.dot_dimension_numbers<[1], [0], [0], [1], [0, 0, 1, 1], [], []>} : vector<24x8xbf16>, vector<8x512xbf16>, vector<24x512xf32> -> vector<24x512xf32>
    %84 = arith.addf %79, %83 : vector<24x512xf32>
    %c0_77 = arith.constant 0 : index
    %c121 = arith.constant 121 : index
    %85 = vector.load %arg5[%c0_77, %c121] : memref<8x1280xbf16, #tpu.memory_space<vmem>>, vector<8x512xbf16>
    %c16 = arith.constant 16 : index
    %c0_78 = arith.constant 0 : index
    %c0_79 = arith.constant 0 : index
    %86 = vector.load %arg1[%c16, %c0_78, %c0_79] : memref<27x24x8xbf16, #tpu.memory_space<vmem>>, vector<1x24x8xbf16>
    %87 = vector.shape_cast %86 : vector<1x24x8xbf16> to vector<24x8xbf16>
    %cst_80 = arith.constant dense<0.000000e+00> : vector<24x512xf32>
    %88 = tpu.matmul %87, %85, %cst_80 {dimension_numbers = #tpu.dot_dimension_numbers<[1], [0], [0], [1], [0, 0, 1, 1], [], []>} : vector<24x8xbf16>, vector<8x512xbf16>, vector<24x512xf32> -> vector<24x512xf32>
    %89 = arith.addf %84, %88 : vector<24x512xf32>
    %c0_81 = arith.constant 0 : index
    %c122 = arith.constant 122 : index
    %90 = vector.load %arg5[%c0_81, %c122] : memref<8x1280xbf16, #tpu.memory_space<vmem>>, vector<8x512xbf16>
    %c17 = arith.constant 17 : index
    %c0_82 = arith.constant 0 : index
    %c0_83 = arith.constant 0 : index
    %91 = vector.load %arg1[%c17, %c0_82, %c0_83] : memref<27x24x8xbf16, #tpu.memory_space<vmem>>, vector<1x24x8xbf16>
    %92 = vector.shape_cast %91 : vector<1x24x8xbf16> to vector<24x8xbf16>
    %cst_84 = arith.constant dense<0.000000e+00> : vector<24x512xf32>
    %93 = tpu.matmul %92, %90, %cst_84 {dimension_numbers = #tpu.dot_dimension_numbers<[1], [0], [0], [1], [0, 0, 1, 1], [], []>} : vector<24x8xbf16>, vector<8x512xbf16>, vector<24x512xf32> -> vector<24x512xf32>
    %94 = arith.addf %89, %93 : vector<24x512xf32>
    %c0_85 = arith.constant 0 : index
    %c200 = arith.constant 200 : index
    %95 = vector.load %arg5[%c0_85, %c200] : memref<8x1280xbf16, #tpu.memory_space<vmem>>, vector<8x512xbf16>
    %c18 = arith.constant 18 : index
    %c0_86 = arith.constant 0 : index
    %c0_87 = arith.constant 0 : index
    %96 = vector.load %arg1[%c18, %c0_86, %c0_87] : memref<27x24x8xbf16, #tpu.memory_space<vmem>>, vector<1x24x8xbf16>
    %97 = vector.shape_cast %96 : vector<1x24x8xbf16> to vector<24x8xbf16>
    %cst_88 = arith.constant dense<0.000000e+00> : vector<24x512xf32>
    %98 = tpu.matmul %97, %95, %cst_88 {dimension_numbers = #tpu.dot_dimension_numbers<[1], [0], [0], [1], [0, 0, 1, 1], [], []>} : vector<24x8xbf16>, vector<8x512xbf16>, vector<24x512xf32> -> vector<24x512xf32>
    %99 = arith.addf %94, %98 : vector<24x512xf32>
    %c0_89 = arith.constant 0 : index
    %c201 = arith.constant 201 : index
    %100 = vector.load %arg5[%c0_89, %c201] : memref<8x1280xbf16, #tpu.memory_space<vmem>>, vector<8x512xbf16>
    %c19 = arith.constant 19 : index
    %c0_90 = arith.constant 0 : index
    %c0_91 = arith.constant 0 : index
    %101 = vector.load %arg1[%c19, %c0_90, %c0_91] : memref<27x24x8xbf16, #tpu.memory_space<vmem>>, vector<1x24x8xbf16>
    %102 = vector.shape_cast %101 : vector<1x24x8xbf16> to vector<24x8xbf16>
    %cst_92 = arith.constant dense<0.000000e+00> : vector<24x512xf32>
    %103 = tpu.matmul %102, %100, %cst_92 {dimension_numbers = #tpu.dot_dimension_numbers<[1], [0], [0], [1], [0, 0, 1, 1], [], []>} : vector<24x8xbf16>, vector<8x512xbf16>, vector<24x512xf32> -> vector<24x512xf32>
    %104 = arith.addf %99, %103 : vector<24x512xf32>
    %c0_93 = arith.constant 0 : index
    %c202 = arith.constant 202 : index
    %105 = vector.load %arg5[%c0_93, %c202] : memref<8x1280xbf16, #tpu.memory_space<vmem>>, vector<8x512xbf16>
    %c20_94 = arith.constant 20 : index
    %c0_95 = arith.constant 0 : index
    %c0_96 = arith.constant 0 : index
    %106 = vector.load %arg1[%c20_94, %c0_95, %c0_96] : memref<27x24x8xbf16, #tpu.memory_space<vmem>>, vector<1x24x8xbf16>
    %107 = vector.shape_cast %106 : vector<1x24x8xbf16> to vector<24x8xbf16>
    %cst_97 = arith.constant dense<0.000000e+00> : vector<24x512xf32>
    %108 = tpu.matmul %107, %105, %cst_97 {dimension_numbers = #tpu.dot_dimension_numbers<[1], [0], [0], [1], [0, 0, 1, 1], [], []>} : vector<24x8xbf16>, vector<8x512xbf16>, vector<24x512xf32> -> vector<24x512xf32>
    %109 = arith.addf %104, %108 : vector<24x512xf32>
    %c0_98 = arith.constant 0 : index
    %c210 = arith.constant 210 : index
    %110 = vector.load %arg5[%c0_98, %c210] : memref<8x1280xbf16, #tpu.memory_space<vmem>>, vector<8x512xbf16>
    %c21_99 = arith.constant 21 : index
    %c0_100 = arith.constant 0 : index
    %c0_101 = arith.constant 0 : index
    %111 = vector.load %arg1[%c21_99, %c0_100, %c0_101] : memref<27x24x8xbf16, #tpu.memory_space<vmem>>, vector<1x24x8xbf16>
    %112 = vector.shape_cast %111 : vector<1x24x8xbf16> to vector<24x8xbf16>
    %cst_102 = arith.constant dense<0.000000e+00> : vector<24x512xf32>
    %113 = tpu.matmul %112, %110, %cst_102 {dimension_numbers = #tpu.dot_dimension_numbers<[1], [0], [0], [1], [0, 0, 1, 1], [], []>} : vector<24x8xbf16>, vector<8x512xbf16>, vector<24x512xf32> -> vector<24x512xf32>
    %114 = arith.addf %109, %113 : vector<24x512xf32>
    %c0_103 = arith.constant 0 : index
    %c211 = arith.constant 211 : index
    %115 = vector.load %arg5[%c0_103, %c211] : memref<8x1280xbf16, #tpu.memory_space<vmem>>, vector<8x512xbf16>
    %c22_104 = arith.constant 22 : index
    %c0_105 = arith.constant 0 : index
    %c0_106 = arith.constant 0 : index
    %116 = vector.load %arg1[%c22_104, %c0_105, %c0_106] : memref<27x24x8xbf16, #tpu.memory_space<vmem>>, vector<1x24x8xbf16>
    %117 = vector.shape_cast %116 : vector<1x24x8xbf16> to vector<24x8xbf16>
    %cst_107 = arith.constant dense<0.000000e+00> : vector<24x512xf32>
    %118 = tpu.matmul %117, %115, %cst_107 {dimension_numbers = #tpu.dot_dimension_numbers<[1], [0], [0], [1], [0, 0, 1, 1], [], []>} : vector<24x8xbf16>, vector<8x512xbf16>, vector<24x512xf32> -> vector<24x512xf32>
    %119 = arith.addf %114, %118 : vector<24x512xf32>
    %c0_108 = arith.constant 0 : index
    %c212 = arith.constant 212 : index
    %120 = vector.load %arg5[%c0_108, %c212] : memref<8x1280xbf16, #tpu.memory_space<vmem>>, vector<8x512xbf16>
    %c23 = arith.constant 23 : index
    %c0_109 = arith.constant 0 : index
    %c0_110 = arith.constant 0 : index
    %121 = vector.load %arg1[%c23, %c0_109, %c0_110] : memref<27x24x8xbf16, #tpu.memory_space<vmem>>, vector<1x24x8xbf16>
    %122 = vector.shape_cast %121 : vector<1x24x8xbf16> to vector<24x8xbf16>
    %cst_111 = arith.constant dense<0.000000e+00> : vector<24x512xf32>
    %123 = tpu.matmul %122, %120, %cst_111 {dimension_numbers = #tpu.dot_dimension_numbers<[1], [0], [0], [1], [0, 0, 1, 1], [], []>} : vector<24x8xbf16>, vector<8x512xbf16>, vector<24x512xf32> -> vector<24x512xf32>
    %124 = arith.addf %119, %123 : vector<24x512xf32>
    %c0_112 = arith.constant 0 : index
    %c220 = arith.constant 220 : index
    %125 = vector.load %arg5[%c0_112, %c220] : memref<8x1280xbf16, #tpu.memory_space<vmem>>, vector<8x512xbf16>
    %c24 = arith.constant 24 : index
    %c0_113 = arith.constant 0 : index
    %c0_114 = arith.constant 0 : index
    %126 = vector.load %arg1[%c24, %c0_113, %c0_114] : memref<27x24x8xbf16, #tpu.memory_space<vmem>>, vector<1x24x8xbf16>
    %127 = vector.shape_cast %126 : vector<1x24x8xbf16> to vector<24x8xbf16>
    %cst_115 = arith.constant dense<0.000000e+00> : vector<24x512xf32>
    %128 = tpu.matmul %127, %125, %cst_115 {dimension_numbers = #tpu.dot_dimension_numbers<[1], [0], [0], [1], [0, 0, 1, 1], [], []>} : vector<24x8xbf16>, vector<8x512xbf16>, vector<24x512xf32> -> vector<24x512xf32>
    %129 = arith.addf %124, %128 : vector<24x512xf32>
    %c0_116 = arith.constant 0 : index
    %c221 = arith.constant 221 : index
    %130 = vector.load %arg5[%c0_116, %c221] : memref<8x1280xbf16, #tpu.memory_space<vmem>>, vector<8x512xbf16>
    %c25 = arith.constant 25 : index
    %c0_117 = arith.constant 0 : index
    %c0_118 = arith.constant 0 : index
    %131 = vector.load %arg1[%c25, %c0_117, %c0_118] : memref<27x24x8xbf16, #tpu.memory_space<vmem>>, vector<1x24x8xbf16>
    %132 = vector.shape_cast %131 : vector<1x24x8xbf16> to vector<24x8xbf16>
    %cst_119 = arith.constant dense<0.000000e+00> : vector<24x512xf32>
    %133 = tpu.matmul %132, %130, %cst_119 {dimension_numbers = #tpu.dot_dimension_numbers<[1], [0], [0], [1], [0, 0, 1, 1], [], []>} : vector<24x8xbf16>, vector<8x512xbf16>, vector<24x512xf32> -> vector<24x512xf32>
    %134 = arith.addf %129, %133 : vector<24x512xf32>
    %c0_120 = arith.constant 0 : index
    %c222 = arith.constant 222 : index
    %135 = vector.load %arg5[%c0_120, %c222] : memref<8x1280xbf16, #tpu.memory_space<vmem>>, vector<8x512xbf16>
    %c26 = arith.constant 26 : index
    %c0_121 = arith.constant 0 : index
    %c0_122 = arith.constant 0 : index
    %136 = vector.load %arg1[%c26, %c0_121, %c0_122] : memref<27x24x8xbf16, #tpu.memory_space<vmem>>, vector<1x24x8xbf16>
    %137 = vector.shape_cast %136 : vector<1x24x8xbf16> to vector<24x8xbf16>
    %cst_123 = arith.constant dense<0.000000e+00> : vector<24x512xf32>
    %138 = tpu.matmul %137, %135, %cst_123 {dimension_numbers = #tpu.dot_dimension_numbers<[1], [0], [0], [1], [0, 0, 1, 1], [], []>} : vector<24x8xbf16>, vector<8x512xbf16>, vector<24x512xf32> -> vector<24x512xf32>
    %139 = arith.addf %134, %138 : vector<24x512xf32>
    %140 = vector.extract_strided_slice %139 {offsets = [0, 0], sizes = [8, 512], strides = [1, 1]} : vector<24x512xf32> to vector<8x512xf32>
    %141 = vector.extract_strided_slice %139 {offsets = [8, 0], sizes = [8, 512], strides = [1, 1]} : vector<24x512xf32> to vector<8x512xf32>
    %142 = vector.extract_strided_slice %139 {offsets = [16, 0], sizes = [8, 512], strides = [1, 1]} : vector<24x512xf32> to vector<8x512xf32>
    %143 = arith.mulf %141, %142 : vector<8x512xf32>
    %144 = arith.addf %140, %143 : vector<8x512xf32>
    %145 = math.exp %144 : vector<8x512xf32>
    %c0_124 = arith.constant 0 : index
    %c0_125 = arith.constant 0 : index
    %146 = vector.load %arg4[%c0_124, %c0_125] : memref<8x1024xf32, #tpu.memory_space<vmem>>, vector<8x512xf32>
    tpu.vector_store %arg4[%c0_124, %c0_125], %145 {strides = array<i32>} : memref<8x1024xf32, #tpu.memory_space<vmem>>, vector<8x512xf32>,
    %cst_126 = arith.constant 0.000000e+00 : f32
    %147 = vector.broadcast %cst_126 : f32 to vector<24x512xf32>
    %c0_127 = arith.constant 0 : index
    %c512 = arith.constant 512 : index
    %148 = vector.load %arg5[%c0_127, %c512] : memref<8x1280xbf16, #tpu.memory_space<vmem>>, vector<8x512xbf16>
    %c0_128 = arith.constant 0 : index
    %c0_129 = arith.constant 0 : index
    %c0_130 = arith.constant 0 : index
    %149 = vector.load %arg1[%c0_128, %c0_129, %c0_130] : memref<27x24x8xbf16, #tpu.memory_space<vmem>>, vector<1x24x8xbf16>
    %150 = vector.shape_cast %149 : vector<1x24x8xbf16> to vector<24x8xbf16>
    %cst_131 = arith.constant dense<0.000000e+00> : vector<24x512xf32>
    %151 = tpu.matmul %150, %148, %cst_131 {dimension_numbers = #tpu.dot_dimension_numbers<[1], [0], [0], [1], [0, 0, 1, 1], [], []>} : vector<24x8xbf16>, vector<8x512xbf16>, vector<24x512xf32> -> vector<24x512xf32>
    %152 = arith.addf %147, %151 : vector<24x512xf32>
    %c0_132 = arith.constant 0 : index
    %c513 = arith.constant 513 : index
    %153 = vector.load %arg5[%c0_132, %c513] : memref<8x1280xbf16, #tpu.memory_space<vmem>>, vector<8x512xbf16>
    %c1_133 = arith.constant 1 : index
    %c0_134 = arith.constant 0 : index
    %c0_135 = arith.constant 0 : index
    %154 = vector.load %arg1[%c1_133, %c0_134, %c0_135] : memref<27x24x8xbf16, #tpu.memory_space<vmem>>, vector<1x24x8xbf16>
    %155 = vector.shape_cast %154 : vector<1x24x8xbf16> to vector<24x8xbf16>
    %cst_136 = arith.constant dense<0.000000e+00> : vector<24x512xf32>
    %156 = tpu.matmul %155, %153, %cst_136 {dimension_numbers = #tpu.dot_dimension_numbers<[1], [0], [0], [1], [0, 0, 1, 1], [], []>} : vector<24x8xbf16>, vector<8x512xbf16>, vector<24x512xf32> -> vector<24x512xf32>
    %157 = arith.addf %152, %156 : vector<24x512xf32>
    %c0_137 = arith.constant 0 : index
    %c514 = arith.constant 514 : index
    %158 = vector.load %arg5[%c0_137, %c514] : memref<8x1280xbf16, #tpu.memory_space<vmem>>, vector<8x512xbf16>
    %c2_138 = arith.constant 2 : index
    %c0_139 = arith.constant 0 : index
    %c0_140 = arith.constant 0 : index
    %159 = vector.load %arg1[%c2_138, %c0_139, %c0_140] : memref<27x24x8xbf16, #tpu.memory_space<vmem>>, vector<1x24x8xbf16>
    %160 = vector.shape_cast %159 : vector<1x24x8xbf16> to vector<24x8xbf16>
    %cst_141 = arith.constant dense<0.000000e+00> : vector<24x512xf32>
    %161 = tpu.matmul %160, %158, %cst_141 {dimension_numbers = #tpu.dot_dimension_numbers<[1], [0], [0], [1], [0, 0, 1, 1], [], []>} : vector<24x8xbf16>, vector<8x512xbf16>, vector<24x512xf32> -> vector<24x512xf32>
    %162 = arith.addf %157, %161 : vector<24x512xf32>
    %c0_142 = arith.constant 0 : index
    %c522 = arith.constant 522 : index
    %163 = vector.load %arg5[%c0_142, %c522] : memref<8x1280xbf16, #tpu.memory_space<vmem>>, vector<8x512xbf16>
    %c3_143 = arith.constant 3 : index
    %c0_144 = arith.constant 0 : index
    %c0_145 = arith.constant 0 : index
    %164 = vector.load %arg1[%c3_143, %c0_144, %c0_145] : memref<27x24x8xbf16, #tpu.memory_space<vmem>>, vector<1x24x8xbf16>
    %165 = vector.shape_cast %164 : vector<1x24x8xbf16> to vector<24x8xbf16>
    %cst_146 = arith.constant dense<0.000000e+00> : vector<24x512xf32>
    %166 = tpu.matmul %165, %163, %cst_146 {dimension_numbers = #tpu.dot_dimension_numbers<[1], [0], [0], [1], [0, 0, 1, 1], [], []>} : vector<24x8xbf16>, vector<8x512xbf16>, vector<24x512xf32> -> vector<24x512xf32>
    %167 = arith.addf %162, %166 : vector<24x512xf32>
    %c0_147 = arith.constant 0 : index
    %c523 = arith.constant 523 : index
    %168 = vector.load %arg5[%c0_147, %c523] : memref<8x1280xbf16, #tpu.memory_space<vmem>>, vector<8x512xbf16>
    %c4_148 = arith.constant 4 : index
    %c0_149 = arith.constant 0 : index
    %c0_150 = arith.constant 0 : index
    %169 = vector.load %arg1[%c4_148, %c0_149, %c0_150] : memref<27x24x8xbf16, #tpu.memory_space<vmem>>, vector<1x24x8xbf16>
    %170 = vector.shape_cast %169 : vector<1x24x8xbf16> to vector<24x8xbf16>
    %cst_151 = arith.constant dense<0.000000e+00> : vector<24x512xf32>
    %171 = tpu.matmul %170, %168, %cst_151 {dimension_numbers = #tpu.dot_dimension_numbers<[1], [0], [0], [1], [0, 0, 1, 1], [], []>} : vector<24x8xbf16>, vector<8x512xbf16>, vector<24x512xf32> -> vector<24x512xf32>
    %172 = arith.addf %167, %171 : vector<24x512xf32>
    %c0_152 = arith.constant 0 : index
    %c524 = arith.constant 524 : index
    %173 = vector.load %arg5[%c0_152, %c524] : memref<8x1280xbf16, #tpu.memory_space<vmem>>, vector<8x512xbf16>
    %c5_153 = arith.constant 5 : index
    %c0_154 = arith.constant 0 : index
    %c0_155 = arith.constant 0 : index
    %174 = vector.load %arg1[%c5_153, %c0_154, %c0_155] : memref<27x24x8xbf16, #tpu.memory_space<vmem>>, vector<1x24x8xbf16>
    %175 = vector.shape_cast %174 : vector<1x24x8xbf16> to vector<24x8xbf16>
    %cst_156 = arith.constant dense<0.000000e+00> : vector<24x512xf32>
    %176 = tpu.matmul %175, %173, %cst_156 {dimension_numbers = #tpu.dot_dimension_numbers<[1], [0], [0], [1], [0, 0, 1, 1], [], []>} : vector<24x8xbf16>, vector<8x512xbf16>, vector<24x512xf32> -> vector<24x512xf32>
    %177 = arith.addf %172, %176 : vector<24x512xf32>
    %c0_157 = arith.constant 0 : index
    %c532 = arith.constant 532 : index
    %178 = vector.load %arg5[%c0_157, %c532] : memref<8x1280xbf16, #tpu.memory_space<vmem>>, vector<8x512xbf16>
    %c6_158 = arith.constant 6 : index
    %c0_159 = arith.constant 0 : index
    %c0_160 = arith.constant 0 : index
    %179 = vector.load %arg1[%c6_158, %c0_159, %c0_160] : memref<27x24x8xbf16, #tpu.memory_space<vmem>>, vector<1x24x8xbf16>
    %180 = vector.shape_cast %179 : vector<1x24x8xbf16> to vector<24x8xbf16>
    %cst_161 = arith.constant dense<0.000000e+00> : vector<24x512xf32>
    %181 = tpu.matmul %180, %178, %cst_161 {dimension_numbers = #tpu.dot_dimension_numbers<[1], [0], [0], [1], [0, 0, 1, 1], [], []>} : vector<24x8xbf16>, vector<8x512xbf16>, vector<24x512xf32> -> vector<24x512xf32>
    %182 = arith.addf %177, %181 : vector<24x512xf32>
    %c0_162 = arith.constant 0 : index
    %c533 = arith.constant 533 : index
    %183 = vector.load %arg5[%c0_162, %c533] : memref<8x1280xbf16, #tpu.memory_space<vmem>>, vector<8x512xbf16>
    %c7_163 = arith.constant 7 : index
    %c0_164 = arith.constant 0 : index
    %c0_165 = arith.constant 0 : index
    %184 = vector.load %arg1[%c7_163, %c0_164, %c0_165] : memref<27x24x8xbf16, #tpu.memory_space<vmem>>, vector<1x24x8xbf16>
    %185 = vector.shape_cast %184 : vector<1x24x8xbf16> to vector<24x8xbf16>
    %cst_166 = arith.constant dense<0.000000e+00> : vector<24x512xf32>
    %186 = tpu.matmul %185, %183, %cst_166 {dimension_numbers = #tpu.dot_dimension_numbers<[1], [0], [0], [1], [0, 0, 1, 1], [], []>} : vector<24x8xbf16>, vector<8x512xbf16>, vector<24x512xf32> -> vector<24x512xf32>
    %187 = arith.addf %182, %186 : vector<24x512xf32>
    %c0_167 = arith.constant 0 : index
    %c534 = arith.constant 534 : index
    %188 = vector.load %arg5[%c0_167, %c534] : memref<8x1280xbf16, #tpu.memory_space<vmem>>, vector<8x512xbf16>
    %c8_168 = arith.constant 8 : index
    %c0_169 = arith.constant 0 : index
    %c0_170 = arith.constant 0 : index
    %189 = vector.load %arg1[%c8_168, %c0_169, %c0_170] : memref<27x24x8xbf16, #tpu.memory_space<vmem>>, vector<1x24x8xbf16>
    %190 = vector.shape_cast %189 : vector<1x24x8xbf16> to vector<24x8xbf16>
    %cst_171 = arith.constant dense<0.000000e+00> : vector<24x512xf32>
    %191 = tpu.matmul %190, %188, %cst_171 {dimension_numbers = #tpu.dot_dimension_numbers<[1], [0], [0], [1], [0, 0, 1, 1], [], []>} : vector<24x8xbf16>, vector<8x512xbf16>, vector<24x512xf32> -> vector<24x512xf32>
    %192 = arith.addf %187, %191 : vector<24x512xf32>
    %c0_172 = arith.constant 0 : index
    %c612 = arith.constant 612 : index
    %193 = vector.load %arg5[%c0_172, %c612] : memref<8x1280xbf16, #tpu.memory_space<vmem>>, vector<8x512xbf16>
    %c9_173 = arith.constant 9 : index
    %c0_174 = arith.constant 0 : index
    %c0_175 = arith.constant 0 : index
    %194 = vector.load %arg1[%c9_173, %c0_174, %c0_175] : memref<27x24x8xbf16, #tpu.memory_space<vmem>>, vector<1x24x8xbf16>
    %195 = vector.shape_cast %194 : vector<1x24x8xbf16> to vector<24x8xbf16>
    %cst_176 = arith.constant dense<0.000000e+00> : vector<24x512xf32>
    %196 = tpu.matmul %195, %193, %cst_176 {dimension_numbers = #tpu.dot_dimension_numbers<[1], [0], [0], [1], [0, 0, 1, 1], [], []>} : vector<24x8xbf16>, vector<8x512xbf16>, vector<24x512xf32> -> vector<24x512xf32>
    %197 = arith.addf %192, %196 : vector<24x512xf32>
    %c0_177 = arith.constant 0 : index
    %c613 = arith.constant 613 : index
    %198 = vector.load %arg5[%c0_177, %c613] : memref<8x1280xbf16, #tpu.memory_space<vmem>>, vector<8x512xbf16>
    %c10_178 = arith.constant 10 : index
    %c0_179 = arith.constant 0 : index
    %c0_180 = arith.constant 0 : index
    %199 = vector.load %arg1[%c10_178, %c0_179, %c0_180] : memref<27x24x8xbf16, #tpu.memory_space<vmem>>, vector<1x24x8xbf16>
    %200 = vector.shape_cast %199 : vector<1x24x8xbf16> to vector<24x8xbf16>
    %cst_181 = arith.constant dense<0.000000e+00> : vector<24x512xf32>
    %201 = tpu.matmul %200, %198, %cst_181 {dimension_numbers = #tpu.dot_dimension_numbers<[1], [0], [0], [1], [0, 0, 1, 1], [], []>} : vector<24x8xbf16>, vector<8x512xbf16>, vector<24x512xf32> -> vector<24x512xf32>
    %202 = arith.addf %197, %201 : vector<24x512xf32>
    %c0_182 = arith.constant 0 : index
    %c614 = arith.constant 614 : index
    %203 = vector.load %arg5[%c0_182, %c614] : memref<8x1280xbf16, #tpu.memory_space<vmem>>, vector<8x512xbf16>
    %c11_183 = arith.constant 11 : index
    %c0_184 = arith.constant 0 : index
    %c0_185 = arith.constant 0 : index
    %204 = vector.load %arg1[%c11_183, %c0_184, %c0_185] : memref<27x24x8xbf16, #tpu.memory_space<vmem>>, vector<1x24x8xbf16>
    %205 = vector.shape_cast %204 : vector<1x24x8xbf16> to vector<24x8xbf16>
    %cst_186 = arith.constant dense<0.000000e+00> : vector<24x512xf32>
    %206 = tpu.matmul %205, %203, %cst_186 {dimension_numbers = #tpu.dot_dimension_numbers<[1], [0], [0], [1], [0, 0, 1, 1], [], []>} : vector<24x8xbf16>, vector<8x512xbf16>, vector<24x512xf32> -> vector<24x512xf32>
    %207 = arith.addf %202, %206 : vector<24x512xf32>
    %c0_187 = arith.constant 0 : index
    %c622 = arith.constant 622 : index
    %208 = vector.load %arg5[%c0_187, %c622] : memref<8x1280xbf16, #tpu.memory_space<vmem>>, vector<8x512xbf16>
    %c12_188 = arith.constant 12 : index
    %c0_189 = arith.constant 0 : index
    %c0_190 = arith.constant 0 : index
    %209 = vector.load %arg1[%c12_188, %c0_189, %c0_190] : memref<27x24x8xbf16, #tpu.memory_space<vmem>>, vector<1x24x8xbf16>
    %210 = vector.shape_cast %209 : vector<1x24x8xbf16> to vector<24x8xbf16>
    %cst_191 = arith.constant dense<0.000000e+00> : vector<24x512xf32>
    %211 = tpu.matmul %210, %208, %cst_191 {dimension_numbers = #tpu.dot_dimension_numbers<[1], [0], [0], [1], [0, 0, 1, 1], [], []>} : vector<24x8xbf16>, vector<8x512xbf16>, vector<24x512xf32> -> vector<24x512xf32>
    %212 = arith.addf %207, %211 : vector<24x512xf32>
    %c0_192 = arith.constant 0 : index
    %c623 = arith.constant 623 : index
    %213 = vector.load %arg5[%c0_192, %c623] : memref<8x1280xbf16, #tpu.memory_space<vmem>>, vector<8x512xbf16>
    %c13_193 = arith.constant 13 : index
    %c0_194 = arith.constant 0 : index
    %c0_195 = arith.constant 0 : index
    %214 = vector.load %arg1[%c13_193, %c0_194, %c0_195] : memref<27x24x8xbf16, #tpu.memory_space<vmem>>, vector<1x24x8xbf16>
    %215 = vector.shape_cast %214 : vector<1x24x8xbf16> to vector<24x8xbf16>
    %cst_196 = arith.constant dense<0.000000e+00> : vector<24x512xf32>
    %216 = tpu.matmul %215, %213, %cst_196 {dimension_numbers = #tpu.dot_dimension_numbers<[1], [0], [0], [1], [0, 0, 1, 1], [], []>} : vector<24x8xbf16>, vector<8x512xbf16>, vector<24x512xf32> -> vector<24x512xf32>
    %217 = arith.addf %212, %216 : vector<24x512xf32>
    %c0_197 = arith.constant 0 : index
    %c624 = arith.constant 624 : index
    %218 = vector.load %arg5[%c0_197, %c624] : memref<8x1280xbf16, #tpu.memory_space<vmem>>, vector<8x512xbf16>
    %c14_198 = arith.constant 14 : index
    %c0_199 = arith.constant 0 : index
    %c0_200 = arith.constant 0 : index
    %219 = vector.load %arg1[%c14_198, %c0_199, %c0_200] : memref<27x24x8xbf16, #tpu.memory_space<vmem>>, vector<1x24x8xbf16>
    %220 = vector.shape_cast %219 : vector<1x24x8xbf16> to vector<24x8xbf16>
    %cst_201 = arith.constant dense<0.000000e+00> : vector<24x512xf32>
    %221 = tpu.matmul %220, %218, %cst_201 {dimension_numbers = #tpu.dot_dimension_numbers<[1], [0], [0], [1], [0, 0, 1, 1], [], []>} : vector<24x8xbf16>, vector<8x512xbf16>, vector<24x512xf32> -> vector<24x512xf32>
    %222 = arith.addf %217, %221 : vector<24x512xf32>
    %c0_202 = arith.constant 0 : index
    %c632 = arith.constant 632 : index
    %223 = vector.load %arg5[%c0_202, %c632] : memref<8x1280xbf16, #tpu.memory_space<vmem>>, vector<8x512xbf16>
    %c15_203 = arith.constant 15 : index
    %c0_204 = arith.constant 0 : index
    %c0_205 = arith.constant 0 : index
    %224 = vector.load %arg1[%c15_203, %c0_204, %c0_205] : memref<27x24x8xbf16, #tpu.memory_space<vmem>>, vector<1x24x8xbf16>
    %225 = vector.shape_cast %224 : vector<1x24x8xbf16> to vector<24x8xbf16>
    %cst_206 = arith.constant dense<0.000000e+00> : vector<24x512xf32>
    %226 = tpu.matmul %225, %223, %cst_206 {dimension_numbers = #tpu.dot_dimension_numbers<[1], [0], [0], [1], [0, 0, 1, 1], [], []>} : vector<24x8xbf16>, vector<8x512xbf16>, vector<24x512xf32> -> vector<24x512xf32>
    %227 = arith.addf %222, %226 : vector<24x512xf32>
    %c0_207 = arith.constant 0 : index
    %c633 = arith.constant 633 : index
    %228 = vector.load %arg5[%c0_207, %c633] : memref<8x1280xbf16, #tpu.memory_space<vmem>>, vector<8x512xbf16>
    %c16_208 = arith.constant 16 : index
    %c0_209 = arith.constant 0 : index
    %c0_210 = arith.constant 0 : index
    %229 = vector.load %arg1[%c16_208, %c0_209, %c0_210] : memref<27x24x8xbf16, #tpu.memory_space<vmem>>, vector<1x24x8xbf16>
    %230 = vector.shape_cast %229 : vector<1x24x8xbf16> to vector<24x8xbf16>
    %cst_211 = arith.constant dense<0.000000e+00> : vector<24x512xf32>
    %231 = tpu.matmul %230, %228, %cst_211 {dimension_numbers = #tpu.dot_dimension_numbers<[1], [0], [0], [1], [0, 0, 1, 1], [], []>} : vector<24x8xbf16>, vector<8x512xbf16>, vector<24x512xf32> -> vector<24x512xf32>
    %232 = arith.addf %227, %231 : vector<24x512xf32>
    %c0_212 = arith.constant 0 : index
    %c634 = arith.constant 634 : index
    %233 = vector.load %arg5[%c0_212, %c634] : memref<8x1280xbf16, #tpu.memory_space<vmem>>, vector<8x512xbf16>
    %c17_213 = arith.constant 17 : index
    %c0_214 = arith.constant 0 : index
    %c0_215 = arith.constant 0 : index
    %234 = vector.load %arg1[%c17_213, %c0_214, %c0_215] : memref<27x24x8xbf16, #tpu.memory_space<vmem>>, vector<1x24x8xbf16>
    %235 = vector.shape_cast %234 : vector<1x24x8xbf16> to vector<24x8xbf16>
    %cst_216 = arith.constant dense<0.000000e+00> : vector<24x512xf32>
    %236 = tpu.matmul %235, %233, %cst_216 {dimension_numbers = #tpu.dot_dimension_numbers<[1], [0], [0], [1], [0, 0, 1, 1], [], []>} : vector<24x8xbf16>, vector<8x512xbf16>, vector<24x512xf32> -> vector<24x512xf32>
    %237 = arith.addf %232, %236 : vector<24x512xf32>
    %c0_217 = arith.constant 0 : index
    %c712 = arith.constant 712 : index
    %238 = vector.load %arg5[%c0_217, %c712] : memref<8x1280xbf16, #tpu.memory_space<vmem>>, vector<8x512xbf16>
    %c18_218 = arith.constant 18 : index
    %c0_219 = arith.constant 0 : index
    %c0_220 = arith.constant 0 : index
    %239 = vector.load %arg1[%c18_218, %c0_219, %c0_220] : memref<27x24x8xbf16, #tpu.memory_space<vmem>>, vector<1x24x8xbf16>
    %240 = vector.shape_cast %239 : vector<1x24x8xbf16> to vector<24x8xbf16>
    %cst_221 = arith.constant dense<0.000000e+00> : vector<24x512xf32>
    %241 = tpu.matmul %240, %238, %cst_221 {dimension_numbers = #tpu.dot_dimension_numbers<[1], [0], [0], [1], [0, 0, 1, 1], [], []>} : vector<24x8xbf16>, vector<8x512xbf16>, vector<24x512xf32> -> vector<24x512xf32>
    %242 = arith.addf %237, %241 : vector<24x512xf32>
    %c0_222 = arith.constant 0 : index
    %c713 = arith.constant 713 : index
    %243 = vector.load %arg5[%c0_222, %c713] : memref<8x1280xbf16, #tpu.memory_space<vmem>>, vector<8x512xbf16>
    %c19_223 = arith.constant 19 : index
    %c0_224 = arith.constant 0 : index
    %c0_225 = arith.constant 0 : index
    %244 = vector.load %arg1[%c19_223, %c0_224, %c0_225] : memref<27x24x8xbf16, #tpu.memory_space<vmem>>, vector<1x24x8xbf16>
    %245 = vector.shape_cast %244 : vector<1x24x8xbf16> to vector<24x8xbf16>
    %cst_226 = arith.constant dense<0.000000e+00> : vector<24x512xf32>
    %246 = tpu.matmul %245, %243, %cst_226 {dimension_numbers = #tpu.dot_dimension_numbers<[1], [0], [0], [1], [0, 0, 1, 1], [], []>} : vector<24x8xbf16>, vector<8x512xbf16>, vector<24x512xf32> -> vector<24x512xf32>
    %247 = arith.addf %242, %246 : vector<24x512xf32>
    %c0_227 = arith.constant 0 : index
    %c714 = arith.constant 714 : index
    %248 = vector.load %arg5[%c0_227, %c714] : memref<8x1280xbf16, #tpu.memory_space<vmem>>, vector<8x512xbf16>
    %c20_228 = arith.constant 20 : index
    %c0_229 = arith.constant 0 : index
    %c0_230 = arith.constant 0 : index
    %249 = vector.load %arg1[%c20_228, %c0_229, %c0_230] : memref<27x24x8xbf16, #tpu.memory_space<vmem>>, vector<1x24x8xbf16>
    %250 = vector.shape_cast %249 : vector<1x24x8xbf16> to vector<24x8xbf16>
    %cst_231 = arith.constant dense<0.000000e+00> : vector<24x512xf32>
    %251 = tpu.matmul %250, %248, %cst_231 {dimension_numbers = #tpu.dot_dimension_numbers<[1], [0], [0], [1], [0, 0, 1, 1], [], []>} : vector<24x8xbf16>, vector<8x512xbf16>, vector<24x512xf32> -> vector<24x512xf32>
    %252 = arith.addf %247, %251 : vector<24x512xf32>
    %c0_232 = arith.constant 0 : index
    %c722 = arith.constant 722 : index
    %253 = vector.load %arg5[%c0_232, %c722] : memref<8x1280xbf16, #tpu.memory_space<vmem>>, vector<8x512xbf16>
    %c21_233 = arith.constant 21 : index
    %c0_234 = arith.constant 0 : index
    %c0_235 = arith.constant 0 : index
    %254 = vector.load %arg1[%c21_233, %c0_234, %c0_235] : memref<27x24x8xbf16, #tpu.memory_space<vmem>>, vector<1x24x8xbf16>
    %255 = vector.shape_cast %254 : vector<1x24x8xbf16> to vector<24x8xbf16>
    %cst_236 = arith.constant dense<0.000000e+00> : vector<24x512xf32>
    %256 = tpu.matmul %255, %253, %cst_236 {dimension_numbers = #tpu.dot_dimension_numbers<[1], [0], [0], [1], [0, 0, 1, 1], [], []>} : vector<24x8xbf16>, vector<8x512xbf16>, vector<24x512xf32> -> vector<24x512xf32>
    %257 = arith.addf %252, %256 : vector<24x512xf32>
    %c0_237 = arith.constant 0 : index
    %c723 = arith.constant 723 : index
    %258 = vector.load %arg5[%c0_237, %c723] : memref<8x1280xbf16, #tpu.memory_space<vmem>>, vector<8x512xbf16>
    %c22_238 = arith.constant 22 : index
    %c0_239 = arith.constant 0 : index
    %c0_240 = arith.constant 0 : index
    %259 = vector.load %arg1[%c22_238, %c0_239, %c0_240] : memref<27x24x8xbf16, #tpu.memory_space<vmem>>, vector<1x24x8xbf16>
    %260 = vector.shape_cast %259 : vector<1x24x8xbf16> to vector<24x8xbf16>
    %cst_241 = arith.constant dense<0.000000e+00> : vector<24x512xf32>
    %261 = tpu.matmul %260, %258, %cst_241 {dimension_numbers = #tpu.dot_dimension_numbers<[1], [0], [0], [1], [0, 0, 1, 1], [], []>} : vector<24x8xbf16>, vector<8x512xbf16>, vector<24x512xf32> -> vector<24x512xf32>
    %262 = arith.addf %257, %261 : vector<24x512xf32>
    %c0_242 = arith.constant 0 : index
    %c724 = arith.constant 724 : index
    %263 = vector.load %arg5[%c0_242, %c724] : memref<8x1280xbf16, #tpu.memory_space<vmem>>, vector<8x512xbf16>
    %c23_243 = arith.constant 23 : index
    %c0_244 = arith.constant 0 : index
    %c0_245 = arith.constant 0 : index
    %264 = vector.load %arg1[%c23_243, %c0_244, %c0_245] : memref<27x24x8xbf16, #tpu.memory_space<vmem>>, vector<1x24x8xbf16>
    %265 = vector.shape_cast %264 : vector<1x24x8xbf16> to vector<24x8xbf16>
    %cst_246 = arith.constant dense<0.000000e+00> : vector<24x512xf32>
    %266 = tpu.matmul %265, %263, %cst_246 {dimension_numbers = #tpu.dot_dimension_numbers<[1], [0], [0], [1], [0, 0, 1, 1], [], []>} : vector<24x8xbf16>, vector<8x512xbf16>, vector<24x512xf32> -> vector<24x512xf32>
    %267 = arith.addf %262, %266 : vector<24x512xf32>
    %c0_247 = arith.constant 0 : index
    %c732 = arith.constant 732 : index
    %268 = vector.load %arg5[%c0_247, %c732] : memref<8x1280xbf16, #tpu.memory_space<vmem>>, vector<8x512xbf16>
    %c24_248 = arith.constant 24 : index
    %c0_249 = arith.constant 0 : index
    %c0_250 = arith.constant 0 : index
    %269 = vector.load %arg1[%c24_248, %c0_249, %c0_250] : memref<27x24x8xbf16, #tpu.memory_space<vmem>>, vector<1x24x8xbf16>
    %270 = vector.shape_cast %269 : vector<1x24x8xbf16> to vector<24x8xbf16>
    %cst_251 = arith.constant dense<0.000000e+00> : vector<24x512xf32>
    %271 = tpu.matmul %270, %268, %cst_251 {dimension_numbers = #tpu.dot_dimension_numbers<[1], [0], [0], [1], [0, 0, 1, 1], [], []>} : vector<24x8xbf16>, vector<8x512xbf16>, vector<24x512xf32> -> vector<24x512xf32>
    %272 = arith.addf %267, %271 : vector<24x512xf32>
    %c0_252 = arith.constant 0 : index
    %c733 = arith.constant 733 : index
    %273 = vector.load %arg5[%c0_252, %c733] : memref<8x1280xbf16, #tpu.memory_space<vmem>>, vector<8x512xbf16>
    %c25_253 = arith.constant 25 : index
    %c0_254 = arith.constant 0 : index
    %c0_255 = arith.constant 0 : index
    %274 = vector.load %arg1[%c25_253, %c0_254, %c0_255] : memref<27x24x8xbf16, #tpu.memory_space<vmem>>, vector<1x24x8xbf16>
    %275 = vector.shape_cast %274 : vector<1x24x8xbf16> to vector<24x8xbf16>
    %cst_256 = arith.constant dense<0.000000e+00> : vector<24x512xf32>
    %276 = tpu.matmul %275, %273, %cst_256 {dimension_numbers = #tpu.dot_dimension_numbers<[1], [0], [0], [1], [0, 0, 1, 1], [], []>} : vector<24x8xbf16>, vector<8x512xbf16>, vector<24x512xf32> -> vector<24x512xf32>
    %277 = arith.addf %272, %276 : vector<24x512xf32>
    %c0_257 = arith.constant 0 : index
    %c734 = arith.constant 734 : index
    %278 = vector.load %arg5[%c0_257, %c734] : memref<8x1280xbf16, #tpu.memory_space<vmem>>, vector<8x512xbf16>
    %c26_258 = arith.constant 26 : index
    %c0_259 = arith.constant 0 : index
    %c0_260 = arith.constant 0 : index
    %279 = vector.load %arg1[%c26_258, %c0_259, %c0_260] : memref<27x24x8xbf16, #tpu.memory_space<vmem>>, vector<1x24x8xbf16>
    %280 = vector.shape_cast %279 : vector<1x24x8xbf16> to vector<24x8xbf16>
    %cst_261 = arith.constant dense<0.000000e+00> : vector<24x512xf32>
    %281 = tpu.matmul %280, %278, %cst_261 {dimension_numbers = #tpu.dot_dimension_numbers<[1], [0], [0], [1], [0, 0, 1, 1], [], []>} : vector<24x8xbf16>, vector<8x512xbf16>, vector<24x512xf32> -> vector<24x512xf32>
    %282 = arith.addf %277, %281 : vector<24x512xf32>
    %283 = vector.extract_strided_slice %282 {offsets = [0, 0], sizes = [8, 512], strides = [1, 1]} : vector<24x512xf32> to vector<8x512xf32>
    %284 = vector.extract_strided_slice %282 {offsets = [8, 0], sizes = [8, 512], strides = [1, 1]} : vector<24x512xf32> to vector<8x512xf32>
    %285 = vector.extract_strided_slice %282 {offsets = [16, 0], sizes = [8, 512], strides = [1, 1]} : vector<24x512xf32> to vector<8x512xf32>
    %286 = arith.mulf %284, %285 : vector<8x512xf32>
    %287 = arith.addf %283, %286 : vector<8x512xf32>
    %288 = math.exp %287 : vector<8x512xf32>
    %c0_262 = arith.constant 0 : index
    %c512_263 = arith.constant 512 : index
    %289 = vector.load %arg4[%c0_262, %c512_263] : memref<8x1024xf32, #tpu.memory_space<vmem>>, vector<8x512xf32>
    tpu.vector_store %arg4[%c0_262, %c512_263], %288 {strides = array<i32>} : memref<8x1024xf32, #tpu.memory_space<vmem>>, vector<8x512xf32>,
    return
  }
  func.func @transform_0(%arg0: i32) -> (i32, i32, i32) {
    %c0_i32 = arith.constant 0 : i32
    %c0_i32_0 = arith.constant 0 : i32
    %c0_i32_1 = arith.constant 0 : i32
    %c0_i32_2 = arith.constant 0 : i32
    return %c0_i32, %c0_i32_0, %c0_i32_1 : i32, i32, i32
  }
  func.func @transform_1(%arg0: i32) -> (i32, i32) {
    %c0_i32 = arith.constant 0 : i32
    %c0_i32_0 = arith.constant 0 : i32
    return %c0_i32, %arg0 : i32, i32
  }
  func.func @transform_2(%arg0: i32) -> (i32, i32) {
    %c1_i32 = arith.constant 1 : i32
    %0 = arith.addi %arg0, %c1_i32 : i32
    %c4_i32 = arith.constant 4 : i32
    %1 = arith.muli %0, %c4_i32 : i32
    %c0_i32 = arith.constant 0 : i32
    %c0_i32_0 = arith.constant 0 : i32
    return %c0_i32, %1 : i32, i32
  }
  func.func @transform_3(%arg0: i32) -> (i32, i32) {
    %c0_i32 = arith.constant 0 : i32
    %c0_i32_0 = arith.constant 0 : i32
    return %c0_i32, %arg0 : i32, i32
  }
}

</mosaic_0001>

<llo_original>
// kernel: manifold_valued_volterra.1
$region0: #{manifold_valued_volterra.1}
  #allocation0 [shape = 'u32[]', space=smem, size = 0x4, offset = 0x4, fixed_abs, tag = 'smem constant byte address 0x4 - core index']
  #allocation1 [shape = 'u32[144,128]{1,0:T(1,128)}', space=vmem, size = 0x12000, scoped, tag = 'internal scratch']
  #allocation2 [shape = 'bf16[8,1280]{1,0:T(8,128)(2,1)}', space=vmem, size = 0x5000, scoped, tag = 'scratch operand']
  %s0 = inlined_call_operand.vmem [shape: bf16[27,24,8], index: 0, kind: input, shape index: {}]
  %s1 = inlined_call_operand.vmem [shape: bf16[8,2304], index: 1, kind: input, shape index: {}, may-alias: {1,2}]
  %s2 = inlined_call_operand.vmem [shape: bf16[8,2304], index: 2, kind: input, shape index: {}, may-alias: {1,2}]
  %s3 = inlined_call_operand.vmem [shape: f32[8,2048], index: 3, kind: output, shape index: {}]
  %s4 = sld [smem:[#allocation0]]
  $region45: #{manifold_valued_volterra.1} parent=0
    _
  %s6 = ssub.s32 1, %s4
  %s7 = scalar_select 0, %s6, %s4
  loop: start=0, step=1, limit=4
  $region2: #{manifold_valued_volterra.1} parent=0 // loop_pre_header
    _
  $region3: #{manifold_valued_volterra.1} parent=0 // loop_header
    %s9 = sphi 0, %s13
    %p10 = scmp.ge.s32.totalorder %s9, 4
    %s17 = sphi 0, %s17
    %s19 = sphi 0, %s17
    %s20 = sphi 0, %s19
    %s34 = sphi 0, %s20
    %s40 = sphi 0, %s42
    %s43 = sphi 0, %s40
    %s44 = sphi 0, %s43
    %s60 = sphi 0, %s44
    %s70 = sphi 0, %s72
    %s73 = sphi 0, %s70
    %s74 = sphi 0, %s73
    %s90 = sphi 0, %s74
    %s96 = sphi 0, %s98
    %s99 = sphi 0, %s96
    %s100 = sphi 0, %s99
    %s116 = sphi 0, %s100
  $region4: #{manifold_valued_volterra.1} parent=0 // loop_header_branch
    %12 = sbr.rel (%p10) target = $region8
  $region5: #{manifold_valued_volterra.1} parent=0 // loop_body
    %s14 = ssub.s32 %s9, 1
    %s15 = ssub.s32 %s9, 2
    %s16 = sadd.s32 %s9, 1
    %s18 = sadd.s32 %s17, 1
    %p21 = scmp.eq.s32.totalorder %s9, 1
    %p22 = scmp.ne.s32.totalorder %s17, %s19
    %p23 = scmp.eq.s32.totalorder %s9, 0
    %p24 = por %p22, %p23
    %p25 = scmp.ne.s32.totalorder %s17, %s19
    %p26 = scmp.eq.s32.totalorder %s14, 1
    %p27 = por %p25, %p26
    %p28 = scmp.ne.s32.totalorder %s19, %s20
    %p29 = scmp.eq.s32.totalorder %s14, 0
    %p30 = por %p28, %p29
    %p31 = scmp.ne.s32.totalorder %s19, %s20
    %p32 = scmp.eq.s32.totalorder %s15, 1
    %p33 = por %p31, %p32
    %p35 = scmp.ne.s32.totalorder %s20, %s34
    %p36 = scmp.eq.s32.totalorder %s15, 0
    %p37 = por %p35, %p36
    %s38 = ssub.s32 %s9, %s16
    %p39 = scmp.eq.s32.totalorder %s38, 0
    %s41 = sadd.s32 %s40, 1
    %s42 = scalar_select %p39, %s40, %s41
    %p45 = pneg %p39
    %p46 = scmp.eq.s32.totalorder %s9, 1
    %p47 = por %p45, %p46
    %p48 = scmp.ne.s32.totalorder %s40, %s43
    %p49 = scmp.eq.s32.totalorder %s9, 0
    %p50 = por %p48, %p49
    %p51 = scmp.ne.s32.totalorder %s40, %s43
    %p52 = scmp.eq.s32.totalorder %s14, 1
    %p53 = por %p51, %p52
    %p54 = scmp.ne.s32.totalorder %s43, %s44
    %p55 = scmp.eq.s32.totalorder %s14, 0
    %p56 = por %p54, %p55
    %p57 = scmp.ne.s32.totalorder %s43, %s44
    %p58 = scmp.eq.s32.totalorder %s15, 1
    %p59 = por %p57, %p58
    %p61 = scmp.ne.s32.totalorder %s44, %s60
    %p62 = scmp.eq.s32.totalorder %s15, 0
    %p63 = por %p61, %p62
    %s64 = sadd.s32 %s9, 1
    %s65 = smul.u32 %s64, 4
    %s66 = sadd.s32 %s16, 1
    %s67 = smul.u32 %s66, 4
    %s68 = ssub.s32 %s65, %s67
    %p69 = scmp.eq.s32.totalorder %s68, 0
    %s71 = sadd.s32 %s70, 1
    %s72 = scalar_select %p69, %s70, %s71
    %p75 = pneg %p69
    %p76 = scmp.eq.s32.totalorder %s9, 1
    %p77 = por %p75, %p76
    %p78 = scmp.ne.s32.totalorder %s70, %s73
    %p79 = scmp.eq.s32.totalorder %s9, 0
    %p80 = por %p78, %p79
    %p81 = scmp.ne.s32.totalorder %s70, %s73
    %p82 = scmp.eq.s32.totalorder %s14, 1
    %p83 = por %p81, %p82
    %p84 = scmp.ne.s32.totalorder %s73, %s74
    %p85 = scmp.eq.s32.totalorder %s14, 0
    %p86 = por %p84, %p85
    %p87 = scmp.ne.s32.totalorder %s73, %s74
    %p88 = scmp.eq.s32.totalorder %s15, 1
    %p89 = por %p87, %p88
    %p91 = scmp.ne.s32.totalorder %s74, %s90
    %p92 = scmp.eq.s32.totalorder %s15, 0
    %p93 = por %p91, %p92
    %s94 = ssub.s32 %s9, %s16
    %p95 = scmp.eq.s32.totalorder %s94, 0
    %s97 = sadd.s32 %s96, 1
    %s98 = scalar_select %p95, %s96, %s97
    %p101 = pneg %p95
    %p102 = scmp.eq.s32.totalorder %s9, 1
    %p103 = por %p101, %p102
    %p104 = scmp.ne.s32.totalorder %s96, %s99
    %p105 = scmp.eq.s32.totalorder %s9, 0
    %p106 = por %p104, %p105
    %p107 = scmp.ne.s32.totalorder %s96, %s99
    %p108 = scmp.eq.s32.totalorder %s14, 1
    %p109 = por %p107, %p108
    %p110 = scmp.ne.s32.totalorder %s99, %s100
    %p111 = scmp.eq.s32.totalorder %s14, 0
    %p112 = por %p110, %p111
    %p113 = scmp.ne.s32.totalorder %s99, %s100
    %p114 = scmp.eq.s32.totalorder %s15, 1
    %p115 = por %p113, %p114
    %p117 = scmp.ne.s32.totalorder %s100, %s116
    %p118 = scmp.eq.s32.totalorder %s15, 0
    %p119 = por %p117, %p118
    %p120 = scmp.le.s32.totalorder 1, %s9
    %p121 = scmp.lt.s32.totalorder %s9, 3
    %p122 = pnand %p120, %p121
    %p123 = pneg %p122
    // Predicated region
    $region9: #{manifold_valued_volterra.1} parent=5 // pred_check
      _
    $region10: #{manifold_valued_volterra.1} parent=5 // pred_check_branch
      %125 = sbr.rel (%p122) target = $region12
    $region11: #{manifold_valued_volterra.1} parent=5 // pred_region
      %s126 = ssub.s32 %s9, 1
      // Predicated region
      $region13: #{manifold_valued_volterra.1} parent=11 // pred_check
        %p127 = pneg %p30
      $region14: #{manifold_valued_volterra.1} parent=11 // pred_check_branch
        %129 = sbr.rel (%p127) target = $region16
      $region15: #{manifold_valued_volterra.1} parent=11 // pred_region
        _
      $region16: #{manifold_valued_volterra.1} parent=11 // pred_fallthru
        _
    $region12: #{manifold_valued_volterra.1} parent=5 // pred_fallthru
      _
    %p130 = scmp.lt.s32.totalorder %s9, 2
    // Predicated region
    $region17: #{manifold_valued_volterra.1} parent=5 // pred_check
      %p131 = pneg %p130
    $region18: #{manifold_valued_volterra.1} parent=5 // pred_check_branch
      %133 = sbr.rel (%p131) target = $region20
    $region19: #{manifold_valued_volterra.1} parent=5 // pred_region
      // Predicated region
      $region21: #{manifold_valued_volterra.1} parent=19 // pred_check
        %p134 = pneg %p50
      $region22: #{manifold_valued_volterra.1} parent=19 // pred_check_branch
        %136 = sbr.rel (%p134) target = $region24
      $region23: #{manifold_valued_volterra.1} parent=19 // pred_region
        %s137 = smul.u32 8, %s9
        %s138 = ssub.s32 18, %s137
        %p139 = scmp.lt.s32.totalorder %s138, 8
        %s140 = scalar_select %p139, %s138, 8
        %s141 = smul.u32 64, %s140
        %p142 = scmp.lt.s32.totalorder %s137, 17
        %s143 = scalar_select %p142, %s137, 17
        %s144 = smul.addr %s143, 4
        %s145 = scalar_lea.vmem %s1, %s144
        %s146 = smul.u32 8, %s9
        %s147 = ssub.s32 18, %s146
        %p148 = scmp.lt.s32.totalorder %s147, 8
        %s149 = scalar_select %p148, %s147, 8
        %s150 = smul.u32 64, %s149
      $region24: #{manifold_valued_volterra.1} parent=19 // pred_fallthru
        _
      // Predicated region
      $region25: #{manifold_valued_volterra.1} parent=19 // pred_check
        %p151 = pneg %p80
      $region26: #{manifold_valued_volterra.1} parent=19 // pred_check_branch
        %153 = sbr.rel (%p151) target = $region28
      $region27: #{manifold_valued_volterra.1} parent=19 // pred_region
        %s154 = sadd.s32 %s9, 1
        %s155 = smul.u32 %s154, 4
        %s156 = smul.u32 2, %s155
        %p157 = scmp.lt.s32.totalorder %s156, 17
        %s158 = scalar_select %p157, %s156, 17
        %s159 = smul.addr %s158, 4
        %s160 = scalar_lea.vmem %s2, %s159
        %s161 = sadd.s32 %s9, 1
        %s162 = smul.u32 %s161, 4
        %s163 = smul.u32 2, %s162
      $region28: #{manifold_valued_volterra.1} parent=19 // pred_fallthru
        _
    $region20: #{manifold_valued_volterra.1} parent=5 // pred_fallthru
      _
    %p164 = scmp.le.s32.totalorder 1, %s9
    %p165 = scmp.lt.s32.totalorder %s9, 3
    %p166 = pnand %p164, %p165
    %p167 = pneg %p166
    // Predicated region
    $region29: #{manifold_valued_volterra.1} parent=5 // pred_check
      _
    $region30: #{manifold_valued_volterra.1} parent=5 // pred_check_branch
      %169 = sbr.rel (%p166) target = $region32
    $region31: #{manifold_valued_volterra.1} parent=5 // pred_region
      %s170 = ssub.s32 %s9, 1
      %p171 = pneg %p30
      %p172 = pneg %p27
      %s173 = smul.u32 8, %s14
      %s174 = ssub.s32 18, %s173
      %p175 = scmp.lt.s32.totalorder %s174, 8
      %s176 = scalar_select %p175, %s174, 8
      %s177 = smul.u32 64, %s176
      %p178 = scmp.lt.s32.totalorder %s173, 17
      %s179 = scalar_select %p178, %s173, 17
      %s180 = smul.addr %s179, 4
      %s181 = scalar_lea.vmem %s1, %s180
      %p182 = pneg %p56
      %p183 = pneg %p53
      %s184 = sadd.s32 %s14, 1
      %s185 = smul.u32 %s184, 4
      %s186 = smul.u32 2, %s185
      %p187 = scmp.lt.s32.totalorder %s186, 17
      %s188 = scalar_select %p187, %s186, 17
      %s189 = smul.addr %s188, 4
      %s190 = scalar_lea.vmem %s2, %s189
      %p191 = pneg %p86
      %p192 = pneg %p83
      %p193 = pneg %p112
      %p194 = pneg %p109
      %s195 = smul.u32 8, %s14
      %p196 = scmp.lt.s32.totalorder %s195, 15
      %s197 = scalar_select %p196, %s195, 15
      %s198 = smul.addr %s197, 8
      %s199 = scalar_lea.vmem %s3, %s198
      %s200 = smul.u32 8, %s14
      %s201 = ssub.s32 18, %s200
      %p202 = scmp.lt.s32.totalorder %s201, 8
      %s203 = scalar_select %p202, %s201, 8
      %s204 = smul.u32 64, %s203
      %p205 = scmp.lt.s32.totalorder %s200, 17
      %s206 = scalar_select %p205, %s200, 17
      %s207 = smul.addr %s206, 4
      %s208 = scalar_lea.vmem %s1, %s207
      %s209 = smul.u32 8, %s14
      %s210 = ssub.s32 18, %s209
      %p211 = scmp.lt.s32.totalorder %s210, 8
      %s212 = scalar_select %p211, %s210, 8
      %s213 = smul.u32 64, %s212
      %s214 = sadd.s32 %s14, 1
      %s215 = smul.u32 %s214, 4
      %s216 = smul.u32 2, %s215
      %p217 = scmp.lt.s32.totalorder %s216, 17
      %s218 = scalar_select %p217, %s216, 17
      %s219 = smul.addr %s218, 4
      %s220 = scalar_lea.vmem %s2, %s219
      %s221 = sadd.s32 %s14, 1
      %s222 = smul.u32 %s221, 4
      %s223 = smul.u32 2, %s222
      %s224 = smul.u32 8, %s14
      %p225 = scmp.lt.s32.totalorder %s224, 15
      %s226 = scalar_select %p225, %s224, 15
      %s227 = smul.addr %s226, 8
      %s228 = scalar_lea.vmem %s3, %s227
      %s229 = smul.u32 8, %s14
      %v231 = vld [vmem:[%s208] sm:$0xff]
      %v232 = vld [vmem:[%s208 + $0x8] sm:$0xff]
      %v233 = vld [vmem:[%s208 + $0x10] sm:$0xff]
      %v234 = vld [vmem:[%s208 + $0x18] sm:$0xff]
      %235 = vst [vmem:[#allocation2] sm:$0xff] %v231
      %236 = vst [vmem:[#allocation2 + $0x8] sm:$0xff] %v232
      %237 = vst [vmem:[#allocation2 + $0x10] sm:$0xff] %v233
      %238 = vst [vmem:[#allocation2 + $0x18] sm:$0xff] %v234
      %v239 = vld [vmem:[%s220] sm:$0xff]
      %240 = vst [vmem:[#allocation2 + $0x20] sm:$0xff] %v239
      %v241 = vld [vmem:[#allocation2] sm:$0xff]
      %v242 = vld [vmem:[#allocation2 + $0x8] sm:$0xff]
      %v243 = vld [vmem:[%s0] sm:$0xf]
      %v244 = vld [vmem:[%s0 + $0x4] sm:$0xf]
      %v245 = vld [vmem:[%s0 + $0x8] sm:$0xf]
      %v246 = vld [vmem:[#allocation2 + $0x10] sm:$0xf]
      %s247 = scalar_lea.vmem %s0, 12
      %v248 = vld [vmem:[%s247] sm:$0xf]
      %v249 = vld [vmem:[%s247 + $0x4] sm:$0xf]
      %v250 = vld [vmem:[%s247 + $0x8] sm:$0xf]
      %v254 = vunpack.c.l.b16 %v248
      %v255 = vunpack.c.l.b16 %v249
      %v256 = vunpack.c.l.b16 %v250
      %v257 = vpack.c.b16 %v255, %v254
      %v258 = vpack.c.b16 %v256, %v256
      %v262 = vunpack.c.l.b16 %v241
      %v263 = vunpack.c.h.b16 %v241
      %v264 = vunpack.c.l.b16 %v242
      %v265 = vunpack.c.h.b16 %v242
      %v266 = vunpack.c.l.b16 %v246
      %v267 = vpack.c.b16 %v262, %v262
      %v268 = vpack.c.b16 %v263, %v263
      %v269 = vpack.c.b16 %v264, %v264
      %v270 = vpack.c.b16 %v265, %v265
      %v271 = vpack.c.b16 %v266, %v266
      %272 = vrot.lane.b32.xlu0 %v267, 127
      %v273 = vpop.permute.xlu0 %272
      %274 = vrot.lane.b32.xlu0 %v268, 127
      %v275 = vpop.permute.xlu0 %274
      %276 = vrot.lane.b32.xlu0 %v269, 127
      %v277 = vpop.permute.xlu0 %276
      %278 = vrot.lane.b32.xlu0 %v270, 127
      %v279 = vpop.permute.xlu0 %278
      %280 = vrot.lane.b32.xlu0 %v271, 127
      %v281 = vpop.permute.xlu0 %280
      %vm282 = vcmask 1039360
      %v283 = vsel %vm282, %v273, %v275
      %v284 = vsel %vm282, %v275, %v277
      %v285 = vsel %vm282, %v277, %v279
      %v286 = vsel %vm282, %v279, %v281
      %vm287 = vcmask 64512
      %v289 = vsel %vm287, %v257, 0
      %v292 = vsel %vm287, %v258, 0
      %vm294 = vcmask 1043456
      %v296 = vsel %vm294, %v283, 0
      %v299 = vsel %vm294, %v284, 0
      %v302 = vsel %vm294, %v285, 0
      %v305 = vsel %vm294, %v286, 0
      %307 = vmatprep.subr.bf16.mxu0 %v299
      %308 = vmatpush1.bf16.msra.mxu0 %v296
      %309 = vmatprep.subr.bf16.mxu0 0
      %310 = vmatpush1.bf16.msra.mxu0 0
      %311 = vmatprep.subr.bf16.mxu0 0
      %312 = vmatpush1.bf16.msra.mxu0 0
      %313 = vmatprep.subr.bf16.mxu0 0
      %314 = vmatpush1.bf16.msra.mxu0 0
      %315 = vmatprep.subr.bf16.mxu0 0
      %316 = vmatpush1.bf16.msra.mxu0 0
      %317 = vmatprep.subr.bf16.mxu0 0
      %318 = vmatpush1.bf16.msra.mxu0 0
      %319 = vmatprep.subr.bf16.mxu0 0
      %320 = vmatpush1.bf16.msra.mxu0 0
      %321 = vmatprep.subr.bf16.mxu0 0
      %322 = vmatpush1.bf16.msra.mxu0 0
      %323 = vmatprep.subr.bf16.mxu0 0
      %324 = vmatpush1.bf16.msra.mxu0 0
      %325 = vmatprep.subr.bf16.mxu0 0
      %326 = vmatpush1.bf16.msra.mxu0 0
      %327 = vmatprep.subr.bf16.mxu0 0
      %328 = vmatpush1.bf16.msra.mxu0 0
      %329 = vmatprep.subr.bf16.mxu0 0
      %330 = vmatpush1.bf16.msra.mxu0 0
      %331 = vmatprep.subr.bf16.mxu0 0
      %332 = vmatpush1.bf16.msra.mxu0 0
      %333 = vmatprep.subr.bf16.mxu0 0
      %334 = vmatpush1.bf16.msra.mxu0 0
      %335 = vmatprep.subr.bf16.mxu0 0
      %336 = vmatpush1.bf16.msra.mxu0 0
      %337 = vmatprep.subr.bf16.mxu0 0
      %338 = vmatpush1.bf16.msra.mxu0 0
      %339 = vmatprep.mubr.bf16.mxu0 0
      %340 = vmatmul.mubr.bf16.gmra.mrb[0].mxu0 %v289
      %v341 = vpop.f32.mrb[0].mxu0
      %v342 = vadd.f32 0.0, %v341
      %v343 = vpop.f32.mrb[0].mxu0
      %v344 = vadd.f32 0.0, %v343
      %v345 = vpop.f32.mrb[0].mxu0
      %v346 = vadd.f32 0.0, %v345
      %v347 = vpop.f32.mrb[0].mxu0
      %v348 = vadd.f32 0.0, %v347
      %349 = vmatprep.mubr.bf16.mxu0 0
      %350 = vmatmul.mubr.bf16.gmra.mrb[0].mxu0 %v292
      %v351 = vpop.f32.mrb[0].mxu0
      %v352 = vadd.f32 0.0, %v351
      %v353 = vpop.f32.mrb[0].mxu0
      %v354 = vadd.f32 0.0, %v353
      %v355 = vpop.f32.mrb[0].mxu0
      %v356 = vpop.f32.mrb[0].mxu0
      %357 = vdwg.mxu0
      %358 = vmatprep.subr.bf16.mxu0 %v305
      %359 = vmatpush1.bf16.msra.mxu0 %v302
      %360 = vmatprep.subr.bf16.mxu0 0
      %361 = vmatpush1.bf16.msra.mxu0 0
      %362 = vmatprep.subr.bf16.mxu0 0
      %363 = vmatpush1.bf16.msra.mxu0 0
      %364 = vmatprep.subr.bf16.mxu0 0
      %365 = vmatpush1.bf16.msra.mxu0 0
      %366 = vmatprep.subr.bf16.mxu0 0
      %367 = vmatpush1.bf16.msra.mxu0 0
      %368 = vmatprep.subr.bf16.mxu0 0
      %369 = vmatpush1.bf16.msra.mxu0 0
      %370 = vmatprep.subr.bf16.mxu0 0
      %371 = vmatpush1.bf16.msra.mxu0 0
      %372 = vmatprep.subr.bf16.mxu0 0
      %373 = vmatpush1.bf16.msra.mxu0 0
      %374 = vmatprep.subr.bf16.mxu0 0
      %375 = vmatpush1.bf16.msra.mxu0 0
      %376 = vmatprep.subr.bf16.mxu0 0
      %377 = vmatpush1.bf16.msra.mxu0 0
      %378 = vmatprep.subr.bf16.mxu0 0
      %379 = vmatpush1.bf16.msra.mxu0 0
      %380 = vmatprep.subr.bf16.mxu0 0
      %381 = vmatpush1.bf16.msra.mxu0 0
      %382 = vmatprep.subr.bf16.mxu0 0
      %383 = vmatpush1.bf16.msra.mxu0 0
      %384 = vmatprep.subr.bf16.mxu0 0
      %385 = vmatpush1.bf16.msra.mxu0 0
      %386 = vmatprep.subr.bf16.mxu0 0
      %387 = vmatpush1.bf16.msra.mxu0 0
      %388 = vmatprep.subr.bf16.mxu0 0
      %389 = vmatpush1.bf16.msra.mxu0 0
      %390 = vmatprep.mubr.bf16.mxu0 0
      %391 = vmatmul.mubr.bf16.gmra.mrb[0].mxu0 %v289
      %v392 = vpop.f32.mrb[0].mxu0
      %v393 = vadd.f32 0.0, %v392
      %v394 = vpop.f32.mrb[0].mxu0
      %v395 = vadd.f32 0.0, %v394
      %v396 = vpop.f32.mrb[0].mxu0
      %v397 = vadd.f32 0.0, %v396
      %v398 = vpop.f32.mrb[0].mxu0
      %v399 = vadd.f32 0.0, %v398
      %400 = vmatprep.mubr.bf16.mxu0 0
      %401 = vmatmul.mubr.bf16.gmra.mrb[0].mxu0 %v292
      %v402 = vpop.f32.mrb[0].mxu0
      %v403 = vadd.f32 0.0, %v402
      %v404 = vpop.f32.mrb[0].mxu0
      %v405 = vadd.f32 0.0, %v404
      %v406 = vpop.f32.mrb[0].mxu0
      %v407 = vpop.f32.mrb[0].mxu0
      %408 = vdwg.mxu0
      %v412 = vunpack.c.l.b16 %v243
      %v413 = vunpack.c.l.b16 %v244
      %v414 = vunpack.c.l.b16 %v245
      %v415 = vpack.c.b16 %v413, %v412
      %v416 = vpack.c.b16 %v414, %v414
      %v418 = vsel %vm287, %v415, 0
      %v421 = vsel %vm287, %v416, 0
      %v424 = vsel %vm294, %v267, 0
      %v427 = vsel %vm294, %v268, 0
      %v430 = vsel %vm294, %v269, 0
      %v433 = vsel %vm294, %v270, 0
      %435 = vmatprep.subr.bf16.mxu0 %v427
      %436 = vmatpush1.bf16.msra.mxu0 %v424
      %437 = vmatprep.subr.bf16.mxu0 0
      %438 = vmatpush1.bf16.msra.mxu0 0
      %439 = vmatprep.subr.bf16.mxu0 0
      %440 = vmatpush1.bf16.msra.mxu0 0
      %441 = vmatprep.subr.bf16.mxu0 0
      %442 = vmatpush1.bf16.msra.mxu0 0
      %443 = vmatprep.subr.bf16.mxu0 0
      %444 = vmatpush1.bf16.msra.mxu0 0
      %445 = vmatprep.subr.bf16.mxu0 0
      %446 = vmatpush1.bf16.msra.mxu0 0
      %447 = vmatprep.subr.bf16.mxu0 0
      %448 = vmatpush1.bf16.msra.mxu0 0
      %449 = vmatprep.subr.bf16.mxu0 0
      %450 = vmatpush1.bf16.msra.mxu0 0
      %451 = vmatprep.subr.bf16.mxu0 0
      %452 = vmatpush1.bf16.msra.mxu0 0
      %453 = vmatprep.subr.bf16.mxu0 0
      %454 = vmatpush1.bf16.msra.mxu0 0
      %455 = vmatprep.subr.bf16.mxu0 0
      %456 = vmatpush1.bf16.msra.mxu0 0
      %457 = vmatprep.subr.bf16.mxu0 0
      %458 = vmatpush1.bf16.msra.mxu0 0
      %459 = vmatprep.subr.bf16.mxu0 0
      %460 = vmatpush1.bf16.msra.mxu0 0
      %461 = vmatprep.subr.bf16.mxu0 0
      %462 = vmatpush1.bf16.msra.mxu0 0
      %463 = vmatprep.subr.bf16.mxu0 0
      %464 = vmatpush1.bf16.msra.mxu0 0
      %465 = vmatprep.subr.bf16.mxu0 0
      %466 = vmatpush1.bf16.msra.mxu0 0
      %467 = vmatprep.mubr.bf16.mxu0 0
      %468 = vmatmul.mubr.bf16.gmra.mrb[0].mxu0 %v418
      %v469 = vpop.f32.mrb[0].mxu0
      %v470 = vadd.f32 %v342, %v469
      %v471 = vpop.f32.mrb[0].mxu0
      %v472 = vadd.f32 %v344, %v471
      %v473 = vpop.f32.mrb[0].mxu0
      %v474 = vadd.f32 %v346, %v473
      %v475 = vpop.f32.mrb[0].mxu0
      %v476 = vadd.f32 %v348, %v475
      %477 = vmatprep.mubr.bf16.mxu0 0
      %478 = vmatmul.mubr.bf16.gmra.mrb[0].mxu0 %v421
      %v479 = vpop.f32.mrb[0].mxu0
      %v480 = vadd.f32 %v352, %v479
      %v481 = vpop.f32.mrb[0].mxu0
      %v482 = vadd.f32 %v354, %v481
      %v483 = vpop.f32.mrb[0].mxu0
      %v484 = vpop.f32.mrb[0].mxu0
      %485 = vdwg.mxu0
      %486 = vmatprep.subr.bf16.mxu0 %v433
      %487 = vmatpush1.bf16.msra.mxu0 %v430
      %488 = vmatprep.subr.bf16.mxu0 0
      %489 = vmatpush1.bf16.msra.mxu0 0
      %490 = vmatprep.subr.bf16.mxu0 0
      %491 = vmatpush1.bf16.msra.mxu0 0
      %492 = vmatprep.subr.bf16.mxu0 0
      %493 = vmatpush1.bf16.msra.mxu0 0
      %494 = vmatprep.subr.bf16.mxu0 0
      %495 = vmatpush1.bf16.msra.mxu0 0
      %496 = vmatprep.subr.bf16.mxu0 0
      %497 = vmatpush1.bf16.msra.mxu0 0
      %498 = vmatprep.subr.bf16.mxu0 0
      %499 = vmatpush1.bf16.msra.mxu0 0
      %500 = vmatprep.subr.bf16.mxu0 0
      %501 = vmatpush1.bf16.msra.mxu0 0
      %502 = vmatprep.subr.bf16.mxu0 0
      %503 = vmatpush1.bf16.msra.mxu0 0
      %504 = vmatprep.subr.bf16.mxu0 0
      %505 = vmatpush1.bf16.msra.mxu0 0
      %506 = vmatprep.subr.bf16.mxu0 0
      %507 = vmatpush1.bf16.msra.mxu0 0
      %508 = vmatprep.subr.bf16.mxu0 0
      %509 = vmatpush1.bf16.msra.mxu0 0
      %510 = vmatprep.subr.bf16.mxu0 0
      %511 = vmatpush1.bf16.msra.mxu0 0
      %512 = vmatprep.subr.bf16.mxu0 0
      %513 = vmatpush1.bf16.msra.mxu0 0
      %514 = vmatprep.subr.bf16.mxu0 0
      %515 = vmatpush1.bf16.msra.mxu0 0
      %516 = vmatprep.subr.bf16.mxu0 0
      %517 = vmatpush1.bf16.msra.mxu0 0
      %518 = vmatprep.mubr.bf16.mxu0 0
      %519 = vmatmul.mubr.bf16.gmra.mrb[0].mxu0 %v418
      %v520 = vpop.f32.mrb[0].mxu0
      %v521 = vadd.f32 %v393, %v520
      %v522 = vpop.f32.mrb[0].mxu0
      %v523 = vadd.f32 %v395, %v522
      %v524 = vpop.f32.mrb[0].mxu0
      %v525 = vadd.f32 %v397, %v524
      %v526 = vpop.f32.mrb[0].mxu0
      %v527 = vadd.f32 %v399, %v526
      %528 = vmatprep.mubr.bf16.mxu0 0
      %529 = vmatmul.mubr.bf16.gmra.mrb[0].mxu0 %v421
      %v530 = vpop.f32.mrb[0].mxu0
      %v531 = vadd.f32 %v403, %v530
      %v532 = vpop.f32.mrb[0].mxu0
      %v533 = vadd.f32 %v405, %v532
      %v534 = vpop.f32.mrb[0].mxu0
      %v535 = vpop.f32.mrb[0].mxu0
      %536 = vdwg.mxu0
      %s537 = scalar_lea.vmem %s0, 24
      %v538 = vld [vmem:[%s537] sm:$0xf]
      %v539 = vld [vmem:[%s537 + $0x4] sm:$0xf]
      %v540 = vld [vmem:[%s537 + $0x8] sm:$0xf]
      %v544 = vunpack.c.l.b16 %v538
      %v545 = vunpack.c.l.b16 %v539
      %v546 = vunpack.c.l.b16 %v540
      %v547 = vpack.c.b16 %v545, %v544
      %v548 = vpack.c.b16 %v546, %v546
      %549 = vrot.lane.b32.xlu0 %v267, 126
      %v550 = vpop.permute.xlu0 %549
      %551 = vrot.lane.b32.xlu0 %v268, 126
      %v552 = vpop.permute.xlu0 %551
      %553 = vrot.lane.b32.xlu0 %v269, 126
      %v554 = vpop.permute.xlu0 %553
      %555 = vrot.lane.b32.xlu0 %v270, 126
      %v556 = vpop.permute.xlu0 %555
      %557 = vrot.lane.b32.xlu0 %v271, 126
      %v558 = vpop.permute.xlu0 %557
      %vm559 = vcmask 1031168
      %v560 = vsel %vm559, %v550, %v552
      %v561 = vsel %vm559, %v552, %v554
      %v562 = vsel %vm559, %v554, %v556
      %v563 = vsel %vm559, %v556, %v558
      %v565 = vsel %vm287, %v547, 0
      %v568 = vsel %vm287, %v548, 0
      %v571 = vsel %vm294, %v560, 0
      %v574 = vsel %vm294, %v561, 0
      %v577 = vsel %vm294, %v562, 0
      %v580 = vsel %vm294, %v563, 0
      %582 = vmatprep.subr.bf16.mxu0 %v574
      %583 = vmatpush1.bf16.msra.mxu0 %v571
      %584 = vmatprep.subr.bf16.mxu0 0
      %585 = vmatpush1.bf16.msra.mxu0 0
      %586 = vmatprep.subr.bf16.mxu0 0
      %587 = vmatpush1.bf16.msra.mxu0 0
      %588 = vmatprep.subr.bf16.mxu0 0
      %589 = vmatpush1.bf16.msra.mxu0 0
      %590 = vmatprep.subr.bf16.mxu0 0
      %591 = vmatpush1.bf16.msra.mxu0 0
      %592 = vmatprep.subr.bf16.mxu0 0
      %593 = vmatpush1.bf16.msra.mxu0 0
      %594 = vmatprep.subr.bf16.mxu0 0
      %595 = vmatpush1.bf16.msra.mxu0 0
      %596 = vmatprep.subr.bf16.mxu0 0
      %597 = vmatpush1.bf16.msra.mxu0 0
      %598 = vmatprep.subr.bf16.mxu0 0
      %599 = vmatpush1.bf16.msra.mxu0 0
      %600 = vmatprep.subr.bf16.mxu0 0
      %601 = vmatpush1.bf16.msra.mxu0 0
      %602 = vmatprep.subr.bf16.mxu0 0
      %603 = vmatpush1.bf16.msra.mxu0 0
      %604 = vmatprep.subr.bf16.mxu0 0
      %605 = vmatpush1.bf16.msra.mxu0 0
      %606 = vmatprep.subr.bf16.mxu0 0
      %607 = vmatpush1.bf16.msra.mxu0 0
      %608 = vmatprep.subr.bf16.mxu0 0
      %609 = vmatpush1.bf16.msra.mxu0 0
      %610 = vmatprep.subr.bf16.mxu0 0
      %611 = vmatpush1.bf16.msra.mxu0 0
      %612 = vmatprep.subr.bf16.mxu0 0
      %613 = vmatpush1.bf16.msra.mxu0 0
      %614 = vmatprep.mubr.bf16.mxu0 0
      %615 = vmatmul.mubr.bf16.gmra.mrb[0].mxu0 %v565
      %v616 = vpop.f32.mrb[0].mxu0
      %v617 = vadd.f32 0.0, %v616
      %v618 = vpop.f32.mrb[0].mxu0
      %v619 = vadd.f32 0.0, %v618
      %v620 = vpop.f32.mrb[0].mxu0
      %v621 = vadd.f32 0.0, %v620
      %v622 = vpop.f32.mrb[0].mxu0
      %v623 = vadd.f32 0.0, %v622
      %624 = vmatprep.mubr.bf16.mxu0 0
      %625 = vmatmul.mubr.bf16.gmra.mrb[0].mxu0 %v568
      %v626 = vpop.f32.mrb[0].mxu0
      %v627 = vadd.f32 0.0, %v626
      %v628 = vpop.f32.mrb[0].mxu0
      %v629 = vadd.f32 0.0, %v628
      %v630 = vpop.f32.mrb[0].mxu0
      %v631 = vpop.f32.mrb[0].mxu0
      %632 = vdwg.mxu0
      %633 = vmatprep.subr.bf16.mxu0 %v580
      %634 = vmatpush1.bf16.msra.mxu0 %v577
      %635 = vmatprep.subr.bf16.mxu0 0
      %636 = vmatpush1.bf16.msra.mxu0 0
      %637 = vmatprep.subr.bf16.mxu0 0
      %638 = vmatpush1.bf16.msra.mxu0 0
      %639 = vmatprep.subr.bf16.mxu0 0
      %640 = vmatpush1.bf16.msra.mxu0 0
      %641 = vmatprep.subr.bf16.mxu0 0
      %642 = vmatpush1.bf16.msra.mxu0 0
      %643 = vmatprep.subr.bf16.mxu0 0
      %644 = vmatpush1.bf16.msra.mxu0 0
      %645 = vmatprep.subr.bf16.mxu0 0
      %646 = vmatpush1.bf16.msra.mxu0 0
      %647 = vmatprep.subr.bf16.mxu0 0
      %648 = vmatpush1.bf16.msra.mxu0 0
      %649 = vmatprep.subr.bf16.mxu0 0
      %650 = vmatpush1.bf16.msra.mxu0 0
      %651 = vmatprep.subr.bf16.mxu0 0
      %652 = vmatpush1.bf16.msra.mxu0 0
      %653 = vmatprep.subr.bf16.mxu0 0
      %654 = vmatpush1.bf16.msra.mxu0 0
      %655 = vmatprep.subr.bf16.mxu0 0
      %656 = vmatpush1.bf16.msra.mxu0 0
      %657 = vmatprep.subr.bf16.mxu0 0
      %658 = vmatpush1.bf16.msra.mxu0 0
      %659 = vmatprep.subr.bf16.mxu0 0
      %660 = vmatpush1.bf16.msra.mxu0 0
      %661 = vmatprep.subr.bf16.mxu0 0
      %662 = vmatpush1.bf16.msra.mxu0 0
      %663 = vmatprep.subr.bf16.mxu0 0
      %664 = vmatpush1.bf16.msra.mxu0 0
      %665 = vmatprep.mubr.bf16.mxu0 0
      %666 = vmatmul.mubr.bf16.gmra.mrb[0].mxu0 %v565
      %v667 = vpop.f32.mrb[0].mxu0
      %v668 = vadd.f32 0.0, %v667
      %v669 = vpop.f32.mrb[0].mxu0
      %v670 = vadd.f32 0.0, %v669
      %v671 = vpop.f32.mrb[0].mxu0
      %v672 = vadd.f32 0.0, %v671
      %v673 = vpop.f32.mrb[0].mxu0
      %v674 = vadd.f32 0.0, %v673
      %675 = vmatprep.mubr.bf16.mxu0 0
      %676 = vmatmul.mubr.bf16.gmra.mrb[0].mxu0 %v568
      %v677 = vpop.f32.mrb[0].mxu0
      %v678 = vadd.f32 0.0, %v677
      %v679 = vpop.f32.mrb[0].mxu0
      %v680 = vadd.f32 0.0, %v679
      %v681 = vpop.f32.mrb[0].mxu0
      %v682 = vpop.f32.mrb[0].mxu0
      %683 = vdwg.mxu0
      %v684 = vadd.f32 %v470, %v617
      %v685 = vadd.f32 %v472, %v619
      %v686 = vadd.f32 %v521, %v668
      %v687 = vadd.f32 %v523, %v670
      %v688 = vadd.f32 %v474, %v621
      %v689 = vadd.f32 %v476, %v623
      %v690 = vadd.f32 %v525, %v672
      %v691 = vadd.f32 %v527, %v674
      %v692 = vadd.f32 %v480, %v627
      %v693 = vadd.f32 %v482, %v629
      %v694 = vadd.f32 %v531, %v678
      %v695 = vadd.f32 %v533, %v680
      %s696 = scalar_lea.vmem %s0, 36
      %v697 = vld [vmem:[%s696] sm:$0xf]
      %v698 = vld [vmem:[%s696 + $0x4] sm:$0xf]
      %v699 = vld [vmem:[%s696 + $0x8] sm:$0xf]
      %v703 = vunpack.c.l.b16 %v697
      %v704 = vunpack.c.l.b16 %v698
      %v705 = vunpack.c.l.b16 %v699
      %v706 = vpack.c.b16 %v704, %v703
      %v707 = vpack.c.b16 %v705, %v705
      %708 = vrot.lane.b32.xlu0 %v267, 118
      %v709 = vpop.permute.xlu0 %708
      %710 = vrot.lane.b32.xlu0 %v268, 118
      %v711 = vpop.permute.xlu0 %710
      %712 = vrot.lane.b32.xlu0 %v269, 118
      %v713 = vpop.permute.xlu0 %712
      %714 = vrot.lane.b32.xlu0 %v270, 118
      %v715 = vpop.permute.xlu0 %714
      %716 = vrot.lane.b32.xlu0 %v271, 118
      %v717 = vpop.permute.xlu0 %716
      %vm718 = vcmask 965632
      %v719 = vsel %vm718, %v709, %v711
      %v720 = vsel %vm718, %v711, %v713
      %v721 = vsel %vm718, %v713, %v715
      %v722 = vsel %vm718, %v715, %v717
      %v724 = vsel %vm287, %v706, 0
      %v727 = vsel %vm287, %v707, 0
      %v730 = vsel %vm294, %v719, 0
      %v733 = vsel %vm294, %v720, 0
      %v736 = vsel %vm294, %v721, 0
      %v739 = vsel %vm294, %v722, 0
      %741 = vmatprep.subr.bf16.mxu0 %v733
      %742 = vmatpush1.bf16.msra.mxu0 %v730
      %743 = vmatprep.subr.bf16.mxu0 0
      %744 = vmatpush1.bf16.msra.mxu0 0
      %745 = vmatprep.subr.bf16.mxu0 0
      %746 = vmatpush1.bf16.msra.mxu0 0
      %747 = vmatprep.subr.bf16.mxu0 0
      %748 = vmatpush1.bf16.msra.mxu0 0
      %749 = vmatprep.subr.bf16.mxu0 0
      %750 = vmatpush1.bf16.msra.mxu0 0
      %751 = vmatprep.subr.bf16.mxu0 0
      %752 = vmatpush1.bf16.msra.mxu0 0
      %753 = vmatprep.subr.bf16.mxu0 0
      %754 = vmatpush1.bf16.msra.mxu0 0
      %755 = vmatprep.subr.bf16.mxu0 0
      %756 = vmatpush1.bf16.msra.mxu0 0
      %757 = vmatprep.subr.bf16.mxu0 0
      %758 = vmatpush1.bf16.msra.mxu0 0
      %759 = vmatprep.subr.bf16.mxu0 0
      %760 = vmatpush1.bf16.msra.mxu0 0
      %761 = vmatprep.subr.bf16.mxu0 0
      %762 = vmatpush1.bf16.msra.mxu0 0
      %763 = vmatprep.subr.bf16.mxu0 0
      %764 = vmatpush1.bf16.msra.mxu0 0
      %765 = vmatprep.subr.bf16.mxu0 0
      %766 = vmatpush1.bf16.msra.mxu0 0
      %767 = vmatprep.subr.bf16.mxu0 0
      %768 = vmatpush1.bf16.msra.mxu0 0
      %769 = vmatprep.subr.bf16.mxu0 0
      %770 = vmatpush1.bf16.msra.mxu0 0
      %771 = vmatprep.subr.bf16.mxu0 0
      %772 = vmatpush1.bf16.msra.mxu0 0
      %773 = vmatprep.mubr.bf16.mxu0 0
      %774 = vmatmul.mubr.bf16.gmra.mrb[0].mxu0 %v724
      %v775 = vpop.f32.mrb[0].mxu0
      %v776 = vadd.f32 0.0, %v775
      %v777 = vpop.f32.mrb[0].mxu0
      %v778 = vadd.f32 0.0, %v777
      %v779 = vpop.f32.mrb[0].mxu0
      %v780 = vadd.f32 0.0, %v779
      %v781 = vpop.f32.mrb[0].mxu0
      %v782 = vadd.f32 0.0, %v781
      %783 = vmatprep.mubr.bf16.mxu0 0
      %784 = vmatmul.mubr.bf16.gmra.mrb[0].mxu0 %v727
      %v785 = vpop.f32.mrb[0].mxu0
      %v786 = vadd.f32 0.0, %v785
      %v787 = vpop.f32.mrb[0].mxu0
      %v788 = vadd.f32 0.0, %v787
      %v789 = vpop.f32.mrb[0].mxu0
      %v790 = vpop.f32.mrb[0].mxu0
      %791 = vdwg.mxu0
      %792 = vmatprep.subr.bf16.mxu0 %v739
      %793 = vmatpush1.bf16.msra.mxu0 %v736
      %794 = vmatprep.subr.bf16.mxu0 0
      %795 = vmatpush1.bf16.msra.mxu0 0
      %796 = vmatprep.subr.bf16.mxu0 0
      %797 = vmatpush1.bf16.msra.mxu0 0
      %798 = vmatprep.subr.bf16.mxu0 0
      %799 = vmatpush1.bf16.msra.mxu0 0
      %800 = vmatprep.subr.bf16.mxu0 0
      %801 = vmatpush1.bf16.msra.mxu0 0
      %802 = vmatprep.subr.bf16.mxu0 0
      %803 = vmatpush1.bf16.msra.mxu0 0
      %804 = vmatprep.subr.bf16.mxu0 0
      %805 = vmatpush1.bf16.msra.mxu0 0
      %806 = vmatprep.subr.bf16.mxu0 0
      %807 = vmatpush1.bf16.msra.mxu0 0
      %808 = vmatprep.subr.bf16.mxu0 0
      %809 = vmatpush1.bf16.msra.mxu0 0
      %810 = vmatprep.subr.bf16.mxu0 0
      %811 = vmatpush1.bf16.msra.mxu0 0
      %812 = vmatprep.subr.bf16.mxu0 0
      %813 = vmatpush1.bf16.msra.mxu0 0
      %814 = vmatprep.subr.bf16.mxu0 0
      %815 = vmatpush1.bf16.msra.mxu0 0
      %816 = vmatprep.subr.bf16.mxu0 0
      %817 = vmatpush1.bf16.msra.mxu0 0
      %818 = vmatprep.subr.bf16.mxu0 0
      %819 = vmatpush1.bf16.msra.mxu0 0
      %820 = vmatprep.subr.bf16.mxu0 0
      %821 = vmatpush1.bf16.msra.mxu0 0
      %822 = vmatprep.subr.bf16.mxu0 0
      %823 = vmatpush1.bf16.msra.mxu0 0
      %824 = vmatprep.mubr.bf16.mxu0 0
      %825 = vmatmul.mubr.bf16.gmra.mrb[0].mxu0 %v724
      %v826 = vpop.f32.mrb[0].mxu0
      %v827 = vadd.f32 0.0, %v826
      %v828 = vpop.f32.mrb[0].mxu0
      %v829 = vadd.f32 0.0, %v828
      %v830 = vpop.f32.mrb[0].mxu0
      %v831 = vadd.f32 0.0, %v830
      %v832 = vpop.f32.mrb[0].mxu0
      %v833 = vadd.f32 0.0, %v832
      %834 = vmatprep.mubr.bf16.mxu0 0
      %835 = vmatmul.mubr.bf16.gmra.mrb[0].mxu0 %v727
      %v836 = vpop.f32.mrb[0].mxu0
      %v837 = vadd.f32 0.0, %v836
      %v838 = vpop.f32.mrb[0].mxu0
      %v839 = vadd.f32 0.0, %v838
      %v840 = vpop.f32.mrb[0].mxu0
      %v841 = vpop.f32.mrb[0].mxu0
      %842 = vdwg.mxu0
      %v843 = vadd.f32 %v684, %v776
      %v844 = vadd.f32 %v685, %v778
      %v845 = vadd.f32 %v686, %v827
      %v846 = vadd.f32 %v687, %v829
      %v847 = vadd.f32 %v688, %v780
      %v848 = vadd.f32 %v689, %v782
      %v849 = vadd.f32 %v690, %v831
      %v850 = vadd.f32 %v691, %v833
      %v851 = vadd.f32 %v692, %v786
      %v852 = vadd.f32 %v693, %v788
      %v853 = vadd.f32 %v694, %v837
      %v854 = vadd.f32 %v695, %v839
      %s855 = scalar_lea.vmem %s0, 48
      %v856 = vld [vmem:[%s855] sm:$0xf]
      %v857 = vld [vmem:[%s855 + $0x4] sm:$0xf]
      %v858 = vld [vmem:[%s855 + $0x8] sm:$0xf]
      %v862 = vunpack.c.l.b16 %v856
      %v863 = vunpack.c.l.b16 %v857
      %v864 = vunpack.c.l.b16 %v858
      %v865 = vpack.c.b16 %v863, %v862
      %v866 = vpack.c.b16 %v864, %v864
      %867 = vrot.lane.b32.xlu0 %v267, 117
      %v868 = vpop.permute.xlu0 %867
      %869 = vrot.lane.b32.xlu0 %v268, 117
      %v870 = vpop.permute.xlu0 %869
      %871 = vrot.lane.b32.xlu0 %v269, 117
      %v872 = vpop.permute.xlu0 %871
      %873 = vrot.lane.b32.xlu0 %v270, 117
      %v874 = vpop.permute.xlu0 %873
      %875 = vrot.lane.b32.xlu0 %v271, 117
      %v876 = vpop.permute.xlu0 %875
      %vm877 = vcmask 957440
      %v878 = vsel %vm877, %v868, %v870
      %v879 = vsel %vm877, %v870, %v872
      %v880 = vsel %vm877, %v872, %v874
      %v881 = vsel %vm877, %v874, %v876
      %v883 = vsel %vm287, %v865, 0
      %v886 = vsel %vm287, %v866, 0
      %v889 = vsel %vm294, %v878, 0
      %v892 = vsel %vm294, %v879, 0
      %v895 = vsel %vm294, %v880, 0
      %v898 = vsel %vm294, %v881, 0
      %900 = vmatprep.subr.bf16.mxu0 %v892
      %901 = vmatpush1.bf16.msra.mxu0 %v889
      %902 = vmatprep.subr.bf16.mxu0 0
      %903 = vmatpush1.bf16.msra.mxu0 0
      %904 = vmatprep.subr.bf16.mxu0 0
      %905 = vmatpush1.bf16.msra.mxu0 0
      %906 = vmatprep.subr.bf16.mxu0 0
      %907 = vmatpush1.bf16.msra.mxu0 0
      %908 = vmatprep.subr.bf16.mxu0 0
      %909 = vmatpush1.bf16.msra.mxu0 0
      %910 = vmatprep.subr.bf16.mxu0 0
      %911 = vmatpush1.bf16.msra.mxu0 0
      %912 = vmatprep.subr.bf16.mxu0 0
      %913 = vmatpush1.bf16.msra.mxu0 0
      %914 = vmatprep.subr.bf16.mxu0 0
      %915 = vmatpush1.bf16.msra.mxu0 0
      %916 = vmatprep.subr.bf16.mxu0 0
      %917 = vmatpush1.bf16.msra.mxu0 0
      %918 = vmatprep.subr.bf16.mxu0 0
      %919 = vmatpush1.bf16.msra.mxu0 0
      %920 = vmatprep.subr.bf16.mxu0 0
      %921 = vmatpush1.bf16.msra.mxu0 0
      %922 = vmatprep.subr.bf16.mxu0 0
      %923 = vmatpush1.bf16.msra.mxu0 0
      %924 = vmatprep.subr.bf16.mxu0 0
      %925 = vmatpush1.bf16.msra.mxu0 0
      %926 = vmatprep.subr.bf16.mxu0 0
      %927 = vmatpush1.bf16.msra.mxu0 0
      %928 = vmatprep.subr.bf16.mxu0 0
      %929 = vmatpush1.bf16.msra.mxu0 0
      %930 = vmatprep.subr.bf16.mxu0 0
      %931 = vmatpush1.bf16.msra.mxu0 0
      %932 = vmatprep.mubr.bf16.mxu0 0
      %933 = vmatmul.mubr.bf16.gmra.mrb[0].mxu0 %v883
      %v934 = vpop.f32.mrb[0].mxu0
      %v935 = vadd.f32 0.0, %v934
      %v936 = vpop.f32.mrb[0].mxu0
      %v937 = vadd.f32 0.0, %v936
      %v938 = vpop.f32.mrb[0].mxu0
      %v939 = vadd.f32 0.0, %v938
      %v940 = vpop.f32.mrb[0].mxu0
      %v941 = vadd.f32 0.0, %v940
      %942 = vmatprep.mubr.bf16.mxu0 0
      %943 = vmatmul.mubr.bf16.gmra.mrb[0].mxu0 %v886
      %v944 = vpop.f32.mrb[0].mxu0
      %v945 = vadd.f32 0.0, %v944
      %v946 = vpop.f32.mrb[0].mxu0
      %v947 = vadd.f32 0.0, %v946
      %v948 = vpop.f32.mrb[0].mxu0
      %v949 = vpop.f32.mrb[0].mxu0
      %950 = vdwg.mxu0
      %951 = vmatprep.subr.bf16.mxu0 %v898
      %952 = vmatpush1.bf16.msra.mxu0 %v895
      %953 = vmatprep.subr.bf16.mxu0 0
      %954 = vmatpush1.bf16.msra.mxu0 0
      %955 = vmatprep.subr.bf16.mxu0 0
      %956 = vmatpush1.bf16.msra.mxu0 0
      %957 = vmatprep.subr.bf16.mxu0 0
      %958 = vmatpush1.bf16.msra.mxu0 0
      %959 = vmatprep.subr.bf16.mxu0 0
      %960 = vmatpush1.bf16.msra.mxu0 0
      %961 = vmatprep.subr.bf16.mxu0 0
      %962 = vmatpush1.bf16.msra.mxu0 0
      %963 = vmatprep.subr.bf16.mxu0 0
      %964 = vmatpush1.bf16.msra.mxu0 0
      %965 = vmatprep.subr.bf16.mxu0 0
      %966 = vmatpush1.bf16.msra.mxu0 0
      %967 = vmatprep.subr.bf16.mxu0 0
      %968 = vmatpush1.bf16.msra.mxu0 0
      %969 = vmatprep.subr.bf16.mxu0 0
      %970 = vmatpush1.bf16.msra.mxu0 0
      %971 = vmatprep.subr.bf16.mxu0 0
      %972 = vmatpush1.bf16.msra.mxu0 0
      %973 = vmatprep.subr.bf16.mxu0 0
      %974 = vmatpush1.bf16.msra.mxu0 0
      %975 = vmatprep.subr.bf16.mxu0 0
      %976 = vmatpush1.bf16.msra.mxu0 0
      %977 = vmatprep.subr.bf16.mxu0 0
      %978 = vmatpush1.bf16.msra.mxu0 0
      %979 = vmatprep.subr.bf16.mxu0 0
      %980 = vmatpush1.bf16.msra.mxu0 0
      %981 = vmatprep.subr.bf16.mxu0 0
      %982 = vmatpush1.bf16.msra.mxu0 0
      %983 = vmatprep.mubr.bf16.mxu0 0
      %984 = vmatmul.mubr.bf16.gmra.mrb[0].mxu0 %v883
      %v985 = vpop.f32.mrb[0].mxu0
      %v986 = vadd.f32 0.0, %v985
      %v987 = vpop.f32.mrb[0].mxu0
      %v988 = vadd.f32 0.0, %v987
      %v989 = vpop.f32.mrb[0].mxu0
      %v990 = vadd.f32 0.0, %v989
      %v991 = vpop.f32.mrb[0].mxu0
      %v992 = vadd.f32 0.0, %v991
      %993 = vmatprep.mubr.bf16.mxu0 0
      %994 = vmatmul.mubr.bf16.gmra.mrb[0].mxu0 %v886
      %v995 = vpop.f32.mrb[0].mxu0
      %v996 = vadd.f32 0.0, %v995
      %v997 = vpop.f32.mrb[0].mxu0
      %v998 = vadd.f32 0.0, %v997
      %v999 = vpop.f32.mrb[0].mxu0
      %v1000 = vpop.f32.mrb[0].mxu0
      %1001 = vdwg.mxu0
      %v1002 = vadd.f32 %v843, %v935
      %v1003 = vadd.f32 %v844, %v937
      %v1004 = vadd.f32 %v845, %v986
      %v1005 = vadd.f32 %v846, %v988
      %v1006 = vadd.f32 %v847, %v939
      %v1007 = vadd.f32 %v848, %v941
      %v1008 = vadd.f32 %v849, %v990
      %v1009 = vadd.f32 %v850, %v992
      %v1010 = vadd.f32 %v851, %v945
      %v1011 = vadd.f32 %v852, %v947
      %v1012 = vadd.f32 %v853, %v996
      %v1013 = vadd.f32 %v854, %v998
      %s1014 = scalar_lea.vmem %s0, 60
      %v1015 = vld [vmem:[%s1014] sm:$0xf]
      %v1016 = vld [vmem:[%s1014 + $0x4] sm:$0xf]
      %v1017 = vld [vmem:[%s1014 + $0x8] sm:$0xf]
      %v1021 = vunpack.c.l.b16 %v1015
      %v1022 = vunpack.c.l.b16 %v1016
      %v1023 = vunpack.c.l.b16 %v1017
      %v1024 = vpack.c.b16 %v1022, %v1021
      %v1025 = vpack.c.b16 %v1023, %v1023
      %1026 = vrot.lane.b32.xlu0 %v267, 116
      %v1027 = vpop.permute.xlu0 %1026
      %1028 = vrot.lane.b32.xlu0 %v268, 116
      %v1029 = vpop.permute.xlu0 %1028
      %1030 = vrot.lane.b32.xlu0 %v269, 116
      %v1031 = vpop.permute.xlu0 %1030
      %1032 = vrot.lane.b32.xlu0 %v270, 116
      %v1033 = vpop.permute.xlu0 %1032
      %1034 = vrot.lane.b32.xlu0 %v271, 116
      %v1035 = vpop.permute.xlu0 %1034
      %vm1036 = vcmask 949248
      %v1037 = vsel %vm1036, %v1027, %v1029
      %v1038 = vsel %vm1036, %v1029, %v1031
      %v1039 = vsel %vm1036, %v1031, %v1033
      %v1040 = vsel %vm1036, %v1033, %v1035
      %v1042 = vsel %vm287, %v1024, 0
      %v1045 = vsel %vm287, %v1025, 0
      %v1048 = vsel %vm294, %v1037, 0
      %v1051 = vsel %vm294, %v1038, 0
      %v1054 = vsel %vm294, %v1039, 0
      %v1057 = vsel %vm294, %v1040, 0
      %1059 = vmatprep.subr.bf16.mxu0 %v1051
      %1060 = vmatpush1.bf16.msra.mxu0 %v1048
      %1061 = vmatprep.subr.bf16.mxu0 0
      %1062 = vmatpush1.bf16.msra.mxu0 0
      %1063 = vmatprep.subr.bf16.mxu0 0
      %1064 = vmatpush1.bf16.msra.mxu0 0
      %1065 = vmatprep.subr.bf16.mxu0 0
      %1066 = vmatpush1.bf16.msra.mxu0 0
      %1067 = vmatprep.subr.bf16.mxu0 0
      %1068 = vmatpush1.bf16.msra.mxu0 0
      %1069 = vmatprep.subr.bf16.mxu0 0
      %1070 = vmatpush1.bf16.msra.mxu0 0
      %1071 = vmatprep.subr.bf16.mxu0 0
      %1072 = vmatpush1.bf16.msra.mxu0 0
      %1073 = vmatprep.subr.bf16.mxu0 0
      %1074 = vmatpush1.bf16.msra.mxu0 0
      %1075 = vmatprep.subr.bf16.mxu0 0
      %1076 = vmatpush1.bf16.msra.mxu0 0
      %1077 = vmatprep.subr.bf16.mxu0 0
      %1078 = vmatpush1.bf16.msra.mxu0 0
      %1079 = vmatprep.subr.bf16.mxu0 0
      %1080 = vmatpush1.bf16.msra.mxu0 0
      %1081 = vmatprep.subr.bf16.mxu0 0
      %1082 = vmatpush1.bf16.msra.mxu0 0
      %1083 = vmatprep.subr.bf16.mxu0 0
      %1084 = vmatpush1.bf16.msra.mxu0 0
      %1085 = vmatprep.subr.bf16.mxu0 0
      %1086 = vmatpush1.bf16.msra.mxu0 0
      %1087 = vmatprep.subr.bf16.mxu0 0
      %1088 = vmatpush1.bf16.msra.mxu0 0
      %1089 = vmatprep.subr.bf16.mxu0 0
      %1090 = vmatpush1.bf16.msra.mxu0 0
      %1091 = vmatprep.mubr.bf16.mxu0 0
      %1092 = vmatmul.mubr.bf16.gmra.mrb[0].mxu0 %v1042
      %v1093 = vpop.f32.mrb[0].mxu0
      %v1094 = vadd.f32 0.0, %v1093
      %v1095 = vpop.f32.mrb[0].mxu0
      %v1096 = vadd.f32 0.0, %v1095
      %v1097 = vpop.f32.mrb[0].mxu0
      %v1098 = vadd.f32 0.0, %v1097
      %v1099 = vpop.f32.mrb[0].mxu0
      %v1100 = vadd.f32 0.0, %v1099
      %1101 = vmatprep.mubr.bf16.mxu0 0
      %1102 = vmatmul.mubr.bf16.gmra.mrb[0].mxu0 %v1045
      %v1103 = vpop.f32.mrb[0].mxu0
      %v1104 = vadd.f32 0.0, %v1103
      %v1105 = vpop.f32.mrb[0].mxu0
      %v1106 = vadd.f32 0.0, %v1105
      %v1107 = vpop.f32.mrb[0].mxu0
      %v1108 = vpop.f32.mrb[0].mxu0
      %1109 = vdwg.mxu0
      %1110 = vmatprep.subr.bf16.mxu0 %v1057
      %1111 = vmatpush1.bf16.msra.mxu0 %v1054
      %1112 = vmatprep.subr.bf16.mxu0 0
      %1113 = vmatpush1.bf16.msra.mxu0 0
      %1114 = vmatprep.subr.bf16.mxu0 0
      %1115 = vmatpush1.bf16.msra.mxu0 0
      %1116 = vmatprep.subr.bf16.mxu0 0
      %1117 = vmatpush1.bf16.msra.mxu0 0
      %1118 = vmatprep.subr.bf16.mxu0 0
      %1119 = vmatpush1.bf16.msra.mxu0 0
      %1120 = vmatprep.subr.bf16.mxu0 0
      %1121 = vmatpush1.bf16.msra.mxu0 0
      %1122 = vmatprep.subr.bf16.mxu0 0
      %1123 = vmatpush1.bf16.msra.mxu0 0
      %1124 = vmatprep.subr.bf16.mxu0 0
      %1125 = vmatpush1.bf16.msra.mxu0 0
      %1126 = vmatprep.subr.bf16.mxu0 0
      %1127 = vmatpush1.bf16.msra.mxu0 0
      %1128 = vmatprep.subr.bf16.mxu0 0
      %1129 = vmatpush1.bf16.msra.mxu0 0
      %1130 = vmatprep.subr.bf16.mxu0 0
      %1131 = vmatpush1.bf16.msra.mxu0 0
      %1132 = vmatprep.subr.bf16.mxu0 0
      %1133 = vmatpush1.bf16.msra.mxu0 0
      %1134 = vmatprep.subr.bf16.mxu0 0
      %1135 = vmatpush1.bf16.msra.mxu0 0
      %1136 = vmatprep.subr.bf16.mxu0 0
      %1137 = vmatpush1.bf16.msra.mxu0 0
      %1138 = vmatprep.subr.bf16.mxu0 0
      %1139 = vmatpush1.bf16.msra.mxu0 0
      %1140 = vmatprep.subr.bf16.mxu0 0
      %1141 = vmatpush1.bf16.msra.mxu0 0
      %1142 = vmatprep.mubr.bf16.mxu0 0
      %1143 = vmatmul.mubr.bf16.gmra.mrb[0].mxu0 %v1042
      %v1144 = vpop.f32.mrb[0].mxu0
      %v1145 = vadd.f32 0.0, %v1144
      %v1146 = vpop.f32.mrb[0].mxu0
      %v1147 = vadd.f32 0.0, %v1146
      %v1148 = vpop.f32.mrb[0].mxu0
      %v1149 = vadd.f32 0.0, %v1148
      %v1150 = vpop.f32.mrb[0].mxu0
      %v1151 = vadd.f32 0.0, %v1150
      %1152 = vmatprep.mubr.bf16.mxu0 0
      %1153 = vmatmul.mubr.bf16.gmra.mrb[0].mxu0 %v1045
      %v1154 = vpop.f32.mrb[0].mxu0
      %v1155 = vadd.f32 0.0, %v1154
      %v1156 = vpop.f32.mrb[0].mxu0
      %v1157 = vadd.f32 0.0, %v1156
      %v1158 = vpop.f32.mrb[0].mxu0
      %v1159 = vpop.f32.mrb[0].mxu0
      %1160 = vdwg.mxu0
      %v1161 = vadd.f32 %v1002, %v1094
      %v1162 = vadd.f32 %v1003, %v1096
      %v1163 = vadd.f32 %v1004, %v1145
      %v1164 = vadd.f32 %v1005, %v1147
      %v1165 = vadd.f32 %v1006, %v1098
      %v1166 = vadd.f32 %v1007, %v1100
      %v1167 = vadd.f32 %v1008, %v1149
      %v1168 = vadd.f32 %v1009, %v1151
      %v1169 = vadd.f32 %v1010, %v1104
      %v1170 = vadd.f32 %v1011, %v1106
      %v1171 = vadd.f32 %v1012, %v1155
      %v1172 = vadd.f32 %v1013, %v1157
      %s1173 = scalar_lea.vmem %s0, 72
      %v1174 = vld [vmem:[%s1173] sm:$0xf]
      %v1175 = vld [vmem:[%s1173 + $0x4] sm:$0xf]
      %v1176 = vld [vmem:[%s1173 + $0x8] sm:$0xf]
      %v1180 = vunpack.c.l.b16 %v1174
      %v1181 = vunpack.c.l.b16 %v1175
      %v1182 = vunpack.c.l.b16 %v1176
      %v1183 = vpack.c.b16 %v1181, %v1180
      %v1184 = vpack.c.b16 %v1182, %v1182
      %1185 = vrot.lane.b32.xlu0 %v267, 108
      %v1186 = vpop.permute.xlu0 %1185
      %1187 = vrot.lane.b32.xlu0 %v268, 108
      %v1188 = vpop.permute.xlu0 %1187
      %1189 = vrot.lane.b32.xlu0 %v269, 108
      %v1190 = vpop.permute.xlu0 %1189
      %1191 = vrot.lane.b32.xlu0 %v270, 108
      %v1192 = vpop.permute.xlu0 %1191
      %1193 = vrot.lane.b32.xlu0 %v271, 108
      %v1194 = vpop.permute.xlu0 %1193
      %vm1195 = vcmask 883712
      %v1196 = vsel %vm1195, %v1186, %v1188
      %v1197 = vsel %vm1195, %v1188, %v1190
      %v1198 = vsel %vm1195, %v1190, %v1192
      %v1199 = vsel %vm1195, %v1192, %v1194
      %v1201 = vsel %vm287, %v1183, 0
      %v1204 = vsel %vm287, %v1184, 0
      %v1207 = vsel %vm294, %v1196, 0
      %v1210 = vsel %vm294, %v1197, 0
      %v1213 = vsel %vm294, %v1198, 0
      %v1216 = vsel %vm294, %v1199, 0
      %1218 = vmatprep.subr.bf16.mxu0 %v1210
      %1219 = vmatpush1.bf16.msra.mxu0 %v1207
      %1220 = vmatprep.subr.bf16.mxu0 0
      %1221 = vmatpush1.bf16.msra.mxu0 0
      %1222 = vmatprep.subr.bf16.mxu0 0
      %1223 = vmatpush1.bf16.msra.mxu0 0
      %1224 = vmatprep.subr.bf16.mxu0 0
      %1225 = vmatpush1.bf16.msra.mxu0 0
      %1226 = vmatprep.subr.bf16.mxu0 0
      %1227 = vmatpush1.bf16.msra.mxu0 0
      %1228 = vmatprep.subr.bf16.mxu0 0
      %1229 = vmatpush1.bf16.msra.mxu0 0
      %1230 = vmatprep.subr.bf16.mxu0 0
      %1231 = vmatpush1.bf16.msra.mxu0 0
      %1232 = vmatprep.subr.bf16.mxu0 0
      %1233 = vmatpush1.bf16.msra.mxu0 0
      %1234 = vmatprep.subr.bf16.mxu0 0
      %1235 = vmatpush1.bf16.msra.mxu0 0
      %1236 = vmatprep.subr.bf16.mxu0 0
      %1237 = vmatpush1.bf16.msra.mxu0 0
      %1238 = vmatprep.subr.bf16.mxu0 0
      %1239 = vmatpush1.bf16.msra.mxu0 0
      %1240 = vmatprep.subr.bf16.mxu0 0
      %1241 = vmatpush1.bf16.msra.mxu0 0
      %1242 = vmatprep.subr.bf16.mxu0 0
      %1243 = vmatpush1.bf16.msra.mxu0 0
      %1244 = vmatprep.subr.bf16.mxu0 0
      %1245 = vmatpush1.bf16.msra.mxu0 0
      %1246 = vmatprep.subr.bf16.mxu0 0
      %1247 = vmatpush1.bf16.msra.mxu0 0
      %1248 = vmatprep.subr.bf16.mxu0 0
      %1249 = vmatpush1.bf16.msra.mxu0 0
      %1250 = vmatprep.mubr.bf16.mxu0 0
      %1251 = vmatmul.mubr.bf16.gmra.mrb[0].mxu0 %v1201
      %v1252 = vpop.f32.mrb[0].mxu0
      %v1253 = vadd.f32 0.0, %v1252
      %v1254 = vpop.f32.mrb[0].mxu0
      %v1255 = vadd.f32 0.0, %v1254
      %v1256 = vpop.f32.mrb[0].mxu0
      %v1257 = vadd.f32 0.0, %v1256
      %v1258 = vpop.f32.mrb[0].mxu0
      %v1259 = vadd.f32 0.0, %v1258
      %1260 = vmatprep.mubr.bf16.mxu0 0
      %1261 = vmatmul.mubr.bf16.gmra.mrb[0].mxu0 %v1204
      %v1262 = vpop.f32.mrb[0].mxu0
      %v1263 = vadd.f32 0.0, %v1262
      %v1264 = vpop.f32.mrb[0].mxu0
      %v1265 = vadd.f32 0.0, %v1264
      %v1266 = vpop.f32.mrb[0].mxu0
      %v1267 = vpop.f32.mrb[0].mxu0
      %1268 = vdwg.mxu0
      %1269 = vmatprep.subr.bf16.mxu0 %v1216
      %1270 = vmatpush1.bf16.msra.mxu0 %v1213
      %1271 = vmatprep.subr.bf16.mxu0 0
      %1272 = vmatpush1.bf16.msra.mxu0 0
      %1273 = vmatprep.subr.bf16.mxu0 0
      %1274 = vmatpush1.bf16.msra.mxu0 0
      %1275 = vmatprep.subr.bf16.mxu0 0
      %1276 = vmatpush1.bf16.msra.mxu0 0
      %1277 = vmatprep.subr.bf16.mxu0 0
      %1278 = vmatpush1.bf16.msra.mxu0 0
      %1279 = vmatprep.subr.bf16.mxu0 0
      %1280 = vmatpush1.bf16.msra.mxu0 0
      %1281 = vmatprep.subr.bf16.mxu0 0
      %1282 = vmatpush1.bf16.msra.mxu0 0
      %1283 = vmatprep.subr.bf16.mxu0 0
      %1284 = vmatpush1.bf16.msra.mxu0 0
      %1285 = vmatprep.subr.bf16.mxu0 0
      %1286 = vmatpush1.bf16.msra.mxu0 0
      %1287 = vmatprep.subr.bf16.mxu0 0
      %1288 = vmatpush1.bf16.msra.mxu0 0
      %1289 = vmatprep.subr.bf16.mxu0 0
      %1290 = vmatpush1.bf16.msra.mxu0 0
      %1291 = vmatprep.subr.bf16.mxu0 0
      %1292 = vmatpush1.bf16.msra.mxu0 0
      %1293 = vmatprep.subr.bf16.mxu0 0
      %1294 = vmatpush1.bf16.msra.mxu0 0
      %1295 = vmatprep.subr.bf16.mxu0 0
      %1296 = vmatpush1.bf16.msra.mxu0 0
      %1297 = vmatprep.subr.bf16.mxu0 0
      %1298 = vmatpush1.bf16.msra.mxu0 0
      %1299 = vmatprep.subr.bf16.mxu0 0
      %1300 = vmatpush1.bf16.msra.mxu0 0
      %1301 = vmatprep.mubr.bf16.mxu0 0
      %1302 = vmatmul.mubr.bf16.gmra.mrb[0].mxu0 %v1201
      %v1303 = vpop.f32.mrb[0].mxu0
      %v1304 = vadd.f32 0.0, %v1303
      %v1305 = vpop.f32.mrb[0].mxu0
      %v1306 = vadd.f32 0.0, %v1305
      %v1307 = vpop.f32.mrb[0].mxu0
      %v1308 = vadd.f32 0.0, %v1307
      %v1309 = vpop.f32.mrb[0].mxu0
      %v1310 = vadd.f32 0.0, %v1309
      %1311 = vmatprep.mubr.bf16.mxu0 0
      %1312 = vmatmul.mubr.bf16.gmra.mrb[0].mxu0 %v1204
      %v1313 = vpop.f32.mrb[0].mxu0
      %v1314 = vadd.f32 0.0, %v1313
      %v1315 = vpop.f32.mrb[0].mxu0
      %v1316 = vadd.f32 0.0, %v1315
      %v1317 = vpop.f32.mrb[0].mxu0
      %v1318 = vpop.f32.mrb[0].mxu0
      %1319 = vdwg.mxu0
      %v1320 = vadd.f32 %v1161, %v1253
      %v1321 = vadd.f32 %v1162, %v1255
      %v1322 = vadd.f32 %v1163, %v1304
      %v1323 = vadd.f32 %v1164, %v1306
      %v1324 = vadd.f32 %v1165, %v1257
      %v1325 = vadd.f32 %v1166, %v1259
      %v1326 = vadd.f32 %v1167, %v1308
      %v1327 = vadd.f32 %v1168, %v1310
      %v1328 = vadd.f32 %v1169, %v1263
      %v1329 = vadd.f32 %v1170, %v1265
      %v1330 = vadd.f32 %v1171, %v1314
      %v1331 = vadd.f32 %v1172, %v1316
      %s1332 = scalar_lea.vmem %s0, 84
      %v1333 = vld [vmem:[%s1332] sm:$0xf]
      %v1334 = vld [vmem:[%s1332 + $0x4] sm:$0xf]
      %v1335 = vld [vmem:[%s1332 + $0x8] sm:$0xf]
      %v1339 = vunpack.c.l.b16 %v1333
      %v1340 = vunpack.c.l.b16 %v1334
      %v1341 = vunpack.c.l.b16 %v1335
      %v1342 = vpack.c.b16 %v1340, %v1339
      %v1343 = vpack.c.b16 %v1341, %v1341
      %1344 = vrot.lane.b32.xlu0 %v267, 107
      %v1345 = vpop.permute.xlu0 %1344
      %1346 = vrot.lane.b32.xlu0 %v268, 107
      %v1347 = vpop.permute.xlu0 %1346
      %1348 = vrot.lane.b32.xlu0 %v269, 107
      %v1349 = vpop.permute.xlu0 %1348
      %1350 = vrot.lane.b32.xlu0 %v270, 107
      %v1351 = vpop.permute.xlu0 %1350
      %1352 = vrot.lane.b32.xlu0 %v271, 107
      %v1353 = vpop.permute.xlu0 %1352
      %vm1354 = vcmask 875520
      %v1355 = vsel %vm1354, %v1345, %v1347
      %v1356 = vsel %vm1354, %v1347, %v1349
      %v1357 = vsel %vm1354, %v1349, %v1351
      %v1358 = vsel %vm1354, %v1351, %v1353
      %v1360 = vsel %vm287, %v1342, 0
      %v1363 = vsel %vm287, %v1343, 0
      %v1366 = vsel %vm294, %v1355, 0
      %v1369 = vsel %vm294, %v1356, 0
      %v1372 = vsel %vm294, %v1357, 0
      %v1375 = vsel %vm294, %v1358, 0
      %1377 = vmatprep.subr.bf16.mxu0 %v1369
      %1378 = vmatpush1.bf16.msra.mxu0 %v1366
      %1379 = vmatprep.subr.bf16.mxu0 0
      %1380 = vmatpush1.bf16.msra.mxu0 0
      %1381 = vmatprep.subr.bf16.mxu0 0
      %1382 = vmatpush1.bf16.msra.mxu0 0
      %1383 = vmatprep.subr.bf16.mxu0 0
      %1384 = vmatpush1.bf16.msra.mxu0 0
      %1385 = vmatprep.subr.bf16.mxu0 0
      %1386 = vmatpush1.bf16.msra.mxu0 0
      %1387 = vmatprep.subr.bf16.mxu0 0
      %1388 = vmatpush1.bf16.msra.mxu0 0
      %1389 = vmatprep.subr.bf16.mxu0 0
      %1390 = vmatpush1.bf16.msra.mxu0 0
      %1391 = vmatprep.subr.bf16.mxu0 0
      %1392 = vmatpush1.bf16.msra.mxu0 0
      %1393 = vmatprep.subr.bf16.mxu0 0
      %1394 = vmatpush1.bf16.msra.mxu0 0
      %1395 = vmatprep.subr.bf16.mxu0 0
      %1396 = vmatpush1.bf16.msra.mxu0 0
      %1397 = vmatprep.subr.bf16.mxu0 0
      %1398 = vmatpush1.bf16.msra.mxu0 0
      %1399 = vmatprep.subr.bf16.mxu0 0
      %1400 = vmatpush1.bf16.msra.mxu0 0
      %1401 = vmatprep.subr.bf16.mxu0 0
      %1402 = vmatpush1.bf16.msra.mxu0 0
      %1403 = vmatprep.subr.bf16.mxu0 0
      %1404 = vmatpush1.bf16.msra.mxu0 0
      %1405 = vmatprep.subr.bf16.mxu0 0
      %1406 = vmatpush1.bf16.msra.mxu0 0
      %1407 = vmatprep.subr.bf16.mxu0 0
      %1408 = vmatpush1.bf16.msra.mxu0 0
      %1409 = vmatprep.mubr.bf16.mxu0 0
      %1410 = vmatmul.mubr.bf16.gmra.mrb[0].mxu0 %v1360
      %v1411 = vpop.f32.mrb[0].mxu0
      %v1412 = vadd.f32 0.0, %v1411
      %v1413 = vpop.f32.mrb[0].mxu0
      %v1414 = vadd.f32 0.0, %v1413
      %v1415 = vpop.f32.mrb[0].mxu0
      %v1416 = vadd.f32 0.0, %v1415
      %v1417 = vpop.f32.mrb[0].mxu0
      %v1418 = vadd.f32 0.0, %v1417
      %1419 = vmatprep.mubr.bf16.mxu0 0
      %1420 = vmatmul.mubr.bf16.gmra.mrb[0].mxu0 %v1363
      %v1421 = vpop.f32.mrb[0].mxu0
      %v1422 = vadd.f32 0.0, %v1421
      %v1423 = vpop.f32.mrb[0].mxu0
      %v1424 = vadd.f32 0.0, %v1423
      %v1425 = vpop.f32.mrb[0].mxu0
      %v1426 = vpop.f32.mrb[0].mxu0
      %1427 = vdwg.mxu0
      %1428 = vmatprep.subr.bf16.mxu0 %v1375
      %1429 = vmatpush1.bf16.msra.mxu0 %v1372
      %1430 = vmatprep.subr.bf16.mxu0 0
      %1431 = vmatpush1.bf16.msra.mxu0 0
      %1432 = vmatprep.subr.bf16.mxu0 0
      %1433 = vmatpush1.bf16.msra.mxu0 0
      %1434 = vmatprep.subr.bf16.mxu0 0
      %1435 = vmatpush1.bf16.msra.mxu0 0
      %1436 = vmatprep.subr.bf16.mxu0 0
      %1437 = vmatpush1.bf16.msra.mxu0 0
      %1438 = vmatprep.subr.bf16.mxu0 0
      %1439 = vmatpush1.bf16.msra.mxu0 0
      %1440 = vmatprep.subr.bf16.mxu0 0
      %1441 = vmatpush1.bf16.msra.mxu0 0
      %1442 = vmatprep.subr.bf16.mxu0 0
      %1443 = vmatpush1.bf16.msra.mxu0 0
      %1444 = vmatprep.subr.bf16.mxu0 0
      %1445 = vmatpush1.bf16.msra.mxu0 0
      %1446 = vmatprep.subr.bf16.mxu0 0
      %1447 = vmatpush1.bf16.msra.mxu0 0
      %1448 = vmatprep.subr.bf16.mxu0 0
      %1449 = vmatpush1.bf16.msra.mxu0 0
      %1450 = vmatprep.subr.bf16.mxu0 0
      %1451 = vmatpush1.bf16.msra.mxu0 0
      %1452 = vmatprep.subr.bf16.mxu0 0
      %1453 = vmatpush1.bf16.msra.mxu0 0
      %1454 = vmatprep.subr.bf16.mxu0 0
      %1455 = vmatpush1.bf16.msra.mxu0 0
      %1456 = vmatprep.subr.bf16.mxu0 0
      %1457 = vmatpush1.bf16.msra.mxu0 0
      %1458 = vmatprep.subr.bf16.mxu0 0
      %1459 = vmatpush1.bf16.msra.mxu0 0
      %1460 = vmatprep.mubr.bf16.mxu0 0
      %1461 = vmatmul.mubr.bf16.gmra.mrb[0].mxu0 %v1360
      %v1462 = vpop.f32.mrb[0].mxu0
      %v1463 = vadd.f32 0.0, %v1462
      %v1464 = vpop.f32.mrb[0].mxu0
      %v1465 = vadd.f32 0.0, %v1464
      %v1466 = vpop.f32.mrb[0].mxu0
      %v1467 = vadd.f32 0.0, %v1466
      %v1468 = vpop.f32.mrb[0].mxu0
      %v1469 = vadd.f32 0.0, %v1468
      %1470 = vmatprep.mubr.bf16.mxu0 0
      %1471 = vmatmul.mubr.bf16.gmra.mrb[0].mxu0 %v1363
      %v1472 = vpop.f32.mrb[0].mxu0
      %v1473 = vadd.f32 0.0, %v1472
      %v1474 = vpop.f32.mrb[0].mxu0
      %v1475 = vadd.f32 0.0, %v1474
      %v1476 = vpop.f32.mrb[0].mxu0
      %v1477 = vpop.f32.mrb[0].mxu0
      %1478 = vdwg.mxu0
      %v1479 = vadd.f32 %v1320, %v1412
      %v1480 = vadd.f32 %v1321, %v1414
      %v1481 = vadd.f32 %v1322, %v1463
      %v1482 = vadd.f32 %v1323, %v1465
      %v1483 = vadd.f32 %v1324, %v1416
      %v1484 = vadd.f32 %v1325, %v1418
      %v1485 = vadd.f32 %v1326, %v1467
      %v1486 = vadd.f32 %v1327, %v1469
      %v1487 = vadd.f32 %v1328, %v1422
      %v1488 = vadd.f32 %v1329, %v1424
      %v1489 = vadd.f32 %v1330, %v1473
      %v1490 = vadd.f32 %v1331, %v1475
      %s1491 = scalar_lea.vmem %s0, 96
      %v1492 = vld [vmem:[%s1491] sm:$0xf]
      %v1493 = vld [vmem:[%s1491 + $0x4] sm:$0xf]
      %v1494 = vld [vmem:[%s1491 + $0x8] sm:$0xf]
      %v1498 = vunpack.c.l.b16 %v1492
      %v1499 = vunpack.c.l.b16 %v1493
      %v1500 = vunpack.c.l.b16 %v1494
      %v1501 = vpack.c.b16 %v1499, %v1498
      %v1502 = vpack.c.b16 %v1500, %v1500
      %1503 = vrot.lane.b32.xlu0 %v267, 106
      %v1504 = vpop.permute.xlu0 %1503
      %1505 = vrot.lane.b32.xlu0 %v268, 106
      %v1506 = vpop.permute.xlu0 %1505
      %1507 = vrot.lane.b32.xlu0 %v269, 106
      %v1508 = vpop.permute.xlu0 %1507
      %1509 = vrot.lane.b32.xlu0 %v270, 106
      %v1510 = vpop.permute.xlu0 %1509
      %1511 = vrot.lane.b32.xlu0 %v271, 106
      %v1512 = vpop.permute.xlu0 %1511
      %vm1513 = vcmask 867328
      %v1514 = vsel %vm1513, %v1504, %v1506
      %v1515 = vsel %vm1513, %v1506, %v1508
      %v1516 = vsel %vm1513, %v1508, %v1510
      %v1517 = vsel %vm1513, %v1510, %v1512
      %v1519 = vsel %vm287, %v1501, 0
      %v1522 = vsel %vm287, %v1502, 0
      %v1525 = vsel %vm294, %v1514, 0
      %v1528 = vsel %vm294, %v1515, 0
      %v1531 = vsel %vm294, %v1516, 0
      %v1534 = vsel %vm294, %v1517, 0
      %1536 = vmatprep.subr.bf16.mxu0 %v1528
      %1537 = vmatpush1.bf16.msra.mxu0 %v1525
      %1538 = vmatprep.subr.bf16.mxu0 0
      %1539 = vmatpush1.bf16.msra.mxu0 0
      %1540 = vmatprep.subr.bf16.mxu0 0
      %1541 = vmatpush1.bf16.msra.mxu0 0
      %1542 = vmatprep.subr.bf16.mxu0 0
      %1543 = vmatpush1.bf16.msra.mxu0 0
      %1544 = vmatprep.subr.bf16.mxu0 0
      %1545 = vmatpush1.bf16.msra.mxu0 0
      %1546 = vmatprep.subr.bf16.mxu0 0
      %1547 = vmatpush1.bf16.msra.mxu0 0
      %1548 = vmatprep.subr.bf16.mxu0 0
      %1549 = vmatpush1.bf16.msra.mxu0 0
      %1550 = vmatprep.subr.bf16.mxu0 0
      %1551 = vmatpush1.bf16.msra.mxu0 0
      %1552 = vmatprep.subr.bf16.mxu0 0
      %1553 = vmatpush1.bf16.msra.mxu0 0
      %1554 = vmatprep.subr.bf16.mxu0 0
      %1555 = vmatpush1.bf16.msra.mxu0 0
      %1556 = vmatprep.subr.bf16.mxu0 0
      %1557 = vmatpush1.bf16.msra.mxu0 0
      %1558 = vmatprep.subr.bf16.mxu0 0
      %1559 = vmatpush1.bf16.msra.mxu0 0
      %1560 = vmatprep.subr.bf16.mxu0 0
      %1561 = vmatpush1.bf16.msra.mxu0 0
      %1562 = vmatprep.subr.bf16.mxu0 0
      %1563 = vmatpush1.bf16.msra.mxu0 0
      %1564 = vmatprep.subr.bf16.mxu0 0
      %1565 = vmatpush1.bf16.msra.mxu0 0
      %1566 = vmatprep.subr.bf16.mxu0 0
      %1567 = vmatpush1.bf16.msra.mxu0 0
      %1568 = vmatprep.mubr.bf16.mxu0 0
      %1569 = vmatmul.mubr.bf16.gmra.mrb[0].mxu0 %v1519
      %v1570 = vpop.f32.mrb[0].mxu0
      %v1571 = vadd.f32 0.0, %v1570
      %v1572 = vpop.f32.mrb[0].mxu0
      %v1573 = vadd.f32 0.0, %v1572
      %v1574 = vpop.f32.mrb[0].mxu0
      %v1575 = vadd.f32 0.0, %v1574
      %v1576 = vpop.f32.mrb[0].mxu0
      %v1577 = vadd.f32 0.0, %v1576
      %1578 = vmatprep.mubr.bf16.mxu0 0
      %1579 = vmatmul.mubr.bf16.gmra.mrb[0].mxu0 %v1522
      %v1580 = vpop.f32.mrb[0].mxu0
      %v1581 = vadd.f32 0.0, %v1580
      %v1582 = vpop.f32.mrb[0].mxu0
      %v1583 = vadd.f32 0.0, %v1582
      %v1584 = vpop.f32.mrb[0].mxu0
      %v1585 = vpop.f32.mrb[0].mxu0
      %1586 = vdwg.mxu0
      %1587 = vmatprep.subr.bf16.mxu0 %v1534
      %1588 = vmatpush1.bf16.msra.mxu0 %v1531
      %1589 = vmatprep.subr.bf16.mxu0 0
      %1590 = vmatpush1.bf16.msra.mxu0 0
      %1591 = vmatprep.subr.bf16.mxu0 0
      %1592 = vmatpush1.bf16.msra.mxu0 0
      %1593 = vmatprep.subr.bf16.mxu0 0
      %1594 = vmatpush1.bf16.msra.mxu0 0
      %1595 = vmatprep.subr.bf16.mxu0 0
      %1596 = vmatpush1.bf16.msra.mxu0 0
      %1597 = vmatprep.subr.bf16.mxu0 0
      %1598 = vmatpush1.bf16.msra.mxu0 0
      %1599 = vmatprep.subr.bf16.mxu0 0
      %1600 = vmatpush1.bf16.msra.mxu0 0
      %1601 = vmatprep.subr.bf16.mxu0 0
      %1602 = vmatpush1.bf16.msra.mxu0 0
      %1603 = vmatprep.subr.bf16.mxu0 0
      %1604 = vmatpush1.bf16.msra.mxu0 0
      %1605 = vmatprep.subr.bf16.mxu0 0
      %1606 = vmatpush1.bf16.msra.mxu0 0
      %1607 = vmatprep.subr.bf16.mxu0 0
      %1608 = vmatpush1.bf16.msra.mxu0 0
      %1609 = vmatprep.subr.bf16.mxu0 0
      %1610 = vmatpush1.bf16.msra.mxu0 0
      %1611 = vmatprep.subr.bf16.mxu0 0
      %1612 = vmatpush1.bf16.msra.mxu0 0
      %1613 = vmatprep.subr.bf16.mxu0 0
      %1614 = vmatpush1.bf16.msra.mxu0 0
      %1615 = vmatprep.subr.bf16.mxu0 0
      %1616 = vmatpush1.bf16.msra.mxu0 0
      %1617 = vmatprep.subr.bf16.mxu0 0
      %1618 = vmatpush1.bf16.msra.mxu0 0
      %1619 = vmatprep.mubr.bf16.mxu0 0
      %1620 = vmatmul.mubr.bf16.gmra.mrb[0].mxu0 %v1519
      %v1621 = vpop.f32.mrb[0].mxu0
      %v1622 = vadd.f32 0.0, %v1621
      %v1623 = vpop.f32.mrb[0].mxu0
      %v1624 = vadd.f32 0.0, %v1623
      %v1625 = vpop.f32.mrb[0].mxu0
      %v1626 = vadd.f32 0.0, %v1625
      %v1627 = vpop.f32.mrb[0].mxu0
      %v1628 = vadd.f32 0.0, %v1627
      %1629 = vmatprep.mubr.bf16.mxu0 0
      %1630 = vmatmul.mubr.bf16.gmra.mrb[0].mxu0 %v1522
      %v1631 = vpop.f32.mrb[0].mxu0
      %v1632 = vadd.f32 0.0, %v1631
      %v1633 = vpop.f32.mrb[0].mxu0
      %v1634 = vadd.f32 0.0, %v1633
      %v1635 = vpop.f32.mrb[0].mxu0
      %v1636 = vpop.f32.mrb[0].mxu0
      %1637 = vdwg.mxu0
      %v1638 = vadd.f32 %v1479, %v1571
      %v1639 = vadd.f32 %v1480, %v1573
      %v1640 = vadd.f32 %v1481, %v1622
      %v1641 = vadd.f32 %v1482, %v1624
      %v1642 = vadd.f32 %v1483, %v1575
      %v1643 = vadd.f32 %v1484, %v1577
      %v1644 = vadd.f32 %v1485, %v1626
      %v1645 = vadd.f32 %v1486, %v1628
      %v1646 = vadd.f32 %v1487, %v1581
      %v1647 = vadd.f32 %v1488, %v1583
      %v1648 = vadd.f32 %v1489, %v1632
      %v1649 = vadd.f32 %v1490, %v1634
      %s1650 = scalar_lea.vmem %s0, 108
      %v1651 = vld [vmem:[%s1650] sm:$0xf]
      %v1652 = vld [vmem:[%s1650 + $0x4] sm:$0xf]
      %v1653 = vld [vmem:[%s1650 + $0x8] sm:$0xf]
      %v1657 = vunpack.c.l.b16 %v1651
      %v1658 = vunpack.c.l.b16 %v1652
      %v1659 = vunpack.c.l.b16 %v1653
      %v1660 = vpack.c.b16 %v1658, %v1657
      %v1661 = vpack.c.b16 %v1659, %v1659
      %1662 = vrot.lane.b32.xlu0 %v267, 28
      %v1663 = vpop.permute.xlu0 %1662
      %1664 = vrot.lane.b32.xlu0 %v268, 28
      %v1665 = vpop.permute.xlu0 %1664
      %1666 = vrot.lane.b32.xlu0 %v269, 28
      %v1667 = vpop.permute.xlu0 %1666
      %1668 = vrot.lane.b32.xlu0 %v270, 28
      %v1669 = vpop.permute.xlu0 %1668
      %1670 = vrot.lane.b32.xlu0 %v271, 28
      %v1671 = vpop.permute.xlu0 %1670
      %vm1672 = vcmask 228352
      %v1673 = vsel %vm1672, %v1663, %v1665
      %v1674 = vsel %vm1672, %v1665, %v1667
      %v1675 = vsel %vm1672, %v1667, %v1669
      %v1676 = vsel %vm1672, %v1669, %v1671
      %v1678 = vsel %vm287, %v1660, 0
      %v1681 = vsel %vm287, %v1661, 0
      %v1684 = vsel %vm294, %v1673, 0
      %v1687 = vsel %vm294, %v1674, 0
      %v1690 = vsel %vm294, %v1675, 0
      %v1693 = vsel %vm294, %v1676, 0
      %1695 = vmatprep.subr.bf16.mxu0 %v1687
      %1696 = vmatpush1.bf16.msra.mxu0 %v1684
      %1697 = vmatprep.subr.bf16.mxu0 0
      %1698 = vmatpush1.bf16.msra.mxu0 0
      %1699 = vmatprep.subr.bf16.mxu0 0
      %1700 = vmatpush1.bf16.msra.mxu0 0
      %1701 = vmatprep.subr.bf16.mxu0 0
      %1702 = vmatpush1.bf16.msra.mxu0 0
      %1703 = vmatprep.subr.bf16.mxu0 0
      %1704 = vmatpush1.bf16.msra.mxu0 0
      %1705 = vmatprep.subr.bf16.mxu0 0
      %1706 = vmatpush1.bf16.msra.mxu0 0
      %1707 = vmatprep.subr.bf16.mxu0 0
      %1708 = vmatpush1.bf16.msra.mxu0 0
      %1709 = vmatprep.subr.bf16.mxu0 0
      %1710 = vmatpush1.bf16.msra.mxu0 0
      %1711 = vmatprep.subr.bf16.mxu0 0
      %1712 = vmatpush1.bf16.msra.mxu0 0
      %1713 = vmatprep.subr.bf16.mxu0 0
      %1714 = vmatpush1.bf16.msra.mxu0 0
      %1715 = vmatprep.subr.bf16.mxu0 0
      %1716 = vmatpush1.bf16.msra.mxu0 0
      %1717 = vmatprep.subr.bf16.mxu0 0
      %1718 = vmatpush1.bf16.msra.mxu0 0
      %1719 = vmatprep.subr.bf16.mxu0 0
      %1720 = vmatpush1.bf16.msra.mxu0 0
      %1721 = vmatprep.subr.bf16.mxu0 0
      %1722 = vmatpush1.bf16.msra.mxu0 0
      %1723 = vmatprep.subr.bf16.mxu0 0
      %1724 = vmatpush1.bf16.msra.mxu0 0
      %1725 = vmatprep.subr.bf16.mxu0 0
      %1726 = vmatpush1.bf16.msra.mxu0 0
      %1727 = vmatprep.mubr.bf16.mxu0 0
      %1728 = vmatmul.mubr.bf16.gmra.mrb[0].mxu0 %v1678
      %v1729 = vpop.f32.mrb[0].mxu0
      %v1730 = vadd.f32 0.0, %v1729
      %v1731 = vpop.f32.mrb[0].mxu0
      %v1732 = vadd.f32 0.0, %v1731
      %v1733 = vpop.f32.mrb[0].mxu0
      %v1734 = vadd.f32 0.0, %v1733
      %v1735 = vpop.f32.mrb[0].mxu0
      %v1736 = vadd.f32 0.0, %v1735
      %1737 = vmatprep.mubr.bf16.mxu0 0
      %1738 = vmatmul.mubr.bf16.gmra.mrb[0].mxu0 %v1681
      %v1739 = vpop.f32.mrb[0].mxu0
      %v1740 = vadd.f32 0.0, %v1739
      %v1741 = vpop.f32.mrb[0].mxu0
      %v1742 = vadd.f32 0.0, %v1741
      %v1743 = vpop.f32.mrb[0].mxu0
      %v1744 = vpop.f32.mrb[0].mxu0
      %1745 = vdwg.mxu0
      %1746 = vmatprep.subr.bf16.mxu0 %v1693
      %1747 = vmatpush1.bf16.msra.mxu0 %v1690
      %1748 = vmatprep.subr.bf16.mxu0 0
      %1749 = vmatpush1.bf16.msra.mxu0 0
      %1750 = vmatprep.subr.bf16.mxu0 0
      %1751 = vmatpush1.bf16.msra.mxu0 0
      %1752 = vmatprep.subr.bf16.mxu0 0
      %1753 = vmatpush1.bf16.msra.mxu0 0
      %1754 = vmatprep.subr.bf16.mxu0 0
      %1755 = vmatpush1.bf16.msra.mxu0 0
      %1756 = vmatprep.subr.bf16.mxu0 0
      %1757 = vmatpush1.bf16.msra.mxu0 0
      %1758 = vmatprep.subr.bf16.mxu0 0
      %1759 = vmatpush1.bf16.msra.mxu0 0
      %1760 = vmatprep.subr.bf16.mxu0 0
      %1761 = vmatpush1.bf16.msra.mxu0 0
      %1762 = vmatprep.subr.bf16.mxu0 0
      %1763 = vmatpush1.bf16.msra.mxu0 0
      %1764 = vmatprep.subr.bf16.mxu0 0
      %1765 = vmatpush1.bf16.msra.mxu0 0
      %1766 = vmatprep.subr.bf16.mxu0 0
      %1767 = vmatpush1.bf16.msra.mxu0 0
      %1768 = vmatprep.subr.bf16.mxu0 0
      %1769 = vmatpush1.bf16.msra.mxu0 0
      %1770 = vmatprep.subr.bf16.mxu0 0
      %1771 = vmatpush1.bf16.msra.mxu0 0
      %1772 = vmatprep.subr.bf16.mxu0 0
      %1773 = vmatpush1.bf16.msra.mxu0 0
      %1774 = vmatprep.subr.bf16.mxu0 0
      %1775 = vmatpush1.bf16.msra.mxu0 0
      %1776 = vmatprep.subr.bf16.mxu0 0
      %1777 = vmatpush1.bf16.msra.mxu0 0
      %1778 = vmatprep.mubr.bf16.mxu0 0
      %1779 = vmatmul.mubr.bf16.gmra.mrb[0].mxu0 %v1678
      %v1780 = vpop.f32.mrb[0].mxu0
      %v1781 = vadd.f32 0.0, %v1780
      %v1782 = vpop.f32.mrb[0].mxu0
      %v1783 = vadd.f32 0.0, %v1782
      %v1784 = vpop.f32.mrb[0].mxu0
      %v1785 = vadd.f32 0.0, %v1784
      %v1786 = vpop.f32.mrb[0].mxu0
      %v1787 = vadd.f32 0.0, %v1786
      %1788 = vmatprep.mubr.bf16.mxu0 0
      %1789 = vmatmul.mubr.bf16.gmra.mrb[0].mxu0 %v1681
      %v1790 = vpop.f32.mrb[0].mxu0
      %v1791 = vadd.f32 0.0, %v1790
      %v1792 = vpop.f32.mrb[0].mxu0
      %v1793 = vadd.f32 0.0, %v1792
      %v1794 = vpop.f32.mrb[0].mxu0
      %v1795 = vpop.f32.mrb[0].mxu0
      %1796 = vdwg.mxu0
      %v1797 = vadd.f32 %v1638, %v1730
      %v1798 = vadd.f32 %v1639, %v1732
      %v1799 = vadd.f32 %v1640, %v1781
      %v1800 = vadd.f32 %v1641, %v1783
      %v1801 = vadd.f32 %v1642, %v1734
      %v1802 = vadd.f32 %v1643, %v1736
      %v1803 = vadd.f32 %v1644, %v1785
      %v1804 = vadd.f32 %v1645, %v1787
      %v1805 = vadd.f32 %v1646, %v1740
      %v1806 = vadd.f32 %v1647, %v1742
      %v1807 = vadd.f32 %v1648, %v1791
      %v1808 = vadd.f32 %v1649, %v1793
      %s1809 = scalar_lea.vmem %s0, 120
      %v1810 = vld [vmem:[%s1809] sm:$0xf]
      %v1811 = vld [vmem:[%s1809 + $0x4] sm:$0xf]
      %v1812 = vld [vmem:[%s1809 + $0x8] sm:$0xf]
      %v1816 = vunpack.c.l.b16 %v1810
      %v1817 = vunpack.c.l.b16 %v1811
      %v1818 = vunpack.c.l.b16 %v1812
      %v1819 = vpack.c.b16 %v1817, %v1816
      %v1820 = vpack.c.b16 %v1818, %v1818
      %1821 = vrot.lane.b32.xlu0 %v267, 27
      %v1822 = vpop.permute.xlu0 %1821
      %1823 = vrot.lane.b32.xlu0 %v268, 27
      %v1824 = vpop.permute.xlu0 %1823
      %1825 = vrot.lane.b32.xlu0 %v269, 27
      %v1826 = vpop.permute.xlu0 %1825
      %1827 = vrot.lane.b32.xlu0 %v270, 27
      %v1828 = vpop.permute.xlu0 %1827
      %1829 = vrot.lane.b32.xlu0 %v271, 27
      %v1830 = vpop.permute.xlu0 %1829
      %vm1831 = vcmask 220160
      %v1832 = vsel %vm1831, %v1822, %v1824
      %v1833 = vsel %vm1831, %v1824, %v1826
      %v1834 = vsel %vm1831, %v1826, %v1828
      %v1835 = vsel %vm1831, %v1828, %v1830
      %v1837 = vsel %vm287, %v1819, 0
      %v1840 = vsel %vm287, %v1820, 0
      %v1843 = vsel %vm294, %v1832, 0
      %v1846 = vsel %vm294, %v1833, 0
      %v1849 = vsel %vm294, %v1834, 0
      %v1852 = vsel %vm294, %v1835, 0
      %1854 = vmatprep.subr.bf16.mxu0 %v1846
      %1855 = vmatpush1.bf16.msra.mxu0 %v1843
      %1856 = vmatprep.subr.bf16.mxu0 0
      %1857 = vmatpush1.bf16.msra.mxu0 0
      %1858 = vmatprep.subr.bf16.mxu0 0
      %1859 = vmatpush1.bf16.msra.mxu0 0
      %1860 = vmatprep.subr.bf16.mxu0 0
      %1861 = vmatpush1.bf16.msra.mxu0 0
      %1862 = vmatprep.subr.bf16.mxu0 0
      %1863 = vmatpush1.bf16.msra.mxu0 0
      %1864 = vmatprep.subr.bf16.mxu0 0
      %1865 = vmatpush1.bf16.msra.mxu0 0
      %1866 = vmatprep.subr.bf16.mxu0 0
      %1867 = vmatpush1.bf16.msra.mxu0 0
      %1868 = vmatprep.subr.bf16.mxu0 0
      %1869 = vmatpush1.bf16.msra.mxu0 0
      %1870 = vmatprep.subr.bf16.mxu0 0
      %1871 = vmatpush1.bf16.msra.mxu0 0
      %1872 = vmatprep.subr.bf16.mxu0 0
      %1873 = vmatpush1.bf16.msra.mxu0 0
      %1874 = vmatprep.subr.bf16.mxu0 0
      %1875 = vmatpush1.bf16.msra.mxu0 0
      %1876 = vmatprep.subr.bf16.mxu0 0
      %1877 = vmatpush1.bf16.msra.mxu0 0
      %1878 = vmatprep.subr.bf16.mxu0 0
      %1879 = vmatpush1.bf16.msra.mxu0 0
      %1880 = vmatprep.subr.bf16.mxu0 0
      %1881 = vmatpush1.bf16.msra.mxu0 0
      %1882 = vmatprep.subr.bf16.mxu0 0
      %1883 = vmatpush1.bf16.msra.mxu0 0
      %1884 = vmatprep.subr.bf16.mxu0 0
      %1885 = vmatpush1.bf16.msra.mxu0 0
      %1886 = vmatprep.mubr.bf16.mxu0 0
      %1887 = vmatmul.mubr.bf16.gmra.mrb[0].mxu0 %v1837
      %v1888 = vpop.f32.mrb[0].mxu0
      %v1889 = vadd.f32 0.0, %v1888
      %v1890 = vpop.f32.mrb[0].mxu0
      %v1891 = vadd.f32 0.0, %v1890
      %v1892 = vpop.f32.mrb[0].mxu0
      %v1893 = vadd.f32 0.0, %v1892
      %v1894 = vpop.f32.mrb[0].mxu0
      %v1895 = vadd.f32 0.0, %v1894
      %1896 = vmatprep.mubr.bf16.mxu0 0
      %1897 = vmatmul.mubr.bf16.gmra.mrb[0].mxu0 %v1840
      %v1898 = vpop.f32.mrb[0].mxu0
      %v1899 = vadd.f32 0.0, %v1898
      %v1900 = vpop.f32.mrb[0].mxu0
      %v1901 = vadd.f32 0.0, %v1900
      %v1902 = vpop.f32.mrb[0].mxu0
      %v1903 = vpop.f32.mrb[0].mxu0
      %1904 = vdwg.mxu0
      %1905 = vmatprep.subr.bf16.mxu0 %v1852
      %1906 = vmatpush1.bf16.msra.mxu0 %v1849
      %1907 = vmatprep.subr.bf16.mxu0 0
      %1908 = vmatpush1.bf16.msra.mxu0 0
      %1909 = vmatprep.subr.bf16.mxu0 0
      %1910 = vmatpush1.bf16.msra.mxu0 0
      %1911 = vmatprep.subr.bf16.mxu0 0
      %1912 = vmatpush1.bf16.msra.mxu0 0
      %1913 = vmatprep.subr.bf16.mxu0 0
      %1914 = vmatpush1.bf16.msra.mxu0 0
      %1915 = vmatprep.subr.bf16.mxu0 0
      %1916 = vmatpush1.bf16.msra.mxu0 0
      %1917 = vmatprep.subr.bf16.mxu0 0
      %1918 = vmatpush1.bf16.msra.mxu0 0
      %1919 = vmatprep.subr.bf16.mxu0 0
      %1920 = vmatpush1.bf16.msra.mxu0 0
      %1921 = vmatprep.subr.bf16.mxu0 0
      %1922 = vmatpush1.bf16.msra.mxu0 0
      %1923 = vmatprep.subr.bf16.mxu0 0
      %1924 = vmatpush1.bf16.msra.mxu0 0
      %1925 = vmatprep.subr.bf16.mxu0 0
      %1926 = vmatpush1.bf16.msra.mxu0 0
      %1927 = vmatprep.subr.bf16.mxu0 0
      %1928 = vmatpush1.bf16.msra.mxu0 0
      %1929 = vmatprep.subr.bf16.mxu0 0
      %1930 = vmatpush1.bf16.msra.mxu0 0
      %1931 = vmatprep.subr.bf16.mxu0 0
      %1932 = vmatpush1.bf16.msra.mxu0 0
      %1933 = vmatprep.subr.bf16.mxu0 0
      %1934 = vmatpush1.bf16.msra.mxu0 0
      %1935 = vmatprep.subr.bf16.mxu0 0
      %1936 = vmatpush1.bf16.msra.mxu0 0
      %1937 = vmatprep.mubr.bf16.mxu0 0
      %1938 = vmatmul.mubr.bf16.gmra.mrb[0].mxu0 %v1837
      %v1939 = vpop.f32.mrb[0].mxu0
      %v1940 = vadd.f32 0.0, %v1939
      %v1941 = vpop.f32.mrb[0].mxu0
      %v1942 = vadd.f32 0.0, %v1941
      %v1943 = vpop.f32.mrb[0].mxu0
      %v1944 = vadd.f32 0.0, %v1943
      %v1945 = vpop.f32.mrb[0].mxu0
      %v1946 = vadd.f32 0.0, %v1945
      %1947 = vmatprep.mubr.bf16.mxu0 0
      %1948 = vmatmul.mubr.bf16.gmra.mrb[0].mxu0 %v1840
      %v1949 = vpop.f32.mrb[0].mxu0
      %v1950 = vadd.f32 0.0, %v1949
      %v1951 = vpop.f32.mrb[0].mxu0
      %v1952 = vadd.f32 0.0, %v1951
      %v1953 = vpop.f32.mrb[0].mxu0
      %v1954 = vpop.f32.mrb[0].mxu0
      %1955 = vdwg.mxu0
      %v1956 = vadd.f32 %v1797, %v1889
      %v1957 = vadd.f32 %v1798, %v1891
      %v1958 = vadd.f32 %v1799, %v1940
      %v1959 = vadd.f32 %v1800, %v1942
      %v1960 = vadd.f32 %v1801, %v1893
      %v1961 = vadd.f32 %v1802, %v1895
      %v1962 = vadd.f32 %v1803, %v1944
      %v1963 = vadd.f32 %v1804, %v1946
      %v1964 = vadd.f32 %v1805, %v1899
      %v1965 = vadd.f32 %v1806, %v1901
      %v1966 = vadd.f32 %v1807, %v1950
      %v1967 = vadd.f32 %v1808, %v1952
      %s1968 = scalar_lea.vmem %s0, 132
      %v1969 = vld [vmem:[%s1968] sm:$0xf]
      %v1970 = vld [vmem:[%s1968 + $0x4] sm:$0xf]
      %v1971 = vld [vmem:[%s1968 + $0x8] sm:$0xf]
      %v1975 = vunpack.c.l.b16 %v1969
      %v1976 = vunpack.c.l.b16 %v1970
      %v1977 = vunpack.c.l.b16 %v1971
      %v1978 = vpack.c.b16 %v1976, %v1975
      %v1979 = vpack.c.b16 %v1977, %v1977
      %1980 = vrot.lane.b32.xlu0 %v267, 26
      %v1981 = vpop.permute.xlu0 %1980
      %1982 = vrot.lane.b32.xlu0 %v268, 26
      %v1983 = vpop.permute.xlu0 %1982
      %1984 = vrot.lane.b32.xlu0 %v269, 26
      %v1985 = vpop.permute.xlu0 %1984
      %1986 = vrot.lane.b32.xlu0 %v270, 26
      %v1987 = vpop.permute.xlu0 %1986
      %1988 = vrot.lane.b32.xlu0 %v271, 26
      %v1989 = vpop.permute.xlu0 %1988
      %vm1990 = vcmask 211968
      %v1991 = vsel %vm1990, %v1981, %v1983
      %v1992 = vsel %vm1990, %v1983, %v1985
      %v1993 = vsel %vm1990, %v1985, %v1987
      %v1994 = vsel %vm1990, %v1987, %v1989
      %v1996 = vsel %vm287, %v1978, 0
      %v1999 = vsel %vm287, %v1979, 0
      %v2002 = vsel %vm294, %v1991, 0
      %v2005 = vsel %vm294, %v1992, 0
      %v2008 = vsel %vm294, %v1993, 0
      %v2011 = vsel %vm294, %v1994, 0
      %2013 = vmatprep.subr.bf16.mxu0 %v2005
      %2014 = vmatpush1.bf16.msra.mxu0 %v2002
      %2015 = vmatprep.subr.bf16.mxu0 0
      %2016 = vmatpush1.bf16.msra.mxu0 0
      %2017 = vmatprep.subr.bf16.mxu0 0
      %2018 = vmatpush1.bf16.msra.mxu0 0
      %2019 = vmatprep.subr.bf16.mxu0 0
      %2020 = vmatpush1.bf16.msra.mxu0 0
      %2021 = vmatprep.subr.bf16.mxu0 0
      %2022 = vmatpush1.bf16.msra.mxu0 0
      %2023 = vmatprep.subr.bf16.mxu0 0
      %2024 = vmatpush1.bf16.msra.mxu0 0
      %2025 = vmatprep.subr.bf16.mxu0 0
      %2026 = vmatpush1.bf16.msra.mxu0 0
      %2027 = vmatprep.subr.bf16.mxu0 0
      %2028 = vmatpush1.bf16.msra.mxu0 0
      %2029 = vmatprep.subr.bf16.mxu0 0
      %2030 = vmatpush1.bf16.msra.mxu0 0
      %2031 = vmatprep.subr.bf16.mxu0 0
      %2032 = vmatpush1.bf16.msra.mxu0 0
      %2033 = vmatprep.subr.bf16.mxu0 0
      %2034 = vmatpush1.bf16.msra.mxu0 0
      %2035 = vmatprep.subr.bf16.mxu0 0
      %2036 = vmatpush1.bf16.msra.mxu0 0
      %2037 = vmatprep.subr.bf16.mxu0 0
      %2038 = vmatpush1.bf16.msra.mxu0 0
      %2039 = vmatprep.subr.bf16.mxu0 0
      %2040 = vmatpush1.bf16.msra.mxu0 0
      %2041 = vmatprep.subr.bf16.mxu0 0
      %2042 = vmatpush1.bf16.msra.mxu0 0
      %2043 = vmatprep.subr.bf16.mxu0 0
      %2044 = vmatpush1.bf16.msra.mxu0 0
      %2045 = vmatprep.mubr.bf16.mxu0 0
      %2046 = vmatmul.mubr.bf16.gmra.mrb[0].mxu0 %v1996
      %v2047 = vpop.f32.mrb[0].mxu0
      %v2048 = vadd.f32 0.0, %v2047
      %v2049 = vpop.f32.mrb[0].mxu0
      %v2050 = vadd.f32 0.0, %v2049
      %v2051 = vpop.f32.mrb[0].mxu0
      %v2052 = vadd.f32 0.0, %v2051
      %v2053 = vpop.f32.mrb[0].mxu0
      %v2054 = vadd.f32 0.0, %v2053
      %2055 = vmatprep.mubr.bf16.mxu0 0
      %2056 = vmatmul.mubr.bf16.gmra.mrb[0].mxu0 %v1999
      %v2057 = vpop.f32.mrb[0].mxu0
      %v2058 = vadd.f32 0.0, %v2057
      %v2059 = vpop.f32.mrb[0].mxu0
      %v2060 = vadd.f32 0.0, %v2059
      %v2061 = vpop.f32.mrb[0].mxu0
      %v2062 = vpop.f32.mrb[0].mxu0
      %2063 = vdwg.mxu0
      %2064 = vmatprep.subr.bf16.mxu0 %v2011
      %2065 = vmatpush1.bf16.msra.mxu0 %v2008
      %2066 = vmatprep.subr.bf16.mxu0 0
      %2067 = vmatpush1.bf16.msra.mxu0 0
      %2068 = vmatprep.subr.bf16.mxu0 0
      %2069 = vmatpush1.bf16.msra.mxu0 0
      %2070 = vmatprep.subr.bf16.mxu0 0
      %2071 = vmatpush1.bf16.msra.mxu0 0
      %2072 = vmatprep.subr.bf16.mxu0 0
      %2073 = vmatpush1.bf16.msra.mxu0 0
      %2074 = vmatprep.subr.bf16.mxu0 0
      %2075 = vmatpush1.bf16.msra.mxu0 0
      %2076 = vmatprep.subr.bf16.mxu0 0
      %2077 = vmatpush1.bf16.msra.mxu0 0
      %2078 = vmatprep.subr.bf16.mxu0 0
      %2079 = vmatpush1.bf16.msra.mxu0 0
      %2080 = vmatprep.subr.bf16.mxu0 0
      %2081 = vmatpush1.bf16.msra.mxu0 0
      %2082 = vmatprep.subr.bf16.mxu0 0
      %2083 = vmatpush1.bf16.msra.mxu0 0
      %2084 = vmatprep.subr.bf16.mxu0 0
      %2085 = vmatpush1.bf16.msra.mxu0 0
      %2086 = vmatprep.subr.bf16.mxu0 0
      %2087 = vmatpush1.bf16.msra.mxu0 0
      %2088 = vmatprep.subr.bf16.mxu0 0
      %2089 = vmatpush1.bf16.msra.mxu0 0
      %2090 = vmatprep.subr.bf16.mxu0 0
      %2091 = vmatpush1.bf16.msra.mxu0 0
      %2092 = vmatprep.subr.bf16.mxu0 0
      %2093 = vmatpush1.bf16.msra.mxu0 0
      %2094 = vmatprep.subr.bf16.mxu0 0
      %2095 = vmatpush1.bf16.msra.mxu0 0
      %2096 = vmatprep.mubr.bf16.mxu0 0
      %2097 = vmatmul.mubr.bf16.gmra.mrb[0].mxu0 %v1996
      %v2098 = vpop.f32.mrb[0].mxu0
      %v2099 = vadd.f32 0.0, %v2098
      %v2100 = vpop.f32.mrb[0].mxu0
      %v2101 = vadd.f32 0.0, %v2100
      %v2102 = vpop.f32.mrb[0].mxu0
      %v2103 = vadd.f32 0.0, %v2102
      %v2104 = vpop.f32.mrb[0].mxu0
      %v2105 = vadd.f32 0.0, %v2104
      %2106 = vmatprep.mubr.bf16.mxu0 0
      %2107 = vmatmul.mubr.bf16.gmra.mrb[0].mxu0 %v1999
      %v2108 = vpop.f32.mrb[0].mxu0
      %v2109 = vadd.f32 0.0, %v2108
      %v2110 = vpop.f32.mrb[0].mxu0
      %v2111 = vadd.f32 0.0, %v2110
      %v2112 = vpop.f32.mrb[0].mxu0
      %v2113 = vpop.f32.mrb[0].mxu0
      %2114 = vdwg.mxu0
      %v2115 = vadd.f32 %v1956, %v2048
      %v2116 = vadd.f32 %v1957, %v2050
      %v2117 = vadd.f32 %v1958, %v2099
      %v2118 = vadd.f32 %v1959, %v2101
      %v2119 = vadd.f32 %v1960, %v2052
      %v2120 = vadd.f32 %v1961, %v2054
      %v2121 = vadd.f32 %v1962, %v2103
      %v2122 = vadd.f32 %v1963, %v2105
      %v2123 = vadd.f32 %v1964, %v2058
      %v2124 = vadd.f32 %v1965, %v2060
      %v2125 = vadd.f32 %v1966, %v2109
      %v2126 = vadd.f32 %v1967, %v2111
      %s2127 = scalar_lea.vmem %s0, 144
      %v2128 = vld [vmem:[%s2127] sm:$0xf]
      %v2129 = vld [vmem:[%s2127 + $0x4] sm:$0xf]
      %v2130 = vld [vmem:[%s2127 + $0x8] sm:$0xf]
      %v2134 = vunpack.c.l.b16 %v2128
      %v2135 = vunpack.c.l.b16 %v2129
      %v2136 = vunpack.c.l.b16 %v2130
      %v2137 = vpack.c.b16 %v2135, %v2134
      %v2138 = vpack.c.b16 %v2136, %v2136
      %2139 = vrot.lane.b32.xlu0 %v267, 18
      %v2140 = vpop.permute.xlu0 %2139
      %2141 = vrot.lane.b32.xlu0 %v268, 18
      %v2142 = vpop.permute.xlu0 %2141
      %2143 = vrot.lane.b32.xlu0 %v269, 18
      %v2144 = vpop.permute.xlu0 %2143
      %2145 = vrot.lane.b32.xlu0 %v270, 18
      %v2146 = vpop.permute.xlu0 %2145
      %2147 = vrot.lane.b32.xlu0 %v271, 18
      %v2148 = vpop.permute.xlu0 %2147
      %vm2149 = vcmask 146432
      %v2150 = vsel %vm2149, %v2140, %v2142
      %v2151 = vsel %vm2149, %v2142, %v2144
      %v2152 = vsel %vm2149, %v2144, %v2146
      %v2153 = vsel %vm2149, %v2146, %v2148
      %v2155 = vsel %vm287, %v2137, 0
      %v2158 = vsel %vm287, %v2138, 0
      %v2161 = vsel %vm294, %v2150, 0
      %v2164 = vsel %vm294, %v2151, 0
      %v2167 = vsel %vm294, %v2152, 0
      %v2170 = vsel %vm294, %v2153, 0
      %2172 = vmatprep.subr.bf16.mxu0 %v2164
      %2173 = vmatpush1.bf16.msra.mxu0 %v2161
      %2174 = vmatprep.subr.bf16.mxu0 0
      %2175 = vmatpush1.bf16.msra.mxu0 0
      %2176 = vmatprep.subr.bf16.mxu0 0
      %2177 = vmatpush1.bf16.msra.mxu0 0
      %2178 = vmatprep.subr.bf16.mxu0 0
      %2179 = vmatpush1.bf16.msra.mxu0 0
      %2180 = vmatprep.subr.bf16.mxu0 0
      %2181 = vmatpush1.bf16.msra.mxu0 0
      %2182 = vmatprep.subr.bf16.mxu0 0
      %2183 = vmatpush1.bf16.msra.mxu0 0
      %2184 = vmatprep.subr.bf16.mxu0 0
      %2185 = vmatpush1.bf16.msra.mxu0 0
      %2186 = vmatprep.subr.bf16.mxu0 0
      %2187 = vmatpush1.bf16.msra.mxu0 0
      %2188 = vmatprep.subr.bf16.mxu0 0
      %2189 = vmatpush1.bf16.msra.mxu0 0
      %2190 = vmatprep.subr.bf16.mxu0 0
      %2191 = vmatpush1.bf16.msra.mxu0 0
      %2192 = vmatprep.subr.bf16.mxu0 0
      %2193 = vmatpush1.bf16.msra.mxu0 0
      %2194 = vmatprep.subr.bf16.mxu0 0
      %2195 = vmatpush1.bf16.msra.mxu0 0
      %2196 = vmatprep.subr.bf16.mxu0 0
      %2197 = vmatpush1.bf16.msra.mxu0 0
      %2198 = vmatprep.subr.bf16.mxu0 0
      %2199 = vmatpush1.bf16.msra.mxu0 0
      %2200 = vmatprep.subr.bf16.mxu0 0
      %2201 = vmatpush1.bf16.msra.mxu0 0
      %2202 = vmatprep.subr.bf16.mxu0 0
      %2203 = vmatpush1.bf16.msra.mxu0 0
      %2204 = vmatprep.mubr.bf16.mxu0 0
      %2205 = vmatmul.mubr.bf16.gmra.mrb[0].mxu0 %v2155
      %v2206 = vpop.f32.mrb[0].mxu0
      %v2207 = vadd.f32 0.0, %v2206
      %v2208 = vpop.f32.mrb[0].mxu0
      %v2209 = vadd.f32 0.0, %v2208
      %v2210 = vpop.f32.mrb[0].mxu0
      %v2211 = vadd.f32 0.0, %v2210
      %v2212 = vpop.f32.mrb[0].mxu0
      %v2213 = vadd.f32 0.0, %v2212
      %2214 = vmatprep.mubr.bf16.mxu0 0
      %2215 = vmatmul.mubr.bf16.gmra.mrb[0].mxu0 %v2158
      %v2216 = vpop.f32.mrb[0].mxu0
      %v2217 = vadd.f32 0.0, %v2216
      %v2218 = vpop.f32.mrb[0].mxu0
      %v2219 = vadd.f32 0.0, %v2218
      %v2220 = vpop.f32.mrb[0].mxu0
      %v2221 = vpop.f32.mrb[0].mxu0
      %2222 = vdwg.mxu0
      %2223 = vmatprep.subr.bf16.mxu0 %v2170
      %2224 = vmatpush1.bf16.msra.mxu0 %v2167
      %2225 = vmatprep.subr.bf16.mxu0 0
      %2226 = vmatpush1.bf16.msra.mxu0 0
      %2227 = vmatprep.subr.bf16.mxu0 0
      %2228 = vmatpush1.bf16.msra.mxu0 0
      %2229 = vmatprep.subr.bf16.mxu0 0
      %2230 = vmatpush1.bf16.msra.mxu0 0
      %2231 = vmatprep.subr.bf16.mxu0 0
      %2232 = vmatpush1.bf16.msra.mxu0 0
      %2233 = vmatprep.subr.bf16.mxu0 0
      %2234 = vmatpush1.bf16.msra.mxu0 0
      %2235 = vmatprep.subr.bf16.mxu0 0
      %2236 = vmatpush1.bf16.msra.mxu0 0
      %2237 = vmatprep.subr.bf16.mxu0 0
      %2238 = vmatpush1.bf16.msra.mxu0 0
      %2239 = vmatprep.subr.bf16.mxu0 0
      %2240 = vmatpush1.bf16.msra.mxu0 0
      %2241 = vmatprep.subr.bf16.mxu0 0
      %2242 = vmatpush1.bf16.msra.mxu0 0
      %2243 = vmatprep.subr.bf16.mxu0 0
      %2244 = vmatpush1.bf16.msra.mxu0 0
      %2245 = vmatprep.subr.bf16.mxu0 0
      %2246 = vmatpush1.bf16.msra.mxu0 0
      %2247 = vmatprep.subr.bf16.mxu0 0
      %2248 = vmatpush1.bf16.msra.mxu0 0
      %2249 = vmatprep.subr.bf16.mxu0 0
      %2250 = vmatpush1.bf16.msra.mxu0 0
      %2251 = vmatprep.subr.bf16.mxu0 0
      %2252 = vmatpush1.bf16.msra.mxu0 0
      %2253 = vmatprep.subr.bf16.mxu0 0
      %2254 = vmatpush1.bf16.msra.mxu0 0
      %2255 = vmatprep.mubr.bf16.mxu0 0
      %2256 = vmatmul.mubr.bf16.gmra.mrb[0].mxu0 %v2155
      %v2257 = vpop.f32.mrb[0].mxu0
      %v2258 = vadd.f32 0.0, %v2257
      %v2259 = vpop.f32.mrb[0].mxu0
      %v2260 = vadd.f32 0.0, %v2259
      %v2261 = vpop.f32.mrb[0].mxu0
      %v2262 = vadd.f32 0.0, %v2261
      %v2263 = vpop.f32.mrb[0].mxu0
      %v2264 = vadd.f32 0.0, %v2263
      %2265 = vmatprep.mubr.bf16.mxu0 0
      %2266 = vmatmul.mubr.bf16.gmra.mrb[0].mxu0 %v2158
      %v2267 = vpop.f32.mrb[0].mxu0
      %v2268 = vadd.f32 0.0, %v2267
      %v2269 = vpop.f32.mrb[0].mxu0
      %v2270 = vadd.f32 0.0, %v2269
      %v2271 = vpop.f32.mrb[0].mxu0
      %v2272 = vpop.f32.mrb[0].mxu0
      %2273 = vdwg.mxu0
      %v2274 = vadd.f32 %v2115, %v2207
      %v2275 = vadd.f32 %v2116, %v2209
      %v2276 = vadd.f32 %v2117, %v2258
      %v2277 = vadd.f32 %v2118, %v2260
      %v2278 = vadd.f32 %v2119, %v2211
      %v2279 = vadd.f32 %v2120, %v2213
      %v2280 = vadd.f32 %v2121, %v2262
      %v2281 = vadd.f32 %v2122, %v2264
      %v2282 = vadd.f32 %v2123, %v2217
      %v2283 = vadd.f32 %v2124, %v2219
      %v2284 = vadd.f32 %v2125, %v2268
      %v2285 = vadd.f32 %v2126, %v2270
      %s2286 = scalar_lea.vmem %s0, 156
      %v2287 = vld [vmem:[%s2286] sm:$0xf]
      %v2288 = vld [vmem:[%s2286 + $0x4] sm:$0xf]
      %v2289 = vld [vmem:[%s2286 + $0x8] sm:$0xf]
      %v2293 = vunpack.c.l.b16 %v2287
      %v2294 = vunpack.c.l.b16 %v2288
      %v2295 = vunpack.c.l.b16 %v2289
      %v2296 = vpack.c.b16 %v2294, %v2293
      %v2297 = vpack.c.b16 %v2295, %v2295
      %2298 = vrot.lane.b32.xlu0 %v267, 17
      %v2299 = vpop.permute.xlu0 %2298
      %2300 = vrot.lane.b32.xlu0 %v268, 17
      %v2301 = vpop.permute.xlu0 %2300
      %2302 = vrot.lane.b32.xlu0 %v269, 17
      %v2303 = vpop.permute.xlu0 %2302
      %2304 = vrot.lane.b32.xlu0 %v270, 17
      %v2305 = vpop.permute.xlu0 %2304
      %2306 = vrot.lane.b32.xlu0 %v271, 17
      %v2307 = vpop.permute.xlu0 %2306
      %vm2308 = vcmask 138240
      %v2309 = vsel %vm2308, %v2299, %v2301
      %v2310 = vsel %vm2308, %v2301, %v2303
      %v2311 = vsel %vm2308, %v2303, %v2305
      %v2312 = vsel %vm2308, %v2305, %v2307
      %v2314 = vsel %vm287, %v2296, 0
      %v2317 = vsel %vm287, %v2297, 0
      %v2320 = vsel %vm294, %v2309, 0
      %v2323 = vsel %vm294, %v2310, 0
      %v2326 = vsel %vm294, %v2311, 0
      %v2329 = vsel %vm294, %v2312, 0
      %2331 = vmatprep.subr.bf16.mxu0 %v2323
      %2332 = vmatpush1.bf16.msra.mxu0 %v2320
      %2333 = vmatprep.subr.bf16.mxu0 0
      %2334 = vmatpush1.bf16.msra.mxu0 0
      %2335 = vmatprep.subr.bf16.mxu0 0
      %2336 = vmatpush1.bf16.msra.mxu0 0
      %2337 = vmatprep.subr.bf16.mxu0 0
      %2338 = vmatpush1.bf16.msra.mxu0 0
      %2339 = vmatprep.subr.bf16.mxu0 0
      %2340 = vmatpush1.bf16.msra.mxu0 0
      %2341 = vmatprep.subr.bf16.mxu0 0
      %2342 = vmatpush1.bf16.msra.mxu0 0
      %2343 = vmatprep.subr.bf16.mxu0 0
      %2344 = vmatpush1.bf16.msra.mxu0 0
      %2345 = vmatprep.subr.bf16.mxu0 0
      %2346 = vmatpush1.bf16.msra.mxu0 0
      %2347 = vmatprep.subr.bf16.mxu0 0
      %2348 = vmatpush1.bf16.msra.mxu0 0
      %2349 = vmatprep.subr.bf16.mxu0 0
      %2350 = vmatpush1.bf16.msra.mxu0 0
      %2351 = vmatprep.subr.bf16.mxu0 0
      %2352 = vmatpush1.bf16.msra.mxu0 0
      %2353 = vmatprep.subr.bf16.mxu0 0
      %2354 = vmatpush1.bf16.msra.mxu0 0
      %2355 = vmatprep.subr.bf16.mxu0 0
      %2356 = vmatpush1.bf16.msra.mxu0 0
      %2357 = vmatprep.subr.bf16.mxu0 0
      %2358 = vmatpush1.bf16.msra.mxu0 0
      %2359 = vmatprep.subr.bf16.mxu0 0
      %2360 = vmatpush1.bf16.msra.mxu0 0
      %2361 = vmatprep.subr.bf16.mxu0 0
      %2362 = vmatpush1.bf16.msra.mxu0 0
      %2363 = vmatprep.mubr.bf16.mxu0 0
      %2364 = vmatmul.mubr.bf16.gmra.mrb[0].mxu0 %v2314
      %v2365 = vpop.f32.mrb[0].mxu0
      %v2366 = vadd.f32 0.0, %v2365
      %v2367 = vpop.f32.mrb[0].mxu0
      %v2368 = vadd.f32 0.0, %v2367
      %v2369 = vpop.f32.mrb[0].mxu0
      %v2370 = vadd.f32 0.0, %v2369
      %v2371 = vpop.f32.mrb[0].mxu0
      %v2372 = vadd.f32 0.0, %v2371
      %2373 = vmatprep.mubr.bf16.mxu0 0
      %2374 = vmatmul.mubr.bf16.gmra.mrb[0].mxu0 %v2317
      %v2375 = vpop.f32.mrb[0].mxu0
      %v2376 = vadd.f32 0.0, %v2375
      %v2377 = vpop.f32.mrb[0].mxu0
      %v2378 = vadd.f32 0.0, %v2377
      %v2379 = vpop.f32.mrb[0].mxu0
      %v2380 = vpop.f32.mrb[0].mxu0
      %2381 = vdwg.mxu0
      %2382 = vmatprep.subr.bf16.mxu0 %v2329
      %2383 = vmatpush1.bf16.msra.mxu0 %v2326
      %2384 = vmatprep.subr.bf16.mxu0 0
      %2385 = vmatpush1.bf16.msra.mxu0 0
      %2386 = vmatprep.subr.bf16.mxu0 0
      %2387 = vmatpush1.bf16.msra.mxu0 0
      %2388 = vmatprep.subr.bf16.mxu0 0
      %2389 = vmatpush1.bf16.msra.mxu0 0
      %2390 = vmatprep.subr.bf16.mxu0 0
      %2391 = vmatpush1.bf16.msra.mxu0 0
      %2392 = vmatprep.subr.bf16.mxu0 0
      %2393 = vmatpush1.bf16.msra.mxu0 0
      %2394 = vmatprep.subr.bf16.mxu0 0
      %2395 = vmatpush1.bf16.msra.mxu0 0
      %2396 = vmatprep.subr.bf16.mxu0 0
      %2397 = vmatpush1.bf16.msra.mxu0 0
      %2398 = vmatprep.subr.bf16.mxu0 0
      %2399 = vmatpush1.bf16.msra.mxu0 0
      %2400 = vmatprep.subr.bf16.mxu0 0
      %2401 = vmatpush1.bf16.msra.mxu0 0
      %2402 = vmatprep.subr.bf16.mxu0 0
      %2403 = vmatpush1.bf16.msra.mxu0 0
      %2404 = vmatprep.subr.bf16.mxu0 0
      %2405 = vmatpush1.bf16.msra.mxu0 0
      %2406 = vmatprep.subr.bf16.mxu0 0
      %2407 = vmatpush1.bf16.msra.mxu0 0
      %2408 = vmatprep.subr.bf16.mxu0 0
      %2409 = vmatpush1.bf16.msra.mxu0 0
      %2410 = vmatprep.subr.bf16.mxu0 0
      %2411 = vmatpush1.bf16.msra.mxu0 0
      %2412 = vmatprep.subr.bf16.mxu0 0
      %2413 = vmatpush1.bf16.msra.mxu0 0
      %2414 = vmatprep.mubr.bf16.mxu0 0
      %2415 = vmatmul.mubr.bf16.gmra.mrb[0].mxu0 %v2314
      %v2416 = vpop.f32.mrb[0].mxu0
      %v2417 = vadd.f32 0.0, %v2416
      %v2418 = vpop.f32.mrb[0].mxu0
      %v2419 = vadd.f32 0.0, %v2418
      %v2420 = vpop.f32.mrb[0].mxu0
      %v2421 = vadd.f32 0.0, %v2420
      %v2422 = vpop.f32.mrb[0].mxu0
      %v2423 = vadd.f32 0.0, %v2422
      %2424 = vmatprep.mubr.bf16.mxu0 0
      %2425 = vmatmul.mubr.bf16.gmra.mrb[0].mxu0 %v2317
      %v2426 = vpop.f32.mrb[0].mxu0
      %v2427 = vadd.f32 0.0, %v2426
      %v2428 = vpop.f32.mrb[0].mxu0
      %v2429 = vadd.f32 0.0, %v2428
      %v2430 = vpop.f32.mrb[0].mxu0
      %v2431 = vpop.f32.mrb[0].mxu0
      %2432 = vdwg.mxu0
      %v2433 = vadd.f32 %v2274, %v2366
      %v2434 = vadd.f32 %v2275, %v2368
      %v2435 = vadd.f32 %v2276, %v2417
      %v2436 = vadd.f32 %v2277, %v2419
      %v2437 = vadd.f32 %v2278, %v2370
      %v2438 = vadd.f32 %v2279, %v2372
      %v2439 = vadd.f32 %v2280, %v2421
      %v2440 = vadd.f32 %v2281, %v2423
      %v2441 = vadd.f32 %v2282, %v2376
      %v2442 = vadd.f32 %v2283, %v2378
      %v2443 = vadd.f32 %v2284, %v2427
      %v2444 = vadd.f32 %v2285, %v2429
      %s2445 = scalar_lea.vmem %s0, 168
      %v2446 = vld [vmem:[%s2445] sm:$0xf]
      %v2447 = vld [vmem:[%s2445 + $0x4] sm:$0xf]
      %v2448 = vld [vmem:[%s2445 + $0x8] sm:$0xf]
      %v2452 = vunpack.c.l.b16 %v2446
      %v2453 = vunpack.c.l.b16 %v2447
      %v2454 = vunpack.c.l.b16 %v2448
      %v2455 = vpack.c.b16 %v2453, %v2452
      %v2456 = vpack.c.b16 %v2454, %v2454
      %2457 = vrot.lane.b32.xlu0 %v267, 16
      %v2458 = vpop.permute.xlu0 %2457
      %2459 = vrot.lane.b32.xlu0 %v268, 16
      %v2460 = vpop.permute.xlu0 %2459
      %2461 = vrot.lane.b32.xlu0 %v269, 16
      %v2462 = vpop.permute.xlu0 %2461
      %2463 = vrot.lane.b32.xlu0 %v270, 16
      %v2464 = vpop.permute.xlu0 %2463
      %2465 = vrot.lane.b32.xlu0 %v271, 16
      %v2466 = vpop.permute.xlu0 %2465
      %vm2467 = vcmask 130048
      %v2468 = vsel %vm2467, %v2458, %v2460
      %v2469 = vsel %vm2467, %v2460, %v2462
      %v2470 = vsel %vm2467, %v2462, %v2464
      %v2471 = vsel %vm2467, %v2464, %v2466
      %v2473 = vsel %vm287, %v2455, 0
      %v2476 = vsel %vm287, %v2456, 0
      %v2479 = vsel %vm294, %v2468, 0
      %v2482 = vsel %vm294, %v2469, 0
      %v2485 = vsel %vm294, %v2470, 0
      %v2488 = vsel %vm294, %v2471, 0
      %2490 = vmatprep.subr.bf16.mxu0 %v2482
      %2491 = vmatpush1.bf16.msra.mxu0 %v2479
      %2492 = vmatprep.subr.bf16.mxu0 0
      %2493 = vmatpush1.bf16.msra.mxu0 0
      %2494 = vmatprep.subr.bf16.mxu0 0
      %2495 = vmatpush1.bf16.msra.mxu0 0
      %2496 = vmatprep.subr.bf16.mxu0 0
      %2497 = vmatpush1.bf16.msra.mxu0 0
      %2498 = vmatprep.subr.bf16.mxu0 0
      %2499 = vmatpush1.bf16.msra.mxu0 0
      %2500 = vmatprep.subr.bf16.mxu0 0
      %2501 = vmatpush1.bf16.msra.mxu0 0
      %2502 = vmatprep.subr.bf16.mxu0 0
      %2503 = vmatpush1.bf16.msra.mxu0 0
      %2504 = vmatprep.subr.bf16.mxu0 0
      %2505 = vmatpush1.bf16.msra.mxu0 0
      %2506 = vmatprep.subr.bf16.mxu0 0
      %2507 = vmatpush1.bf16.msra.mxu0 0
      %2508 = vmatprep.subr.bf16.mxu0 0
      %2509 = vmatpush1.bf16.msra.mxu0 0
      %2510 = vmatprep.subr.bf16.mxu0 0
      %2511 = vmatpush1.bf16.msra.mxu0 0
      %2512 = vmatprep.subr.bf16.mxu0 0
      %2513 = vmatpush1.bf16.msra.mxu0 0
      %2514 = vmatprep.subr.bf16.mxu0 0
      %2515 = vmatpush1.bf16.msra.mxu0 0
      %2516 = vmatprep.subr.bf16.mxu0 0
      %2517 = vmatpush1.bf16.msra.mxu0 0
      %2518 = vmatprep.subr.bf16.mxu0 0
      %2519 = vmatpush1.bf16.msra.mxu0 0
      %2520 = vmatprep.subr.bf16.mxu0 0
      %2521 = vmatpush1.bf16.msra.mxu0 0
      %2522 = vmatprep.mubr.bf16.mxu0 0
      %2523 = vmatmul.mubr.bf16.gmra.mrb[0].mxu0 %v2473
      %v2524 = vpop.f32.mrb[0].mxu0
      %v2525 = vadd.f32 0.0, %v2524
      %v2526 = vpop.f32.mrb[0].mxu0
      %v2527 = vadd.f32 0.0, %v2526
      %v2528 = vpop.f32.mrb[0].mxu0
      %v2529 = vadd.f32 0.0, %v2528
      %v2530 = vpop.f32.mrb[0].mxu0
      %v2531 = vadd.f32 0.0, %v2530
      %2532 = vmatprep.mubr.bf16.mxu0 0
      %2533 = vmatmul.mubr.bf16.gmra.mrb[0].mxu0 %v2476
      %v2534 = vpop.f32.mrb[0].mxu0
      %v2535 = vadd.f32 0.0, %v2534
      %v2536 = vpop.f32.mrb[0].mxu0
      %v2537 = vadd.f32 0.0, %v2536
      %v2538 = vpop.f32.mrb[0].mxu0
      %v2539 = vpop.f32.mrb[0].mxu0
      %2540 = vdwg.mxu0
      %2541 = vmatprep.subr.bf16.mxu0 %v2488
      %2542 = vmatpush1.bf16.msra.mxu0 %v2485
      %2543 = vmatprep.subr.bf16.mxu0 0
      %2544 = vmatpush1.bf16.msra.mxu0 0
      %2545 = vmatprep.subr.bf16.mxu0 0
      %2546 = vmatpush1.bf16.msra.mxu0 0
      %2547 = vmatprep.subr.bf16.mxu0 0
      %2548 = vmatpush1.bf16.msra.mxu0 0
      %2549 = vmatprep.subr.bf16.mxu0 0
      %2550 = vmatpush1.bf16.msra.mxu0 0
      %2551 = vmatprep.subr.bf16.mxu0 0
      %2552 = vmatpush1.bf16.msra.mxu0 0
      %2553 = vmatprep.subr.bf16.mxu0 0
      %2554 = vmatpush1.bf16.msra.mxu0 0
      %2555 = vmatprep.subr.bf16.mxu0 0
      %2556 = vmatpush1.bf16.msra.mxu0 0
      %2557 = vmatprep.subr.bf16.mxu0 0
      %2558 = vmatpush1.bf16.msra.mxu0 0
      %2559 = vmatprep.subr.bf16.mxu0 0
      %2560 = vmatpush1.bf16.msra.mxu0 0
      %2561 = vmatprep.subr.bf16.mxu0 0
      %2562 = vmatpush1.bf16.msra.mxu0 0
      %2563 = vmatprep.subr.bf16.mxu0 0
      %2564 = vmatpush1.bf16.msra.mxu0 0
      %2565 = vmatprep.subr.bf16.mxu0 0
      %2566 = vmatpush1.bf16.msra.mxu0 0
      %2567 = vmatprep.subr.bf16.mxu0 0
      %2568 = vmatpush1.bf16.msra.mxu0 0
      %2569 = vmatprep.subr.bf16.mxu0 0
      %2570 = vmatpush1.bf16.msra.mxu0 0
      %2571 = vmatprep.subr.bf16.mxu0 0
      %2572 = vmatpush1.bf16.msra.mxu0 0
      %2573 = vmatprep.mubr.bf16.mxu0 0
      %2574 = vmatmul.mubr.bf16.gmra.mrb[0].mxu0 %v2473
      %v2575 = vpop.f32.mrb[0].mxu0
      %v2576 = vadd.f32 0.0, %v2575
      %v2577 = vpop.f32.mrb[0].mxu0
      %v2578 = vadd.f32 0.0, %v2577
      %v2579 = vpop.f32.mrb[0].mxu0
      %v2580 = vadd.f32 0.0, %v2579
      %v2581 = vpop.f32.mrb[0].mxu0
      %v2582 = vadd.f32 0.0, %v2581
      %2583 = vmatprep.mubr.bf16.mxu0 0
      %2584 = vmatmul.mubr.bf16.gmra.mrb[0].mxu0 %v2476
      %v2585 = vpop.f32.mrb[0].mxu0
      %v2586 = vadd.f32 0.0, %v2585
      %v2587 = vpop.f32.mrb[0].mxu0
      %v2588 = vadd.f32 0.0, %v2587
      %v2589 = vpop.f32.mrb[0].mxu0
      %v2590 = vpop.f32.mrb[0].mxu0
      %2591 = vdwg.mxu0
      %v2592 = vadd.f32 %v2433, %v2525
      %v2593 = vadd.f32 %v2434, %v2527
      %v2594 = vadd.f32 %v2435, %v2576
      %v2595 = vadd.f32 %v2436, %v2578
      %v2596 = vadd.f32 %v2437, %v2529
      %v2597 = vadd.f32 %v2438, %v2531
      %v2598 = vadd.f32 %v2439, %v2580
      %v2599 = vadd.f32 %v2440, %v2582
      %v2600 = vadd.f32 %v2441, %v2535
      %v2601 = vadd.f32 %v2442, %v2537
      %v2602 = vadd.f32 %v2443, %v2586
      %v2603 = vadd.f32 %v2444, %v2588
      %s2604 = scalar_lea.vmem %s0, 180
      %v2605 = vld [vmem:[%s2604] sm:$0xf]
      %v2606 = vld [vmem:[%s2604 + $0x4] sm:$0xf]
      %v2607 = vld [vmem:[%s2604 + $0x8] sm:$0xf]
      %v2611 = vunpack.c.l.b16 %v2605
      %v2612 = vunpack.c.l.b16 %v2606
      %v2613 = vunpack.c.l.b16 %v2607
      %v2614 = vpack.c.b16 %v2612, %v2611
      %v2615 = vpack.c.b16 %v2613, %v2613
      %2616 = vrot.lane.b32.xlu0 %v267, 8
      %v2617 = vpop.permute.xlu0 %2616
      %2618 = vrot.lane.b32.xlu0 %v268, 8
      %v2619 = vpop.permute.xlu0 %2618
      %2620 = vrot.lane.b32.xlu0 %v269, 8
      %v2621 = vpop.permute.xlu0 %2620
      %2622 = vrot.lane.b32.xlu0 %v270, 8
      %v2623 = vpop.permute.xlu0 %2622
      %2624 = vrot.lane.b32.xlu0 %v271, 8
      %v2625 = vpop.permute.xlu0 %2624
      %vm2626 = vcmask 64512
      %v2627 = vsel %vm2626, %v2617, %v2619
      %v2628 = vsel %vm2626, %v2619, %v2621
      %v2629 = vsel %vm2626, %v2621, %v2623
      %v2630 = vsel %vm2626, %v2623, %v2625
      %v2632 = vsel %vm287, %v2614, 0
      %v2635 = vsel %vm287, %v2615, 0
      %v2638 = vsel %vm294, %v2627, 0
      %v2641 = vsel %vm294, %v2628, 0
      %v2644 = vsel %vm294, %v2629, 0
      %v2647 = vsel %vm294, %v2630, 0
      %2649 = vmatprep.subr.bf16.mxu0 %v2641
      %2650 = vmatpush1.bf16.msra.mxu0 %v2638
      %2651 = vmatprep.subr.bf16.mxu0 0
      %2652 = vmatpush1.bf16.msra.mxu0 0
      %2653 = vmatprep.subr.bf16.mxu0 0
      %2654 = vmatpush1.bf16.msra.mxu0 0
      %2655 = vmatprep.subr.bf16.mxu0 0
      %2656 = vmatpush1.bf16.msra.mxu0 0
      %2657 = vmatprep.subr.bf16.mxu0 0
      %2658 = vmatpush1.bf16.msra.mxu0 0
      %2659 = vmatprep.subr.bf16.mxu0 0
      %2660 = vmatpush1.bf16.msra.mxu0 0
      %2661 = vmatprep.subr.bf16.mxu0 0
      %2662 = vmatpush1.bf16.msra.mxu0 0
      %2663 = vmatprep.subr.bf16.mxu0 0
      %2664 = vmatpush1.bf16.msra.mxu0 0
      %2665 = vmatprep.subr.bf16.mxu0 0
      %2666 = vmatpush1.bf16.msra.mxu0 0
      %2667 = vmatprep.subr.bf16.mxu0 0
      %2668 = vmatpush1.bf16.msra.mxu0 0
      %2669 = vmatprep.subr.bf16.mxu0 0
      %2670 = vmatpush1.bf16.msra.mxu0 0
      %2671 = vmatprep.subr.bf16.mxu0 0
      %2672 = vmatpush1.bf16.msra.mxu0 0
      %2673 = vmatprep.subr.bf16.mxu0 0
      %2674 = vmatpush1.bf16.msra.mxu0 0
      %2675 = vmatprep.subr.bf16.mxu0 0
      %2676 = vmatpush1.bf16.msra.mxu0 0
      %2677 = vmatprep.subr.bf16.mxu0 0
      %2678 = vmatpush1.bf16.msra.mxu0 0
      %2679 = vmatprep.subr.bf16.mxu0 0
      %2680 = vmatpush1.bf16.msra.mxu0 0
      %2681 = vmatprep.mubr.bf16.mxu0 0
      %2682 = vmatmul.mubr.bf16.gmra.mrb[0].mxu0 %v2632
      %v2683 = vpop.f32.mrb[0].mxu0
      %v2684 = vadd.f32 0.0, %v2683
      %v2685 = vpop.f32.mrb[0].mxu0
      %v2686 = vadd.f32 0.0, %v2685
      %v2687 = vpop.f32.mrb[0].mxu0
      %v2688 = vadd.f32 0.0, %v2687
      %v2689 = vpop.f32.mrb[0].mxu0
      %v2690 = vadd.f32 0.0, %v2689
      %2691 = vmatprep.mubr.bf16.mxu0 0
      %2692 = vmatmul.mubr.bf16.gmra.mrb[0].mxu0 %v2635
      %v2693 = vpop.f32.mrb[0].mxu0
      %v2694 = vadd.f32 0.0, %v2693
      %v2695 = vpop.f32.mrb[0].mxu0
      %v2696 = vadd.f32 0.0, %v2695
      %v2697 = vpop.f32.mrb[0].mxu0
      %v2698 = vpop.f32.mrb[0].mxu0
      %2699 = vdwg.mxu0
      %2700 = vmatprep.subr.bf16.mxu0 %v2647
      %2701 = vmatpush1.bf16.msra.mxu0 %v2644
      %2702 = vmatprep.subr.bf16.mxu0 0
      %2703 = vmatpush1.bf16.msra.mxu0 0
      %2704 = vmatprep.subr.bf16.mxu0 0
      %2705 = vmatpush1.bf16.msra.mxu0 0
      %2706 = vmatprep.subr.bf16.mxu0 0
      %2707 = vmatpush1.bf16.msra.mxu0 0
      %2708 = vmatprep.subr.bf16.mxu0 0
      %2709 = vmatpush1.bf16.msra.mxu0 0
      %2710 = vmatprep.subr.bf16.mxu0 0
      %2711 = vmatpush1.bf16.msra.mxu0 0
      %2712 = vmatprep.subr.bf16.mxu0 0
      %2713 = vmatpush1.bf16.msra.mxu0 0
      %2714 = vmatprep.subr.bf16.mxu0 0
      %2715 = vmatpush1.bf16.msra.mxu0 0
      %2716 = vmatprep.subr.bf16.mxu0 0
      %2717 = vmatpush1.bf16.msra.mxu0 0
      %2718 = vmatprep.subr.bf16.mxu0 0
      %2719 = vmatpush1.bf16.msra.mxu0 0
      %2720 = vmatprep.subr.bf16.mxu0 0
      %2721 = vmatpush1.bf16.msra.mxu0 0
      %2722 = vmatprep.subr.bf16.mxu0 0
      %2723 = vmatpush1.bf16.msra.mxu0 0
      %2724 = vmatprep.subr.bf16.mxu0 0
      %2725 = vmatpush1.bf16.msra.mxu0 0
      %2726 = vmatprep.subr.bf16.mxu0 0
      %2727 = vmatpush1.bf16.msra.mxu0 0
      %2728 = vmatprep.subr.bf16.mxu0 0
      %2729 = vmatpush1.bf16.msra.mxu0 0
      %2730 = vmatprep.subr.bf16.mxu0 0
      %2731 = vmatpush1.bf16.msra.mxu0 0
      %2732 = vmatprep.mubr.bf16.mxu0 0
      %2733 = vmatmul.mubr.bf16.gmra.mrb[0].mxu0 %v2632
      %v2734 = vpop.f32.mrb[0].mxu0
      %v2735 = vadd.f32 0.0, %v2734
      %v2736 = vpop.f32.mrb[0].mxu0
      %v2737 = vadd.f32 0.0, %v2736
      %v2738 = vpop.f32.mrb[0].mxu0
      %v2739 = vadd.f32 0.0, %v2738
      %v2740 = vpop.f32.mrb[0].mxu0
      %v2741 = vadd.f32 0.0, %v2740
      %2742 = vmatprep.mubr.bf16.mxu0 0
      %2743 = vmatmul.mubr.bf16.gmra.mrb[0].mxu0 %v2635
      %v2744 = vpop.f32.mrb[0].mxu0
      %v2745 = vadd.f32 0.0, %v2744
      %v2746 = vpop.f32.mrb[0].mxu0
      %v2747 = vadd.f32 0.0, %v2746
      %v2748 = vpop.f32.mrb[0].mxu0
      %v2749 = vpop.f32.mrb[0].mxu0
      %2750 = vdwg.mxu0
      %v2751 = vadd.f32 %v2592, %v2684
      %v2752 = vadd.f32 %v2593, %v2686
      %v2753 = vadd.f32 %v2594, %v2735
      %v2754 = vadd.f32 %v2595, %v2737
      %v2755 = vadd.f32 %v2596, %v2688
      %v2756 = vadd.f32 %v2597, %v2690
      %v2757 = vadd.f32 %v2598, %v2739
      %v2758 = vadd.f32 %v2599, %v2741
      %v2759 = vadd.f32 %v2600, %v2694
      %v2760 = vadd.f32 %v2601, %v2696
      %v2761 = vadd.f32 %v2602, %v2745
      %v2762 = vadd.f32 %v2603, %v2747
      %s2763 = scalar_lea.vmem %s0, 192
      %v2764 = vld [vmem:[%s2763] sm:$0xf]
      %v2765 = vld [vmem:[%s2763 + $0x4] sm:$0xf]
      %v2766 = vld [vmem:[%s2763 + $0x8] sm:$0xf]
      %v2770 = vunpack.c.l.b16 %v2764
      %v2771 = vunpack.c.l.b16 %v2765
      %v2772 = vunpack.c.l.b16 %v2766
      %v2773 = vpack.c.b16 %v2771, %v2770
      %v2774 = vpack.c.b16 %v2772, %v2772
      %2775 = vrot.lane.b32.xlu0 %v267, 7
      %v2776 = vpop.permute.xlu0 %2775
      %2777 = vrot.lane.b32.xlu0 %v268, 7
      %v2778 = vpop.permute.xlu0 %2777
      %2779 = vrot.lane.b32.xlu0 %v269, 7
      %v2780 = vpop.permute.xlu0 %2779
      %2781 = vrot.lane.b32.xlu0 %v270, 7
      %v2782 = vpop.permute.xlu0 %2781
      %2783 = vrot.lane.b32.xlu0 %v271, 7
      %v2784 = vpop.permute.xlu0 %2783
      %vm2785 = vcmask 56320
      %v2786 = vsel %vm2785, %v2776, %v2778
      %v2787 = vsel %vm2785, %v2778, %v2780
      %v2788 = vsel %vm2785, %v2780, %v2782
      %v2789 = vsel %vm2785, %v2782, %v2784
      %v2791 = vsel %vm287, %v2773, 0
      %v2794 = vsel %vm287, %v2774, 0
      %v2797 = vsel %vm294, %v2786, 0
      %v2800 = vsel %vm294, %v2787, 0
      %v2803 = vsel %vm294, %v2788, 0
      %v2806 = vsel %vm294, %v2789, 0
      %2808 = vmatprep.subr.bf16.mxu0 %v2800
      %2809 = vmatpush1.bf16.msra.mxu0 %v2797
      %2810 = vmatprep.subr.bf16.mxu0 0
      %2811 = vmatpush1.bf16.msra.mxu0 0
      %2812 = vmatprep.subr.bf16.mxu0 0
      %2813 = vmatpush1.bf16.msra.mxu0 0
      %2814 = vmatprep.subr.bf16.mxu0 0
      %2815 = vmatpush1.bf16.msra.mxu0 0
      %2816 = vmatprep.subr.bf16.mxu0 0
      %2817 = vmatpush1.bf16.msra.mxu0 0
      %2818 = vmatprep.subr.bf16.mxu0 0
      %2819 = vmatpush1.bf16.msra.mxu0 0
      %2820 = vmatprep.subr.bf16.mxu0 0
      %2821 = vmatpush1.bf16.msra.mxu0 0
      %2822 = vmatprep.subr.bf16.mxu0 0
      %2823 = vmatpush1.bf16.msra.mxu0 0
      %2824 = vmatprep.subr.bf16.mxu0 0
      %2825 = vmatpush1.bf16.msra.mxu0 0
      %2826 = vmatprep.subr.bf16.mxu0 0
      %2827 = vmatpush1.bf16.msra.mxu0 0
      %2828 = vmatprep.subr.bf16.mxu0 0
      %2829 = vmatpush1.bf16.msra.mxu0 0
      %2830 = vmatprep.subr.bf16.mxu0 0
      %2831 = vmatpush1.bf16.msra.mxu0 0
      %2832 = vmatprep.subr.bf16.mxu0 0
      %2833 = vmatpush1.bf16.msra.mxu0 0
      %2834 = vmatprep.subr.bf16.mxu0 0
      %2835 = vmatpush1.bf16.msra.mxu0 0
      %2836 = vmatprep.subr.bf16.mxu0 0
      %2837 = vmatpush1.bf16.msra.mxu0 0
      %2838 = vmatprep.subr.bf16.mxu0 0
      %2839 = vmatpush1.bf16.msra.mxu0 0
      %2840 = vmatprep.mubr.bf16.mxu0 0
      %2841 = vmatmul.mubr.bf16.gmra.mrb[0].mxu0 %v2791
      %v2842 = vpop.f32.mrb[0].mxu0
      %v2843 = vadd.f32 0.0, %v2842
      %v2844 = vpop.f32.mrb[0].mxu0
      %v2845 = vadd.f32 0.0, %v2844
      %v2846 = vpop.f32.mrb[0].mxu0
      %v2847 = vadd.f32 0.0, %v2846
      %v2848 = vpop.f32.mrb[0].mxu0
      %v2849 = vadd.f32 0.0, %v2848
      %2850 = vmatprep.mubr.bf16.mxu0 0
      %2851 = vmatmul.mubr.bf16.gmra.mrb[0].mxu0 %v2794
      %v2852 = vpop.f32.mrb[0].mxu0
      %v2853 = vadd.f32 0.0, %v2852
      %v2854 = vpop.f32.mrb[0].mxu0
      %v2855 = vadd.f32 0.0, %v2854
      %v2856 = vpop.f32.mrb[0].mxu0
      %v2857 = vpop.f32.mrb[0].mxu0
      %2858 = vdwg.mxu0
      %2859 = vmatprep.subr.bf16.mxu0 %v2806
      %2860 = vmatpush1.bf16.msra.mxu0 %v2803
      %2861 = vmatprep.subr.bf16.mxu0 0
      %2862 = vmatpush1.bf16.msra.mxu0 0
      %2863 = vmatprep.subr.bf16.mxu0 0
      %2864 = vmatpush1.bf16.msra.mxu0 0
      %2865 = vmatprep.subr.bf16.mxu0 0
      %2866 = vmatpush1.bf16.msra.mxu0 0
      %2867 = vmatprep.subr.bf16.mxu0 0
      %2868 = vmatpush1.bf16.msra.mxu0 0
      %2869 = vmatprep.subr.bf16.mxu0 0
      %2870 = vmatpush1.bf16.msra.mxu0 0
      %2871 = vmatprep.subr.bf16.mxu0 0
      %2872 = vmatpush1.bf16.msra.mxu0 0
      %2873 = vmatprep.subr.bf16.mxu0 0
      %2874 = vmatpush1.bf16.msra.mxu0 0
      %2875 = vmatprep.subr.bf16.mxu0 0
      %2876 = vmatpush1.bf16.msra.mxu0 0
      %2877 = vmatprep.subr.bf16.mxu0 0
      %2878 = vmatpush1.bf16.msra.mxu0 0
      %2879 = vmatprep.subr.bf16.mxu0 0
      %2880 = vmatpush1.bf16.msra.mxu0 0
      %2881 = vmatprep.subr.bf16.mxu0 0
      %2882 = vmatpush1.bf16.msra.mxu0 0
      %2883 = vmatprep.subr.bf16.mxu0 0
      %2884 = vmatpush1.bf16.msra.mxu0 0
      %2885 = vmatprep.subr.bf16.mxu0 0
      %2886 = vmatpush1.bf16.msra.mxu0 0
      %2887 = vmatprep.subr.bf16.mxu0 0
      %2888 = vmatpush1.bf16.msra.mxu0 0
      %2889 = vmatprep.subr.bf16.mxu0 0
      %2890 = vmatpush1.bf16.msra.mxu0 0
      %2891 = vmatprep.mubr.bf16.mxu0 0
      %2892 = vmatmul.mubr.bf16.gmra.mrb[0].mxu0 %v2791
      %v2893 = vpop.f32.mrb[0].mxu0
      %v2894 = vadd.f32 0.0, %v2893
      %v2895 = vpop.f32.mrb[0].mxu0
      %v2896 = vadd.f32 0.0, %v2895
      %v2897 = vpop.f32.mrb[0].mxu0
      %v2898 = vadd.f32 0.0, %v2897
      %v2899 = vpop.f32.mrb[0].mxu0
      %v2900 = vadd.f32 0.0, %v2899
      %2901 = vmatprep.mubr.bf16.mxu0 0
      %2902 = vmatmul.mubr.bf16.gmra.mrb[0].mxu0 %v2794
      %v2903 = vpop.f32.mrb[0].mxu0
      %v2904 = vadd.f32 0.0, %v2903
      %v2905 = vpop.f32.mrb[0].mxu0
      %v2906 = vadd.f32 0.0, %v2905
      %v2907 = vpop.f32.mrb[0].mxu0
      %v2908 = vpop.f32.mrb[0].mxu0
      %2909 = vdwg.mxu0
      %v2910 = vadd.f32 %v2751, %v2843
      %v2911 = vadd.f32 %v2752, %v2845
      %v2912 = vadd.f32 %v2753, %v2894
      %v2913 = vadd.f32 %v2754, %v2896
      %v2914 = vadd.f32 %v2755, %v2847
      %v2915 = vadd.f32 %v2756, %v2849
      %v2916 = vadd.f32 %v2757, %v2898
      %v2917 = vadd.f32 %v2758, %v2900
      %v2918 = vadd.f32 %v2759, %v2853
      %v2919 = vadd.f32 %v2760, %v2855
      %v2920 = vadd.f32 %v2761, %v2904
      %v2921 = vadd.f32 %v2762, %v2906
      %s2922 = scalar_lea.vmem %s0, 204
      %v2923 = vld [vmem:[%s2922] sm:$0xf]
      %v2924 = vld [vmem:[%s2922 + $0x4] sm:$0xf]
      %v2925 = vld [vmem:[%s2922 + $0x8] sm:$0xf]
      %v2929 = vunpack.c.l.b16 %v2923
      %v2930 = vunpack.c.l.b16 %v2924
      %v2931 = vunpack.c.l.b16 %v2925
      %v2932 = vpack.c.b16 %v2930, %v2929
      %v2933 = vpack.c.b16 %v2931, %v2931
      %2934 = vrot.lane.b32.xlu0 %v267, 6
      %v2935 = vpop.permute.xlu0 %2934
      %2936 = vrot.lane.b32.xlu0 %v268, 6
      %v2937 = vpop.permute.xlu0 %2936
      %2938 = vrot.lane.b32.xlu0 %v269, 6
      %v2939 = vpop.permute.xlu0 %2938
      %2940 = vrot.lane.b32.xlu0 %v270, 6
      %v2941 = vpop.permute.xlu0 %2940
      %2942 = vrot.lane.b32.xlu0 %v271, 6
      %v2943 = vpop.permute.xlu0 %2942
      %vm2944 = vcmask 48128
      %v2945 = vsel %vm2944, %v2935, %v2937
      %v2946 = vsel %vm2944, %v2937, %v2939
      %v2947 = vsel %vm2944, %v2939, %v2941
      %v2948 = vsel %vm2944, %v2941, %v2943
      %v2950 = vsel %vm287, %v2932, 0
      %v2953 = vsel %vm287, %v2933, 0
      %v2956 = vsel %vm294, %v2945, 0
      %v2959 = vsel %vm294, %v2946, 0
      %v2962 = vsel %vm294, %v2947, 0
      %v2965 = vsel %vm294, %v2948, 0
      %2967 = vmatprep.subr.bf16.mxu0 %v2959
      %2968 = vmatpush1.bf16.msra.mxu0 %v2956
      %2969 = vmatprep.subr.bf16.mxu0 0
      %2970 = vmatpush1.bf16.msra.mxu0 0
      %2971 = vmatprep.subr.bf16.mxu0 0
      %2972 = vmatpush1.bf16.msra.mxu0 0
      %2973 = vmatprep.subr.bf16.mxu0 0
      %2974 = vmatpush1.bf16.msra.mxu0 0
      %2975 = vmatprep.subr.bf16.mxu0 0
      %2976 = vmatpush1.bf16.msra.mxu0 0
      %2977 = vmatprep.subr.bf16.mxu0 0
      %2978 = vmatpush1.bf16.msra.mxu0 0
      %2979 = vmatprep.subr.bf16.mxu0 0
      %2980 = vmatpush1.bf16.msra.mxu0 0
      %2981 = vmatprep.subr.bf16.mxu0 0
      %2982 = vmatpush1.bf16.msra.mxu0 0
      %2983 = vmatprep.subr.bf16.mxu0 0
      %2984 = vmatpush1.bf16.msra.mxu0 0
      %2985 = vmatprep.subr.bf16.mxu0 0
      %2986 = vmatpush1.bf16.msra.mxu0 0
      %2987 = vmatprep.subr.bf16.mxu0 0
      %2988 = vmatpush1.bf16.msra.mxu0 0
      %2989 = vmatprep.subr.bf16.mxu0 0
      %2990 = vmatpush1.bf16.msra.mxu0 0
      %2991 = vmatprep.subr.bf16.mxu0 0
      %2992 = vmatpush1.bf16.msra.mxu0 0
      %2993 = vmatprep.subr.bf16.mxu0 0
      %2994 = vmatpush1.bf16.msra.mxu0 0
      %2995 = vmatprep.subr.bf16.mxu0 0
      %2996 = vmatpush1.bf16.msra.mxu0 0
      %2997 = vmatprep.subr.bf16.mxu0 0
      %2998 = vmatpush1.bf16.msra.mxu0 0
      %2999 = vmatprep.mubr.bf16.mxu0 0
      %3000 = vmatmul.mubr.bf16.gmra.mrb[0].mxu0 %v2950
      %v3001 = vpop.f32.mrb[0].mxu0
      %v3002 = vadd.f32 0.0, %v3001
      %v3003 = vpop.f32.mrb[0].mxu0
      %v3004 = vadd.f32 0.0, %v3003
      %v3005 = vpop.f32.mrb[0].mxu0
      %v3006 = vadd.f32 0.0, %v3005
      %v3007 = vpop.f32.mrb[0].mxu0
      %v3008 = vadd.f32 0.0, %v3007
      %3009 = vmatprep.mubr.bf16.mxu0 0
      %3010 = vmatmul.mubr.bf16.gmra.mrb[0].mxu0 %v2953
      %v3011 = vpop.f32.mrb[0].mxu0
      %v3012 = vadd.f32 0.0, %v3011
      %v3013 = vpop.f32.mrb[0].mxu0
      %v3014 = vadd.f32 0.0, %v3013
      %v3015 = vpop.f32.mrb[0].mxu0
      %v3016 = vpop.f32.mrb[0].mxu0
      %3017 = vdwg.mxu0
      %3018 = vmatprep.subr.bf16.mxu0 %v2965
      %3019 = vmatpush1.bf16.msra.mxu0 %v2962
      %3020 = vmatprep.subr.bf16.mxu0 0
      %3021 = vmatpush1.bf16.msra.mxu0 0
      %3022 = vmatprep.subr.bf16.mxu0 0
      %3023 = vmatpush1.bf16.msra.mxu0 0
      %3024 = vmatprep.subr.bf16.mxu0 0
      %3025 = vmatpush1.bf16.msra.mxu0 0
      %3026 = vmatprep.subr.bf16.mxu0 0
      %3027 = vmatpush1.bf16.msra.mxu0 0
      %3028 = vmatprep.subr.bf16.mxu0 0
      %3029 = vmatpush1.bf16.msra.mxu0 0
      %3030 = vmatprep.subr.bf16.mxu0 0
      %3031 = vmatpush1.bf16.msra.mxu0 0
      %3032 = vmatprep.subr.bf16.mxu0 0
      %3033 = vmatpush1.bf16.msra.mxu0 0
      %3034 = vmatprep.subr.bf16.mxu0 0
      %3035 = vmatpush1.bf16.msra.mxu0 0
      %3036 = vmatprep.subr.bf16.mxu0 0
      %3037 = vmatpush1.bf16.msra.mxu0 0
      %3038 = vmatprep.subr.bf16.mxu0 0
      %3039 = vmatpush1.bf16.msra.mxu0 0
      %3040 = vmatprep.subr.bf16.mxu0 0
      %3041 = vmatpush1.bf16.msra.mxu0 0
      %3042 = vmatprep.subr.bf16.mxu0 0
      %3043 = vmatpush1.bf16.msra.mxu0 0
      %3044 = vmatprep.subr.bf16.mxu0 0
      %3045 = vmatpush1.bf16.msra.mxu0 0
      %3046 = vmatprep.subr.bf16.mxu0 0
      %3047 = vmatpush1.bf16.msra.mxu0 0
      %3048 = vmatprep.subr.bf16.mxu0 0
      %3049 = vmatpush1.bf16.msra.mxu0 0
      %3050 = vmatprep.mubr.bf16.mxu0 0
      %3051 = vmatmul.mubr.bf16.gmra.mrb[0].mxu0 %v2950
      %v3052 = vpop.f32.mrb[0].mxu0
      %v3053 = vadd.f32 0.0, %v3052
      %v3054 = vpop.f32.mrb[0].mxu0
      %v3055 = vadd.f32 0.0, %v3054
      %v3056 = vpop.f32.mrb[0].mxu0
      %v3057 = vadd.f32 0.0, %v3056
      %v3058 = vpop.f32.mrb[0].mxu0
      %v3059 = vadd.f32 0.0, %v3058
      %3060 = vmatprep.mubr.bf16.mxu0 0
      %3061 = vmatmul.mubr.bf16.gmra.mrb[0].mxu0 %v2953
      %v3062 = vpop.f32.mrb[0].mxu0
      %v3063 = vadd.f32 0.0, %v3062
      %v3064 = vpop.f32.mrb[0].mxu0
      %v3065 = vadd.f32 0.0, %v3064
      %v3066 = vpop.f32.mrb[0].mxu0
      %v3067 = vpop.f32.mrb[0].mxu0
      %3068 = vdwg.mxu0
      %v3069 = vadd.f32 %v2910, %v3002
      %v3070 = vadd.f32 %v2911, %v3004
      %v3071 = vadd.f32 %v2912, %v3053
      %v3072 = vadd.f32 %v2913, %v3055
      %v3073 = vadd.f32 %v2914, %v3006
      %v3074 = vadd.f32 %v2915, %v3008
      %v3075 = vadd.f32 %v2916, %v3057
      %v3076 = vadd.f32 %v2917, %v3059
      %v3077 = vadd.f32 %v2918, %v3012
      %v3078 = vadd.f32 %v2919, %v3014
      %v3079 = vadd.f32 %v2920, %v3063
      %v3080 = vadd.f32 %v2921, %v3065
      %v3081 = vld [vmem:[#allocation2 + $0x4] sm:$0xff]
      %v3082 = vld [vmem:[#allocation2 + $0xc] sm:$0xff]
      %v3083 = vld [vmem:[#allocation2 + $0x14] sm:$0xf]
      %s3084 = scalar_lea.vmem %s0, 216
      %v3085 = vld [vmem:[%s3084] sm:$0xf]
      %v3086 = vld [vmem:[%s3084 + $0x4] sm:$0xf]
      %v3087 = vld [vmem:[%s3084 + $0x8] sm:$0xf]
      %v3091 = vunpack.c.l.b16 %v3085
      %v3092 = vunpack.c.l.b16 %v3086
      %v3093 = vunpack.c.l.b16 %v3087
      %v3094 = vpack.c.b16 %v3092, %v3091
      %v3095 = vpack.c.b16 %v3093, %v3093
      %v3099 = vunpack.c.l.b16 %v3081
      %v3100 = vunpack.c.h.b16 %v3081
      %v3101 = vunpack.c.l.b16 %v3082
      %v3102 = vunpack.c.h.b16 %v3082
      %v3103 = vunpack.c.l.b16 %v3083
      %v3104 = vpack.c.b16 %v3099, %v3099
      %v3105 = vpack.c.b16 %v3100, %v3100
      %v3106 = vpack.c.b16 %v3101, %v3101
      %v3107 = vpack.c.b16 %v3102, %v3102
      %v3108 = vpack.c.b16 %v3103, %v3103
      %3109 = vrot.lane.b32.xlu0 %v3104, 56
      %v3110 = vpop.permute.xlu0 %3109
      %3111 = vrot.lane.b32.xlu0 %v3105, 56
      %v3112 = vpop.permute.xlu0 %3111
      %3113 = vrot.lane.b32.xlu0 %v3106, 56
      %v3114 = vpop.permute.xlu0 %3113
      %3115 = vrot.lane.b32.xlu0 %v3107, 56
      %v3116 = vpop.permute.xlu0 %3115
      %3117 = vrot.lane.b32.xlu0 %v3108, 56
      %v3118 = vpop.permute.xlu0 %3117
      %vm3119 = vcmask 457728
      %v3120 = vsel %vm3119, %v3110, %v3112
      %v3121 = vsel %vm3119, %v3112, %v3114
      %v3122 = vsel %vm3119, %v3114, %v3116
      %v3123 = vsel %vm3119, %v3116, %v3118
      %v3125 = vsel %vm287, %v3094, 0
      %v3128 = vsel %vm287, %v3095, 0
      %v3131 = vsel %vm294, %v3120, 0
      %v3134 = vsel %vm294, %v3121, 0
      %v3137 = vsel %vm294, %v3122, 0
      %v3140 = vsel %vm294, %v3123, 0
      %3142 = vmatprep.subr.bf16.mxu0 %v3134
      %3143 = vmatpush1.bf16.msra.mxu0 %v3131
      %3144 = vmatprep.subr.bf16.mxu0 0
      %3145 = vmatpush1.bf16.msra.mxu0 0
      %3146 = vmatprep.subr.bf16.mxu0 0
      %3147 = vmatpush1.bf16.msra.mxu0 0
      %3148 = vmatprep.subr.bf16.mxu0 0
      %3149 = vmatpush1.bf16.msra.mxu0 0
      %3150 = vmatprep.subr.bf16.mxu0 0
      %3151 = vmatpush1.bf16.msra.mxu0 0
      %3152 = vmatprep.subr.bf16.mxu0 0
      %3153 = vmatpush1.bf16.msra.mxu0 0
      %3154 = vmatprep.subr.bf16.mxu0 0
      %3155 = vmatpush1.bf16.msra.mxu0 0
      %3156 = vmatprep.subr.bf16.mxu0 0
      %3157 = vmatpush1.bf16.msra.mxu0 0
      %3158 = vmatprep.subr.bf16.mxu0 0
      %3159 = vmatpush1.bf16.msra.mxu0 0
      %3160 = vmatprep.subr.bf16.mxu0 0
      %3161 = vmatpush1.bf16.msra.mxu0 0
      %3162 = vmatprep.subr.bf16.mxu0 0
      %3163 = vmatpush1.bf16.msra.mxu0 0
      %3164 = vmatprep.subr.bf16.mxu0 0
      %3165 = vmatpush1.bf16.msra.mxu0 0
      %3166 = vmatprep.subr.bf16.mxu0 0
      %3167 = vmatpush1.bf16.msra.mxu0 0
      %3168 = vmatprep.subr.bf16.mxu0 0
      %3169 = vmatpush1.bf16.msra.mxu0 0
      %3170 = vmatprep.subr.bf16.mxu0 0
      %3171 = vmatpush1.bf16.msra.mxu0 0
      %3172 = vmatprep.subr.bf16.mxu0 0
      %3173 = vmatpush1.bf16.msra.mxu0 0
      %3174 = vmatprep.mubr.bf16.mxu0 0
      %3175 = vmatmul.mubr.bf16.gmra.mrb[0].mxu0 %v3125
      %v3176 = vpop.f32.mrb[0].mxu0
      %v3177 = vadd.f32 0.0, %v3176
      %v3178 = vpop.f32.mrb[0].mxu0
      %v3179 = vadd.f32 0.0, %v3178
      %v3180 = vpop.f32.mrb[0].mxu0
      %v3181 = vadd.f32 0.0, %v3180
      %v3182 = vpop.f32.mrb[0].mxu0
      %v3183 = vadd.f32 0.0, %v3182
      %3184 = vmatprep.mubr.bf16.mxu0 0
      %3185 = vmatmul.mubr.bf16.gmra.mrb[0].mxu0 %v3128
      %v3186 = vpop.f32.mrb[0].mxu0
      %v3187 = vadd.f32 0.0, %v3186
      %v3188 = vpop.f32.mrb[0].mxu0
      %v3189 = vadd.f32 0.0, %v3188
      %v3190 = vpop.f32.mrb[0].mxu0
      %v3191 = vpop.f32.mrb[0].mxu0
      %3192 = vdwg.mxu0
      %3193 = vmatprep.subr.bf16.mxu0 %v3140
      %3194 = vmatpush1.bf16.msra.mxu0 %v3137
      %3195 = vmatprep.subr.bf16.mxu0 0
      %3196 = vmatpush1.bf16.msra.mxu0 0
      %3197 = vmatprep.subr.bf16.mxu0 0
      %3198 = vmatpush1.bf16.msra.mxu0 0
      %3199 = vmatprep.subr.bf16.mxu0 0
      %3200 = vmatpush1.bf16.msra.mxu0 0
      %3201 = vmatprep.subr.bf16.mxu0 0
      %3202 = vmatpush1.bf16.msra.mxu0 0
      %3203 = vmatprep.subr.bf16.mxu0 0
      %3204 = vmatpush1.bf16.msra.mxu0 0
      %3205 = vmatprep.subr.bf16.mxu0 0
      %3206 = vmatpush1.bf16.msra.mxu0 0
      %3207 = vmatprep.subr.bf16.mxu0 0
      %3208 = vmatpush1.bf16.msra.mxu0 0
      %3209 = vmatprep.subr.bf16.mxu0 0
      %3210 = vmatpush1.bf16.msra.mxu0 0
      %3211 = vmatprep.subr.bf16.mxu0 0
      %3212 = vmatpush1.bf16.msra.mxu0 0
      %3213 = vmatprep.subr.bf16.mxu0 0
      %3214 = vmatpush1.bf16.msra.mxu0 0
      %3215 = vmatprep.subr.bf16.mxu0 0
      %3216 = vmatpush1.bf16.msra.mxu0 0
      %3217 = vmatprep.subr.bf16.mxu0 0
      %3218 = vmatpush1.bf16.msra.mxu0 0
      %3219 = vmatprep.subr.bf16.mxu0 0
      %3220 = vmatpush1.bf16.msra.mxu0 0
      %3221 = vmatprep.subr.bf16.mxu0 0
      %3222 = vmatpush1.bf16.msra.mxu0 0
      %3223 = vmatprep.subr.bf16.mxu0 0
      %3224 = vmatpush1.bf16.msra.mxu0 0
      %3225 = vmatprep.mubr.bf16.mxu0 0
      %3226 = vmatmul.mubr.bf16.gmra.mrb[0].mxu0 %v3125
      %v3227 = vpop.f32.mrb[0].mxu0
      %v3228 = vadd.f32 0.0, %v3227
      %v3229 = vpop.f32.mrb[0].mxu0
      %v3230 = vadd.f32 0.0, %v3229
      %v3231 = vpop.f32.mrb[0].mxu0
      %v3232 = vadd.f32 0.0, %v3231
      %v3233 = vpop.f32.mrb[0].mxu0
      %v3234 = vadd.f32 0.0, %v3233
      %3235 = vmatprep.mubr.bf16.mxu0 0
      %3236 = vmatmul.mubr.bf16.gmra.mrb[0].mxu0 %v3128
      %v3237 = vpop.f32.mrb[0].mxu0
      %v3238 = vadd.f32 0.0, %v3237
      %v3239 = vpop.f32.mrb[0].mxu0
      %v3240 = vadd.f32 0.0, %v3239
      %v3241 = vpop.f32.mrb[0].mxu0
      %v3242 = vpop.f32.mrb[0].mxu0
      %3243 = vdwg.mxu0
      %v3244 = vadd.f32 %v3069, %v3177
      %v3245 = vadd.f32 %v3070, %v3179
      %v3246 = vadd.f32 %v3071, %v3228
      %v3247 = vadd.f32 %v3072, %v3230
      %v3248 = vadd.f32 %v3073, %v3181
      %v3249 = vadd.f32 %v3074, %v3183
      %v3250 = vadd.f32 %v3075, %v3232
      %v3251 = vadd.f32 %v3076, %v3234
      %v3252 = vadd.f32 %v3077, %v3187
      %v3253 = vadd.f32 %v3078, %v3189
      %v3254 = vadd.f32 %v3079, %v3238
      %v3255 = vadd.f32 %v3080, %v3240
      %s3256 = scalar_lea.vmem %s0, 228
      %v3257 = vld [vmem:[%s3256] sm:$0xf]
      %v3258 = vld [vmem:[%s3256 + $0x4] sm:$0xf]
      %v3259 = vld [vmem:[%s3256 + $0x8] sm:$0xf]
      %v3263 = vunpack.c.l.b16 %v3257
      %v3264 = vunpack.c.l.b16 %v3258
      %v3265 = vunpack.c.l.b16 %v3259
      %v3266 = vpack.c.b16 %v3264, %v3263
      %v3267 = vpack.c.b16 %v3265, %v3265
      %3268 = vrot.lane.b32.xlu0 %v3104, 55
      %v3269 = vpop.permute.xlu0 %3268
      %3270 = vrot.lane.b32.xlu0 %v3105, 55
      %v3271 = vpop.permute.xlu0 %3270
      %3272 = vrot.lane.b32.xlu0 %v3106, 55
      %v3273 = vpop.permute.xlu0 %3272
      %3274 = vrot.lane.b32.xlu0 %v3107, 55
      %v3275 = vpop.permute.xlu0 %3274
      %3276 = vrot.lane.b32.xlu0 %v3108, 55
      %v3277 = vpop.permute.xlu0 %3276
      %vm3278 = vcmask 449536
      %v3279 = vsel %vm3278, %v3269, %v3271
      %v3280 = vsel %vm3278, %v3271, %v3273
      %v3281 = vsel %vm3278, %v3273, %v3275
      %v3282 = vsel %vm3278, %v3275, %v3277
      %v3284 = vsel %vm287, %v3266, 0
      %v3287 = vsel %vm287, %v3267, 0
      %v3290 = vsel %vm294, %v3279, 0
      %v3293 = vsel %vm294, %v3280, 0
      %v3296 = vsel %vm294, %v3281, 0
      %v3299 = vsel %vm294, %v3282, 0
      %3301 = vmatprep.subr.bf16.mxu0 %v3293
      %3302 = vmatpush1.bf16.msra.mxu0 %v3290
      %3303 = vmatprep.subr.bf16.mxu0 0
      %3304 = vmatpush1.bf16.msra.mxu0 0
      %3305 = vmatprep.subr.bf16.mxu0 0
      %3306 = vmatpush1.bf16.msra.mxu0 0
      %3307 = vmatprep.subr.bf16.mxu0 0
      %3308 = vmatpush1.bf16.msra.mxu0 0
      %3309 = vmatprep.subr.bf16.mxu0 0
      %3310 = vmatpush1.bf16.msra.mxu0 0
      %3311 = vmatprep.subr.bf16.mxu0 0
      %3312 = vmatpush1.bf16.msra.mxu0 0
      %3313 = vmatprep.subr.bf16.mxu0 0
      %3314 = vmatpush1.bf16.msra.mxu0 0
      %3315 = vmatprep.subr.bf16.mxu0 0
      %3316 = vmatpush1.bf16.msra.mxu0 0
      %3317 = vmatprep.subr.bf16.mxu0 0
      %3318 = vmatpush1.bf16.msra.mxu0 0
      %3319 = vmatprep.subr.bf16.mxu0 0
      %3320 = vmatpush1.bf16.msra.mxu0 0
      %3321 = vmatprep.subr.bf16.mxu0 0
      %3322 = vmatpush1.bf16.msra.mxu0 0
      %3323 = vmatprep.subr.bf16.mxu0 0
      %3324 = vmatpush1.bf16.msra.mxu0 0
      %3325 = vmatprep.subr.bf16.mxu0 0
      %3326 = vmatpush1.bf16.msra.mxu0 0
      %3327 = vmatprep.subr.bf16.mxu0 0
      %3328 = vmatpush1.bf16.msra.mxu0 0
      %3329 = vmatprep.subr.bf16.mxu0 0
      %3330 = vmatpush1.bf16.msra.mxu0 0
      %3331 = vmatprep.subr.bf16.mxu0 0
      %3332 = vmatpush1.bf16.msra.mxu0 0
      %3333 = vmatprep.mubr.bf16.mxu0 0
      %3334 = vmatmul.mubr.bf16.gmra.mrb[0].mxu0 %v3284
      %v3335 = vpop.f32.mrb[0].mxu0
      %v3336 = vadd.f32 0.0, %v3335
      %v3337 = vpop.f32.mrb[0].mxu0
      %v3338 = vadd.f32 0.0, %v3337
      %v3339 = vpop.f32.mrb[0].mxu0
      %v3340 = vadd.f32 0.0, %v3339
      %v3341 = vpop.f32.mrb[0].mxu0
      %v3342 = vadd.f32 0.0, %v3341
      %3343 = vmatprep.mubr.bf16.mxu0 0
      %3344 = vmatmul.mubr.bf16.gmra.mrb[0].mxu0 %v3287
      %v3345 = vpop.f32.mrb[0].mxu0
      %v3346 = vadd.f32 0.0, %v3345
      %v3347 = vpop.f32.mrb[0].mxu0
      %v3348 = vadd.f32 0.0, %v3347
      %v3349 = vpop.f32.mrb[0].mxu0
      %v3350 = vpop.f32.mrb[0].mxu0
      %3351 = vdwg.mxu0
      %3352 = vmatprep.subr.bf16.mxu0 %v3299
      %3353 = vmatpush1.bf16.msra.mxu0 %v3296
      %3354 = vmatprep.subr.bf16.mxu0 0
      %3355 = vmatpush1.bf16.msra.mxu0 0
      %3356 = vmatprep.subr.bf16.mxu0 0
      %3357 = vmatpush1.bf16.msra.mxu0 0
      %3358 = vmatprep.subr.bf16.mxu0 0
      %3359 = vmatpush1.bf16.msra.mxu0 0
      %3360 = vmatprep.subr.bf16.mxu0 0
      %3361 = vmatpush1.bf16.msra.mxu0 0
      %3362 = vmatprep.subr.bf16.mxu0 0
      %3363 = vmatpush1.bf16.msra.mxu0 0
      %3364 = vmatprep.subr.bf16.mxu0 0
      %3365 = vmatpush1.bf16.msra.mxu0 0
      %3366 = vmatprep.subr.bf16.mxu0 0
      %3367 = vmatpush1.bf16.msra.mxu0 0
      %3368 = vmatprep.subr.bf16.mxu0 0
      %3369 = vmatpush1.bf16.msra.mxu0 0
      %3370 = vmatprep.subr.bf16.mxu0 0
      %3371 = vmatpush1.bf16.msra.mxu0 0
      %3372 = vmatprep.subr.bf16.mxu0 0
      %3373 = vmatpush1.bf16.msra.mxu0 0
      %3374 = vmatprep.subr.bf16.mxu0 0
      %3375 = vmatpush1.bf16.msra.mxu0 0
      %3376 = vmatprep.subr.bf16.mxu0 0
      %3377 = vmatpush1.bf16.msra.mxu0 0
      %3378 = vmatprep.subr.bf16.mxu0 0
      %3379 = vmatpush1.bf16.msra.mxu0 0
      %3380 = vmatprep.subr.bf16.mxu0 0
      %3381 = vmatpush1.bf16.msra.mxu0 0
      %3382 = vmatprep.subr.bf16.mxu0 0
      %3383 = vmatpush1.bf16.msra.mxu0 0
      %3384 = vmatprep.mubr.bf16.mxu0 0
      %3385 = vmatmul.mubr.bf16.gmra.mrb[0].mxu0 %v3284
      %v3386 = vpop.f32.mrb[0].mxu0
      %v3387 = vadd.f32 0.0, %v3386
      %v3388 = vpop.f32.mrb[0].mxu0
      %v3389 = vadd.f32 0.0, %v3388
      %v3390 = vpop.f32.mrb[0].mxu0
      %v3391 = vadd.f32 0.0, %v3390
      %v3392 = vpop.f32.mrb[0].mxu0
      %v3393 = vadd.f32 0.0, %v3392
      %3394 = vmatprep.mubr.bf16.mxu0 0
      %3395 = vmatmul.mubr.bf16.gmra.mrb[0].mxu0 %v3287
      %v3396 = vpop.f32.mrb[0].mxu0
      %v3397 = vadd.f32 0.0, %v3396
      %v3398 = vpop.f32.mrb[0].mxu0
      %v3399 = vadd.f32 0.0, %v3398
      %v3400 = vpop.f32.mrb[0].mxu0
      %v3401 = vpop.f32.mrb[0].mxu0
      %3402 = vdwg.mxu0
      %v3403 = vadd.f32 %v3244, %v3336
      %v3404 = vadd.f32 %v3245, %v3338
      %v3405 = vadd.f32 %v3246, %v3387
      %v3406 = vadd.f32 %v3247, %v3389
      %v3407 = vadd.f32 %v3248, %v3340
      %v3408 = vadd.f32 %v3249, %v3342
      %v3409 = vadd.f32 %v3250, %v3391
      %v3410 = vadd.f32 %v3251, %v3393
      %v3411 = vadd.f32 %v3252, %v3346
      %v3412 = vadd.f32 %v3253, %v3348
      %v3413 = vadd.f32 %v3254, %v3397
      %v3414 = vadd.f32 %v3255, %v3399
      %s3415 = scalar_lea.vmem %s0, 240
      %v3416 = vld [vmem:[%s3415] sm:$0xf]
      %v3417 = vld [vmem:[%s3415 + $0x4] sm:$0xf]
      %v3418 = vld [vmem:[%s3415 + $0x8] sm:$0xf]
      %v3422 = vunpack.c.l.b16 %v3416
      %v3423 = vunpack.c.l.b16 %v3417
      %v3424 = vunpack.c.l.b16 %v3418
      %v3425 = vpack.c.b16 %v3423, %v3422
      %v3426 = vpack.c.b16 %v3424, %v3424
      %3427 = vrot.lane.b32.xlu0 %v3104, 54
      %v3428 = vpop.permute.xlu0 %3427
      %3429 = vrot.lane.b32.xlu0 %v3105, 54
      %v3430 = vpop.permute.xlu0 %3429
      %3431 = vrot.lane.b32.xlu0 %v3106, 54
      %v3432 = vpop.permute.xlu0 %3431
      %3433 = vrot.lane.b32.xlu0 %v3107, 54
      %v3434 = vpop.permute.xlu0 %3433
      %3435 = vrot.lane.b32.xlu0 %v3108, 54
      %v3436 = vpop.permute.xlu0 %3435
      %vm3437 = vcmask 441344
      %v3438 = vsel %vm3437, %v3428, %v3430
      %v3439 = vsel %vm3437, %v3430, %v3432
      %v3440 = vsel %vm3437, %v3432, %v3434
      %v3441 = vsel %vm3437, %v3434, %v3436
      %v3443 = vsel %vm287, %v3425, 0
      %v3446 = vsel %vm287, %v3426, 0
      %v3449 = vsel %vm294, %v3438, 0
      %v3452 = vsel %vm294, %v3439, 0
      %v3455 = vsel %vm294, %v3440, 0
      %v3458 = vsel %vm294, %v3441, 0
      %3460 = vmatprep.subr.bf16.mxu0 %v3452
      %3461 = vmatpush1.bf16.msra.mxu0 %v3449
      %3462 = vmatprep.subr.bf16.mxu0 0
      %3463 = vmatpush1.bf16.msra.mxu0 0
      %3464 = vmatprep.subr.bf16.mxu0 0
      %3465 = vmatpush1.bf16.msra.mxu0 0
      %3466 = vmatprep.subr.bf16.mxu0 0
      %3467 = vmatpush1.bf16.msra.mxu0 0
      %3468 = vmatprep.subr.bf16.mxu0 0
      %3469 = vmatpush1.bf16.msra.mxu0 0
      %3470 = vmatprep.subr.bf16.mxu0 0
      %3471 = vmatpush1.bf16.msra.mxu0 0
      %3472 = vmatprep.subr.bf16.mxu0 0
      %3473 = vmatpush1.bf16.msra.mxu0 0
      %3474 = vmatprep.subr.bf16.mxu0 0
      %3475 = vmatpush1.bf16.msra.mxu0 0
      %3476 = vmatprep.subr.bf16.mxu0 0
      %3477 = vmatpush1.bf16.msra.mxu0 0
      %3478 = vmatprep.subr.bf16.mxu0 0
      %3479 = vmatpush1.bf16.msra.mxu0 0
      %3480 = vmatprep.subr.bf16.mxu0 0
      %3481 = vmatpush1.bf16.msra.mxu0 0
      %3482 = vmatprep.subr.bf16.mxu0 0
      %3483 = vmatpush1.bf16.msra.mxu0 0
      %3484 = vmatprep.subr.bf16.mxu0 0
      %3485 = vmatpush1.bf16.msra.mxu0 0
      %3486 = vmatprep.subr.bf16.mxu0 0
      %3487 = vmatpush1.bf16.msra.mxu0 0
      %3488 = vmatprep.subr.bf16.mxu0 0
      %3489 = vmatpush1.bf16.msra.mxu0 0
      %3490 = vmatprep.subr.bf16.mxu0 0
      %3491 = vmatpush1.bf16.msra.mxu0 0
      %3492 = vmatprep.mubr.bf16.mxu0 0
      %3493 = vmatmul.mubr.bf16.gmra.mrb[0].mxu0 %v3443
      %v3494 = vpop.f32.mrb[0].mxu0
      %v3495 = vadd.f32 0.0, %v3494
      %v3496 = vpop.f32.mrb[0].mxu0
      %v3497 = vadd.f32 0.0, %v3496
      %v3498 = vpop.f32.mrb[0].mxu0
      %v3499 = vadd.f32 0.0, %v3498
      %v3500 = vpop.f32.mrb[0].mxu0
      %v3501 = vadd.f32 0.0, %v3500
      %3502 = vmatprep.mubr.bf16.mxu0 0
      %3503 = vmatmul.mubr.bf16.gmra.mrb[0].mxu0 %v3446
      %v3504 = vpop.f32.mrb[0].mxu0
      %v3505 = vadd.f32 0.0, %v3504
      %v3506 = vpop.f32.mrb[0].mxu0
      %v3507 = vadd.f32 0.0, %v3506
      %v3508 = vpop.f32.mrb[0].mxu0
      %v3509 = vpop.f32.mrb[0].mxu0
      %3510 = vdwg.mxu0
      %3511 = vmatprep.subr.bf16.mxu0 %v3458
      %3512 = vmatpush1.bf16.msra.mxu0 %v3455
      %3513 = vmatprep.subr.bf16.mxu0 0
      %3514 = vmatpush1.bf16.msra.mxu0 0
      %3515 = vmatprep.subr.bf16.mxu0 0
      %3516 = vmatpush1.bf16.msra.mxu0 0
      %3517 = vmatprep.subr.bf16.mxu0 0
      %3518 = vmatpush1.bf16.msra.mxu0 0
      %3519 = vmatprep.subr.bf16.mxu0 0
      %3520 = vmatpush1.bf16.msra.mxu0 0
      %3521 = vmatprep.subr.bf16.mxu0 0
      %3522 = vmatpush1.bf16.msra.mxu0 0
      %3523 = vmatprep.subr.bf16.mxu0 0
      %3524 = vmatpush1.bf16.msra.mxu0 0
      %3525 = vmatprep.subr.bf16.mxu0 0
      %3526 = vmatpush1.bf16.msra.mxu0 0
      %3527 = vmatprep.subr.bf16.mxu0 0
      %3528 = vmatpush1.bf16.msra.mxu0 0
      %3529 = vmatprep.subr.bf16.mxu0 0
      %3530 = vmatpush1.bf16.msra.mxu0 0
      %3531 = vmatprep.subr.bf16.mxu0 0
      %3532 = vmatpush1.bf16.msra.mxu0 0
      %3533 = vmatprep.subr.bf16.mxu0 0
      %3534 = vmatpush1.bf16.msra.mxu0 0
      %3535 = vmatprep.subr.bf16.mxu0 0
      %3536 = vmatpush1.bf16.msra.mxu0 0
      %3537 = vmatprep.subr.bf16.mxu0 0
      %3538 = vmatpush1.bf16.msra.mxu0 0
      %3539 = vmatprep.subr.bf16.mxu0 0
      %3540 = vmatpush1.bf16.msra.mxu0 0
      %3541 = vmatprep.subr.bf16.mxu0 0
      %3542 = vmatpush1.bf16.msra.mxu0 0
      %3543 = vmatprep.mubr.bf16.mxu0 0
      %3544 = vmatmul.mubr.bf16.gmra.mrb[0].mxu0 %v3443
      %v3545 = vpop.f32.mrb[0].mxu0
      %v3546 = vadd.f32 0.0, %v3545
      %v3547 = vpop.f32.mrb[0].mxu0
      %v3548 = vadd.f32 0.0, %v3547
      %v3549 = vpop.f32.mrb[0].mxu0
      %v3550 = vadd.f32 0.0, %v3549
      %v3551 = vpop.f32.mrb[0].mxu0
      %v3552 = vadd.f32 0.0, %v3551
      %3553 = vmatprep.mubr.bf16.mxu0 0
      %3554 = vmatmul.mubr.bf16.gmra.mrb[0].mxu0 %v3446
      %v3555 = vpop.f32.mrb[0].mxu0
      %v3556 = vadd.f32 0.0, %v3555
      %v3557 = vpop.f32.mrb[0].mxu0
      %v3558 = vadd.f32 0.0, %v3557
      %v3559 = vpop.f32.mrb[0].mxu0
      %v3560 = vpop.f32.mrb[0].mxu0
      %3561 = vdwg.mxu0
      %v3562 = vadd.f32 %v3403, %v3495
      %v3563 = vadd.f32 %v3404, %v3497
      %v3564 = vadd.f32 %v3405, %v3546
      %v3565 = vadd.f32 %v3406, %v3548
      %v3566 = vadd.f32 %v3407, %v3499
      %v3567 = vadd.f32 %v3408, %v3501
      %v3568 = vadd.f32 %v3409, %v3550
      %v3569 = vadd.f32 %v3410, %v3552
      %v3570 = vadd.f32 %v3411, %v3505
      %v3571 = vadd.f32 %v3412, %v3507
      %v3572 = vadd.f32 %v3413, %v3556
      %v3573 = vadd.f32 %v3414, %v3558
      %s3574 = scalar_lea.vmem %s0, 252
      %v3575 = vld [vmem:[%s3574] sm:$0xf]
      %v3576 = vld [vmem:[%s3574 + $0x4] sm:$0xf]
      %v3577 = vld [vmem:[%s3574 + $0x8] sm:$0xf]
      %v3581 = vunpack.c.l.b16 %v3575
      %v3582 = vunpack.c.l.b16 %v3576
      %v3583 = vunpack.c.l.b16 %v3577
      %v3584 = vpack.c.b16 %v3582, %v3581
      %v3585 = vpack.c.b16 %v3583, %v3583
      %3586 = vrot.lane.b32.xlu0 %v3104, 46
      %v3587 = vpop.permute.xlu0 %3586
      %3588 = vrot.lane.b32.xlu0 %v3105, 46
      %v3589 = vpop.permute.xlu0 %3588
      %3590 = vrot.lane.b32.xlu0 %v3106, 46
      %v3591 = vpop.permute.xlu0 %3590
      %3592 = vrot.lane.b32.xlu0 %v3107, 46
      %v3593 = vpop.permute.xlu0 %3592
      %3594 = vrot.lane.b32.xlu0 %v3108, 46
      %v3595 = vpop.permute.xlu0 %3594
      %vm3596 = vcmask 375808
      %v3597 = vsel %vm3596, %v3587, %v3589
      %v3598 = vsel %vm3596, %v3589, %v3591
      %v3599 = vsel %vm3596, %v3591, %v3593
      %v3600 = vsel %vm3596, %v3593, %v3595
      %v3602 = vsel %vm287, %v3584, 0
      %v3605 = vsel %vm287, %v3585, 0
      %v3608 = vsel %vm294, %v3597, 0
      %v3611 = vsel %vm294, %v3598, 0
      %v3614 = vsel %vm294, %v3599, 0
      %v3617 = vsel %vm294, %v3600, 0
      %3619 = vmatprep.subr.bf16.mxu0 %v3611
      %3620 = vmatpush1.bf16.msra.mxu0 %v3608
      %3621 = vmatprep.subr.bf16.mxu0 0
      %3622 = vmatpush1.bf16.msra.mxu0 0
      %3623 = vmatprep.subr.bf16.mxu0 0
      %3624 = vmatpush1.bf16.msra.mxu0 0
      %3625 = vmatprep.subr.bf16.mxu0 0
      %3626 = vmatpush1.bf16.msra.mxu0 0
      %3627 = vmatprep.subr.bf16.mxu0 0
      %3628 = vmatpush1.bf16.msra.mxu0 0
      %3629 = vmatprep.subr.bf16.mxu0 0
      %3630 = vmatpush1.bf16.msra.mxu0 0
      %3631 = vmatprep.subr.bf16.mxu0 0
      %3632 = vmatpush1.bf16.msra.mxu0 0
      %3633 = vmatprep.subr.bf16.mxu0 0
      %3634 = vmatpush1.bf16.msra.mxu0 0
      %3635 = vmatprep.subr.bf16.mxu0 0
      %3636 = vmatpush1.bf16.msra.mxu0 0
      %3637 = vmatprep.subr.bf16.mxu0 0
      %3638 = vmatpush1.bf16.msra.mxu0 0
      %3639 = vmatprep.subr.bf16.mxu0 0
      %3640 = vmatpush1.bf16.msra.mxu0 0
      %3641 = vmatprep.subr.bf16.mxu0 0
      %3642 = vmatpush1.bf16.msra.mxu0 0
      %3643 = vmatprep.subr.bf16.mxu0 0
      %3644 = vmatpush1.bf16.msra.mxu0 0
      %3645 = vmatprep.subr.bf16.mxu0 0
      %3646 = vmatpush1.bf16.msra.mxu0 0
      %3647 = vmatprep.subr.bf16.mxu0 0
      %3648 = vmatpush1.bf16.msra.mxu0 0
      %3649 = vmatprep.subr.bf16.mxu0 0
      %3650 = vmatpush1.bf16.msra.mxu0 0
      %3651 = vmatprep.mubr.bf16.mxu0 0
      %3652 = vmatmul.mubr.bf16.gmra.mrb[0].mxu0 %v3602
      %v3653 = vpop.f32.mrb[0].mxu0
      %v3654 = vadd.f32 0.0, %v3653
      %v3655 = vpop.f32.mrb[0].mxu0
      %v3656 = vadd.f32 0.0, %v3655
      %v3657 = vpop.f32.mrb[0].mxu0
      %v3658 = vadd.f32 0.0, %v3657
      %v3659 = vpop.f32.mrb[0].mxu0
      %v3660 = vadd.f32 0.0, %v3659
      %3661 = vmatprep.mubr.bf16.mxu0 0
      %3662 = vmatmul.mubr.bf16.gmra.mrb[0].mxu0 %v3605
      %v3663 = vpop.f32.mrb[0].mxu0
      %v3664 = vadd.f32 0.0, %v3663
      %v3665 = vpop.f32.mrb[0].mxu0
      %v3666 = vadd.f32 0.0, %v3665
      %v3667 = vpop.f32.mrb[0].mxu0
      %v3668 = vpop.f32.mrb[0].mxu0
      %3669 = vdwg.mxu0
      %3670 = vmatprep.subr.bf16.mxu0 %v3617
      %3671 = vmatpush1.bf16.msra.mxu0 %v3614
      %3672 = vmatprep.subr.bf16.mxu0 0
      %3673 = vmatpush1.bf16.msra.mxu0 0
      %3674 = vmatprep.subr.bf16.mxu0 0
      %3675 = vmatpush1.bf16.msra.mxu0 0
      %3676 = vmatprep.subr.bf16.mxu0 0
      %3677 = vmatpush1.bf16.msra.mxu0 0
      %3678 = vmatprep.subr.bf16.mxu0 0
      %3679 = vmatpush1.bf16.msra.mxu0 0
      %3680 = vmatprep.subr.bf16.mxu0 0
      %3681 = vmatpush1.bf16.msra.mxu0 0
      %3682 = vmatprep.subr.bf16.mxu0 0
      %3683 = vmatpush1.bf16.msra.mxu0 0
      %3684 = vmatprep.subr.bf16.mxu0 0
      %3685 = vmatpush1.bf16.msra.mxu0 0
      %3686 = vmatprep.subr.bf16.mxu0 0
      %3687 = vmatpush1.bf16.msra.mxu0 0
      %3688 = vmatprep.subr.bf16.mxu0 0
      %3689 = vmatpush1.bf16.msra.mxu0 0
      %3690 = vmatprep.subr.bf16.mxu0 0
      %3691 = vmatpush1.bf16.msra.mxu0 0
      %3692 = vmatprep.subr.bf16.mxu0 0
      %3693 = vmatpush1.bf16.msra.mxu0 0
      %3694 = vmatprep.subr.bf16.mxu0 0
      %3695 = vmatpush1.bf16.msra.mxu0 0
      %3696 = vmatprep.subr.bf16.mxu0 0
      %3697 = vmatpush1.bf16.msra.mxu0 0
      %3698 = vmatprep.subr.bf16.mxu0 0
      %3699 = vmatpush1.bf16.msra.mxu0 0
      %3700 = vmatprep.subr.bf16.mxu0 0
      %3701 = vmatpush1.bf16.msra.mxu0 0
      %3702 = vmatprep.mubr.bf16.mxu0 0
      %3703 = vmatmul.mubr.bf16.gmra.mrb[0].mxu0 %v3602
      %v3704 = vpop.f32.mrb[0].mxu0
      %v3705 = vadd.f32 0.0, %v3704
      %v3706 = vpop.f32.mrb[0].mxu0
      %v3707 = vadd.f32 0.0, %v3706
      %v3708 = vpop.f32.mrb[0].mxu0
      %v3709 = vadd.f32 0.0, %v3708
      %v3710 = vpop.f32.mrb[0].mxu0
      %v3711 = vadd.f32 0.0, %v3710
      %3712 = vmatprep.mubr.bf16.mxu0 0
      %3713 = vmatmul.mubr.bf16.gmra.mrb[0].mxu0 %v3605
      %v3714 = vpop.f32.mrb[0].mxu0
      %v3715 = vadd.f32 0.0, %v3714
      %v3716 = vpop.f32.mrb[0].mxu0
      %v3717 = vadd.f32 0.0, %v3716
      %v3718 = vpop.f32.mrb[0].mxu0
      %v3719 = vpop.f32.mrb[0].mxu0
      %3720 = vdwg.mxu0
      %v3721 = vadd.f32 %v3562, %v3654
      %v3722 = vadd.f32 %v3563, %v3656
      %v3723 = vadd.f32 %v3564, %v3705
      %v3724 = vadd.f32 %v3565, %v3707
      %v3725 = vadd.f32 %v3566, %v3658
      %v3726 = vadd.f32 %v3567, %v3660
      %v3727 = vadd.f32 %v3568, %v3709
      %v3728 = vadd.f32 %v3569, %v3711
      %v3729 = vadd.f32 %v3570, %v3664
      %v3730 = vadd.f32 %v3571, %v3666
      %v3731 = vadd.f32 %v3572, %v3715
      %v3732 = vadd.f32 %v3573, %v3717
      %s3733 = scalar_lea.vmem %s0, 264
      %v3734 = vld [vmem:[%s3733] sm:$0xf]
      %v3735 = vld [vmem:[%s3733 + $0x4] sm:$0xf]
      %v3736 = vld [vmem:[%s3733 + $0x8] sm:$0xf]
      %v3740 = vunpack.c.l.b16 %v3734
      %v3741 = vunpack.c.l.b16 %v3735
      %v3742 = vunpack.c.l.b16 %v3736
      %v3743 = vpack.c.b16 %v3741, %v3740
      %v3744 = vpack.c.b16 %v3742, %v3742
      %3745 = vrot.lane.b32.xlu0 %v3104, 45
      %v3746 = vpop.permute.xlu0 %3745
      %3747 = vrot.lane.b32.xlu0 %v3105, 45
      %v3748 = vpop.permute.xlu0 %3747
      %3749 = vrot.lane.b32.xlu0 %v3106, 45
      %v3750 = vpop.permute.xlu0 %3749
      %3751 = vrot.lane.b32.xlu0 %v3107, 45
      %v3752 = vpop.permute.xlu0 %3751
      %3753 = vrot.lane.b32.xlu0 %v3108, 45
      %v3754 = vpop.permute.xlu0 %3753
      %vm3755 = vcmask 367616
      %v3756 = vsel %vm3755, %v3746, %v3748
      %v3757 = vsel %vm3755, %v3748, %v3750
      %v3758 = vsel %vm3755, %v3750, %v3752
      %v3759 = vsel %vm3755, %v3752, %v3754
      %v3761 = vsel %vm287, %v3743, 0
      %v3764 = vsel %vm287, %v3744, 0
      %v3767 = vsel %vm294, %v3756, 0
      %v3770 = vsel %vm294, %v3757, 0
      %v3773 = vsel %vm294, %v3758, 0
      %v3776 = vsel %vm294, %v3759, 0
      %3778 = vmatprep.subr.bf16.mxu0 %v3770
      %3779 = vmatpush1.bf16.msra.mxu0 %v3767
      %3780 = vmatprep.subr.bf16.mxu0 0
      %3781 = vmatpush1.bf16.msra.mxu0 0
      %3782 = vmatprep.subr.bf16.mxu0 0
      %3783 = vmatpush1.bf16.msra.mxu0 0
      %3784 = vmatprep.subr.bf16.mxu0 0
      %3785 = vmatpush1.bf16.msra.mxu0 0
      %3786 = vmatprep.subr.bf16.mxu0 0
      %3787 = vmatpush1.bf16.msra.mxu0 0
      %3788 = vmatprep.subr.bf16.mxu0 0
      %3789 = vmatpush1.bf16.msra.mxu0 0
      %3790 = vmatprep.subr.bf16.mxu0 0
      %3791 = vmatpush1.bf16.msra.mxu0 0
      %3792 = vmatprep.subr.bf16.mxu0 0
      %3793 = vmatpush1.bf16.msra.mxu0 0
      %3794 = vmatprep.subr.bf16.mxu0 0
      %3795 = vmatpush1.bf16.msra.mxu0 0
      %3796 = vmatprep.subr.bf16.mxu0 0
      %3797 = vmatpush1.bf16.msra.mxu0 0
      %3798 = vmatprep.subr.bf16.mxu0 0
      %3799 = vmatpush1.bf16.msra.mxu0 0
      %3800 = vmatprep.subr.bf16.mxu0 0
      %3801 = vmatpush1.bf16.msra.mxu0 0
      %3802 = vmatprep.subr.bf16.mxu0 0
      %3803 = vmatpush1.bf16.msra.mxu0 0
      %3804 = vmatprep.subr.bf16.mxu0 0
      %3805 = vmatpush1.bf16.msra.mxu0 0
      %3806 = vmatprep.subr.bf16.mxu0 0
      %3807 = vmatpush1.bf16.msra.mxu0 0
      %3808 = vmatprep.subr.bf16.mxu0 0
      %3809 = vmatpush1.bf16.msra.mxu0 0
      %3810 = vmatprep.mubr.bf16.mxu0 0
      %3811 = vmatmul.mubr.bf16.gmra.mrb[0].mxu0 %v3761
      %v3812 = vpop.f32.mrb[0].mxu0
      %v3813 = vadd.f32 0.0, %v3812
      %v3814 = vpop.f32.mrb[0].mxu0
      %v3815 = vadd.f32 0.0, %v3814
      %v3816 = vpop.f32.mrb[0].mxu0
      %v3817 = vadd.f32 0.0, %v3816
      %v3818 = vpop.f32.mrb[0].mxu0
      %v3819 = vadd.f32 0.0, %v3818
      %3820 = vmatprep.mubr.bf16.mxu0 0
      %3821 = vmatmul.mubr.bf16.gmra.mrb[0].mxu0 %v3764
      %v3822 = vpop.f32.mrb[0].mxu0
      %v3823 = vadd.f32 0.0, %v3822
      %v3824 = vpop.f32.mrb[0].mxu0
      %v3825 = vadd.f32 0.0, %v3824
      %v3826 = vpop.f32.mrb[0].mxu0
      %v3827 = vpop.f32.mrb[0].mxu0
      %3828 = vdwg.mxu0
      %3829 = vmatprep.subr.bf16.mxu0 %v3776
      %3830 = vmatpush1.bf16.msra.mxu0 %v3773
      %3831 = vmatprep.subr.bf16.mxu0 0
      %3832 = vmatpush1.bf16.msra.mxu0 0
      %3833 = vmatprep.subr.bf16.mxu0 0
      %3834 = vmatpush1.bf16.msra.mxu0 0
      %3835 = vmatprep.subr.bf16.mxu0 0
      %3836 = vmatpush1.bf16.msra.mxu0 0
      %3837 = vmatprep.subr.bf16.mxu0 0
      %3838 = vmatpush1.bf16.msra.mxu0 0
      %3839 = vmatprep.subr.bf16.mxu0 0
      %3840 = vmatpush1.bf16.msra.mxu0 0
      %3841 = vmatprep.subr.bf16.mxu0 0
      %3842 = vmatpush1.bf16.msra.mxu0 0
      %3843 = vmatprep.subr.bf16.mxu0 0
      %3844 = vmatpush1.bf16.msra.mxu0 0
      %3845 = vmatprep.subr.bf16.mxu0 0
      %3846 = vmatpush1.bf16.msra.mxu0 0
      %3847 = vmatprep.subr.bf16.mxu0 0
      %3848 = vmatpush1.bf16.msra.mxu0 0
      %3849 = vmatprep.subr.bf16.mxu0 0
      %3850 = vmatpush1.bf16.msra.mxu0 0
      %3851 = vmatprep.subr.bf16.mxu0 0
      %3852 = vmatpush1.bf16.msra.mxu0 0
      %3853 = vmatprep.subr.bf16.mxu0 0
      %3854 = vmatpush1.bf16.msra.mxu0 0
      %3855 = vmatprep.subr.bf16.mxu0 0
      %3856 = vmatpush1.bf16.msra.mxu0 0
      %3857 = vmatprep.subr.bf16.mxu0 0
      %3858 = vmatpush1.bf16.msra.mxu0 0
      %3859 = vmatprep.subr.bf16.mxu0 0
      %3860 = vmatpush1.bf16.msra.mxu0 0
      %3861 = vmatprep.mubr.bf16.mxu0 0
      %3862 = vmatmul.mubr.bf16.gmra.mrb[0].mxu0 %v3761
      %v3863 = vpop.f32.mrb[0].mxu0
      %v3864 = vadd.f32 0.0, %v3863
      %v3865 = vpop.f32.mrb[0].mxu0
      %v3866 = vadd.f32 0.0, %v3865
      %v3867 = vpop.f32.mrb[0].mxu0
      %v3868 = vadd.f32 0.0, %v3867
      %v3869 = vpop.f32.mrb[0].mxu0
      %v3870 = vadd.f32 0.0, %v3869
      %3871 = vmatprep.mubr.bf16.mxu0 0
      %3872 = vmatmul.mubr.bf16.gmra.mrb[0].mxu0 %v3764
      %v3873 = vpop.f32.mrb[0].mxu0
      %v3874 = vadd.f32 0.0, %v3873
      %v3875 = vpop.f32.mrb[0].mxu0
      %v3876 = vadd.f32 0.0, %v3875
      %v3877 = vpop.f32.mrb[0].mxu0
      %v3878 = vpop.f32.mrb[0].mxu0
      %3879 = vdwg.mxu0
      %v3880 = vadd.f32 %v3721, %v3813
      %v3881 = vadd.f32 %v3722, %v3815
      %v3882 = vadd.f32 %v3723, %v3864
      %v3883 = vadd.f32 %v3724, %v3866
      %v3884 = vadd.f32 %v3725, %v3817
      %v3885 = vadd.f32 %v3726, %v3819
      %v3886 = vadd.f32 %v3727, %v3868
      %v3887 = vadd.f32 %v3728, %v3870
      %v3888 = vadd.f32 %v3729, %v3823
      %v3889 = vadd.f32 %v3730, %v3825
      %v3890 = vadd.f32 %v3731, %v3874
      %v3891 = vadd.f32 %v3732, %v3876
      %s3892 = scalar_lea.vmem %s0, 276
      %v3893 = vld [vmem:[%s3892] sm:$0xf]
      %v3894 = vld [vmem:[%s3892 + $0x4] sm:$0xf]
      %v3895 = vld [vmem:[%s3892 + $0x8] sm:$0xf]
      %v3899 = vunpack.c.l.b16 %v3893
      %v3900 = vunpack.c.l.b16 %v3894
      %v3901 = vunpack.c.l.b16 %v3895
      %v3902 = vpack.c.b16 %v3900, %v3899
      %v3903 = vpack.c.b16 %v3901, %v3901
      %3904 = vrot.lane.b32.xlu0 %v3104, 44
      %v3905 = vpop.permute.xlu0 %3904
      %3906 = vrot.lane.b32.xlu0 %v3105, 44
      %v3907 = vpop.permute.xlu0 %3906
      %3908 = vrot.lane.b32.xlu0 %v3106, 44
      %v3909 = vpop.permute.xlu0 %3908
      %3910 = vrot.lane.b32.xlu0 %v3107, 44
      %v3911 = vpop.permute.xlu0 %3910
      %3912 = vrot.lane.b32.xlu0 %v3108, 44
      %v3913 = vpop.permute.xlu0 %3912
      %vm3914 = vcmask 359424
      %v3915 = vsel %vm3914, %v3905, %v3907
      %v3916 = vsel %vm3914, %v3907, %v3909
      %v3917 = vsel %vm3914, %v3909, %v3911
      %v3918 = vsel %vm3914, %v3911, %v3913
      %v3920 = vsel %vm287, %v3902, 0
      %v3923 = vsel %vm287, %v3903, 0
      %v3926 = vsel %vm294, %v3915, 0
      %v3929 = vsel %vm294, %v3916, 0
      %v3932 = vsel %vm294, %v3917, 0
      %v3935 = vsel %vm294, %v3918, 0
      %3937 = vmatprep.subr.bf16.mxu0 %v3929
      %3938 = vmatpush1.bf16.msra.mxu0 %v3926
      %3939 = vmatprep.subr.bf16.mxu0 0
      %3940 = vmatpush1.bf16.msra.mxu0 0
      %3941 = vmatprep.subr.bf16.mxu0 0
      %3942 = vmatpush1.bf16.msra.mxu0 0
      %3943 = vmatprep.subr.bf16.mxu0 0
      %3944 = vmatpush1.bf16.msra.mxu0 0
      %3945 = vmatprep.subr.bf16.mxu0 0
      %3946 = vmatpush1.bf16.msra.mxu0 0
      %3947 = vmatprep.subr.bf16.mxu0 0
      %3948 = vmatpush1.bf16.msra.mxu0 0
      %3949 = vmatprep.subr.bf16.mxu0 0
      %3950 = vmatpush1.bf16.msra.mxu0 0
      %3951 = vmatprep.subr.bf16.mxu0 0
      %3952 = vmatpush1.bf16.msra.mxu0 0
      %3953 = vmatprep.subr.bf16.mxu0 0
      %3954 = vmatpush1.bf16.msra.mxu0 0
      %3955 = vmatprep.subr.bf16.mxu0 0
      %3956 = vmatpush1.bf16.msra.mxu0 0
      %3957 = vmatprep.subr.bf16.mxu0 0
      %3958 = vmatpush1.bf16.msra.mxu0 0
      %3959 = vmatprep.subr.bf16.mxu0 0
      %3960 = vmatpush1.bf16.msra.mxu0 0
      %3961 = vmatprep.subr.bf16.mxu0 0
      %3962 = vmatpush1.bf16.msra.mxu0 0
      %3963 = vmatprep.subr.bf16.mxu0 0
      %3964 = vmatpush1.bf16.msra.mxu0 0
      %3965 = vmatprep.subr.bf16.mxu0 0
      %3966 = vmatpush1.bf16.msra.mxu0 0
      %3967 = vmatprep.subr.bf16.mxu0 0
      %3968 = vmatpush1.bf16.msra.mxu0 0
      %3969 = vmatprep.mubr.bf16.mxu0 0
      %3970 = vmatmul.mubr.bf16.gmra.mrb[0].mxu0 %v3920
      %v3971 = vpop.f32.mrb[0].mxu0
      %v3972 = vadd.f32 0.0, %v3971
      %v3973 = vpop.f32.mrb[0].mxu0
      %v3974 = vadd.f32 0.0, %v3973
      %v3975 = vpop.f32.mrb[0].mxu0
      %v3976 = vadd.f32 0.0, %v3975
      %v3977 = vpop.f32.mrb[0].mxu0
      %v3978 = vadd.f32 0.0, %v3977
      %3979 = vmatprep.mubr.bf16.mxu0 0
      %3980 = vmatmul.mubr.bf16.gmra.mrb[0].mxu0 %v3923
      %v3981 = vpop.f32.mrb[0].mxu0
      %v3982 = vadd.f32 0.0, %v3981
      %v3983 = vpop.f32.mrb[0].mxu0
      %v3984 = vadd.f32 0.0, %v3983
      %v3985 = vpop.f32.mrb[0].mxu0
      %v3986 = vpop.f32.mrb[0].mxu0
      %3987 = vdwg.mxu0
      %3988 = vmatprep.subr.bf16.mxu0 %v3935
      %3989 = vmatpush1.bf16.msra.mxu0 %v3932
      %3990 = vmatprep.subr.bf16.mxu0 0
      %3991 = vmatpush1.bf16.msra.mxu0 0
      %3992 = vmatprep.subr.bf16.mxu0 0
      %3993 = vmatpush1.bf16.msra.mxu0 0
      %3994 = vmatprep.subr.bf16.mxu0 0
      %3995 = vmatpush1.bf16.msra.mxu0 0
      %3996 = vmatprep.subr.bf16.mxu0 0
      %3997 = vmatpush1.bf16.msra.mxu0 0
      %3998 = vmatprep.subr.bf16.mxu0 0
      %3999 = vmatpush1.bf16.msra.mxu0 0
      %4000 = vmatprep.subr.bf16.mxu0 0
      %4001 = vmatpush1.bf16.msra.mxu0 0
      %4002 = vmatprep.subr.bf16.mxu0 0
      %4003 = vmatpush1.bf16.msra.mxu0 0
      %4004 = vmatprep.subr.bf16.mxu0 0
      %4005 = vmatpush1.bf16.msra.mxu0 0
      %4006 = vmatprep.subr.bf16.mxu0 0
      %4007 = vmatpush1.bf16.msra.mxu0 0
      %4008 = vmatprep.subr.bf16.mxu0 0
      %4009 = vmatpush1.bf16.msra.mxu0 0
      %4010 = vmatprep.subr.bf16.mxu0 0
      %4011 = vmatpush1.bf16.msra.mxu0 0
      %4012 = vmatprep.subr.bf16.mxu0 0
      %4013 = vmatpush1.bf16.msra.mxu0 0
      %4014 = vmatprep.subr.bf16.mxu0 0
      %4015 = vmatpush1.bf16.msra.mxu0 0
      %4016 = vmatprep.subr.bf16.mxu0 0
      %4017 = vmatpush1.bf16.msra.mxu0 0
      %4018 = vmatprep.subr.bf16.mxu0 0
      %4019 = vmatpush1.bf16.msra.mxu0 0
      %4020 = vmatprep.mubr.bf16.mxu0 0
      %4021 = vmatmul.mubr.bf16.gmra.mrb[0].mxu0 %v3920
      %v4022 = vpop.f32.mrb[0].mxu0
      %v4023 = vadd.f32 0.0, %v4022
      %v4024 = vpop.f32.mrb[0].mxu0
      %v4025 = vadd.f32 0.0, %v4024
      %v4026 = vpop.f32.mrb[0].mxu0
      %v4027 = vadd.f32 0.0, %v4026
      %v4028 = vpop.f32.mrb[0].mxu0
      %v4029 = vadd.f32 0.0, %v4028
      %4030 = vmatprep.mubr.bf16.mxu0 0
      %4031 = vmatmul.mubr.bf16.gmra.mrb[0].mxu0 %v3923
      %v4032 = vpop.f32.mrb[0].mxu0
      %v4033 = vadd.f32 0.0, %v4032
      %v4034 = vpop.f32.mrb[0].mxu0
      %v4035 = vadd.f32 0.0, %v4034
      %v4036 = vpop.f32.mrb[0].mxu0
      %v4037 = vpop.f32.mrb[0].mxu0
      %4038 = vdwg.mxu0
      %v4039 = vadd.f32 %v3880, %v3972
      %v4040 = vadd.f32 %v3881, %v3974
      %v4041 = vadd.f32 %v3882, %v4023
      %v4042 = vadd.f32 %v3883, %v4025
      %v4043 = vadd.f32 %v3884, %v3976
      %v4044 = vadd.f32 %v3885, %v3978
      %v4045 = vadd.f32 %v3886, %v4027
      %v4046 = vadd.f32 %v3887, %v4029
      %v4047 = vadd.f32 %v3888, %v3982
      %v4048 = vadd.f32 %v3889, %v3984
      %v4049 = vadd.f32 %v3890, %v4033
      %v4050 = vadd.f32 %v3891, %v4035
      %s4051 = scalar_lea.vmem %s0, 288
      %v4052 = vld [vmem:[%s4051] sm:$0xf]
      %v4053 = vld [vmem:[%s4051 + $0x4] sm:$0xf]
      %v4054 = vld [vmem:[%s4051 + $0x8] sm:$0xf]
      %v4058 = vunpack.c.l.b16 %v4052
      %v4059 = vunpack.c.l.b16 %v4053
      %v4060 = vunpack.c.l.b16 %v4054
      %v4061 = vpack.c.b16 %v4059, %v4058
      %v4062 = vpack.c.b16 %v4060, %v4060
      %4063 = vrot.lane.b32.xlu0 %v3104, 36
      %v4064 = vpop.permute.xlu0 %4063
      %4065 = vrot.lane.b32.xlu0 %v3105, 36
      %v4066 = vpop.permute.xlu0 %4065
      %4067 = vrot.lane.b32.xlu0 %v3106, 36
      %v4068 = vpop.permute.xlu0 %4067
      %4069 = vrot.lane.b32.xlu0 %v3107, 36
      %v4070 = vpop.permute.xlu0 %4069
      %4071 = vrot.lane.b32.xlu0 %v3108, 36
      %v4072 = vpop.permute.xlu0 %4071
      %vm4073 = vcmask 293888
      %v4074 = vsel %vm4073, %v4064, %v4066
      %v4075 = vsel %vm4073, %v4066, %v4068
      %v4076 = vsel %vm4073, %v4068, %v4070
      %v4077 = vsel %vm4073, %v4070, %v4072
      %v4079 = vsel %vm287, %v4061, 0
      %v4082 = vsel %vm287, %v4062, 0
      %v4085 = vsel %vm294, %v4074, 0
      %v4088 = vsel %vm294, %v4075, 0
      %v4091 = vsel %vm294, %v4076, 0
      %v4094 = vsel %vm294, %v4077, 0
      %4096 = vmatprep.subr.bf16.mxu0 %v4088
      %4097 = vmatpush1.bf16.msra.mxu0 %v4085
      %4098 = vmatprep.subr.bf16.mxu0 0
      %4099 = vmatpush1.bf16.msra.mxu0 0
      %4100 = vmatprep.subr.bf16.mxu0 0
      %4101 = vmatpush1.bf16.msra.mxu0 0
      %4102 = vmatprep.subr.bf16.mxu0 0
      %4103 = vmatpush1.bf16.msra.mxu0 0
      %4104 = vmatprep.subr.bf16.mxu0 0
      %4105 = vmatpush1.bf16.msra.mxu0 0
      %4106 = vmatprep.subr.bf16.mxu0 0
      %4107 = vmatpush1.bf16.msra.mxu0 0
      %4108 = vmatprep.subr.bf16.mxu0 0
      %4109 = vmatpush1.bf16.msra.mxu0 0
      %4110 = vmatprep.subr.bf16.mxu0 0
      %4111 = vmatpush1.bf16.msra.mxu0 0
      %4112 = vmatprep.subr.bf16.mxu0 0
      %4113 = vmatpush1.bf16.msra.mxu0 0
      %4114 = vmatprep.subr.bf16.mxu0 0
      %4115 = vmatpush1.bf16.msra.mxu0 0
      %4116 = vmatprep.subr.bf16.mxu0 0
      %4117 = vmatpush1.bf16.msra.mxu0 0
      %4118 = vmatprep.subr.bf16.mxu0 0
      %4119 = vmatpush1.bf16.msra.mxu0 0
      %4120 = vmatprep.subr.bf16.mxu0 0
      %4121 = vmatpush1.bf16.msra.mxu0 0
      %4122 = vmatprep.subr.bf16.mxu0 0
      %4123 = vmatpush1.bf16.msra.mxu0 0
      %4124 = vmatprep.subr.bf16.mxu0 0
      %4125 = vmatpush1.bf16.msra.mxu0 0
      %4126 = vmatprep.subr.bf16.mxu0 0
      %4127 = vmatpush1.bf16.msra.mxu0 0
      %4128 = vmatprep.mubr.bf16.mxu0 0
      %4129 = vmatmul.mubr.bf16.gmra.mrb[0].mxu0 %v4079
      %v4130 = vpop.f32.mrb[0].mxu0
      %v4131 = vadd.f32 0.0, %v4130
      %v4132 = vpop.f32.mrb[0].mxu0
      %v4133 = vadd.f32 0.0, %v4132
      %v4134 = vpop.f32.mrb[0].mxu0
      %v4135 = vadd.f32 0.0, %v4134
      %v4136 = vpop.f32.mrb[0].mxu0
      %v4137 = vadd.f32 0.0, %v4136
      %4138 = vmatprep.mubr.bf16.mxu0 0
      %4139 = vmatmul.mubr.bf16.gmra.mrb[0].mxu0 %v4082
      %v4140 = vpop.f32.mrb[0].mxu0
      %v4141 = vadd.f32 0.0, %v4140
      %v4142 = vpop.f32.mrb[0].mxu0
      %v4143 = vadd.f32 0.0, %v4142
      %v4144 = vpop.f32.mrb[0].mxu0
      %v4145 = vpop.f32.mrb[0].mxu0
      %4146 = vdwg.mxu0
      %4147 = vmatprep.subr.bf16.mxu0 %v4094
      %4148 = vmatpush1.bf16.msra.mxu0 %v4091
      %4149 = vmatprep.subr.bf16.mxu0 0
      %4150 = vmatpush1.bf16.msra.mxu0 0
      %4151 = vmatprep.subr.bf16.mxu0 0
      %4152 = vmatpush1.bf16.msra.mxu0 0
      %4153 = vmatprep.subr.bf16.mxu0 0
      %4154 = vmatpush1.bf16.msra.mxu0 0
      %4155 = vmatprep.subr.bf16.mxu0 0
      %4156 = vmatpush1.bf16.msra.mxu0 0
      %4157 = vmatprep.subr.bf16.mxu0 0
      %4158 = vmatpush1.bf16.msra.mxu0 0
      %4159 = vmatprep.subr.bf16.mxu0 0
      %4160 = vmatpush1.bf16.msra.mxu0 0
      %4161 = vmatprep.subr.bf16.mxu0 0
      %4162 = vmatpush1.bf16.msra.mxu0 0
      %4163 = vmatprep.subr.bf16.mxu0 0
      %4164 = vmatpush1.bf16.msra.mxu0 0
      %4165 = vmatprep.subr.bf16.mxu0 0
      %4166 = vmatpush1.bf16.msra.mxu0 0
      %4167 = vmatprep.subr.bf16.mxu0 0
      %4168 = vmatpush1.bf16.msra.mxu0 0
      %4169 = vmatprep.subr.bf16.mxu0 0
      %4170 = vmatpush1.bf16.msra.mxu0 0
      %4171 = vmatprep.subr.bf16.mxu0 0
      %4172 = vmatpush1.bf16.msra.mxu0 0
      %4173 = vmatprep.subr.bf16.mxu0 0
      %4174 = vmatpush1.bf16.msra.mxu0 0
      %4175 = vmatprep.subr.bf16.mxu0 0
      %4176 = vmatpush1.bf16.msra.mxu0 0
      %4177 = vmatprep.subr.bf16.mxu0 0
      %4178 = vmatpush1.bf16.msra.mxu0 0
      %4179 = vmatprep.mubr.bf16.mxu0 0
      %4180 = vmatmul.mubr.bf16.gmra.mrb[0].mxu0 %v4079
      %v4181 = vpop.f32.mrb[0].mxu0
      %v4182 = vadd.f32 0.0, %v4181
      %v4183 = vpop.f32.mrb[0].mxu0
      %v4184 = vadd.f32 0.0, %v4183
      %v4185 = vpop.f32.mrb[0].mxu0
      %v4186 = vadd.f32 0.0, %v4185
      %v4187 = vpop.f32.mrb[0].mxu0
      %v4188 = vadd.f32 0.0, %v4187
      %4189 = vmatprep.mubr.bf16.mxu0 0
      %4190 = vmatmul.mubr.bf16.gmra.mrb[0].mxu0 %v4082
      %v4191 = vpop.f32.mrb[0].mxu0
      %v4192 = vadd.f32 0.0, %v4191
      %v4193 = vpop.f32.mrb[0].mxu0
      %v4194 = vadd.f32 0.0, %v4193
      %v4195 = vpop.f32.mrb[0].mxu0
      %v4196 = vpop.f32.mrb[0].mxu0
      %4197 = vdwg.mxu0
      %v4198 = vadd.f32 %v4039, %v4131
      %v4199 = vadd.f32 %v4040, %v4133
      %v4200 = vadd.f32 %v4041, %v4182
      %v4201 = vadd.f32 %v4042, %v4184
      %v4202 = vadd.f32 %v4043, %v4135
      %v4203 = vadd.f32 %v4044, %v4137
      %v4204 = vadd.f32 %v4045, %v4186
      %v4205 = vadd.f32 %v4046, %v4188
      %v4206 = vadd.f32 %v4047, %v4141
      %v4207 = vadd.f32 %v4048, %v4143
      %v4208 = vadd.f32 %v4049, %v4192
      %v4209 = vadd.f32 %v4050, %v4194
      %s4210 = scalar_lea.vmem %s0, 300
      %v4211 = vld [vmem:[%s4210] sm:$0xf]
      %v4212 = vld [vmem:[%s4210 + $0x4] sm:$0xf]
      %v4213 = vld [vmem:[%s4210 + $0x8] sm:$0xf]
      %v4217 = vunpack.c.l.b16 %v4211
      %v4218 = vunpack.c.l.b16 %v4212
      %v4219 = vunpack.c.l.b16 %v4213
      %v4220 = vpack.c.b16 %v4218, %v4217
      %v4221 = vpack.c.b16 %v4219, %v4219
      %4222 = vrot.lane.b32.xlu0 %v3104, 35
      %v4223 = vpop.permute.xlu0 %4222
      %4224 = vrot.lane.b32.xlu0 %v3105, 35
      %v4225 = vpop.permute.xlu0 %4224
      %4226 = vrot.lane.b32.xlu0 %v3106, 35
      %v4227 = vpop.permute.xlu0 %4226
      %4228 = vrot.lane.b32.xlu0 %v3107, 35
      %v4229 = vpop.permute.xlu0 %4228
      %4230 = vrot.lane.b32.xlu0 %v3108, 35
      %v4231 = vpop.permute.xlu0 %4230
      %vm4232 = vcmask 285696
      %v4233 = vsel %vm4232, %v4223, %v4225
      %v4234 = vsel %vm4232, %v4225, %v4227
      %v4235 = vsel %vm4232, %v4227, %v4229
      %v4236 = vsel %vm4232, %v4229, %v4231
      %v4238 = vsel %vm287, %v4220, 0
      %v4241 = vsel %vm287, %v4221, 0
      %v4244 = vsel %vm294, %v4233, 0
      %v4247 = vsel %vm294, %v4234, 0
      %v4250 = vsel %vm294, %v4235, 0
      %v4253 = vsel %vm294, %v4236, 0
      %4255 = vmatprep.subr.bf16.mxu0 %v4247
      %4256 = vmatpush1.bf16.msra.mxu0 %v4244
      %4257 = vmatprep.subr.bf16.mxu0 0
      %4258 = vmatpush1.bf16.msra.mxu0 0
      %4259 = vmatprep.subr.bf16.mxu0 0
      %4260 = vmatpush1.bf16.msra.mxu0 0
      %4261 = vmatprep.subr.bf16.mxu0 0
      %4262 = vmatpush1.bf16.msra.mxu0 0
      %4263 = vmatprep.subr.bf16.mxu0 0
      %4264 = vmatpush1.bf16.msra.mxu0 0
      %4265 = vmatprep.subr.bf16.mxu0 0
      %4266 = vmatpush1.bf16.msra.mxu0 0
      %4267 = vmatprep.subr.bf16.mxu0 0
      %4268 = vmatpush1.bf16.msra.mxu0 0
      %4269 = vmatprep.subr.bf16.mxu0 0
      %4270 = vmatpush1.bf16.msra.mxu0 0
      %4271 = vmatprep.subr.bf16.mxu0 0
      %4272 = vmatpush1.bf16.msra.mxu0 0
      %4273 = vmatprep.subr.bf16.mxu0 0
      %4274 = vmatpush1.bf16.msra.mxu0 0
      %4275 = vmatprep.subr.bf16.mxu0 0
      %4276 = vmatpush1.bf16.msra.mxu0 0
      %4277 = vmatprep.subr.bf16.mxu0 0
      %4278 = vmatpush1.bf16.msra.mxu0 0
      %4279 = vmatprep.subr.bf16.mxu0 0
      %4280 = vmatpush1.bf16.msra.mxu0 0
      %4281 = vmatprep.subr.bf16.mxu0 0
      %4282 = vmatpush1.bf16.msra.mxu0 0
      %4283 = vmatprep.subr.bf16.mxu0 0
      %4284 = vmatpush1.bf16.msra.mxu0 0
      %4285 = vmatprep.subr.bf16.mxu0 0
      %4286 = vmatpush1.bf16.msra.mxu0 0
      %4287 = vmatprep.mubr.bf16.mxu0 0
      %4288 = vmatmul.mubr.bf16.gmra.mrb[0].mxu0 %v4238
      %v4289 = vpop.f32.mrb[0].mxu0
      %v4290 = vadd.f32 0.0, %v4289
      %v4291 = vpop.f32.mrb[0].mxu0
      %v4292 = vadd.f32 0.0, %v4291
      %v4293 = vpop.f32.mrb[0].mxu0
      %v4294 = vadd.f32 0.0, %v4293
      %v4295 = vpop.f32.mrb[0].mxu0
      %v4296 = vadd.f32 0.0, %v4295
      %4297 = vmatprep.mubr.bf16.mxu0 0
      %4298 = vmatmul.mubr.bf16.gmra.mrb[0].mxu0 %v4241
      %v4299 = vpop.f32.mrb[0].mxu0
      %v4300 = vadd.f32 0.0, %v4299
      %v4301 = vpop.f32.mrb[0].mxu0
      %v4302 = vadd.f32 0.0, %v4301
      %v4303 = vpop.f32.mrb[0].mxu0
      %v4304 = vpop.f32.mrb[0].mxu0
      %4305 = vdwg.mxu0
      %4306 = vmatprep.subr.bf16.mxu0 %v4253
      %4307 = vmatpush1.bf16.msra.mxu0 %v4250
      %4308 = vmatprep.subr.bf16.mxu0 0
      %4309 = vmatpush1.bf16.msra.mxu0 0
      %4310 = vmatprep.subr.bf16.mxu0 0
      %4311 = vmatpush1.bf16.msra.mxu0 0
      %4312 = vmatprep.subr.bf16.mxu0 0
      %4313 = vmatpush1.bf16.msra.mxu0 0
      %4314 = vmatprep.subr.bf16.mxu0 0
      %4315 = vmatpush1.bf16.msra.mxu0 0
      %4316 = vmatprep.subr.bf16.mxu0 0
      %4317 = vmatpush1.bf16.msra.mxu0 0
      %4318 = vmatprep.subr.bf16.mxu0 0
      %4319 = vmatpush1.bf16.msra.mxu0 0
      %4320 = vmatprep.subr.bf16.mxu0 0
      %4321 = vmatpush1.bf16.msra.mxu0 0
      %4322 = vmatprep.subr.bf16.mxu0 0
      %4323 = vmatpush1.bf16.msra.mxu0 0
      %4324 = vmatprep.subr.bf16.mxu0 0
      %4325 = vmatpush1.bf16.msra.mxu0 0
      %4326 = vmatprep.subr.bf16.mxu0 0
      %4327 = vmatpush1.bf16.msra.mxu0 0
      %4328 = vmatprep.subr.bf16.mxu0 0
      %4329 = vmatpush1.bf16.msra.mxu0 0
      %4330 = vmatprep.subr.bf16.mxu0 0
      %4331 = vmatpush1.bf16.msra.mxu0 0
      %4332 = vmatprep.subr.bf16.mxu0 0
      %4333 = vmatpush1.bf16.msra.mxu0 0
      %4334 = vmatprep.subr.bf16.mxu0 0
      %4335 = vmatpush1.bf16.msra.mxu0 0
      %4336 = vmatprep.subr.bf16.mxu0 0
      %4337 = vmatpush1.bf16.msra.mxu0 0
      %4338 = vmatprep.mubr.bf16.mxu0 0
      %4339 = vmatmul.mubr.bf16.gmra.mrb[0].mxu0 %v4238
      %v4340 = vpop.f32.mrb[0].mxu0
      %v4341 = vadd.f32 0.0, %v4340
      %v4342 = vpop.f32.mrb[0].mxu0
      %v4343 = vadd.f32 0.0, %v4342
      %v4344 = vpop.f32.mrb[0].mxu0
      %v4345 = vadd.f32 0.0, %v4344
      %v4346 = vpop.f32.mrb[0].mxu0
      %v4347 = vadd.f32 0.0, %v4346
      %4348 = vmatprep.mubr.bf16.mxu0 0
      %4349 = vmatmul.mubr.bf16.gmra.mrb[0].mxu0 %v4241
      %v4350 = vpop.f32.mrb[0].mxu0
      %v4351 = vadd.f32 0.0, %v4350
      %v4352 = vpop.f32.mrb[0].mxu0
      %v4353 = vadd.f32 0.0, %v4352
      %v4354 = vpop.f32.mrb[0].mxu0
      %v4355 = vpop.f32.mrb[0].mxu0
      %4356 = vdwg.mxu0
      %v4357 = vadd.f32 %v4198, %v4290
      %v4358 = vadd.f32 %v4199, %v4292
      %v4359 = vadd.f32 %v4200, %v4341
      %v4360 = vadd.f32 %v4201, %v4343
      %v4361 = vadd.f32 %v4202, %v4294
      %v4362 = vadd.f32 %v4203, %v4296
      %v4363 = vadd.f32 %v4204, %v4345
      %v4364 = vadd.f32 %v4205, %v4347
      %v4365 = vadd.f32 %v4206, %v4300
      %v4366 = vadd.f32 %v4207, %v4302
      %v4367 = vadd.f32 %v4208, %v4351
      %v4368 = vadd.f32 %v4209, %v4353
      %s4369 = scalar_lea.vmem %s0, 312
      %v4370 = vld [vmem:[%s4369] sm:$0xf]
      %v4371 = vld [vmem:[%s4369 + $0x4] sm:$0xf]
      %v4372 = vld [vmem:[%s4369 + $0x8] sm:$0xf]
      %v4376 = vunpack.c.l.b16 %v4370
      %v4377 = vunpack.c.l.b16 %v4371
      %v4378 = vunpack.c.l.b16 %v4372
      %v4379 = vpack.c.b16 %v4377, %v4376
      %v4380 = vpack.c.b16 %v4378, %v4378
      %4381 = vrot.lane.b32.xlu0 %v3104, 34
      %v4382 = vpop.permute.xlu0 %4381
      %4383 = vrot.lane.b32.xlu0 %v3105, 34
      %v4384 = vpop.permute.xlu0 %4383
      %4385 = vrot.lane.b32.xlu0 %v3106, 34
      %v4386 = vpop.permute.xlu0 %4385
      %4387 = vrot.lane.b32.xlu0 %v3107, 34
      %v4388 = vpop.permute.xlu0 %4387
      %4389 = vrot.lane.b32.xlu0 %v3108, 34
      %v4390 = vpop.permute.xlu0 %4389
      %vm4391 = vcmask 277504
      %v4392 = vsel %vm4391, %v4382, %v4384
      %v4393 = vsel %vm4391, %v4384, %v4386
      %v4394 = vsel %vm4391, %v4386, %v4388
      %v4395 = vsel %vm4391, %v4388, %v4390
      %v4397 = vsel %vm287, %v4379, 0
      %v4400 = vsel %vm287, %v4380, 0
      %v4403 = vsel %vm294, %v4392, 0
      %v4406 = vsel %vm294, %v4393, 0
      %v4409 = vsel %vm294, %v4394, 0
      %v4412 = vsel %vm294, %v4395, 0
      %4414 = vmatprep.subr.bf16.mxu0 %v4406
      %4415 = vmatpush1.bf16.msra.mxu0 %v4403
      %4416 = vmatprep.subr.bf16.mxu0 0
      %4417 = vmatpush1.bf16.msra.mxu0 0
      %4418 = vmatprep.subr.bf16.mxu0 0
      %4419 = vmatpush1.bf16.msra.mxu0 0
      %4420 = vmatprep.subr.bf16.mxu0 0
      %4421 = vmatpush1.bf16.msra.mxu0 0
      %4422 = vmatprep.subr.bf16.mxu0 0
      %4423 = vmatpush1.bf16.msra.mxu0 0
      %4424 = vmatprep.subr.bf16.mxu0 0
      %4425 = vmatpush1.bf16.msra.mxu0 0
      %4426 = vmatprep.subr.bf16.mxu0 0
      %4427 = vmatpush1.bf16.msra.mxu0 0
      %4428 = vmatprep.subr.bf16.mxu0 0
      %4429 = vmatpush1.bf16.msra.mxu0 0
      %4430 = vmatprep.subr.bf16.mxu0 0
      %4431 = vmatpush1.bf16.msra.mxu0 0
      %4432 = vmatprep.subr.bf16.mxu0 0
      %4433 = vmatpush1.bf16.msra.mxu0 0
      %4434 = vmatprep.subr.bf16.mxu0 0
      %4435 = vmatpush1.bf16.msra.mxu0 0
      %4436 = vmatprep.subr.bf16.mxu0 0
      %4437 = vmatpush1.bf16.msra.mxu0 0
      %4438 = vmatprep.subr.bf16.mxu0 0
      %4439 = vmatpush1.bf16.msra.mxu0 0
      %4440 = vmatprep.subr.bf16.mxu0 0
      %4441 = vmatpush1.bf16.msra.mxu0 0
      %4442 = vmatprep.subr.bf16.mxu0 0
      %4443 = vmatpush1.bf16.msra.mxu0 0
      %4444 = vmatprep.subr.bf16.mxu0 0
      %4445 = vmatpush1.bf16.msra.mxu0 0
      %4446 = vmatprep.mubr.bf16.mxu0 0
      %4447 = vmatmul.mubr.bf16.gmra.mrb[0].mxu0 %v4397
      %v4448 = vpop.f32.mrb[0].mxu0
      %v4449 = vadd.f32 0.0, %v4448
      %v4450 = vpop.f32.mrb[0].mxu0
      %v4451 = vadd.f32 0.0, %v4450
      %v4452 = vpop.f32.mrb[0].mxu0
      %v4453 = vadd.f32 0.0, %v4452
      %v4454 = vpop.f32.mrb[0].mxu0
      %v4455 = vadd.f32 0.0, %v4454
      %4456 = vmatprep.mubr.bf16.mxu0 0
      %4457 = vmatmul.mubr.bf16.gmra.mrb[0].mxu0 %v4400
      %v4458 = vpop.f32.mrb[0].mxu0
      %v4459 = vadd.f32 0.0, %v4458
      %v4460 = vpop.f32.mrb[0].mxu0
      %v4461 = vadd.f32 0.0, %v4460
      %v4462 = vpop.f32.mrb[0].mxu0
      %v4463 = vpop.f32.mrb[0].mxu0
      %4464 = vdwg.mxu0
      %4465 = vmatprep.subr.bf16.mxu0 %v4412
      %4466 = vmatpush1.bf16.msra.mxu0 %v4409
      %4467 = vmatprep.subr.bf16.mxu0 0
      %4468 = vmatpush1.bf16.msra.mxu0 0
      %4469 = vmatprep.subr.bf16.mxu0 0
      %4470 = vmatpush1.bf16.msra.mxu0 0
      %4471 = vmatprep.subr.bf16.mxu0 0
      %4472 = vmatpush1.bf16.msra.mxu0 0
      %4473 = vmatprep.subr.bf16.mxu0 0
      %4474 = vmatpush1.bf16.msra.mxu0 0
      %4475 = vmatprep.subr.bf16.mxu0 0
      %4476 = vmatpush1.bf16.msra.mxu0 0
      %4477 = vmatprep.subr.bf16.mxu0 0
      %4478 = vmatpush1.bf16.msra.mxu0 0
      %4479 = vmatprep.subr.bf16.mxu0 0
      %4480 = vmatpush1.bf16.msra.mxu0 0
      %4481 = vmatprep.subr.bf16.mxu0 0
      %4482 = vmatpush1.bf16.msra.mxu0 0
      %4483 = vmatprep.subr.bf16.mxu0 0
      %4484 = vmatpush1.bf16.msra.mxu0 0
      %4485 = vmatprep.subr.bf16.mxu0 0
      %4486 = vmatpush1.bf16.msra.mxu0 0
      %4487 = vmatprep.subr.bf16.mxu0 0
      %4488 = vmatpush1.bf16.msra.mxu0 0
      %4489 = vmatprep.subr.bf16.mxu0 0
      %4490 = vmatpush1.bf16.msra.mxu0 0
      %4491 = vmatprep.subr.bf16.mxu0 0
      %4492 = vmatpush1.bf16.msra.mxu0 0
      %4493 = vmatprep.subr.bf16.mxu0 0
      %4494 = vmatpush1.bf16.msra.mxu0 0
      %4495 = vmatprep.subr.bf16.mxu0 0
      %4496 = vmatpush1.bf16.msra.mxu0 0
      %4497 = vmatprep.mubr.bf16.mxu0 0
      %4498 = vmatmul.mubr.bf16.gmra.mrb[0].mxu0 %v4397
      %v4499 = vpop.f32.mrb[0].mxu0
      %v4500 = vadd.f32 0.0, %v4499
      %v4501 = vpop.f32.mrb[0].mxu0
      %v4502 = vadd.f32 0.0, %v4501
      %v4503 = vpop.f32.mrb[0].mxu0
      %v4504 = vadd.f32 0.0, %v4503
      %v4505 = vpop.f32.mrb[0].mxu0
      %v4506 = vadd.f32 0.0, %v4505
      %4507 = vmatprep.mubr.bf16.mxu0 0
      %4508 = vmatmul.mubr.bf16.gmra.mrb[0].mxu0 %v4400
      %v4509 = vpop.f32.mrb[0].mxu0
      %v4510 = vadd.f32 0.0, %v4509
      %v4511 = vpop.f32.mrb[0].mxu0
      %v4512 = vadd.f32 0.0, %v4511
      %v4513 = vpop.f32.mrb[0].mxu0
      %v4514 = vpop.f32.mrb[0].mxu0
      %4515 = vdwg.mxu0
      %v4516 = vadd.f32 %v4357, %v4449
      %v4517 = vadd.f32 %v4358, %v4451
      %v4518 = vadd.f32 %v4359, %v4500
      %v4519 = vadd.f32 %v4360, %v4502
      %v4520 = vadd.f32 %v4361, %v4453
      %v4521 = vadd.f32 %v4362, %v4455
      %v4522 = vadd.f32 %v4363, %v4504
      %v4523 = vadd.f32 %v4364, %v4506
      %v4524 = vadd.f32 %v4365, %v4459
      %v4525 = vadd.f32 %v4366, %v4461
      %v4526 = vadd.f32 %v4367, %v4510
      %v4527 = vadd.f32 %v4368, %v4512
      %v4528 = vmul.f32 %v4520, %v4524
      %v4529 = vmul.f32 %v4521, %v4525
      %v4530 = vmul.f32 %v4522, %v4526
      %v4531 = vmul.f32 %v4523, %v4527
      %v4532 = vadd.f32 %v4516, %v4528
      %v4533 = vadd.f32 %v4517, %v4529
      %v4534 = vadd.f32 %v4518, %v4530
      %v4535 = vadd.f32 %v4519, %v4531
      %v4536 = vmul.f32 %v4532, 1.442695
      %v4537 = vpow.pop %v4536
      %v4538 = vmul.f32 %v4533, 1.442695
      %v4539 = vpow.pop %v4538
      %v4540 = vmul.f32 %v4534, 1.442695
      %v4541 = vpow.pop %v4540
      %v4542 = vmul.f32 %v4535, 1.442695
      %v4543 = vpow.pop %v4542
      %4544 = vst [vmem:[%s228] sm:$0xff] %v4537
      %4545 = vst [vmem:[%s228 + $0x8] sm:$0xff] %v4539
      %4546 = vst [vmem:[%s228 + $0x10] sm:$0xff] %v4541
      %4547 = vst [vmem:[%s228 + $0x18] sm:$0xff] %v4543
      %v4548 = vld [vmem:[#allocation2 + $0x10] sm:$0xff]
      %v4549 = vld [vmem:[#allocation2 + $0x18] sm:$0xff]
      %v4550 = vld [vmem:[%s0] sm:$0xf]
      %v4551 = vld [vmem:[%s0 + $0x4] sm:$0xf]
      %v4552 = vld [vmem:[%s0 + $0x8] sm:$0xf]
      %v4553 = vld [vmem:[#allocation2 + $0x20] sm:$0xf]
      %v4554 = vld [vmem:[%s247] sm:$0xf]
      %v4555 = vld [vmem:[%s247 + $0x4] sm:$0xf]
      %v4556 = vld [vmem:[%s247 + $0x8] sm:$0xf]
      %v4560 = vunpack.c.l.b16 %v4554
      %v4561 = vunpack.c.l.b16 %v4555
      %v4562 = vunpack.c.l.b16 %v4556
      %v4563 = vpack.c.b16 %v4561, %v4560
      %v4564 = vpack.c.b16 %v4562, %v4562
      %v4568 = vunpack.c.l.b16 %v4548
      %v4569 = vunpack.c.h.b16 %v4548
      %v4570 = vunpack.c.l.b16 %v4549
      %v4571 = vunpack.c.h.b16 %v4549
      %v4572 = vunpack.c.l.b16 %v4553
      %v4573 = vpack.c.b16 %v4568, %v4568
      %v4574 = vpack.c.b16 %v4569, %v4569
      %v4575 = vpack.c.b16 %v4570, %v4570
      %v4576 = vpack.c.b16 %v4571, %v4571
      %v4577 = vpack.c.b16 %v4572, %v4572
      %4578 = vrot.lane.b32.xlu0 %v4573, 127
      %v4579 = vpop.permute.xlu0 %4578
      %4580 = vrot.lane.b32.xlu0 %v4574, 127
      %v4581 = vpop.permute.xlu0 %4580
      %4582 = vrot.lane.b32.xlu0 %v4575, 127
      %v4583 = vpop.permute.xlu0 %4582
      %4584 = vrot.lane.b32.xlu0 %v4576, 127
      %v4585 = vpop.permute.xlu0 %4584
      %4586 = vrot.lane.b32.xlu0 %v4577, 127
      %v4587 = vpop.permute.xlu0 %4586
      %v4588 = vsel %vm282, %v4579, %v4581
      %v4589 = vsel %vm282, %v4581, %v4583
      %v4590 = vsel %vm282, %v4583, %v4585
      %v4591 = vsel %vm282, %v4585, %v4587
      %v4593 = vsel %vm287, %v4563, 0
      %v4596 = vsel %vm287, %v4564, 0
      %v4599 = vsel %vm294, %v4588, 0
      %v4602 = vsel %vm294, %v4589, 0
      %v4605 = vsel %vm294, %v4590, 0
      %v4608 = vsel %vm294, %v4591, 0
      %4610 = vmatprep.subr.bf16.mxu0 %v4602
      %4611 = vmatpush1.bf16.msra.mxu0 %v4599
      %4612 = vmatprep.subr.bf16.mxu0 0
      %4613 = vmatpush1.bf16.msra.mxu0 0
      %4614 = vmatprep.subr.bf16.mxu0 0
      %4615 = vmatpush1.bf16.msra.mxu0 0
      %4616 = vmatprep.subr.bf16.mxu0 0
      %4617 = vmatpush1.bf16.msra.mxu0 0
      %4618 = vmatprep.subr.bf16.mxu0 0
      %4619 = vmatpush1.bf16.msra.mxu0 0
      %4620 = vmatprep.subr.bf16.mxu0 0
      %4621 = vmatpush1.bf16.msra.mxu0 0
      %4622 = vmatprep.subr.bf16.mxu0 0
      %4623 = vmatpush1.bf16.msra.mxu0 0
      %4624 = vmatprep.subr.bf16.mxu0 0
      %4625 = vmatpush1.bf16.msra.mxu0 0
      %4626 = vmatprep.subr.bf16.mxu0 0
      %4627 = vmatpush1.bf16.msra.mxu0 0
      %4628 = vmatprep.subr.bf16.mxu0 0
      %4629 = vmatpush1.bf16.msra.mxu0 0
      %4630 = vmatprep.subr.bf16.mxu0 0
      %4631 = vmatpush1.bf16.msra.mxu0 0
      %4632 = vmatprep.subr.bf16.mxu0 0
      %4633 = vmatpush1.bf16.msra.mxu0 0
      %4634 = vmatprep.subr.bf16.mxu0 0
      %4635 = vmatpush1.bf16.msra.mxu0 0
      %4636 = vmatprep.subr.bf16.mxu0 0
      %4637 = vmatpush1.bf16.msra.mxu0 0
      %4638 = vmatprep.subr.bf16.mxu0 0
      %4639 = vmatpush1.bf16.msra.mxu0 0
      %4640 = vmatprep.subr.bf16.mxu0 0
      %4641 = vmatpush1.bf16.msra.mxu0 0
      %4642 = vmatprep.mubr.bf16.mxu0 0
      %4643 = vmatmul.mubr.bf16.gmra.mrb[0].mxu0 %v4593
      %v4644 = vpop.f32.mrb[0].mxu0
      %v4645 = vadd.f32 0.0, %v4644
      %v4646 = vpop.f32.mrb[0].mxu0
      %v4647 = vadd.f32 0.0, %v4646
      %v4648 = vpop.f32.mrb[0].mxu0
      %v4649 = vadd.f32 0.0, %v4648
      %v4650 = vpop.f32.mrb[0].mxu0
      %v4651 = vadd.f32 0.0, %v4650
      %4652 = vmatprep.mubr.bf16.mxu0 0
      %4653 = vmatmul.mubr.bf16.gmra.mrb[0].mxu0 %v4596
      %v4654 = vpop.f32.mrb[0].mxu0
      %v4655 = vadd.f32 0.0, %v4654
      %v4656 = vpop.f32.mrb[0].mxu0
      %v4657 = vadd.f32 0.0, %v4656
      %v4658 = vpop.f32.mrb[0].mxu0
      %v4659 = vpop.f32.mrb[0].mxu0
      %4660 = vdwg.mxu0
      %4661 = vmatprep.subr.bf16.mxu0 %v4608
      %4662 = vmatpush1.bf16.msra.mxu0 %v4605
      %4663 = vmatprep.subr.bf16.mxu0 0
      %4664 = vmatpush1.bf16.msra.mxu0 0
      %4665 = vmatprep.subr.bf16.mxu0 0
      %4666 = vmatpush1.bf16.msra.mxu0 0
      %4667 = vmatprep.subr.bf16.mxu0 0
      %4668 = vmatpush1.bf16.msra.mxu0 0
      %4669 = vmatprep.subr.bf16.mxu0 0
      %4670 = vmatpush1.bf16.msra.mxu0 0
      %4671 = vmatprep.subr.bf16.mxu0 0
      %4672 = vmatpush1.bf16.msra.mxu0 0
      %4673 = vmatprep.subr.bf16.mxu0 0
      %4674 = vmatpush1.bf16.msra.mxu0 0
      %4675 = vmatprep.subr.bf16.mxu0 0
      %4676 = vmatpush1.bf16.msra.mxu0 0
      %4677 = vmatprep.subr.bf16.mxu0 0
      %4678 = vmatpush1.bf16.msra.mxu0 0
      %4679 = vmatprep.subr.bf16.mxu0 0
      %4680 = vmatpush1.bf16.msra.mxu0 0
      %4681 = vmatprep.subr.bf16.mxu0 0
      %4682 = vmatpush1.bf16.msra.mxu0 0
      %4683 = vmatprep.subr.bf16.mxu0 0
      %4684 = vmatpush1.bf16.msra.mxu0 0
      %4685 = vmatprep.subr.bf16.mxu0 0
      %4686 = vmatpush1.bf16.msra.mxu0 0
      %4687 = vmatprep.subr.bf16.mxu0 0
      %4688 = vmatpush1.bf16.msra.mxu0 0
      %4689 = vmatprep.subr.bf16.mxu0 0
      %4690 = vmatpush1.bf16.msra.mxu0 0
      %4691 = vmatprep.subr.bf16.mxu0 0
      %4692 = vmatpush1.bf16.msra.mxu0 0
      %4693 = vmatprep.mubr.bf16.mxu0 0
      %4694 = vmatmul.mubr.bf16.gmra.mrb[0].mxu0 %v4593
      %v4695 = vpop.f32.mrb[0].mxu0
      %v4696 = vadd.f32 0.0, %v4695
      %v4697 = vpop.f32.mrb[0].mxu0
      %v4698 = vadd.f32 0.0, %v4697
      %v4699 = vpop.f32.mrb[0].mxu0
      %v4700 = vadd.f32 0.0, %v4699
      %v4701 = vpop.f32.mrb[0].mxu0
      %v4702 = vadd.f32 0.0, %v4701
      %4703 = vmatprep.mubr.bf16.mxu0 0
      %4704 = vmatmul.mubr.bf16.gmra.mrb[0].mxu0 %v4596
      %v4705 = vpop.f32.mrb[0].mxu0
      %v4706 = vadd.f32 0.0, %v4705
      %v4707 = vpop.f32.mrb[0].mxu0
      %v4708 = vadd.f32 0.0, %v4707
      %v4709 = vpop.f32.mrb[0].mxu0
      %v4710 = vpop.f32.mrb[0].mxu0
      %4711 = vdwg.mxu0
      %v4715 = vunpack.c.l.b16 %v4550
      %v4716 = vunpack.c.l.b16 %v4551
      %v4717 = vunpack.c.l.b16 %v4552
      %v4718 = vpack.c.b16 %v4716, %v4715
      %v4719 = vpack.c.b16 %v4717, %v4717
      %v4721 = vsel %vm287, %v4718, 0
      %v4724 = vsel %vm287, %v4719, 0
      %v4727 = vsel %vm294, %v4573, 0
      %v4730 = vsel %vm294, %v4574, 0
      %v4733 = vsel %vm294, %v4575, 0
      %v4736 = vsel %vm294, %v4576, 0
      %4738 = vmatprep.subr.bf16.mxu0 %v4730
      %4739 = vmatpush1.bf16.msra.mxu0 %v4727
      %4740 = vmatprep.subr.bf16.mxu0 0
      %4741 = vmatpush1.bf16.msra.mxu0 0
      %4742 = vmatprep.subr.bf16.mxu0 0
      %4743 = vmatpush1.bf16.msra.mxu0 0
      %4744 = vmatprep.subr.bf16.mxu0 0
      %4745 = vmatpush1.bf16.msra.mxu0 0
      %4746 = vmatprep.subr.bf16.mxu0 0
      %4747 = vmatpush1.bf16.msra.mxu0 0
      %4748 = vmatprep.subr.bf16.mxu0 0
      %4749 = vmatpush1.bf16.msra.mxu0 0
      %4750 = vmatprep.subr.bf16.mxu0 0
      %4751 = vmatpush1.bf16.msra.mxu0 0
      %4752 = vmatprep.subr.bf16.mxu0 0
      %4753 = vmatpush1.bf16.msra.mxu0 0
      %4754 = vmatprep.subr.bf16.mxu0 0
      %4755 = vmatpush1.bf16.msra.mxu0 0
      %4756 = vmatprep.subr.bf16.mxu0 0
      %4757 = vmatpush1.bf16.msra.mxu0 0
      %4758 = vmatprep.subr.bf16.mxu0 0
      %4759 = vmatpush1.bf16.msra.mxu0 0
      %4760 = vmatprep.subr.bf16.mxu0 0
      %4761 = vmatpush1.bf16.msra.mxu0 0
      %4762 = vmatprep.subr.bf16.mxu0 0
      %4763 = vmatpush1.bf16.msra.mxu0 0
      %4764 = vmatprep.subr.bf16.mxu0 0
      %4765 = vmatpush1.bf16.msra.mxu0 0
      %4766 = vmatprep.subr.bf16.mxu0 0
      %4767 = vmatpush1.bf16.msra.mxu0 0
      %4768 = vmatprep.subr.bf16.mxu0 0
      %4769 = vmatpush1.bf16.msra.mxu0 0
      %4770 = vmatprep.mubr.bf16.mxu0 0
      %4771 = vmatmul.mubr.bf16.gmra.mrb[0].mxu0 %v4721
      %v4772 = vpop.f32.mrb[0].mxu0
      %v4773 = vadd.f32 %v4645, %v4772
      %v4774 = vpop.f32.mrb[0].mxu0
      %v4775 = vadd.f32 %v4647, %v4774
      %v4776 = vpop.f32.mrb[0].mxu0
      %v4777 = vadd.f32 %v4649, %v4776
      %v4778 = vpop.f32.mrb[0].mxu0
      %v4779 = vadd.f32 %v4651, %v4778
      %4780 = vmatprep.mubr.bf16.mxu0 0
      %4781 = vmatmul.mubr.bf16.gmra.mrb[0].mxu0 %v4724
      %v4782 = vpop.f32.mrb[0].mxu0
      %v4783 = vadd.f32 %v4655, %v4782
      %v4784 = vpop.f32.mrb[0].mxu0
      %v4785 = vadd.f32 %v4657, %v4784
      %v4786 = vpop.f32.mrb[0].mxu0
      %v4787 = vpop.f32.mrb[0].mxu0
      %4788 = vdwg.mxu0
      %4789 = vmatprep.subr.bf16.mxu0 %v4736
      %4790 = vmatpush1.bf16.msra.mxu0 %v4733
      %4791 = vmatprep.subr.bf16.mxu0 0
      %4792 = vmatpush1.bf16.msra.mxu0 0
      %4793 = vmatprep.subr.bf16.mxu0 0
      %4794 = vmatpush1.bf16.msra.mxu0 0
      %4795 = vmatprep.subr.bf16.mxu0 0
      %4796 = vmatpush1.bf16.msra.mxu0 0
      %4797 = vmatprep.subr.bf16.mxu0 0
      %4798 = vmatpush1.bf16.msra.mxu0 0
      %4799 = vmatprep.subr.bf16.mxu0 0
      %4800 = vmatpush1.bf16.msra.mxu0 0
      %4801 = vmatprep.subr.bf16.mxu0 0
      %4802 = vmatpush1.bf16.msra.mxu0 0
      %4803 = vmatprep.subr.bf16.mxu0 0
      %4804 = vmatpush1.bf16.msra.mxu0 0
      %4805 = vmatprep.subr.bf16.mxu0 0
      %4806 = vmatpush1.bf16.msra.mxu0 0
      %4807 = vmatprep.subr.bf16.mxu0 0
      %4808 = vmatpush1.bf16.msra.mxu0 0
      %4809 = vmatprep.subr.bf16.mxu0 0
      %4810 = vmatpush1.bf16.msra.mxu0 0
      %4811 = vmatprep.subr.bf16.mxu0 0
      %4812 = vmatpush1.bf16.msra.mxu0 0
      %4813 = vmatprep.subr.bf16.mxu0 0
      %4814 = vmatpush1.bf16.msra.mxu0 0
      %4815 = vmatprep.subr.bf16.mxu0 0
      %4816 = vmatpush1.bf16.msra.mxu0 0
      %4817 = vmatprep.subr.bf16.mxu0 0
      %4818 = vmatpush1.bf16.msra.mxu0 0
      %4819 = vmatprep.subr.bf16.mxu0 0
      %4820 = vmatpush1.bf16.msra.mxu0 0
      %4821 = vmatprep.mubr.bf16.mxu0 0
      %4822 = vmatmul.mubr.bf16.gmra.mrb[0].mxu0 %v4721
      %v4823 = vpop.f32.mrb[0].mxu0
      %v4824 = vadd.f32 %v4696, %v4823
      %v4825 = vpop.f32.mrb[0].mxu0
      %v4826 = vadd.f32 %v4698, %v4825
      %v4827 = vpop.f32.mrb[0].mxu0
      %v4828 = vadd.f32 %v4700, %v4827
      %v4829 = vpop.f32.mrb[0].mxu0
      %v4830 = vadd.f32 %v4702, %v4829
      %4831 = vmatprep.mubr.bf16.mxu0 0
      %4832 = vmatmul.mubr.bf16.gmra.mrb[0].mxu0 %v4724
      %v4833 = vpop.f32.mrb[0].mxu0
      %v4834 = vadd.f32 %v4706, %v4833
      %v4835 = vpop.f32.mrb[0].mxu0
      %v4836 = vadd.f32 %v4708, %v4835
      %v4837 = vpop.f32.mrb[0].mxu0
      %v4838 = vpop.f32.mrb[0].mxu0
      %4839 = vdwg.mxu0
      %v4840 = vld [vmem:[%s537] sm:$0xf]
      %v4841 = vld [vmem:[%s537 + $0x4] sm:$0xf]
      %v4842 = vld [vmem:[%s537 + $0x8] sm:$0xf]
      %v4846 = vunpack.c.l.b16 %v4840
      %v4847 = vunpack.c.l.b16 %v4841
      %v4848 = vunpack.c.l.b16 %v4842
      %v4849 = vpack.c.b16 %v4847, %v4846
      %v4850 = vpack.c.b16 %v4848, %v4848
      %4851 = vrot.lane.b32.xlu0 %v4573, 126
      %v4852 = vpop.permute.xlu0 %4851
      %4853 = vrot.lane.b32.xlu0 %v4574, 126
      %v4854 = vpop.permute.xlu0 %4853
      %4855 = vrot.lane.b32.xlu0 %v4575, 126
      %v4856 = vpop.permute.xlu0 %4855
      %4857 = vrot.lane.b32.xlu0 %v4576, 126
      %v4858 = vpop.permute.xlu0 %4857
      %4859 = vrot.lane.b32.xlu0 %v4577, 126
      %v4860 = vpop.permute.xlu0 %4859
      %v4861 = vsel %vm559, %v4852, %v4854
      %v4862 = vsel %vm559, %v4854, %v4856
      %v4863 = vsel %vm559, %v4856, %v4858
      %v4864 = vsel %vm559, %v4858, %v4860
      %v4866 = vsel %vm287, %v4849, 0
      %v4869 = vsel %vm287, %v4850, 0
      %v4872 = vsel %vm294, %v4861, 0
      %v4875 = vsel %vm294, %v4862, 0
      %v4878 = vsel %vm294, %v4863, 0
      %v4881 = vsel %vm294, %v4864, 0
      %4883 = vmatprep.subr.bf16.mxu0 %v4875
      %4884 = vmatpush1.bf16.msra.mxu0 %v4872
      %4885 = vmatprep.subr.bf16.mxu0 0
      %4886 = vmatpush1.bf16.msra.mxu0 0
      %4887 = vmatprep.subr.bf16.mxu0 0
      %4888 = vmatpush1.bf16.msra.mxu0 0
      %4889 = vmatprep.subr.bf16.mxu0 0
      %4890 = vmatpush1.bf16.msra.mxu0 0
      %4891 = vmatprep.subr.bf16.mxu0 0
      %4892 = vmatpush1.bf16.msra.mxu0 0
      %4893 = vmatprep.subr.bf16.mxu0 0
      %4894 = vmatpush1.bf16.msra.mxu0 0
      %4895 = vmatprep.subr.bf16.mxu0 0
      %4896 = vmatpush1.bf16.msra.mxu0 0
      %4897 = vmatprep.subr.bf16.mxu0 0
      %4898 = vmatpush1.bf16.msra.mxu0 0
      %4899 = vmatprep.subr.bf16.mxu0 0
      %4900 = vmatpush1.bf16.msra.mxu0 0
      %4901 = vmatprep.subr.bf16.mxu0 0
      %4902 = vmatpush1.bf16.msra.mxu0 0
      %4903 = vmatprep.subr.bf16.mxu0 0
      %4904 = vmatpush1.bf16.msra.mxu0 0
      %4905 = vmatprep.subr.bf16.mxu0 0
      %4906 = vmatpush1.bf16.msra.mxu0 0
      %4907 = vmatprep.subr.bf16.mxu0 0
      %4908 = vmatpush1.bf16.msra.mxu0 0
      %4909 = vmatprep.subr.bf16.mxu0 0
      %4910 = vmatpush1.bf16.msra.mxu0 0
      %4911 = vmatprep.subr.bf16.mxu0 0
      %4912 = vmatpush1.bf16.msra.mxu0 0
      %4913 = vmatprep.subr.bf16.mxu0 0
      %4914 = vmatpush1.bf16.msra.mxu0 0
      %4915 = vmatprep.mubr.bf16.mxu0 0
      %4916 = vmatmul.mubr.bf16.gmra.mrb[0].mxu0 %v4866
      %v4917 = vpop.f32.mrb[0].mxu0
      %v4918 = vadd.f32 0.0, %v4917
      %v4919 = vpop.f32.mrb[0].mxu0
      %v4920 = vadd.f32 0.0, %v4919
      %v4921 = vpop.f32.mrb[0].mxu0
      %v4922 = vadd.f32 0.0, %v4921
      %v4923 = vpop.f32.mrb[0].mxu0
      %v4924 = vadd.f32 0.0, %v4923
      %4925 = vmatprep.mubr.bf16.mxu0 0
      %4926 = vmatmul.mubr.bf16.gmra.mrb[0].mxu0 %v4869
      %v4927 = vpop.f32.mrb[0].mxu0
      %v4928 = vadd.f32 0.0, %v4927
      %v4929 = vpop.f32.mrb[0].mxu0
      %v4930 = vadd.f32 0.0, %v4929
      %v4931 = vpop.f32.mrb[0].mxu0
      %v4932 = vpop.f32.mrb[0].mxu0
      %4933 = vdwg.mxu0
      %4934 = vmatprep.subr.bf16.mxu0 %v4881
      %4935 = vmatpush1.bf16.msra.mxu0 %v4878
      %4936 = vmatprep.subr.bf16.mxu0 0
      %4937 = vmatpush1.bf16.msra.mxu0 0
      %4938 = vmatprep.subr.bf16.mxu0 0
      %4939 = vmatpush1.bf16.msra.mxu0 0
      %4940 = vmatprep.subr.bf16.mxu0 0
      %4941 = vmatpush1.bf16.msra.mxu0 0
      %4942 = vmatprep.subr.bf16.mxu0 0
      %4943 = vmatpush1.bf16.msra.mxu0 0
      %4944 = vmatprep.subr.bf16.mxu0 0
      %4945 = vmatpush1.bf16.msra.mxu0 0
      %4946 = vmatprep.subr.bf16.mxu0 0
      %4947 = vmatpush1.bf16.msra.mxu0 0
      %4948 = vmatprep.subr.bf16.mxu0 0
      %4949 = vmatpush1.bf16.msra.mxu0 0
      %4950 = vmatprep.subr.bf16.mxu0 0
      %4951 = vmatpush1.bf16.msra.mxu0 0
      %4952 = vmatprep.subr.bf16.mxu0 0
      %4953 = vmatpush1.bf16.msra.mxu0 0
      %4954 = vmatprep.subr.bf16.mxu0 0
      %4955 = vmatpush1.bf16.msra.mxu0 0
      %4956 = vmatprep.subr.bf16.mxu0 0
      %4957 = vmatpush1.bf16.msra.mxu0 0
      %4958 = vmatprep.subr.bf16.mxu0 0
      %4959 = vmatpush1.bf16.msra.mxu0 0
      %4960 = vmatprep.subr.bf16.mxu0 0
      %4961 = vmatpush1.bf16.msra.mxu0 0
      %4962 = vmatprep.subr.bf16.mxu0 0
      %4963 = vmatpush1.bf16.msra.mxu0 0
      %4964 = vmatprep.subr.bf16.mxu0 0
      %4965 = vmatpush1.bf16.msra.mxu0 0
      %4966 = vmatprep.mubr.bf16.mxu0 0
      %4967 = vmatmul.mubr.bf16.gmra.mrb[0].mxu0 %v4866
      %v4968 = vpop.f32.mrb[0].mxu0
      %v4969 = vadd.f32 0.0, %v4968
      %v4970 = vpop.f32.mrb[0].mxu0
      %v4971 = vadd.f32 0.0, %v4970
      %v4972 = vpop.f32.mrb[0].mxu0
      %v4973 = vadd.f32 0.0, %v4972
      %v4974 = vpop.f32.mrb[0].mxu0
      %v4975 = vadd.f32 0.0, %v4974
      %4976 = vmatprep.mubr.bf16.mxu0 0
      %4977 = vmatmul.mubr.bf16.gmra.mrb[0].mxu0 %v4869
      %v4978 = vpop.f32.mrb[0].mxu0
      %v4979 = vadd.f32 0.0, %v4978
      %v4980 = vpop.f32.mrb[0].mxu0
      %v4981 = vadd.f32 0.0, %v4980
      %v4982 = vpop.f32.mrb[0].mxu0
      %v4983 = vpop.f32.mrb[0].mxu0
      %4984 = vdwg.mxu0
      %v4985 = vadd.f32 %v4773, %v4918
      %v4986 = vadd.f32 %v4775, %v4920
      %v4987 = vadd.f32 %v4824, %v4969
      %v4988 = vadd.f32 %v4826, %v4971
      %v4989 = vadd.f32 %v4777, %v4922
      %v4990 = vadd.f32 %v4779, %v4924
      %v4991 = vadd.f32 %v4828, %v4973
      %v4992 = vadd.f32 %v4830, %v4975
      %v4993 = vadd.f32 %v4783, %v4928
      %v4994 = vadd.f32 %v4785, %v4930
      %v4995 = vadd.f32 %v4834, %v4979
      %v4996 = vadd.f32 %v4836, %v4981
      %v4997 = vld [vmem:[%s696] sm:$0xf]
      %v4998 = vld [vmem:[%s696 + $0x4] sm:$0xf]
      %v4999 = vld [vmem:[%s696 + $0x8] sm:$0xf]
      %v5003 = vunpack.c.l.b16 %v4997
      %v5004 = vunpack.c.l.b16 %v4998
      %v5005 = vunpack.c.l.b16 %v4999
      %v5006 = vpack.c.b16 %v5004, %v5003
      %v5007 = vpack.c.b16 %v5005, %v5005
      %5008 = vrot.lane.b32.xlu0 %v4573, 118
      %v5009 = vpop.permute.xlu0 %5008
      %5010 = vrot.lane.b32.xlu0 %v4574, 118
      %v5011 = vpop.permute.xlu0 %5010
      %5012 = vrot.lane.b32.xlu0 %v4575, 118
      %v5013 = vpop.permute.xlu0 %5012
      %5014 = vrot.lane.b32.xlu0 %v4576, 118
      %v5015 = vpop.permute.xlu0 %5014
      %5016 = vrot.lane.b32.xlu0 %v4577, 118
      %v5017 = vpop.permute.xlu0 %5016
      %v5018 = vsel %vm718, %v5009, %v5011
      %v5019 = vsel %vm718, %v5011, %v5013
      %v5020 = vsel %vm718, %v5013, %v5015
      %v5021 = vsel %vm718, %v5015, %v5017
      %v5023 = vsel %vm287, %v5006, 0
      %v5026 = vsel %vm287, %v5007, 0
      %v5029 = vsel %vm294, %v5018, 0
      %v5032 = vsel %vm294, %v5019, 0
      %v5035 = vsel %vm294, %v5020, 0
      %v5038 = vsel %vm294, %v5021, 0
      %5040 = vmatprep.subr.bf16.mxu0 %v5032
      %5041 = vmatpush1.bf16.msra.mxu0 %v5029
      %5042 = vmatprep.subr.bf16.mxu0 0
      %5043 = vmatpush1.bf16.msra.mxu0 0
      %5044 = vmatprep.subr.bf16.mxu0 0
      %5045 = vmatpush1.bf16.msra.mxu0 0
      %5046 = vmatprep.subr.bf16.mxu0 0
      %5047 = vmatpush1.bf16.msra.mxu0 0
      %5048 = vmatprep.subr.bf16.mxu0 0
      %5049 = vmatpush1.bf16.msra.mxu0 0
      %5050 = vmatprep.subr.bf16.mxu0 0
      %5051 = vmatpush1.bf16.msra.mxu0 0
      %5052 = vmatprep.subr.bf16.mxu0 0
      %5053 = vmatpush1.bf16.msra.mxu0 0
      %5054 = vmatprep.subr.bf16.mxu0 0
      %5055 = vmatpush1.bf16.msra.mxu0 0
      %5056 = vmatprep.subr.bf16.mxu0 0
      %5057 = vmatpush1.bf16.msra.mxu0 0
      %5058 = vmatprep.subr.bf16.mxu0 0
      %5059 = vmatpush1.bf16.msra.mxu0 0
      %5060 = vmatprep.subr.bf16.mxu0 0
      %5061 = vmatpush1.bf16.msra.mxu0 0
      %5062 = vmatprep.subr.bf16.mxu0 0
      %5063 = vmatpush1.bf16.msra.mxu0 0
      %5064 = vmatprep.subr.bf16.mxu0 0
      %5065 = vmatpush1.bf16.msra.mxu0 0
      %5066 = vmatprep.subr.bf16.mxu0 0
      %5067 = vmatpush1.bf16.msra.mxu0 0
      %5068 = vmatprep.subr.bf16.mxu0 0
      %5069 = vmatpush1.bf16.msra.mxu0 0
      %5070 = vmatprep.subr.bf16.mxu0 0
      %5071 = vmatpush1.bf16.msra.mxu0 0
      %5072 = vmatprep.mubr.bf16.mxu0 0
      %5073 = vmatmul.mubr.bf16.gmra.mrb[0].mxu0 %v5023
      %v5074 = vpop.f32.mrb[0].mxu0
      %v5075 = vadd.f32 0.0, %v5074
      %v5076 = vpop.f32.mrb[0].mxu0
      %v5077 = vadd.f32 0.0, %v5076
      %v5078 = vpop.f32.mrb[0].mxu0
      %v5079 = vadd.f32 0.0, %v5078
      %v5080 = vpop.f32.mrb[0].mxu0
      %v5081 = vadd.f32 0.0, %v5080
      %5082 = vmatprep.mubr.bf16.mxu0 0
      %5083 = vmatmul.mubr.bf16.gmra.mrb[0].mxu0 %v5026
      %v5084 = vpop.f32.mrb[0].mxu0
      %v5085 = vadd.f32 0.0, %v5084
      %v5086 = vpop.f32.mrb[0].mxu0
      %v5087 = vadd.f32 0.0, %v5086
      %v5088 = vpop.f32.mrb[0].mxu0
      %v5089 = vpop.f32.mrb[0].mxu0
      %5090 = vdwg.mxu0
      %5091 = vmatprep.subr.bf16.mxu0 %v5038
      %5092 = vmatpush1.bf16.msra.mxu0 %v5035
      %5093 = vmatprep.subr.bf16.mxu0 0
      %5094 = vmatpush1.bf16.msra.mxu0 0
      %5095 = vmatprep.subr.bf16.mxu0 0
      %5096 = vmatpush1.bf16.msra.mxu0 0
      %5097 = vmatprep.subr.bf16.mxu0 0
      %5098 = vmatpush1.bf16.msra.mxu0 0
      %5099 = vmatprep.subr.bf16.mxu0 0
      %5100 = vmatpush1.bf16.msra.mxu0 0
      %5101 = vmatprep.subr.bf16.mxu0 0
      %5102 = vmatpush1.bf16.msra.mxu0 0
      %5103 = vmatprep.subr.bf16.mxu0 0
      %5104 = vmatpush1.bf16.msra.mxu0 0
      %5105 = vmatprep.subr.bf16.mxu0 0
      %5106 = vmatpush1.bf16.msra.mxu0 0
      %5107 = vmatprep.subr.bf16.mxu0 0
      %5108 = vmatpush1.bf16.msra.mxu0 0
      %5109 = vmatprep.subr.bf16.mxu0 0
      %5110 = vmatpush1.bf16.msra.mxu0 0
      %5111 = vmatprep.subr.bf16.mxu0 0
      %5112 = vmatpush1.bf16.msra.mxu0 0
      %5113 = vmatprep.subr.bf16.mxu0 0
      %5114 = vmatpush1.bf16.msra.mxu0 0
      %5115 = vmatprep.subr.bf16.mxu0 0
      %5116 = vmatpush1.bf16.msra.mxu0 0
      %5117 = vmatprep.subr.bf16.mxu0 0
      %5118 = vmatpush1.bf16.msra.mxu0 0
      %5119 = vmatprep.subr.bf16.mxu0 0
      %5120 = vmatpush1.bf16.msra.mxu0 0
      %5121 = vmatprep.subr.bf16.mxu0 0
      %5122 = vmatpush1.bf16.msra.mxu0 0
      %5123 = vmatprep.mubr.bf16.mxu0 0
      %5124 = vmatmul.mubr.bf16.gmra.mrb[0].mxu0 %v5023
      %v5125 = vpop.f32.mrb[0].mxu0
      %v5126 = vadd.f32 0.0, %v5125
      %v5127 = vpop.f32.mrb[0].mxu0
      %v5128 = vadd.f32 0.0, %v5127
      %v5129 = vpop.f32.mrb[0].mxu0
      %v5130 = vadd.f32 0.0, %v5129
      %v5131 = vpop.f32.mrb[0].mxu0
      %v5132 = vadd.f32 0.0, %v5131
      %5133 = vmatprep.mubr.bf16.mxu0 0
      %5134 = vmatmul.mubr.bf16.gmra.mrb[0].mxu0 %v5026
      %v5135 = vpop.f32.mrb[0].mxu0
      %v5136 = vadd.f32 0.0, %v5135
      %v5137 = vpop.f32.mrb[0].mxu0
      %v5138 = vadd.f32 0.0, %v5137
      %v5139 = vpop.f32.mrb[0].mxu0
      %v5140 = vpop.f32.mrb[0].mxu0
      %5141 = vdwg.mxu0
      %v5142 = vadd.f32 %v4985, %v5075
      %v5143 = vadd.f32 %v4986, %v5077
      %v5144 = vadd.f32 %v4987, %v5126
      %v5145 = vadd.f32 %v4988, %v5128
      %v5146 = vadd.f32 %v4989, %v5079
      %v5147 = vadd.f32 %v4990, %v5081
      %v5148 = vadd.f32 %v4991, %v5130
      %v5149 = vadd.f32 %v4992, %v5132
      %v5150 = vadd.f32 %v4993, %v5085
      %v5151 = vadd.f32 %v4994, %v5087
      %v5152 = vadd.f32 %v4995, %v5136
      %v5153 = vadd.f32 %v4996, %v5138
      %v5154 = vld [vmem:[%s855] sm:$0xf]
      %v5155 = vld [vmem:[%s855 + $0x4] sm:$0xf]
      %v5156 = vld [vmem:[%s855 + $0x8] sm:$0xf]
      %v5160 = vunpack.c.l.b16 %v5154
      %v5161 = vunpack.c.l.b16 %v5155
      %v5162 = vunpack.c.l.b16 %v5156
      %v5163 = vpack.c.b16 %v5161, %v5160
      %v5164 = vpack.c.b16 %v5162, %v5162
      %5165 = vrot.lane.b32.xlu0 %v4573, 117
      %v5166 = vpop.permute.xlu0 %5165
      %5167 = vrot.lane.b32.xlu0 %v4574, 117
      %v5168 = vpop.permute.xlu0 %5167
      %5169 = vrot.lane.b32.xlu0 %v4575, 117
      %v5170 = vpop.permute.xlu0 %5169
      %5171 = vrot.lane.b32.xlu0 %v4576, 117
      %v5172 = vpop.permute.xlu0 %5171
      %5173 = vrot.lane.b32.xlu0 %v4577, 117
      %v5174 = vpop.permute.xlu0 %5173
      %v5175 = vsel %vm877, %v5166, %v5168
      %v5176 = vsel %vm877, %v5168, %v5170
      %v5177 = vsel %vm877, %v5170, %v5172
      %v5178 = vsel %vm877, %v5172, %v5174
      %v5180 = vsel %vm287, %v5163, 0
      %v5183 = vsel %vm287, %v5164, 0
      %v5186 = vsel %vm294, %v5175, 0
      %v5189 = vsel %vm294, %v5176, 0
      %v5192 = vsel %vm294, %v5177, 0
      %v5195 = vsel %vm294, %v5178, 0
      %5197 = vmatprep.subr.bf16.mxu0 %v5189
      %5198 = vmatpush1.bf16.msra.mxu0 %v5186
      %5199 = vmatprep.subr.bf16.mxu0 0
      %5200 = vmatpush1.bf16.msra.mxu0 0
      %5201 = vmatprep.subr.bf16.mxu0 0
      %5202 = vmatpush1.bf16.msra.mxu0 0
      %5203 = vmatprep.subr.bf16.mxu0 0
      %5204 = vmatpush1.bf16.msra.mxu0 0
      %5205 = vmatprep.subr.bf16.mxu0 0
      %5206 = vmatpush1.bf16.msra.mxu0 0
      %5207 = vmatprep.subr.bf16.mxu0 0
      %5208 = vmatpush1.bf16.msra.mxu0 0
      %5209 = vmatprep.subr.bf16.mxu0 0
      %5210 = vmatpush1.bf16.msra.mxu0 0
      %5211 = vmatprep.subr.bf16.mxu0 0
      %5212 = vmatpush1.bf16.msra.mxu0 0
      %5213 = vmatprep.subr.bf16.mxu0 0
      %5214 = vmatpush1.bf16.msra.mxu0 0
      %5215 = vmatprep.subr.bf16.mxu0 0
      %5216 = vmatpush1.bf16.msra.mxu0 0
      %5217 = vmatprep.subr.bf16.mxu0 0
      %5218 = vmatpush1.bf16.msra.mxu0 0
      %5219 = vmatprep.subr.bf16.mxu0 0
      %5220 = vmatpush1.bf16.msra.mxu0 0
      %5221 = vmatprep.subr.bf16.mxu0 0
      %5222 = vmatpush1.bf16.msra.mxu0 0
      %5223 = vmatprep.subr.bf16.mxu0 0
      %5224 = vmatpush1.bf16.msra.mxu0 0
      %5225 = vmatprep.subr.bf16.mxu0 0
      %5226 = vmatpush1.bf16.msra.mxu0 0
      %5227 = vmatprep.subr.bf16.mxu0 0
      %5228 = vmatpush1.bf16.msra.mxu0 0
      %5229 = vmatprep.mubr.bf16.mxu0 0
      %5230 = vmatmul.mubr.bf16.gmra.mrb[0].mxu0 %v5180
      %v5231 = vpop.f32.mrb[0].mxu0
      %v5232 = vadd.f32 0.0, %v5231
      %v5233 = vpop.f32.mrb[0].mxu0
      %v5234 = vadd.f32 0.0, %v5233
      %v5235 = vpop.f32.mrb[0].mxu0
      %v5236 = vadd.f32 0.0, %v5235
      %v5237 = vpop.f32.mrb[0].mxu0
      %v5238 = vadd.f32 0.0, %v5237
      %5239 = vmatprep.mubr.bf16.mxu0 0
      %5240 = vmatmul.mubr.bf16.gmra.mrb[0].mxu0 %v5183
      %v5241 = vpop.f32.mrb[0].mxu0
      %v5242 = vadd.f32 0.0, %v5241
      %v5243 = vpop.f32.mrb[0].mxu0
      %v5244 = vadd.f32 0.0, %v5243
      %v5245 = vpop.f32.mrb[0].mxu0
      %v5246 = vpop.f32.mrb[0].mxu0
      %5247 = vdwg.mxu0
      %5248 = vmatprep.subr.bf16.mxu0 %v5195
      %5249 = vmatpush1.bf16.msra.mxu0 %v5192
      %5250 = vmatprep.subr.bf16.mxu0 0
      %5251 = vmatpush1.bf16.msra.mxu0 0
      %5252 = vmatprep.subr.bf16.mxu0 0
      %5253 = vmatpush1.bf16.msra.mxu0 0
      %5254 = vmatprep.subr.bf16.mxu0 0
      %5255 = vmatpush1.bf16.msra.mxu0 0
      %5256 = vmatprep.subr.bf16.mxu0 0
      %5257 = vmatpush1.bf16.msra.mxu0 0
      %5258 = vmatprep.subr.bf16.mxu0 0
      %5259 = vmatpush1.bf16.msra.mxu0 0
      %5260 = vmatprep.subr.bf16.mxu0 0
      %5261 = vmatpush1.bf16.msra.mxu0 0
      %5262 = vmatprep.subr.bf16.mxu0 0
      %5263 = vmatpush1.bf16.msra.mxu0 0
      %5264 = vmatprep.subr.bf16.mxu0 0
      %5265 = vmatpush1.bf16.msra.mxu0 0
      %5266 = vmatprep.subr.bf16.mxu0 0
      %5267 = vmatpush1.bf16.msra.mxu0 0
      %5268 = vmatprep.subr.bf16.mxu0 0
      %5269 = vmatpush1.bf16.msra.mxu0 0
      %5270 = vmatprep.subr.bf16.mxu0 0
      %5271 = vmatpush1.bf16.msra.mxu0 0
      %5272 = vmatprep.subr.bf16.mxu0 0
      %5273 = vmatpush1.bf16.msra.mxu0 0
      %5274 = vmatprep.subr.bf16.mxu0 0
      %5275 = vmatpush1.bf16.msra.mxu0 0
      %5276 = vmatprep.subr.bf16.mxu0 0
      %5277 = vmatpush1.bf16.msra.mxu0 0
      %5278 = vmatprep.subr.bf16.mxu0 0
      %5279 = vmatpush1.bf16.msra.mxu0 0
      %5280 = vmatprep.mubr.bf16.mxu0 0
      %5281 = vmatmul.mubr.bf16.gmra.mrb[0].mxu0 %v5180
      %v5282 = vpop.f32.mrb[0].mxu0
      %v5283 = vadd.f32 0.0, %v5282
      %v5284 = vpop.f32.mrb[0].mxu0
      %v5285 = vadd.f32 0.0, %v5284
      %v5286 = vpop.f32.mrb[0].mxu0
      %v5287 = vadd.f32 0.0, %v5286
      %v5288 = vpop.f32.mrb[0].mxu0
      %v5289 = vadd.f32 0.0, %v5288
      %5290 = vmatprep.mubr.bf16.mxu0 0
      %5291 = vmatmul.mubr.bf16.gmra.mrb[0].mxu0 %v5183
      %v5292 = vpop.f32.mrb[0].mxu0
      %v5293 = vadd.f32 0.0, %v5292
      %v5294 = vpop.f32.mrb[0].mxu0
      %v5295 = vadd.f32 0.0, %v5294
      %v5296 = vpop.f32.mrb[0].mxu0
      %v5297 = vpop.f32.mrb[0].mxu0
      %5298 = vdwg.mxu0
      %v5299 = vadd.f32 %v5142, %v5232
      %v5300 = vadd.f32 %v5143, %v5234
      %v5301 = vadd.f32 %v5144, %v5283
      %v5302 = vadd.f32 %v5145, %v5285
      %v5303 = vadd.f32 %v5146, %v5236
      %v5304 = vadd.f32 %v5147, %v5238
      %v5305 = vadd.f32 %v5148, %v5287
      %v5306 = vadd.f32 %v5149, %v5289
      %v5307 = vadd.f32 %v5150, %v5242
      %v5308 = vadd.f32 %v5151, %v5244
      %v5309 = vadd.f32 %v5152, %v5293
      %v5310 = vadd.f32 %v5153, %v5295
      %v5311 = vld [vmem:[%s1014] sm:$0xf]
      %v5312 = vld [vmem:[%s1014 + $0x4] sm:$0xf]
      %v5313 = vld [vmem:[%s1014 + $0x8] sm:$0xf]
      %v5317 = vunpack.c.l.b16 %v5311
      %v5318 = vunpack.c.l.b16 %v5312
      %v5319 = vunpack.c.l.b16 %v5313
      %v5320 = vpack.c.b16 %v5318, %v5317
      %v5321 = vpack.c.b16 %v5319, %v5319
      %5322 = vrot.lane.b32.xlu0 %v4573, 116
      %v5323 = vpop.permute.xlu0 %5322
      %5324 = vrot.lane.b32.xlu0 %v4574, 116
      %v5325 = vpop.permute.xlu0 %5324
      %5326 = vrot.lane.b32.xlu0 %v4575, 116
      %v5327 = vpop.permute.xlu0 %5326
      %5328 = vrot.lane.b32.xlu0 %v4576, 116
      %v5329 = vpop.permute.xlu0 %5328
      %5330 = vrot.lane.b32.xlu0 %v4577, 116
      %v5331 = vpop.permute.xlu0 %5330
      %v5332 = vsel %vm1036, %v5323, %v5325
      %v5333 = vsel %vm1036, %v5325, %v5327
      %v5334 = vsel %vm1036, %v5327, %v5329
      %v5335 = vsel %vm1036, %v5329, %v5331
      %v5337 = vsel %vm287, %v5320, 0
      %v5340 = vsel %vm287, %v5321, 0
      %v5343 = vsel %vm294, %v5332, 0
      %v5346 = vsel %vm294, %v5333, 0
      %v5349 = vsel %vm294, %v5334, 0
      %v5352 = vsel %vm294, %v5335, 0
      %5354 = vmatprep.subr.bf16.mxu0 %v5346
      %5355 = vmatpush1.bf16.msra.mxu0 %v5343
      %5356 = vmatprep.subr.bf16.mxu0 0
      %5357 = vmatpush1.bf16.msra.mxu0 0
      %5358 = vmatprep.subr.bf16.mxu0 0
      %5359 = vmatpush1.bf16.msra.mxu0 0
      %5360 = vmatprep.subr.bf16.mxu0 0
      %5361 = vmatpush1.bf16.msra.mxu0 0
      %5362 = vmatprep.subr.bf16.mxu0 0
      %5363 = vmatpush1.bf16.msra.mxu0 0
      %5364 = vmatprep.subr.bf16.mxu0 0
      %5365 = vmatpush1.bf16.msra.mxu0 0
      %5366 = vmatprep.subr.bf16.mxu0 0
      %5367 = vmatpush1.bf16.msra.mxu0 0
      %5368 = vmatprep.subr.bf16.mxu0 0
      %5369 = vmatpush1.bf16.msra.mxu0 0
      %5370 = vmatprep.subr.bf16.mxu0 0
      %5371 = vmatpush1.bf16.msra.mxu0 0
      %5372 = vmatprep.subr.bf16.mxu0 0
      %5373 = vmatpush1.bf16.msra.mxu0 0
      %5374 = vmatprep.subr.bf16.mxu0 0
      %5375 = vmatpush1.bf16.msra.mxu0 0
      %5376 = vmatprep.subr.bf16.mxu0 0
      %5377 = vmatpush1.bf16.msra.mxu0 0
      %5378 = vmatprep.subr.bf16.mxu0 0
      %5379 = vmatpush1.bf16.msra.mxu0 0
      %5380 = vmatprep.subr.bf16.mxu0 0
      %5381 = vmatpush1.bf16.msra.mxu0 0
      %5382 = vmatprep.subr.bf16.mxu0 0
      %5383 = vmatpush1.bf16.msra.mxu0 0
      %5384 = vmatprep.subr.bf16.mxu0 0
      %5385 = vmatpush1.bf16.msra.mxu0 0
      %5386 = vmatprep.mubr.bf16.mxu0 0
      %5387 = vmatmul.mubr.bf16.gmra.mrb[0].mxu0 %v5337
      %v5388 = vpop.f32.mrb[0].mxu0
      %v5389 = vadd.f32 0.0, %v5388
      %v5390 = vpop.f32.mrb[0].mxu0
      %v5391 = vadd.f32 0.0, %v5390
      %v5392 = vpop.f32.mrb[0].mxu0
      %v5393 = vadd.f32 0.0, %v5392
      %v5394 = vpop.f32.mrb[0].mxu0
      %v5395 = vadd.f32 0.0, %v5394
      %5396 = vmatprep.mubr.bf16.mxu0 0
      %5397 = vmatmul.mubr.bf16.gmra.mrb[0].mxu0 %v5340
      %v5398 = vpop.f32.mrb[0].mxu0
      %v5399 = vadd.f32 0.0, %v5398
      %v5400 = vpop.f32.mrb[0].mxu0
      %v5401 = vadd.f32 0.0, %v5400
      %v5402 = vpop.f32.mrb[0].mxu0
      %v5403 = vpop.f32.mrb[0].mxu0
      %5404 = vdwg.mxu0
      %5405 = vmatprep.subr.bf16.mxu0 %v5352
      %5406 = vmatpush1.bf16.msra.mxu0 %v5349
      %5407 = vmatprep.subr.bf16.mxu0 0
      %5408 = vmatpush1.bf16.msra.mxu0 0
      %5409 = vmatprep.subr.bf16.mxu0 0
      %5410 = vmatpush1.bf16.msra.mxu0 0
      %5411 = vmatprep.subr.bf16.mxu0 0
      %5412 = vmatpush1.bf16.msra.mxu0 0
      %5413 = vmatprep.subr.bf16.mxu0 0
      %5414 = vmatpush1.bf16.msra.mxu0 0
      %5415 = vmatprep.subr.bf16.mxu0 0
      %5416 = vmatpush1.bf16.msra.mxu0 0
      %5417 = vmatprep.subr.bf16.mxu0 0
      %5418 = vmatpush1.bf16.msra.mxu0 0
      %5419 = vmatprep.subr.bf16.mxu0 0
      %5420 = vmatpush1.bf16.msra.mxu0 0
      %5421 = vmatprep.subr.bf16.mxu0 0
      %5422 = vmatpush1.bf16.msra.mxu0 0
      %5423 = vmatprep.subr.bf16.mxu0 0
      %5424 = vmatpush1.bf16.msra.mxu0 0
      %5425 = vmatprep.subr.bf16.mxu0 0
      %5426 = vmatpush1.bf16.msra.mxu0 0
      %5427 = vmatprep.subr.bf16.mxu0 0
      %5428 = vmatpush1.bf16.msra.mxu0 0
      %5429 = vmatprep.subr.bf16.mxu0 0
      %5430 = vmatpush1.bf16.msra.mxu0 0
      %5431 = vmatprep.subr.bf16.mxu0 0
      %5432 = vmatpush1.bf16.msra.mxu0 0
      %5433 = vmatprep.subr.bf16.mxu0 0
      %5434 = vmatpush1.bf16.msra.mxu0 0
      %5435 = vmatprep.subr.bf16.mxu0 0
      %5436 = vmatpush1.bf16.msra.mxu0 0
      %5437 = vmatprep.mubr.bf16.mxu0 0
      %5438 = vmatmul.mubr.bf16.gmra.mrb[0].mxu0 %v5337
      %v5439 = vpop.f32.mrb[0].mxu0
      %v5440 = vadd.f32 0.0, %v5439
      %v5441 = vpop.f32.mrb[0].mxu0
      %v5442 = vadd.f32 0.0, %v5441
      %v5443 = vpop.f32.mrb[0].mxu0
      %v5444 = vadd.f32 0.0, %v5443
      %v5445 = vpop.f32.mrb[0].mxu0
      %v5446 = vadd.f32 0.0, %v5445
      %5447 = vmatprep.mubr.bf16.mxu0 0
      %5448 = vmatmul.mubr.bf16.gmra.mrb[0].mxu0 %v5340
      %v5449 = vpop.f32.mrb[0].mxu0
      %v5450 = vadd.f32 0.0, %v5449
      %v5451 = vpop.f32.mrb[0].mxu0
      %v5452 = vadd.f32 0.0, %v5451
      %v5453 = vpop.f32.mrb[0].mxu0
      %v5454 = vpop.f32.mrb[0].mxu0
      %5455 = vdwg.mxu0
      %v5456 = vadd.f32 %v5299, %v5389
      %v5457 = vadd.f32 %v5300, %v5391
      %v5458 = vadd.f32 %v5301, %v5440
      %v5459 = vadd.f32 %v5302, %v5442
      %v5460 = vadd.f32 %v5303, %v5393
      %v5461 = vadd.f32 %v5304, %v5395
      %v5462 = vadd.f32 %v5305, %v5444
      %v5463 = vadd.f32 %v5306, %v5446
      %v5464 = vadd.f32 %v5307, %v5399
      %v5465 = vadd.f32 %v5308, %v5401
      %v5466 = vadd.f32 %v5309, %v5450
      %v5467 = vadd.f32 %v5310, %v5452
      %v5468 = vld [vmem:[%s1173] sm:$0xf]
      %v5469 = vld [vmem:[%s1173 + $0x4] sm:$0xf]
      %v5470 = vld [vmem:[%s1173 + $0x8] sm:$0xf]
      %v5474 = vunpack.c.l.b16 %v5468
      %v5475 = vunpack.c.l.b16 %v5469
      %v5476 = vunpack.c.l.b16 %v5470
      %v5477 = vpack.c.b16 %v5475, %v5474
      %v5478 = vpack.c.b16 %v5476, %v5476
      %5479 = vrot.lane.b32.xlu0 %v4573, 108
      %v5480 = vpop.permute.xlu0 %5479
      %5481 = vrot.lane.b32.xlu0 %v4574, 108
      %v5482 = vpop.permute.xlu0 %5481
      %5483 = vrot.lane.b32.xlu0 %v4575, 108
      %v5484 = vpop.permute.xlu0 %5483
      %5485 = vrot.lane.b32.xlu0 %v4576, 108
      %v5486 = vpop.permute.xlu0 %5485
      %5487 = vrot.lane.b32.xlu0 %v4577, 108
      %v5488 = vpop.permute.xlu0 %5487
      %v5489 = vsel %vm1195, %v5480, %v5482
      %v5490 = vsel %vm1195, %v5482, %v5484
      %v5491 = vsel %vm1195, %v5484, %v5486
      %v5492 = vsel %vm1195, %v5486, %v5488
      %v5494 = vsel %vm287, %v5477, 0
      %v5497 = vsel %vm287, %v5478, 0
      %v5500 = vsel %vm294, %v5489, 0
      %v5503 = vsel %vm294, %v5490, 0
      %v5506 = vsel %vm294, %v5491, 0
      %v5509 = vsel %vm294, %v5492, 0
      %5511 = vmatprep.subr.bf16.mxu0 %v5503
      %5512 = vmatpush1.bf16.msra.mxu0 %v5500
      %5513 = vmatprep.subr.bf16.mxu0 0
      %5514 = vmatpush1.bf16.msra.mxu0 0
      %5515 = vmatprep.subr.bf16.mxu0 0
      %5516 = vmatpush1.bf16.msra.mxu0 0
      %5517 = vmatprep.subr.bf16.mxu0 0
      %5518 = vmatpush1.bf16.msra.mxu0 0
      %5519 = vmatprep.subr.bf16.mxu0 0
      %5520 = vmatpush1.bf16.msra.mxu0 0
      %5521 = vmatprep.subr.bf16.mxu0 0
      %5522 = vmatpush1.bf16.msra.mxu0 0
      %5523 = vmatprep.subr.bf16.mxu0 0
      %5524 = vmatpush1.bf16.msra.mxu0 0
      %5525 = vmatprep.subr.bf16.mxu0 0
      %5526 = vmatpush1.bf16.msra.mxu0 0
      %5527 = vmatprep.subr.bf16.mxu0 0
      %5528 = vmatpush1.bf16.msra.mxu0 0
      %5529 = vmatprep.subr.bf16.mxu0 0
      %5530 = vmatpush1.bf16.msra.mxu0 0
      %5531 = vmatprep.subr.bf16.mxu0 0
      %5532 = vmatpush1.bf16.msra.mxu0 0
      %5533 = vmatprep.subr.bf16.mxu0 0
      %5534 = vmatpush1.bf16.msra.mxu0 0
      %5535 = vmatprep.subr.bf16.mxu0 0
      %5536 = vmatpush1.bf16.msra.mxu0 0
      %5537 = vmatprep.subr.bf16.mxu0 0
      %5538 = vmatpush1.bf16.msra.mxu0 0
      %5539 = vmatprep.subr.bf16.mxu0 0
      %5540 = vmatpush1.bf16.msra.mxu0 0
      %5541 = vmatprep.subr.bf16.mxu0 0
      %5542 = vmatpush1.bf16.msra.mxu0 0
      %5543 = vmatprep.mubr.bf16.mxu0 0
      %5544 = vmatmul.mubr.bf16.gmra.mrb[0].mxu0 %v5494
      %v5545 = vpop.f32.mrb[0].mxu0
      %v5546 = vadd.f32 0.0, %v5545
      %v5547 = vpop.f32.mrb[0].mxu0
      %v5548 = vadd.f32 0.0, %v5547
      %v5549 = vpop.f32.mrb[0].mxu0
      %v5550 = vadd.f32 0.0, %v5549
      %v5551 = vpop.f32.mrb[0].mxu0
      %v5552 = vadd.f32 0.0, %v5551
      %5553 = vmatprep.mubr.bf16.mxu0 0
      %5554 = vmatmul.mubr.bf16.gmra.mrb[0].mxu0 %v5497
      %v5555 = vpop.f32.mrb[0].mxu0
      %v5556 = vadd.f32 0.0, %v5555
      %v5557 = vpop.f32.mrb[0].mxu0
      %v5558 = vadd.f32 0.0, %v5557
      %v5559 = vpop.f32.mrb[0].mxu0
      %v5560 = vpop.f32.mrb[0].mxu0
      %5561 = vdwg.mxu0
      %5562 = vmatprep.subr.bf16.mxu0 %v5509
      %5563 = vmatpush1.bf16.msra.mxu0 %v5506
      %5564 = vmatprep.subr.bf16.mxu0 0
      %5565 = vmatpush1.bf16.msra.mxu0 0
      %5566 = vmatprep.subr.bf16.mxu0 0
      %5567 = vmatpush1.bf16.msra.mxu0 0
      %5568 = vmatprep.subr.bf16.mxu0 0
      %5569 = vmatpush1.bf16.msra.mxu0 0
      %5570 = vmatprep.subr.bf16.mxu0 0
      %5571 = vmatpush1.bf16.msra.mxu0 0
      %5572 = vmatprep.subr.bf16.mxu0 0
      %5573 = vmatpush1.bf16.msra.mxu0 0
      %5574 = vmatprep.subr.bf16.mxu0 0
      %5575 = vmatpush1.bf16.msra.mxu0 0
      %5576 = vmatprep.subr.bf16.mxu0 0
      %5577 = vmatpush1.bf16.msra.mxu0 0
      %5578 = vmatprep.subr.bf16.mxu0 0
      %5579 = vmatpush1.bf16.msra.mxu0 0
      %5580 = vmatprep.subr.bf16.mxu0 0
      %5581 = vmatpush1.bf16.msra.mxu0 0
      %5582 = vmatprep.subr.bf16.mxu0 0
      %5583 = vmatpush1.bf16.msra.mxu0 0
      %5584 = vmatprep.subr.bf16.mxu0 0
      %5585 = vmatpush1.bf16.msra.mxu0 0
      %5586 = vmatprep.subr.bf16.mxu0 0
      %5587 = vmatpush1.bf16.msra.mxu0 0
      %5588 = vmatprep.subr.bf16.mxu0 0
      %5589 = vmatpush1.bf16.msra.mxu0 0
      %5590 = vmatprep.subr.bf16.mxu0 0
      %5591 = vmatpush1.bf16.msra.mxu0 0
      %5592 = vmatprep.subr.bf16.mxu0 0
      %5593 = vmatpush1.bf16.msra.mxu0 0
      %5594 = vmatprep.mubr.bf16.mxu0 0
      %5595 = vmatmul.mubr.bf16.gmra.mrb[0].mxu0 %v5494
      %v5596 = vpop.f32.mrb[0].mxu0
      %v5597 = vadd.f32 0.0, %v5596
      %v5598 = vpop.f32.mrb[0].mxu0
      %v5599 = vadd.f32 0.0, %v5598
      %v5600 = vpop.f32.mrb[0].mxu0
      %v5601 = vadd.f32 0.0, %v5600
      %v5602 = vpop.f32.mrb[0].mxu0
      %v5603 = vadd.f32 0.0, %v5602
      %5604 = vmatprep.mubr.bf16.mxu0 0
      %5605 = vmatmul.mubr.bf16.gmra.mrb[0].mxu0 %v5497
      %v5606 = vpop.f32.mrb[0].mxu0
      %v5607 = vadd.f32 0.0, %v5606
      %v5608 = vpop.f32.mrb[0].mxu0
      %v5609 = vadd.f32 0.0, %v5608
      %v5610 = vpop.f32.mrb[0].mxu0
      %v5611 = vpop.f32.mrb[0].mxu0
      %5612 = vdwg.mxu0
      %v5613 = vadd.f32 %v5456, %v5546
      %v5614 = vadd.f32 %v5457, %v5548
      %v5615 = vadd.f32 %v5458, %v5597
      %v5616 = vadd.f32 %v5459, %v5599
      %v5617 = vadd.f32 %v5460, %v5550
      %v5618 = vadd.f32 %v5461, %v5552
      %v5619 = vadd.f32 %v5462, %v5601
      %v5620 = vadd.f32 %v5463, %v5603
      %v5621 = vadd.f32 %v5464, %v5556
      %v5622 = vadd.f32 %v5465, %v5558
      %v5623 = vadd.f32 %v5466, %v5607
      %v5624 = vadd.f32 %v5467, %v5609
      %v5625 = vld [vmem:[%s1332] sm:$0xf]
      %v5626 = vld [vmem:[%s1332 + $0x4] sm:$0xf]
      %v5627 = vld [vmem:[%s1332 + $0x8] sm:$0xf]
      %v5631 = vunpack.c.l.b16 %v5625
      %v5632 = vunpack.c.l.b16 %v5626
      %v5633 = vunpack.c.l.b16 %v5627
      %v5634 = vpack.c.b16 %v5632, %v5631
      %v5635 = vpack.c.b16 %v5633, %v5633
      %5636 = vrot.lane.b32.xlu0 %v4573, 107
      %v5637 = vpop.permute.xlu0 %5636
      %5638 = vrot.lane.b32.xlu0 %v4574, 107
      %v5639 = vpop.permute.xlu0 %5638
      %5640 = vrot.lane.b32.xlu0 %v4575, 107
      %v5641 = vpop.permute.xlu0 %5640
      %5642 = vrot.lane.b32.xlu0 %v4576, 107
      %v5643 = vpop.permute.xlu0 %5642
      %5644 = vrot.lane.b32.xlu0 %v4577, 107
      %v5645 = vpop.permute.xlu0 %5644
      %v5646 = vsel %vm1354, %v5637, %v5639
      %v5647 = vsel %vm1354, %v5639, %v5641
      %v5648 = vsel %vm1354, %v5641, %v5643
      %v5649 = vsel %vm1354, %v5643, %v5645
      %v5651 = vsel %vm287, %v5634, 0
      %v5654 = vsel %vm287, %v5635, 0
      %v5657 = vsel %vm294, %v5646, 0
      %v5660 = vsel %vm294, %v5647, 0
      %v5663 = vsel %vm294, %v5648, 0
      %v5666 = vsel %vm294, %v5649, 0
      %5668 = vmatprep.subr.bf16.mxu0 %v5660
      %5669 = vmatpush1.bf16.msra.mxu0 %v5657
      %5670 = vmatprep.subr.bf16.mxu0 0
      %5671 = vmatpush1.bf16.msra.mxu0 0
      %5672 = vmatprep.subr.bf16.mxu0 0
      %5673 = vmatpush1.bf16.msra.mxu0 0
      %5674 = vmatprep.subr.bf16.mxu0 0
      %5675 = vmatpush1.bf16.msra.mxu0 0
      %5676 = vmatprep.subr.bf16.mxu0 0
      %5677 = vmatpush1.bf16.msra.mxu0 0
      %5678 = vmatprep.subr.bf16.mxu0 0
      %5679 = vmatpush1.bf16.msra.mxu0 0
      %5680 = vmatprep.subr.bf16.mxu0 0
      %5681 = vmatpush1.bf16.msra.mxu0 0
      %5682 = vmatprep.subr.bf16.mxu0 0
      %5683 = vmatpush1.bf16.msra.mxu0 0
      %5684 = vmatprep.subr.bf16.mxu0 0
      %5685 = vmatpush1.bf16.msra.mxu0 0
      %5686 = vmatprep.subr.bf16.mxu0 0
      %5687 = vmatpush1.bf16.msra.mxu0 0
      %5688 = vmatprep.subr.bf16.mxu0 0
      %5689 = vmatpush1.bf16.msra.mxu0 0
      %5690 = vmatprep.subr.bf16.mxu0 0
      %5691 = vmatpush1.bf16.msra.mxu0 0
      %5692 = vmatprep.subr.bf16.mxu0 0
      %5693 = vmatpush1.bf16.msra.mxu0 0
      %5694 = vmatprep.subr.bf16.mxu0 0
      %5695 = vmatpush1.bf16.msra.mxu0 0
      %5696 = vmatprep.subr.bf16.mxu0 0
      %5697 = vmatpush1.bf16.msra.mxu0 0
      %5698 = vmatprep.subr.bf16.mxu0 0
      %5699 = vmatpush1.bf16.msra.mxu0 0
      %5700 = vmatprep.mubr.bf16.mxu0 0
      %5701 = vmatmul.mubr.bf16.gmra.mrb[0].mxu0 %v5651
      %v5702 = vpop.f32.mrb[0].mxu0
      %v5703 = vadd.f32 0.0, %v5702
      %v5704 = vpop.f32.mrb[0].mxu0
      %v5705 = vadd.f32 0.0, %v5704
      %v5706 = vpop.f32.mrb[0].mxu0
      %v5707 = vadd.f32 0.0, %v5706
      %v5708 = vpop.f32.mrb[0].mxu0
      %v5709 = vadd.f32 0.0, %v5708
      %5710 = vmatprep.mubr.bf16.mxu0 0
      %5711 = vmatmul.mubr.bf16.gmra.mrb[0].mxu0 %v5654
      %v5712 = vpop.f32.mrb[0].mxu0
      %v5713 = vadd.f32 0.0, %v5712
      %v5714 = vpop.f32.mrb[0].mxu0
      %v5715 = vadd.f32 0.0, %v5714
      %v5716 = vpop.f32.mrb[0].mxu0
      %v5717 = vpop.f32.mrb[0].mxu0
      %5718 = vdwg.mxu0
      %5719 = vmatprep.subr.bf16.mxu0 %v5666
      %5720 = vmatpush1.bf16.msra.mxu0 %v5663
      %5721 = vmatprep.subr.bf16.mxu0 0
      %5722 = vmatpush1.bf16.msra.mxu0 0
      %5723 = vmatprep.subr.bf16.mxu0 0
      %5724 = vmatpush1.bf16.msra.mxu0 0
      %5725 = vmatprep.subr.bf16.mxu0 0
      %5726 = vmatpush1.bf16.msra.mxu0 0
      %5727 = vmatprep.subr.bf16.mxu0 0
      %5728 = vmatpush1.bf16.msra.mxu0 0
      %5729 = vmatprep.subr.bf16.mxu0 0
      %5730 = vmatpush1.bf16.msra.mxu0 0
      %5731 = vmatprep.subr.bf16.mxu0 0
      %5732 = vmatpush1.bf16.msra.mxu0 0
      %5733 = vmatprep.subr.bf16.mxu0 0
      %5734 = vmatpush1.bf16.msra.mxu0 0
      %5735 = vmatprep.subr.bf16.mxu0 0
      %5736 = vmatpush1.bf16.msra.mxu0 0
      %5737 = vmatprep.subr.bf16.mxu0 0
      %5738 = vmatpush1.bf16.msra.mxu0 0
      %5739 = vmatprep.subr.bf16.mxu0 0
      %5740 = vmatpush1.bf16.msra.mxu0 0
      %5741 = vmatprep.subr.bf16.mxu0 0
      %5742 = vmatpush1.bf16.msra.mxu0 0
      %5743 = vmatprep.subr.bf16.mxu0 0
      %5744 = vmatpush1.bf16.msra.mxu0 0
      %5745 = vmatprep.subr.bf16.mxu0 0
      %5746 = vmatpush1.bf16.msra.mxu0 0
      %5747 = vmatprep.subr.bf16.mxu0 0
      %5748 = vmatpush1.bf16.msra.mxu0 0
      %5749 = vmatprep.subr.bf16.mxu0 0
      %5750 = vmatpush1.bf16.msra.mxu0 0
      %5751 = vmatprep.mubr.bf16.mxu0 0
      %5752 = vmatmul.mubr.bf16.gmra.mrb[0].mxu0 %v5651
      %v5753 = vpop.f32.mrb[0].mxu0
      %v5754 = vadd.f32 0.0, %v5753
      %v5755 = vpop.f32.mrb[0].mxu0
      %v5756 = vadd.f32 0.0, %v5755
      %v5757 = vpop.f32.mrb[0].mxu0
      %v5758 = vadd.f32 0.0, %v5757
      %v5759 = vpop.f32.mrb[0].mxu0
      %v5760 = vadd.f32 0.0, %v5759
      %5761 = vmatprep.mubr.bf16.mxu0 0
      %5762 = vmatmul.mubr.bf16.gmra.mrb[0].mxu0 %v5654
      %v5763 = vpop.f32.mrb[0].mxu0
      %v5764 = vadd.f32 0.0, %v5763
      %v5765 = vpop.f32.mrb[0].mxu0
      %v5766 = vadd.f32 0.0, %v5765
      %v5767 = vpop.f32.mrb[0].mxu0
      %v5768 = vpop.f32.mrb[0].mxu0
      %5769 = vdwg.mxu0
      %v5770 = vadd.f32 %v5613, %v5703
      %v5771 = vadd.f32 %v5614, %v5705
      %v5772 = vadd.f32 %v5615, %v5754
      %v5773 = vadd.f32 %v5616, %v5756
      %v5774 = vadd.f32 %v5617, %v5707
      %v5775 = vadd.f32 %v5618, %v5709
      %v5776 = vadd.f32 %v5619, %v5758
      %v5777 = vadd.f32 %v5620, %v5760
      %v5778 = vadd.f32 %v5621, %v5713
      %v5779 = vadd.f32 %v5622, %v5715
      %v5780 = vadd.f32 %v5623, %v5764
      %v5781 = vadd.f32 %v5624, %v5766
      %v5782 = vld [vmem:[%s1491] sm:$0xf]
      %v5783 = vld [vmem:[%s1491 + $0x4] sm:$0xf]
      %v5784 = vld [vmem:[%s1491 + $0x8] sm:$0xf]
      %v5788 = vunpack.c.l.b16 %v5782
      %v5789 = vunpack.c.l.b16 %v5783
      %v5790 = vunpack.c.l.b16 %v5784
      %v5791 = vpack.c.b16 %v5789, %v5788
      %v5792 = vpack.c.b16 %v5790, %v5790
      %5793 = vrot.lane.b32.xlu0 %v4573, 106
      %v5794 = vpop.permute.xlu0 %5793
      %5795 = vrot.lane.b32.xlu0 %v4574, 106
      %v5796 = vpop.permute.xlu0 %5795
      %5797 = vrot.lane.b32.xlu0 %v4575, 106
      %v5798 = vpop.permute.xlu0 %5797
      %5799 = vrot.lane.b32.xlu0 %v4576, 106
      %v5800 = vpop.permute.xlu0 %5799
      %5801 = vrot.lane.b32.xlu0 %v4577, 106
      %v5802 = vpop.permute.xlu0 %5801
      %v5803 = vsel %vm1513, %v5794, %v5796
      %v5804 = vsel %vm1513, %v5796, %v5798
      %v5805 = vsel %vm1513, %v5798, %v5800
      %v5806 = vsel %vm1513, %v5800, %v5802
      %v5808 = vsel %vm287, %v5791, 0
      %v5811 = vsel %vm287, %v5792, 0
      %v5814 = vsel %vm294, %v5803, 0
      %v5817 = vsel %vm294, %v5804, 0
      %v5820 = vsel %vm294, %v5805, 0
      %v5823 = vsel %vm294, %v5806, 0
      %5825 = vmatprep.subr.bf16.mxu0 %v5817
      %5826 = vmatpush1.bf16.msra.mxu0 %v5814
      %5827 = vmatprep.subr.bf16.mxu0 0
      %5828 = vmatpush1.bf16.msra.mxu0 0
      %5829 = vmatprep.subr.bf16.mxu0 0
      %5830 = vmatpush1.bf16.msra.mxu0 0
      %5831 = vmatprep.subr.bf16.mxu0 0
      %5832 = vmatpush1.bf16.msra.mxu0 0
      %5833 = vmatprep.subr.bf16.mxu0 0
      %5834 = vmatpush1.bf16.msra.mxu0 0
      %5835 = vmatprep.subr.bf16.mxu0 0
      %5836 = vmatpush1.bf16.msra.mxu0 0
      %5837 = vmatprep.subr.bf16.mxu0 0
      %5838 = vmatpush1.bf16.msra.mxu0 0
      %5839 = vmatprep.subr.bf16.mxu0 0
      %5840 = vmatpush1.bf16.msra.mxu0 0
      %5841 = vmatprep.subr.bf16.mxu0 0
      %5842 = vmatpush1.bf16.msra.mxu0 0
      %5843 = vmatprep.subr.bf16.mxu0 0
      %5844 = vmatpush1.bf16.msra.mxu0 0
      %5845 = vmatprep.subr.bf16.mxu0 0
      %5846 = vmatpush1.bf16.msra.mxu0 0
      %5847 = vmatprep.subr.bf16.mxu0 0
      %5848 = vmatpush1.bf16.msra.mxu0 0
      %5849 = vmatprep.subr.bf16.mxu0 0
      %5850 = vmatpush1.bf16.msra.mxu0 0
      %5851 = vmatprep.subr.bf16.mxu0 0
      %5852 = vmatpush1.bf16.msra.mxu0 0
      %5853 = vmatprep.subr.bf16.mxu0 0
      %5854 = vmatpush1.bf16.msra.mxu0 0
      %5855 = vmatprep.subr.bf16.mxu0 0
      %5856 = vmatpush1.bf16.msra.mxu0 0
      %5857 = vmatprep.mubr.bf16.mxu0 0
      %5858 = vmatmul.mubr.bf16.gmra.mrb[0].mxu0 %v5808
      %v5859 = vpop.f32.mrb[0].mxu0
      %v5860 = vadd.f32 0.0, %v5859
      %v5861 = vpop.f32.mrb[0].mxu0
      %v5862 = vadd.f32 0.0, %v5861
      %v5863 = vpop.f32.mrb[0].mxu0
      %v5864 = vadd.f32 0.0, %v5863
      %v5865 = vpop.f32.mrb[0].mxu0
      %v5866 = vadd.f32 0.0, %v5865
      %5867 = vmatprep.mubr.bf16.mxu0 0
      %5868 = vmatmul.mubr.bf16.gmra.mrb[0].mxu0 %v5811
      %v5869 = vpop.f32.mrb[0].mxu0
      %v5870 = vadd.f32 0.0, %v5869
      %v5871 = vpop.f32.mrb[0].mxu0
      %v5872 = vadd.f32 0.0, %v5871
      %v5873 = vpop.f32.mrb[0].mxu0
      %v5874 = vpop.f32.mrb[0].mxu0
      %5875 = vdwg.mxu0
      %5876 = vmatprep.subr.bf16.mxu0 %v5823
      %5877 = vmatpush1.bf16.msra.mxu0 %v5820
      %5878 = vmatprep.subr.bf16.mxu0 0
      %5879 = vmatpush1.bf16.msra.mxu0 0
      %5880 = vmatprep.subr.bf16.mxu0 0
      %5881 = vmatpush1.bf16.msra.mxu0 0
      %5882 = vmatprep.subr.bf16.mxu0 0
      %5883 = vmatpush1.bf16.msra.mxu0 0
      %5884 = vmatprep.subr.bf16.mxu0 0
      %5885 = vmatpush1.bf16.msra.mxu0 0
      %5886 = vmatprep.subr.bf16.mxu0 0
      %5887 = vmatpush1.bf16.msra.mxu0 0
      %5888 = vmatprep.subr.bf16.mxu0 0
      %5889 = vmatpush1.bf16.msra.mxu0 0
      %5890 = vmatprep.subr.bf16.mxu0 0
      %5891 = vmatpush1.bf16.msra.mxu0 0
      %5892 = vmatprep.subr.bf16.mxu0 0
      %5893 = vmatpush1.bf16.msra.mxu0 0
      %5894 = vmatprep.subr.bf16.mxu0 0
      %5895 = vmatpush1.bf16.msra.mxu0 0
      %5896 = vmatprep.subr.bf16.mxu0 0
      %5897 = vmatpush1.bf16.msra.mxu0 0
      %5898 = vmatprep.subr.bf16.mxu0 0
      %5899 = vmatpush1.bf16.msra.mxu0 0
      %5900 = vmatprep.subr.bf16.mxu0 0
      %5901 = vmatpush1.bf16.msra.mxu0 0
      %5902 = vmatprep.subr.bf16.mxu0 0
      %5903 = vmatpush1.bf16.msra.mxu0 0
      %5904 = vmatprep.subr.bf16.mxu0 0
      %5905 = vmatpush1.bf16.msra.mxu0 0
      %5906 = vmatprep.subr.bf16.mxu0 0
      %5907 = vmatpush1.bf16.msra.mxu0 0
      %5908 = vmatprep.mubr.bf16.mxu0 0
      %5909 = vmatmul.mubr.bf16.gmra.mrb[0].mxu0 %v5808
      %v5910 = vpop.f32.mrb[0].mxu0
      %v5911 = vadd.f32 0.0, %v5910
      %v5912 = vpop.f32.mrb[0].mxu0
      %v5913 = vadd.f32 0.0, %v5912
      %v5914 = vpop.f32.mrb[0].mxu0
      %v5915 = vadd.f32 0.0, %v5914
      %v5916 = vpop.f32.mrb[0].mxu0
      %v5917 = vadd.f32 0.0, %v5916
      %5918 = vmatprep.mubr.bf16.mxu0 0
      %5919 = vmatmul.mubr.bf16.gmra.mrb[0].mxu0 %v5811
      %v5920 = vpop.f32.mrb[0].mxu0
      %v5921 = vadd.f32 0.0, %v5920
      %v5922 = vpop.f32.mrb[0].mxu0
      %v5923 = vadd.f32 0.0, %v5922
      %v5924 = vpop.f32.mrb[0].mxu0
      %v5925 = vpop.f32.mrb[0].mxu0
      %5926 = vdwg.mxu0
      %v5927 = vadd.f32 %v5770, %v5860
      %v5928 = vadd.f32 %v5771, %v5862
      %v5929 = vadd.f32 %v5772, %v5911
      %v5930 = vadd.f32 %v5773, %v5913
      %v5931 = vadd.f32 %v5774, %v5864
      %v5932 = vadd.f32 %v5775, %v5866
      %v5933 = vadd.f32 %v5776, %v5915
      %v5934 = vadd.f32 %v5777, %v5917
      %v5935 = vadd.f32 %v5778, %v5870
      %v5936 = vadd.f32 %v5779, %v5872
      %v5937 = vadd.f32 %v5780, %v5921
      %v5938 = vadd.f32 %v5781, %v5923
      %v5939 = vld [vmem:[%s1650] sm:$0xf]
      %v5940 = vld [vmem:[%s1650 + $0x4] sm:$0xf]
      %v5941 = vld [vmem:[%s1650 + $0x8] sm:$0xf]
      %v5945 = vunpack.c.l.b16 %v5939
      %v5946 = vunpack.c.l.b16 %v5940
      %v5947 = vunpack.c.l.b16 %v5941
      %v5948 = vpack.c.b16 %v5946, %v5945
      %v5949 = vpack.c.b16 %v5947, %v5947
      %5950 = vrot.lane.b32.xlu0 %v4573, 28
      %v5951 = vpop.permute.xlu0 %5950
      %5952 = vrot.lane.b32.xlu0 %v4574, 28
      %v5953 = vpop.permute.xlu0 %5952
      %5954 = vrot.lane.b32.xlu0 %v4575, 28
      %v5955 = vpop.permute.xlu0 %5954
      %5956 = vrot.lane.b32.xlu0 %v4576, 28
      %v5957 = vpop.permute.xlu0 %5956
      %5958 = vrot.lane.b32.xlu0 %v4577, 28
      %v5959 = vpop.permute.xlu0 %5958
      %v5960 = vsel %vm1672, %v5951, %v5953
      %v5961 = vsel %vm1672, %v5953, %v5955
      %v5962 = vsel %vm1672, %v5955, %v5957
      %v5963 = vsel %vm1672, %v5957, %v5959
      %v5965 = vsel %vm287, %v5948, 0
      %v5968 = vsel %vm287, %v5949, 0
      %v5971 = vsel %vm294, %v5960, 0
      %v5974 = vsel %vm294, %v5961, 0
      %v5977 = vsel %vm294, %v5962, 0
      %v5980 = vsel %vm294, %v5963, 0
      %5982 = vmatprep.subr.bf16.mxu0 %v5974
      %5983 = vmatpush1.bf16.msra.mxu0 %v5971
      %5984 = vmatprep.subr.bf16.mxu0 0
      %5985 = vmatpush1.bf16.msra.mxu0 0
      %5986 = vmatprep.subr.bf16.mxu0 0
      %5987 = vmatpush1.bf16.msra.mxu0 0
      %5988 = vmatprep.subr.bf16.mxu0 0
      %5989 = vmatpush1.bf16.msra.mxu0 0
      %5990 = vmatprep.subr.bf16.mxu0 0
      %5991 = vmatpush1.bf16.msra.mxu0 0
      %5992 = vmatprep.subr.bf16.mxu0 0
      %5993 = vmatpush1.bf16.msra.mxu0 0
      %5994 = vmatprep.subr.bf16.mxu0 0
      %5995 = vmatpush1.bf16.msra.mxu0 0
      %5996 = vmatprep.subr.bf16.mxu0 0
      %5997 = vmatpush1.bf16.msra.mxu0 0
      %5998 = vmatprep.subr.bf16.mxu0 0
      %5999 = vmatpush1.bf16.msra.mxu0 0
      %6000 = vmatprep.subr.bf16.mxu0 0
      %6001 = vmatpush1.bf16.msra.mxu0 0
      %6002 = vmatprep.subr.bf16.mxu0 0
      %6003 = vmatpush1.bf16.msra.mxu0 0
      %6004 = vmatprep.subr.bf16.mxu0 0
      %6005 = vmatpush1.bf16.msra.mxu0 0
      %6006 = vmatprep.subr.bf16.mxu0 0
      %6007 = vmatpush1.bf16.msra.mxu0 0
      %6008 = vmatprep.subr.bf16.mxu0 0
      %6009 = vmatpush1.bf16.msra.mxu0 0
      %6010 = vmatprep.subr.bf16.mxu0 0
      %6011 = vmatpush1.bf16.msra.mxu0 0
      %6012 = vmatprep.subr.bf16.mxu0 0
      %6013 = vmatpush1.bf16.msra.mxu0 0
      %6014 = vmatprep.mubr.bf16.mxu0 0
      %6015 = vmatmul.mubr.bf16.gmra.mrb[0].mxu0 %v5965
      %v6016 = vpop.f32.mrb[0].mxu0
      %v6017 = vadd.f32 0.0, %v6016
      %v6018 = vpop.f32.mrb[0].mxu0
      %v6019 = vadd.f32 0.0, %v6018
      %v6020 = vpop.f32.mrb[0].mxu0
      %v6021 = vadd.f32 0.0, %v6020
      %v6022 = vpop.f32.mrb[0].mxu0
      %v6023 = vadd.f32 0.0, %v6022
      %6024 = vmatprep.mubr.bf16.mxu0 0
      %6025 = vmatmul.mubr.bf16.gmra.mrb[0].mxu0 %v5968
      %v6026 = vpop.f32.mrb[0].mxu0
      %v6027 = vadd.f32 0.0, %v6026
      %v6028 = vpop.f32.mrb[0].mxu0
      %v6029 = vadd.f32 0.0, %v6028
      %v6030 = vpop.f32.mrb[0].mxu0
      %v6031 = vpop.f32.mrb[0].mxu0
      %6032 = vdwg.mxu0
      %6033 = vmatprep.subr.bf16.mxu0 %v5980
      %6034 = vmatpush1.bf16.msra.mxu0 %v5977
      %6035 = vmatprep.subr.bf16.mxu0 0
      %6036 = vmatpush1.bf16.msra.mxu0 0
      %6037 = vmatprep.subr.bf16.mxu0 0
      %6038 = vmatpush1.bf16.msra.mxu0 0
      %6039 = vmatprep.subr.bf16.mxu0 0
      %6040 = vmatpush1.bf16.msra.mxu0 0
      %6041 = vmatprep.subr.bf16.mxu0 0
      %6042 = vmatpush1.bf16.msra.mxu0 0
      %6043 = vmatprep.subr.bf16.mxu0 0
      %6044 = vmatpush1.bf16.msra.mxu0 0
      %6045 = vmatprep.subr.bf16.mxu0 0
      %6046 = vmatpush1.bf16.msra.mxu0 0
      %6047 = vmatprep.subr.bf16.mxu0 0
      %6048 = vmatpush1.bf16.msra.mxu0 0
      %6049 = vmatprep.subr.bf16.mxu0 0
      %6050 = vmatpush1.bf16.msra.mxu0 0
      %6051 = vmatprep.subr.bf16.mxu0 0
      %6052 = vmatpush1.bf16.msra.mxu0 0
      %6053 = vmatprep.subr.bf16.mxu0 0
      %6054 = vmatpush1.bf16.msra.mxu0 0
      %6055 = vmatprep.subr.bf16.mxu0 0
      %6056 = vmatpush1.bf16.msra.mxu0 0
      %6057 = vmatprep.subr.bf16.mxu0 0
      %6058 = vmatpush1.bf16.msra.mxu0 0
      %6059 = vmatprep.subr.bf16.mxu0 0
      %6060 = vmatpush1.bf16.msra.mxu0 0
      %6061 = vmatprep.subr.bf16.mxu0 0
      %6062 = vmatpush1.bf16.msra.mxu0 0
      %6063 = vmatprep.subr.bf16.mxu0 0
      %6064 = vmatpush1.bf16.msra.mxu0 0
      %6065 = vmatprep.mubr.bf16.mxu0 0
      %6066 = vmatmul.mubr.bf16.gmra.mrb[0].mxu0 %v5965
      %v6067 = vpop.f32.mrb[0].mxu0
      %v6068 = vadd.f32 0.0, %v6067
      %v6069 = vpop.f32.mrb[0].mxu0
      %v6070 = vadd.f32 0.0, %v6069
      %v6071 = vpop.f32.mrb[0].mxu0
      %v6072 = vadd.f32 0.0, %v6071
      %v6073 = vpop.f32.mrb[0].mxu0
      %v6074 = vadd.f32 0.0, %v6073
      %6075 = vmatprep.mubr.bf16.mxu0 0
      %6076 = vmatmul.mubr.bf16.gmra.mrb[0].mxu0 %v5968
      %v6077 = vpop.f32.mrb[0].mxu0
      %v6078 = vadd.f32 0.0, %v6077
      %v6079 = vpop.f32.mrb[0].mxu0
      %v6080 = vadd.f32 0.0, %v6079
      %v6081 = vpop.f32.mrb[0].mxu0
      %v6082 = vpop.f32.mrb[0].mxu0
      %6083 = vdwg.mxu0
      %v6084 = vadd.f32 %v5927, %v6017
      %v6085 = vadd.f32 %v5928, %v6019
      %v6086 = vadd.f32 %v5929, %v6068
      %v6087 = vadd.f32 %v5930, %v6070
      %v6088 = vadd.f32 %v5931, %v6021
      %v6089 = vadd.f32 %v5932, %v6023
      %v6090 = vadd.f32 %v5933, %v6072
      %v6091 = vadd.f32 %v5934, %v6074
      %v6092 = vadd.f32 %v5935, %v6027
      %v6093 = vadd.f32 %v5936, %v6029
      %v6094 = vadd.f32 %v5937, %v6078
      %v6095 = vadd.f32 %v5938, %v6080
      %v6096 = vld [vmem:[%s1809] sm:$0xf]
      %v6097 = vld [vmem:[%s1809 + $0x4] sm:$0xf]
      %v6098 = vld [vmem:[%s1809 + $0x8] sm:$0xf]
      %v6102 = vunpack.c.l.b16 %v6096
      %v6103 = vunpack.c.l.b16 %v6097
      %v6104 = vunpack.c.l.b16 %v6098
      %v6105 = vpack.c.b16 %v6103, %v6102
      %v6106 = vpack.c.b16 %v6104, %v6104
      %6107 = vrot.lane.b32.xlu0 %v4573, 27
      %v6108 = vpop.permute.xlu0 %6107
      %6109 = vrot.lane.b32.xlu0 %v4574, 27
      %v6110 = vpop.permute.xlu0 %6109
      %6111 = vrot.lane.b32.xlu0 %v4575, 27
      %v6112 = vpop.permute.xlu0 %6111
      %6113 = vrot.lane.b32.xlu0 %v4576, 27
      %v6114 = vpop.permute.xlu0 %6113
      %6115 = vrot.lane.b32.xlu0 %v4577, 27
      %v6116 = vpop.permute.xlu0 %6115
      %v6117 = vsel %vm1831, %v6108, %v6110
      %v6118 = vsel %vm1831, %v6110, %v6112
      %v6119 = vsel %vm1831, %v6112, %v6114
      %v6120 = vsel %vm1831, %v6114, %v6116
      %v6122 = vsel %vm287, %v6105, 0
      %v6125 = vsel %vm287, %v6106, 0
      %v6128 = vsel %vm294, %v6117, 0
      %v6131 = vsel %vm294, %v6118, 0
      %v6134 = vsel %vm294, %v6119, 0
      %v6137 = vsel %vm294, %v6120, 0
      %6139 = vmatprep.subr.bf16.mxu0 %v6131
      %6140 = vmatpush1.bf16.msra.mxu0 %v6128
      %6141 = vmatprep.subr.bf16.mxu0 0
      %6142 = vmatpush1.bf16.msra.mxu0 0
      %6143 = vmatprep.subr.bf16.mxu0 0
      %6144 = vmatpush1.bf16.msra.mxu0 0
      %6145 = vmatprep.subr.bf16.mxu0 0
      %6146 = vmatpush1.bf16.msra.mxu0 0
      %6147 = vmatprep.subr.bf16.mxu0 0
      %6148 = vmatpush1.bf16.msra.mxu0 0
      %6149 = vmatprep.subr.bf16.mxu0 0
      %6150 = vmatpush1.bf16.msra.mxu0 0
      %6151 = vmatprep.subr.bf16.mxu0 0
      %6152 = vmatpush1.bf16.msra.mxu0 0
      %6153 = vmatprep.subr.bf16.mxu0 0
      %6154 = vmatpush1.bf16.msra.mxu0 0
      %6155 = vmatprep.subr.bf16.mxu0 0
      %6156 = vmatpush1.bf16.msra.mxu0 0
      %6157 = vmatprep.subr.bf16.mxu0 0
      %6158 = vmatpush1.bf16.msra.mxu0 0
      %6159 = vmatprep.subr.bf16.mxu0 0
      %6160 = vmatpush1.bf16.msra.mxu0 0
      %6161 = vmatprep.subr.bf16.mxu0 0
      %6162 = vmatpush1.bf16.msra.mxu0 0
      %6163 = vmatprep.subr.bf16.mxu0 0
      %6164 = vmatpush1.bf16.msra.mxu0 0
      %6165 = vmatprep.subr.bf16.mxu0 0
      %6166 = vmatpush1.bf16.msra.mxu0 0
      %6167 = vmatprep.subr.bf16.mxu0 0
      %6168 = vmatpush1.bf16.msra.mxu0 0
      %6169 = vmatprep.subr.bf16.mxu0 0
      %6170 = vmatpush1.bf16.msra.mxu0 0
      %6171 = vmatprep.mubr.bf16.mxu0 0
      %6172 = vmatmul.mubr.bf16.gmra.mrb[0].mxu0 %v6122
      %v6173 = vpop.f32.mrb[0].mxu0
      %v6174 = vadd.f32 0.0, %v6173
      %v6175 = vpop.f32.mrb[0].mxu0
      %v6176 = vadd.f32 0.0, %v6175
      %v6177 = vpop.f32.mrb[0].mxu0
      %v6178 = vadd.f32 0.0, %v6177
      %v6179 = vpop.f32.mrb[0].mxu0
      %v6180 = vadd.f32 0.0, %v6179
      %6181 = vmatprep.mubr.bf16.mxu0 0
      %6182 = vmatmul.mubr.bf16.gmra.mrb[0].mxu0 %v6125
      %v6183 = vpop.f32.mrb[0].mxu0
      %v6184 = vadd.f32 0.0, %v6183
      %v6185 = vpop.f32.mrb[0].mxu0
      %v6186 = vadd.f32 0.0, %v6185
      %v6187 = vpop.f32.mrb[0].mxu0
      %v6188 = vpop.f32.mrb[0].mxu0
      %6189 = vdwg.mxu0
      %6190 = vmatprep.subr.bf16.mxu0 %v6137
      %6191 = vmatpush1.bf16.msra.mxu0 %v6134
      %6192 = vmatprep.subr.bf16.mxu0 0
      %6193 = vmatpush1.bf16.msra.mxu0 0
      %6194 = vmatprep.subr.bf16.mxu0 0
      %6195 = vmatpush1.bf16.msra.mxu0 0
      %6196 = vmatprep.subr.bf16.mxu0 0
      %6197 = vmatpush1.bf16.msra.mxu0 0
      %6198 = vmatprep.subr.bf16.mxu0 0
      %6199 = vmatpush1.bf16.msra.mxu0 0
      %6200 = vmatprep.subr.bf16.mxu0 0
      %6201 = vmatpush1.bf16.msra.mxu0 0
      %6202 = vmatprep.subr.bf16.mxu0 0
      %6203 = vmatpush1.bf16.msra.mxu0 0
      %6204 = vmatprep.subr.bf16.mxu0 0
      %6205 = vmatpush1.bf16.msra.mxu0 0
      %6206 = vmatprep.subr.bf16.mxu0 0
      %6207 = vmatpush1.bf16.msra.mxu0 0
      %6208 = vmatprep.subr.bf16.mxu0 0
      %6209 = vmatpush1.bf16.msra.mxu0 0
      %6210 = vmatprep.subr.bf16.mxu0 0
      %6211 = vmatpush1.bf16.msra.mxu0 0
      %6212 = vmatprep.subr.bf16.mxu0 0
      %6213 = vmatpush1.bf16.msra.mxu0 0
      %6214 = vmatprep.subr.bf16.mxu0 0
      %6215 = vmatpush1.bf16.msra.mxu0 0
      %6216 = vmatprep.subr.bf16.mxu0 0
      %6217 = vmatpush1.bf16.msra.mxu0 0
      %6218 = vmatprep.subr.bf16.mxu0 0
      %6219 = vmatpush1.bf16.msra.mxu0 0
      %6220 = vmatprep.subr.bf16.mxu0 0
      %6221 = vmatpush1.bf16.msra.mxu0 0
      %6222 = vmatprep.mubr.bf16.mxu0 0
      %6223 = vmatmul.mubr.bf16.gmra.mrb[0].mxu0 %v6122
      %v6224 = vpop.f32.mrb[0].mxu0
      %v6225 = vadd.f32 0.0, %v6224
      %v6226 = vpop.f32.mrb[0].mxu0
      %v6227 = vadd.f32 0.0, %v6226
      %v6228 = vpop.f32.mrb[0].mxu0
      %v6229 = vadd.f32 0.0, %v6228
      %v6230 = vpop.f32.mrb[0].mxu0
      %v6231 = vadd.f32 0.0, %v6230
      %6232 = vmatprep.mubr.bf16.mxu0 0
      %6233 = vmatmul.mubr.bf16.gmra.mrb[0].mxu0 %v6125
      %v6234 = vpop.f32.mrb[0].mxu0
      %v6235 = vadd.f32 0.0, %v6234
      %v6236 = vpop.f32.mrb[0].mxu0
      %v6237 = vadd.f32 0.0, %v6236
      %v6238 = vpop.f32.mrb[0].mxu0
      %v6239 = vpop.f32.mrb[0].mxu0
      %6240 = vdwg.mxu0
      %v6241 = vadd.f32 %v6084, %v6174
      %v6242 = vadd.f32 %v6085, %v6176
      %v6243 = vadd.f32 %v6086, %v6225
      %v6244 = vadd.f32 %v6087, %v6227
      %v6245 = vadd.f32 %v6088, %v6178
      %v6246 = vadd.f32 %v6089, %v6180
      %v6247 = vadd.f32 %v6090, %v6229
      %v6248 = vadd.f32 %v6091, %v6231
      %v6249 = vadd.f32 %v6092, %v6184
      %v6250 = vadd.f32 %v6093, %v6186
      %v6251 = vadd.f32 %v6094, %v6235
      %v6252 = vadd.f32 %v6095, %v6237
      %v6253 = vld [vmem:[%s1968] sm:$0xf]
      %v6254 = vld [vmem:[%s1968 + $0x4] sm:$0xf]
      %v6255 = vld [vmem:[%s1968 + $0x8] sm:$0xf]
      %v6259 = vunpack.c.l.b16 %v6253
      %v6260 = vunpack.c.l.b16 %v6254
      %v6261 = vunpack.c.l.b16 %v6255
      %v6262 = vpack.c.b16 %v6260, %v6259
      %v6263 = vpack.c.b16 %v6261, %v6261
      %6264 = vrot.lane.b32.xlu0 %v4573, 26
      %v6265 = vpop.permute.xlu0 %6264
      %6266 = vrot.lane.b32.xlu0 %v4574, 26
      %v6267 = vpop.permute.xlu0 %6266
      %6268 = vrot.lane.b32.xlu0 %v4575, 26
      %v6269 = vpop.permute.xlu0 %6268
      %6270 = vrot.lane.b32.xlu0 %v4576, 26
      %v6271 = vpop.permute.xlu0 %6270
      %6272 = vrot.lane.b32.xlu0 %v4577, 26
      %v6273 = vpop.permute.xlu0 %6272
      %v6274 = vsel %vm1990, %v6265, %v6267
      %v6275 = vsel %vm1990, %v6267, %v6269
      %v6276 = vsel %vm1990, %v6269, %v6271
      %v6277 = vsel %vm1990, %v6271, %v6273
      %v6279 = vsel %vm287, %v6262, 0
      %v6282 = vsel %vm287, %v6263, 0
      %v6285 = vsel %vm294, %v6274, 0
      %v6288 = vsel %vm294, %v6275, 0
      %v6291 = vsel %vm294, %v6276, 0
      %v6294 = vsel %vm294, %v6277, 0
      %6296 = vmatprep.subr.bf16.mxu0 %v6288
      %6297 = vmatpush1.bf16.msra.mxu0 %v6285
      %6298 = vmatprep.subr.bf16.mxu0 0
      %6299 = vmatpush1.bf16.msra.mxu0 0
      %6300 = vmatprep.subr.bf16.mxu0 0
      %6301 = vmatpush1.bf16.msra.mxu0 0
      %6302 = vmatprep.subr.bf16.mxu0 0
      %6303 = vmatpush1.bf16.msra.mxu0 0
      %6304 = vmatprep.subr.bf16.mxu0 0
      %6305 = vmatpush1.bf16.msra.mxu0 0
      %6306 = vmatprep.subr.bf16.mxu0 0
      %6307 = vmatpush1.bf16.msra.mxu0 0
      %6308 = vmatprep.subr.bf16.mxu0 0
      %6309 = vmatpush1.bf16.msra.mxu0 0
      %6310 = vmatprep.subr.bf16.mxu0 0
      %6311 = vmatpush1.bf16.msra.mxu0 0
      %6312 = vmatprep.subr.bf16.mxu0 0
      %6313 = vmatpush1.bf16.msra.mxu0 0
      %6314 = vmatprep.subr.bf16.mxu0 0
      %6315 = vmatpush1.bf16.msra.mxu0 0
      %6316 = vmatprep.subr.bf16.mxu0 0
      %6317 = vmatpush1.bf16.msra.mxu0 0
      %6318 = vmatprep.subr.bf16.mxu0 0
      %6319 = vmatpush1.bf16.msra.mxu0 0
      %6320 = vmatprep.subr.bf16.mxu0 0
      %6321 = vmatpush1.bf16.msra.mxu0 0
      %6322 = vmatprep.subr.bf16.mxu0 0
      %6323 = vmatpush1.bf16.msra.mxu0 0
      %6324 = vmatprep.subr.bf16.mxu0 0
      %6325 = vmatpush1.bf16.msra.mxu0 0
      %6326 = vmatprep.subr.bf16.mxu0 0
      %6327 = vmatpush1.bf16.msra.mxu0 0
      %6328 = vmatprep.mubr.bf16.mxu0 0
      %6329 = vmatmul.mubr.bf16.gmra.mrb[0].mxu0 %v6279
      %v6330 = vpop.f32.mrb[0].mxu0
      %v6331 = vadd.f32 0.0, %v6330
      %v6332 = vpop.f32.mrb[0].mxu0
      %v6333 = vadd.f32 0.0, %v6332
      %v6334 = vpop.f32.mrb[0].mxu0
      %v6335 = vadd.f32 0.0, %v6334
      %v6336 = vpop.f32.mrb[0].mxu0
      %v6337 = vadd.f32 0.0, %v6336
      %6338 = vmatprep.mubr.bf16.mxu0 0
      %6339 = vmatmul.mubr.bf16.gmra.mrb[0].mxu0 %v6282
      %v6340 = vpop.f32.mrb[0].mxu0
      %v6341 = vadd.f32 0.0, %v6340
      %v6342 = vpop.f32.mrb[0].mxu0
      %v6343 = vadd.f32 0.0, %v6342
      %v6344 = vpop.f32.mrb[0].mxu0
      %v6345 = vpop.f32.mrb[0].mxu0
      %6346 = vdwg.mxu0
      %6347 = vmatprep.subr.bf16.mxu0 %v6294
      %6348 = vmatpush1.bf16.msra.mxu0 %v6291
      %6349 = vmatprep.subr.bf16.mxu0 0
      %6350 = vmatpush1.bf16.msra.mxu0 0
      %6351 = vmatprep.subr.bf16.mxu0 0
      %6352 = vmatpush1.bf16.msra.mxu0 0
      %6353 = vmatprep.subr.bf16.mxu0 0
      %6354 = vmatpush1.bf16.msra.mxu0 0
      %6355 = vmatprep.subr.bf16.mxu0 0
      %6356 = vmatpush1.bf16.msra.mxu0 0
      %6357 = vmatprep.subr.bf16.mxu0 0
      %6358 = vmatpush1.bf16.msra.mxu0 0
      %6359 = vmatprep.subr.bf16.mxu0 0
      %6360 = vmatpush1.bf16.msra.mxu0 0
      %6361 = vmatprep.subr.bf16.mxu0 0
      %6362 = vmatpush1.bf16.msra.mxu0 0
      %6363 = vmatprep.subr.bf16.mxu0 0
      %6364 = vmatpush1.bf16.msra.mxu0 0
      %6365 = vmatprep.subr.bf16.mxu0 0
      %6366 = vmatpush1.bf16.msra.mxu0 0
      %6367 = vmatprep.subr.bf16.mxu0 0
      %6368 = vmatpush1.bf16.msra.mxu0 0
      %6369 = vmatprep.subr.bf16.mxu0 0
      %6370 = vmatpush1.bf16.msra.mxu0 0
      %6371 = vmatprep.subr.bf16.mxu0 0
      %6372 = vmatpush1.bf16.msra.mxu0 0
      %6373 = vmatprep.subr.bf16.mxu0 0
      %6374 = vmatpush1.bf16.msra.mxu0 0
      %6375 = vmatprep.subr.bf16.mxu0 0
      %6376 = vmatpush1.bf16.msra.mxu0 0
      %6377 = vmatprep.subr.bf16.mxu0 0
      %6378 = vmatpush1.bf16.msra.mxu0 0
      %6379 = vmatprep.mubr.bf16.mxu0 0
      %6380 = vmatmul.mubr.bf16.gmra.mrb[0].mxu0 %v6279
      %v6381 = vpop.f32.mrb[0].mxu0
      %v6382 = vadd.f32 0.0, %v6381
      %v6383 = vpop.f32.mrb[0].mxu0
      %v6384 = vadd.f32 0.0, %v6383
      %v6385 = vpop.f32.mrb[0].mxu0
      %v6386 = vadd.f32 0.0, %v6385
      %v6387 = vpop.f32.mrb[0].mxu0
      %v6388 = vadd.f32 0.0, %v6387
      %6389 = vmatprep.mubr.bf16.mxu0 0
      %6390 = vmatmul.mubr.bf16.gmra.mrb[0].mxu0 %v6282
      %v6391 = vpop.f32.mrb[0].mxu0
      %v6392 = vadd.f32 0.0, %v6391
      %v6393 = vpop.f32.mrb[0].mxu0
      %v6394 = vadd.f32 0.0, %v6393
      %v6395 = vpop.f32.mrb[0].mxu0
      %v6396 = vpop.f32.mrb[0].mxu0
      %6397 = vdwg.mxu0
      %v6398 = vadd.f32 %v6241, %v6331
      %v6399 = vadd.f32 %v6242, %v6333
      %v6400 = vadd.f32 %v6243, %v6382
      %v6401 = vadd.f32 %v6244, %v6384
      %v6402 = vadd.f32 %v6245, %v6335
      %v6403 = vadd.f32 %v6246, %v6337
      %v6404 = vadd.f32 %v6247, %v6386
      %v6405 = vadd.f32 %v6248, %v6388
      %v6406 = vadd.f32 %v6249, %v6341
      %v6407 = vadd.f32 %v6250, %v6343
      %v6408 = vadd.f32 %v6251, %v6392
      %v6409 = vadd.f32 %v6252, %v6394
      %v6410 = vld [vmem:[%s2127] sm:$0xf]
      %v6411 = vld [vmem:[%s2127 + $0x4] sm:$0xf]
      %v6412 = vld [vmem:[%s2127 + $0x8] sm:$0xf]
      %v6416 = vunpack.c.l.b16 %v6410
      %v6417 = vunpack.c.l.b16 %v6411
      %v6418 = vunpack.c.l.b16 %v6412
      %v6419 = vpack.c.b16 %v6417, %v6416
      %v6420 = vpack.c.b16 %v6418, %v6418
      %6421 = vrot.lane.b32.xlu0 %v4573, 18
      %v6422 = vpop.permute.xlu0 %6421
      %6423 = vrot.lane.b32.xlu0 %v4574, 18
      %v6424 = vpop.permute.xlu0 %6423
      %6425 = vrot.lane.b32.xlu0 %v4575, 18
      %v6426 = vpop.permute.xlu0 %6425
      %6427 = vrot.lane.b32.xlu0 %v4576, 18
      %v6428 = vpop.permute.xlu0 %6427
      %6429 = vrot.lane.b32.xlu0 %v4577, 18
      %v6430 = vpop.permute.xlu0 %6429
      %v6431 = vsel %vm2149, %v6422, %v6424
      %v6432 = vsel %vm2149, %v6424, %v6426
      %v6433 = vsel %vm2149, %v6426, %v6428
      %v6434 = vsel %vm2149, %v6428, %v6430
      %v6436 = vsel %vm287, %v6419, 0
      %v6439 = vsel %vm287, %v6420, 0
      %v6442 = vsel %vm294, %v6431, 0
      %v6445 = vsel %vm294, %v6432, 0
      %v6448 = vsel %vm294, %v6433, 0
      %v6451 = vsel %vm294, %v6434, 0
      %6453 = vmatprep.subr.bf16.mxu0 %v6445
      %6454 = vmatpush1.bf16.msra.mxu0 %v6442
      %6455 = vmatprep.subr.bf16.mxu0 0
      %6456 = vmatpush1.bf16.msra.mxu0 0
      %6457 = vmatprep.subr.bf16.mxu0 0
      %6458 = vmatpush1.bf16.msra.mxu0 0
      %6459 = vmatprep.subr.bf16.mxu0 0
      %6460 = vmatpush1.bf16.msra.mxu0 0
      %6461 = vmatprep.subr.bf16.mxu0 0
      %6462 = vmatpush1.bf16.msra.mxu0 0
      %6463 = vmatprep.subr.bf16.mxu0 0
      %6464 = vmatpush1.bf16.msra.mxu0 0
      %6465 = vmatprep.subr.bf16.mxu0 0
      %6466 = vmatpush1.bf16.msra.mxu0 0
      %6467 = vmatprep.subr.bf16.mxu0 0
      %6468 = vmatpush1.bf16.msra.mxu0 0
      %6469 = vmatprep.subr.bf16.mxu0 0
      %6470 = vmatpush1.bf16.msra.mxu0 0
      %6471 = vmatprep.subr.bf16.mxu0 0
      %6472 = vmatpush1.bf16.msra.mxu0 0
      %6473 = vmatprep.subr.bf16.mxu0 0
      %6474 = vmatpush1.bf16.msra.mxu0 0
      %6475 = vmatprep.subr.bf16.mxu0 0
      %6476 = vmatpush1.bf16.msra.mxu0 0
      %6477 = vmatprep.subr.bf16.mxu0 0
      %6478 = vmatpush1.bf16.msra.mxu0 0
      %6479 = vmatprep.subr.bf16.mxu0 0
      %6480 = vmatpush1.bf16.msra.mxu0 0
      %6481 = vmatprep.subr.bf16.mxu0 0
      %6482 = vmatpush1.bf16.msra.mxu0 0
      %6483 = vmatprep.subr.bf16.mxu0 0
      %6484 = vmatpush1.bf16.msra.mxu0 0
      %6485 = vmatprep.mubr.bf16.mxu0 0
      %6486 = vmatmul.mubr.bf16.gmra.mrb[0].mxu0 %v6436
      %v6487 = vpop.f32.mrb[0].mxu0
      %v6488 = vadd.f32 0.0, %v6487
      %v6489 = vpop.f32.mrb[0].mxu0
      %v6490 = vadd.f32 0.0, %v6489
      %v6491 = vpop.f32.mrb[0].mxu0
      %v6492 = vadd.f32 0.0, %v6491
      %v6493 = vpop.f32.mrb[0].mxu0
      %v6494 = vadd.f32 0.0, %v6493
      %6495 = vmatprep.mubr.bf16.mxu0 0
      %6496 = vmatmul.mubr.bf16.gmra.mrb[0].mxu0 %v6439
      %v6497 = vpop.f32.mrb[0].mxu0
      %v6498 = vadd.f32 0.0, %v6497
      %v6499 = vpop.f32.mrb[0].mxu0
      %v6500 = vadd.f32 0.0, %v6499
      %v6501 = vpop.f32.mrb[0].mxu0
      %v6502 = vpop.f32.mrb[0].mxu0
      %6503 = vdwg.mxu0
      %6504 = vmatprep.subr.bf16.mxu0 %v6451
      %6505 = vmatpush1.bf16.msra.mxu0 %v6448
      %6506 = vmatprep.subr.bf16.mxu0 0
      %6507 = vmatpush1.bf16.msra.mxu0 0
      %6508 = vmatprep.subr.bf16.mxu0 0
      %6509 = vmatpush1.bf16.msra.mxu0 0
      %6510 = vmatprep.subr.bf16.mxu0 0
      %6511 = vmatpush1.bf16.msra.mxu0 0
      %6512 = vmatprep.subr.bf16.mxu0 0
      %6513 = vmatpush1.bf16.msra.mxu0 0
      %6514 = vmatprep.subr.bf16.mxu0 0
      %6515 = vmatpush1.bf16.msra.mxu0 0
      %6516 = vmatprep.subr.bf16.mxu0 0
      %6517 = vmatpush1.bf16.msra.mxu0 0
      %6518 = vmatprep.subr.bf16.mxu0 0
      %6519 = vmatpush1.bf16.msra.mxu0 0
      %6520 = vmatprep.subr.bf16.mxu0 0
      %6521 = vmatpush1.bf16.msra.mxu0 0
      %6522 = vmatprep.subr.bf16.mxu0 0
      %6523 = vmatpush1.bf16.msra.mxu0 0
      %6524 = vmatprep.subr.bf16.mxu0 0
      %6525 = vmatpush1.bf16.msra.mxu0 0
      %6526 = vmatprep.subr.bf16.mxu0 0
      %6527 = vmatpush1.bf16.msra.mxu0 0
      %6528 = vmatprep.subr.bf16.mxu0 0
      %6529 = vmatpush1.bf16.msra.mxu0 0
      %6530 = vmatprep.subr.bf16.mxu0 0
      %6531 = vmatpush1.bf16.msra.mxu0 0
      %6532 = vmatprep.subr.bf16.mxu0 0
      %6533 = vmatpush1.bf16.msra.mxu0 0
      %6534 = vmatprep.subr.bf16.mxu0 0
      %6535 = vmatpush1.bf16.msra.mxu0 0
      %6536 = vmatprep.mubr.bf16.mxu0 0
      %6537 = vmatmul.mubr.bf16.gmra.mrb[0].mxu0 %v6436
      %v6538 = vpop.f32.mrb[0].mxu0
      %v6539 = vadd.f32 0.0, %v6538
      %v6540 = vpop.f32.mrb[0].mxu0
      %v6541 = vadd.f32 0.0, %v6540
      %v6542 = vpop.f32.mrb[0].mxu0
      %v6543 = vadd.f32 0.0, %v6542
      %v6544 = vpop.f32.mrb[0].mxu0
      %v6545 = vadd.f32 0.0, %v6544
      %6546 = vmatprep.mubr.bf16.mxu0 0
      %6547 = vmatmul.mubr.bf16.gmra.mrb[0].mxu0 %v6439
      %v6548 = vpop.f32.mrb[0].mxu0
      %v6549 = vadd.f32 0.0, %v6548
      %v6550 = vpop.f32.mrb[0].mxu0
      %v6551 = vadd.f32 0.0, %v6550
      %v6552 = vpop.f32.mrb[0].mxu0
      %v6553 = vpop.f32.mrb[0].mxu0
      %6554 = vdwg.mxu0
      %v6555 = vadd.f32 %v6398, %v6488
      %v6556 = vadd.f32 %v6399, %v6490
      %v6557 = vadd.f32 %v6400, %v6539
      %v6558 = vadd.f32 %v6401, %v6541
      %v6559 = vadd.f32 %v6402, %v6492
      %v6560 = vadd.f32 %v6403, %v6494
      %v6561 = vadd.f32 %v6404, %v6543
      %v6562 = vadd.f32 %v6405, %v6545
      %v6563 = vadd.f32 %v6406, %v6498
      %v6564 = vadd.f32 %v6407, %v6500
      %v6565 = vadd.f32 %v6408, %v6549
      %v6566 = vadd.f32 %v6409, %v6551
      %v6567 = vld [vmem:[%s2286] sm:$0xf]
      %v6568 = vld [vmem:[%s2286 + $0x4] sm:$0xf]
      %v6569 = vld [vmem:[%s2286 + $0x8] sm:$0xf]
      %v6573 = vunpack.c.l.b16 %v6567
      %v6574 = vunpack.c.l.b16 %v6568
      %v6575 = vunpack.c.l.b16 %v6569
      %v6576 = vpack.c.b16 %v6574, %v6573
      %v6577 = vpack.c.b16 %v6575, %v6575
      %6578 = vrot.lane.b32.xlu0 %v4573, 17
      %v6579 = vpop.permute.xlu0 %6578
      %6580 = vrot.lane.b32.xlu0 %v4574, 17
      %v6581 = vpop.permute.xlu0 %6580
      %6582 = vrot.lane.b32.xlu0 %v4575, 17
      %v6583 = vpop.permute.xlu0 %6582
      %6584 = vrot.lane.b32.xlu0 %v4576, 17
      %v6585 = vpop.permute.xlu0 %6584
      %6586 = vrot.lane.b32.xlu0 %v4577, 17
      %v6587 = vpop.permute.xlu0 %6586
      %v6588 = vsel %vm2308, %v6579, %v6581
      %v6589 = vsel %vm2308, %v6581, %v6583
      %v6590 = vsel %vm2308, %v6583, %v6585
      %v6591 = vsel %vm2308, %v6585, %v6587
      %v6593 = vsel %vm287, %v6576, 0
      %v6596 = vsel %vm287, %v6577, 0
      %v6599 = vsel %vm294, %v6588, 0
      %v6602 = vsel %vm294, %v6589, 0
      %v6605 = vsel %vm294, %v6590, 0
      %v6608 = vsel %vm294, %v6591, 0
      %6610 = vmatprep.subr.bf16.mxu0 %v6602
      %6611 = vmatpush1.bf16.msra.mxu0 %v6599
      %6612 = vmatprep.subr.bf16.mxu0 0
      %6613 = vmatpush1.bf16.msra.mxu0 0
      %6614 = vmatprep.subr.bf16.mxu0 0
      %6615 = vmatpush1.bf16.msra.mxu0 0
      %6616 = vmatprep.subr.bf16.mxu0 0
      %6617 = vmatpush1.bf16.msra.mxu0 0
      %6618 = vmatprep.subr.bf16.mxu0 0
      %6619 = vmatpush1.bf16.msra.mxu0 0
      %6620 = vmatprep.subr.bf16.mxu0 0
      %6621 = vmatpush1.bf16.msra.mxu0 0
      %6622 = vmatprep.subr.bf16.mxu0 0
      %6623 = vmatpush1.bf16.msra.mxu0 0
      %6624 = vmatprep.subr.bf16.mxu0 0
      %6625 = vmatpush1.bf16.msra.mxu0 0
      %6626 = vmatprep.subr.bf16.mxu0 0
      %6627 = vmatpush1.bf16.msra.mxu0 0
      %6628 = vmatprep.subr.bf16.mxu0 0
      %6629 = vmatpush1.bf16.msra.mxu0 0
      %6630 = vmatprep.subr.bf16.mxu0 0
      %6631 = vmatpush1.bf16.msra.mxu0 0
      %6632 = vmatprep.subr.bf16.mxu0 0
      %6633 = vmatpush1.bf16.msra.mxu0 0
      %6634 = vmatprep.subr.bf16.mxu0 0
      %6635 = vmatpush1.bf16.msra.mxu0 0
      %6636 = vmatprep.subr.bf16.mxu0 0
      %6637 = vmatpush1.bf16.msra.mxu0 0
      %6638 = vmatprep.subr.bf16.mxu0 0
      %6639 = vmatpush1.bf16.msra.mxu0 0
      %6640 = vmatprep.subr.bf16.mxu0 0
      %6641 = vmatpush1.bf16.msra.mxu0 0
      %6642 = vmatprep.mubr.bf16.mxu0 0
      %6643 = vmatmul.mubr.bf16.gmra.mrb[0].mxu0 %v6593
      %v6644 = vpop.f32.mrb[0].mxu0
      %v6645 = vadd.f32 0.0, %v6644
      %v6646 = vpop.f32.mrb[0].mxu0
      %v6647 = vadd.f32 0.0, %v6646
      %v6648 = vpop.f32.mrb[0].mxu0
      %v6649 = vadd.f32 0.0, %v6648
      %v6650 = vpop.f32.mrb[0].mxu0
      %v6651 = vadd.f32 0.0, %v6650
      %6652 = vmatprep.mubr.bf16.mxu0 0
      %6653 = vmatmul.mubr.bf16.gmra.mrb[0].mxu0 %v6596
      %v6654 = vpop.f32.mrb[0].mxu0
      %v6655 = vadd.f32 0.0, %v6654
      %v6656 = vpop.f32.mrb[0].mxu0
      %v6657 = vadd.f32 0.0, %v6656
      %v6658 = vpop.f32.mrb[0].mxu0
      %v6659 = vpop.f32.mrb[0].mxu0
      %6660 = vdwg.mxu0
      %6661 = vmatprep.subr.bf16.mxu0 %v6608
      %6662 = vmatpush1.bf16.msra.mxu0 %v6605
      %6663 = vmatprep.subr.bf16.mxu0 0
      %6664 = vmatpush1.bf16.msra.mxu0 0
      %6665 = vmatprep.subr.bf16.mxu0 0
      %6666 = vmatpush1.bf16.msra.mxu0 0
      %6667 = vmatprep.subr.bf16.mxu0 0
      %6668 = vmatpush1.bf16.msra.mxu0 0
      %6669 = vmatprep.subr.bf16.mxu0 0
      %6670 = vmatpush1.bf16.msra.mxu0 0
      %6671 = vmatprep.subr.bf16.mxu0 0
      %6672 = vmatpush1.bf16.msra.mxu0 0
      %6673 = vmatprep.subr.bf16.mxu0 0
      %6674 = vmatpush1.bf16.msra.mxu0 0
      %6675 = vmatprep.subr.bf16.mxu0 0
      %6676 = vmatpush1.bf16.msra.mxu0 0
      %6677 = vmatprep.subr.bf16.mxu0 0
      %6678 = vmatpush1.bf16.msra.mxu0 0
      %6679 = vmatprep.subr.bf16.mxu0 0
      %6680 = vmatpush1.bf16.msra.mxu0 0
      %6681 = vmatprep.subr.bf16.mxu0 0
      %6682 = vmatpush1.bf16.msra.mxu0 0
      %6683 = vmatprep.subr.bf16.mxu0 0
      %6684 = vmatpush1.bf16.msra.mxu0 0
      %6685 = vmatprep.subr.bf16.mxu0 0
      %6686 = vmatpush1.bf16.msra.mxu0 0
      %6687 = vmatprep.subr.bf16.mxu0 0
      %6688 = vmatpush1.bf16.msra.mxu0 0
      %6689 = vmatprep.subr.bf16.mxu0 0
      %6690 = vmatpush1.bf16.msra.mxu0 0
      %6691 = vmatprep.subr.bf16.mxu0 0
      %6692 = vmatpush1.bf16.msra.mxu0 0
      %6693 = vmatprep.mubr.bf16.mxu0 0
      %6694 = vmatmul.mubr.bf16.gmra.mrb[0].mxu0 %v6593
      %v6695 = vpop.f32.mrb[0].mxu0
      %v6696 = vadd.f32 0.0, %v6695
      %v6697 = vpop.f32.mrb[0].mxu0
      %v6698 = vadd.f32 0.0, %v6697
      %v6699 = vpop.f32.mrb[0].mxu0
      %v6700 = vadd.f32 0.0, %v6699
      %v6701 = vpop.f32.mrb[0].mxu0
      %v6702 = vadd.f32 0.0, %v6701
      %6703 = vmatprep.mubr.bf16.mxu0 0
      %6704 = vmatmul.mubr.bf16.gmra.mrb[0].mxu0 %v6596
      %v6705 = vpop.f32.mrb[0].mxu0
      %v6706 = vadd.f32 0.0, %v6705
      %v6707 = vpop.f32.mrb[0].mxu0
      %v6708 = vadd.f32 0.0, %v6707
      %v6709 = vpop.f32.mrb[0].mxu0
      %v6710 = vpop.f32.mrb[0].mxu0
      %6711 = vdwg.mxu0
      %v6712 = vadd.f32 %v6555, %v6645
      %v6713 = vadd.f32 %v6556, %v6647
      %v6714 = vadd.f32 %v6557, %v6696
      %v6715 = vadd.f32 %v6558, %v6698
      %v6716 = vadd.f32 %v6559, %v6649
      %v6717 = vadd.f32 %v6560, %v6651
      %v6718 = vadd.f32 %v6561, %v6700
      %v6719 = vadd.f32 %v6562, %v6702
      %v6720 = vadd.f32 %v6563, %v6655
      %v6721 = vadd.f32 %v6564, %v6657
      %v6722 = vadd.f32 %v6565, %v6706
      %v6723 = vadd.f32 %v6566, %v6708
      %v6724 = vld [vmem:[%s2445] sm:$0xf]
      %v6725 = vld [vmem:[%s2445 + $0x4] sm:$0xf]
      %v6726 = vld [vmem:[%s2445 + $0x8] sm:$0xf]
      %v6730 = vunpack.c.l.b16 %v6724
      %v6731 = vunpack.c.l.b16 %v6725
      %v6732 = vunpack.c.l.b16 %v6726
      %v6733 = vpack.c.b16 %v6731, %v6730
      %v6734 = vpack.c.b16 %v6732, %v6732
      %6735 = vrot.lane.b32.xlu0 %v4573, 16
      %v6736 = vpop.permute.xlu0 %6735
      %6737 = vrot.lane.b32.xlu0 %v4574, 16
      %v6738 = vpop.permute.xlu0 %6737
      %6739 = vrot.lane.b32.xlu0 %v4575, 16
      %v6740 = vpop.permute.xlu0 %6739
      %6741 = vrot.lane.b32.xlu0 %v4576, 16
      %v6742 = vpop.permute.xlu0 %6741
      %6743 = vrot.lane.b32.xlu0 %v4577, 16
      %v6744 = vpop.permute.xlu0 %6743
      %v6745 = vsel %vm2467, %v6736, %v6738
      %v6746 = vsel %vm2467, %v6738, %v6740
      %v6747 = vsel %vm2467, %v6740, %v6742
      %v6748 = vsel %vm2467, %v6742, %v6744
      %v6750 = vsel %vm287, %v6733, 0
      %v6753 = vsel %vm287, %v6734, 0
      %v6756 = vsel %vm294, %v6745, 0
      %v6759 = vsel %vm294, %v6746, 0
      %v6762 = vsel %vm294, %v6747, 0
      %v6765 = vsel %vm294, %v6748, 0
      %6767 = vmatprep.subr.bf16.mxu0 %v6759
      %6768 = vmatpush1.bf16.msra.mxu0 %v6756
      %6769 = vmatprep.subr.bf16.mxu0 0
      %6770 = vmatpush1.bf16.msra.mxu0 0
      %6771 = vmatprep.subr.bf16.mxu0 0
      %6772 = vmatpush1.bf16.msra.mxu0 0
      %6773 = vmatprep.subr.bf16.mxu0 0
      %6774 = vmatpush1.bf16.msra.mxu0 0
      %6775 = vmatprep.subr.bf16.mxu0 0
      %6776 = vmatpush1.bf16.msra.mxu0 0
      %6777 = vmatprep.subr.bf16.mxu0 0
      %6778 = vmatpush1.bf16.msra.mxu0 0
      %6779 = vmatprep.subr.bf16.mxu0 0
      %6780 = vmatpush1.bf16.msra.mxu0 0
      %6781 = vmatprep.subr.bf16.mxu0 0
      %6782 = vmatpush1.bf16.msra.mxu0 0
      %6783 = vmatprep.subr.bf16.mxu0 0
      %6784 = vmatpush1.bf16.msra.mxu0 0
      %6785 = vmatprep.subr.bf16.mxu0 0
      %6786 = vmatpush1.bf16.msra.mxu0 0
      %6787 = vmatprep.subr.bf16.mxu0 0
      %6788 = vmatpush1.bf16.msra.mxu0 0
      %6789 = vmatprep.subr.bf16.mxu0 0
      %6790 = vmatpush1.bf16.msra.mxu0 0
      %6791 = vmatprep.subr.bf16.mxu0 0
      %6792 = vmatpush1.bf16.msra.mxu0 0
      %6793 = vmatprep.subr.bf16.mxu0 0
      %6794 = vmatpush1.bf16.msra.mxu0 0
      %6795 = vmatprep.subr.bf16.mxu0 0
      %6796 = vmatpush1.bf16.msra.mxu0 0
      %6797 = vmatprep.subr.bf16.mxu0 0
      %6798 = vmatpush1.bf16.msra.mxu0 0
      %6799 = vmatprep.mubr.bf16.mxu0 0
      %6800 = vmatmul.mubr.bf16.gmra.mrb[0].mxu0 %v6750
      %v6801 = vpop.f32.mrb[0].mxu0
      %v6802 = vadd.f32 0.0, %v6801
      %v6803 = vpop.f32.mrb[0].mxu0
      %v6804 = vadd.f32 0.0, %v6803
      %v6805 = vpop.f32.mrb[0].mxu0
      %v6806 = vadd.f32 0.0, %v6805
      %v6807 = vpop.f32.mrb[0].mxu0
      %v6808 = vadd.f32 0.0, %v6807
      %6809 = vmatprep.mubr.bf16.mxu0 0
      %6810 = vmatmul.mubr.bf16.gmra.mrb[0].mxu0 %v6753
      %v6811 = vpop.f32.mrb[0].mxu0
      %v6812 = vadd.f32 0.0, %v6811
      %v6813 = vpop.f32.mrb[0].mxu0
      %v6814 = vadd.f32 0.0, %v6813
      %v6815 = vpop.f32.mrb[0].mxu0
      %v6816 = vpop.f32.mrb[0].mxu0
      %6817 = vdwg.mxu0
      %6818 = vmatprep.subr.bf16.mxu0 %v6765
      %6819 = vmatpush1.bf16.msra.mxu0 %v6762
      %6820 = vmatprep.subr.bf16.mxu0 0
      %6821 = vmatpush1.bf16.msra.mxu0 0
      %6822 = vmatprep.subr.bf16.mxu0 0
      %6823 = vmatpush1.bf16.msra.mxu0 0
      %6824 = vmatprep.subr.bf16.mxu0 0
      %6825 = vmatpush1.bf16.msra.mxu0 0
      %6826 = vmatprep.subr.bf16.mxu0 0
      %6827 = vmatpush1.bf16.msra.mxu0 0
      %6828 = vmatprep.subr.bf16.mxu0 0
      %6829 = vmatpush1.bf16.msra.mxu0 0
      %6830 = vmatprep.subr.bf16.mxu0 0
      %6831 = vmatpush1.bf16.msra.mxu0 0
      %6832 = vmatprep.subr.bf16.mxu0 0
      %6833 = vmatpush1.bf16.msra.mxu0 0
      %6834 = vmatprep.subr.bf16.mxu0 0
      %6835 = vmatpush1.bf16.msra.mxu0 0
      %6836 = vmatprep.subr.bf16.mxu0 0
      %6837 = vmatpush1.bf16.msra.mxu0 0
      %6838 = vmatprep.subr.bf16.mxu0 0
      %6839 = vmatpush1.bf16.msra.mxu0 0
      %6840 = vmatprep.subr.bf16.mxu0 0
      %6841 = vmatpush1.bf16.msra.mxu0 0
      %6842 = vmatprep.subr.bf16.mxu0 0
      %6843 = vmatpush1.bf16.msra.mxu0 0
      %6844 = vmatprep.subr.bf16.mxu0 0
      %6845 = vmatpush1.bf16.msra.mxu0 0
      %6846 = vmatprep.subr.bf16.mxu0 0
      %6847 = vmatpush1.bf16.msra.mxu0 0
      %6848 = vmatprep.subr.bf16.mxu0 0
      %6849 = vmatpush1.bf16.msra.mxu0 0
      %6850 = vmatprep.mubr.bf16.mxu0 0
      %6851 = vmatmul.mubr.bf16.gmra.mrb[0].mxu0 %v6750
      %v6852 = vpop.f32.mrb[0].mxu0
      %v6853 = vadd.f32 0.0, %v6852
      %v6854 = vpop.f32.mrb[0].mxu0
      %v6855 = vadd.f32 0.0, %v6854
      %v6856 = vpop.f32.mrb[0].mxu0
      %v6857 = vadd.f32 0.0, %v6856
      %v6858 = vpop.f32.mrb[0].mxu0
      %v6859 = vadd.f32 0.0, %v6858
      %6860 = vmatprep.mubr.bf16.mxu0 0
      %6861 = vmatmul.mubr.bf16.gmra.mrb[0].mxu0 %v6753
      %v6862 = vpop.f32.mrb[0].mxu0
      %v6863 = vadd.f32 0.0, %v6862
      %v6864 = vpop.f32.mrb[0].mxu0
      %v6865 = vadd.f32 0.0, %v6864
      %v6866 = vpop.f32.mrb[0].mxu0
      %v6867 = vpop.f32.mrb[0].mxu0
      %6868 = vdwg.mxu0
      %v6869 = vadd.f32 %v6712, %v6802
      %v6870 = vadd.f32 %v6713, %v6804
      %v6871 = vadd.f32 %v6714, %v6853
      %v6872 = vadd.f32 %v6715, %v6855
      %v6873 = vadd.f32 %v6716, %v6806
      %v6874 = vadd.f32 %v6717, %v6808
      %v6875 = vadd.f32 %v6718, %v6857
      %v6876 = vadd.f32 %v6719, %v6859
      %v6877 = vadd.f32 %v6720, %v6812
      %v6878 = vadd.f32 %v6721, %v6814
      %v6879 = vadd.f32 %v6722, %v6863
      %v6880 = vadd.f32 %v6723, %v6865
      %v6881 = vld [vmem:[%s2604] sm:$0xf]
      %v6882 = vld [vmem:[%s2604 + $0x4] sm:$0xf]
      %v6883 = vld [vmem:[%s2604 + $0x8] sm:$0xf]
      %v6887 = vunpack.c.l.b16 %v6881
      %v6888 = vunpack.c.l.b16 %v6882
      %v6889 = vunpack.c.l.b16 %v6883
      %v6890 = vpack.c.b16 %v6888, %v6887
      %v6891 = vpack.c.b16 %v6889, %v6889
      %6892 = vrot.lane.b32.xlu0 %v4573, 8
      %v6893 = vpop.permute.xlu0 %6892
      %6894 = vrot.lane.b32.xlu0 %v4574, 8
      %v6895 = vpop.permute.xlu0 %6894
      %6896 = vrot.lane.b32.xlu0 %v4575, 8
      %v6897 = vpop.permute.xlu0 %6896
      %6898 = vrot.lane.b32.xlu0 %v4576, 8
      %v6899 = vpop.permute.xlu0 %6898
      %6900 = vrot.lane.b32.xlu0 %v4577, 8
      %v6901 = vpop.permute.xlu0 %6900
      %v6902 = vsel %vm2626, %v6893, %v6895
      %v6903 = vsel %vm2626, %v6895, %v6897
      %v6904 = vsel %vm2626, %v6897, %v6899
      %v6905 = vsel %vm2626, %v6899, %v6901
      %v6907 = vsel %vm287, %v6890, 0
      %v6910 = vsel %vm287, %v6891, 0
      %v6913 = vsel %vm294, %v6902, 0
      %v6916 = vsel %vm294, %v6903, 0
      %v6919 = vsel %vm294, %v6904, 0
      %v6922 = vsel %vm294, %v6905, 0
      %6924 = vmatprep.subr.bf16.mxu0 %v6916
      %6925 = vmatpush1.bf16.msra.mxu0 %v6913
      %6926 = vmatprep.subr.bf16.mxu0 0
      %6927 = vmatpush1.bf16.msra.mxu0 0
      %6928 = vmatprep.subr.bf16.mxu0 0
      %6929 = vmatpush1.bf16.msra.mxu0 0
      %6930 = vmatprep.subr.bf16.mxu0 0
      %6931 = vmatpush1.bf16.msra.mxu0 0
      %6932 = vmatprep.subr.bf16.mxu0 0
      %6933 = vmatpush1.bf16.msra.mxu0 0
      %6934 = vmatprep.subr.bf16.mxu0 0
      %6935 = vmatpush1.bf16.msra.mxu0 0
      %6936 = vmatprep.subr.bf16.mxu0 0
      %6937 = vmatpush1.bf16.msra.mxu0 0
      %6938 = vmatprep.subr.bf16.mxu0 0
      %6939 = vmatpush1.bf16.msra.mxu0 0
      %6940 = vmatprep.subr.bf16.mxu0 0
      %6941 = vmatpush1.bf16.msra.mxu0 0
      %6942 = vmatprep.subr.bf16.mxu0 0
      %6943 = vmatpush1.bf16.msra.mxu0 0
      %6944 = vmatprep.subr.bf16.mxu0 0
      %6945 = vmatpush1.bf16.msra.mxu0 0
      %6946 = vmatprep.subr.bf16.mxu0 0
      %6947 = vmatpush1.bf16.msra.mxu0 0
      %6948 = vmatprep.subr.bf16.mxu0 0
      %6949 = vmatpush1.bf16.msra.mxu0 0
      %6950 = vmatprep.subr.bf16.mxu0 0
      %6951 = vmatpush1.bf16.msra.mxu0 0
      %6952 = vmatprep.subr.bf16.mxu0 0
      %6953 = vmatpush1.bf16.msra.mxu0 0
      %6954 = vmatprep.subr.bf16.mxu0 0
      %6955 = vmatpush1.bf16.msra.mxu0 0
      %6956 = vmatprep.mubr.bf16.mxu0 0
      %6957 = vmatmul.mubr.bf16.gmra.mrb[0].mxu0 %v6907
      %v6958 = vpop.f32.mrb[0].mxu0
      %v6959 = vadd.f32 0.0, %v6958
      %v6960 = vpop.f32.mrb[0].mxu0
      %v6961 = vadd.f32 0.0, %v6960
      %v6962 = vpop.f32.mrb[0].mxu0
      %v6963 = vadd.f32 0.0, %v6962
      %v6964 = vpop.f32.mrb[0].mxu0
      %v6965 = vadd.f32 0.0, %v6964
      %6966 = vmatprep.mubr.bf16.mxu0 0
      %6967 = vmatmul.mubr.bf16.gmra.mrb[0].mxu0 %v6910
      %v6968 = vpop.f32.mrb[0].mxu0
      %v6969 = vadd.f32 0.0, %v6968
      %v6970 = vpop.f32.mrb[0].mxu0
      %v6971 = vadd.f32 0.0, %v6970
      %v6972 = vpop.f32.mrb[0].mxu0
      %v6973 = vpop.f32.mrb[0].mxu0
      %6974 = vdwg.mxu0
      %6975 = vmatprep.subr.bf16.mxu0 %v6922
      %6976 = vmatpush1.bf16.msra.mxu0 %v6919
      %6977 = vmatprep.subr.bf16.mxu0 0
      %6978 = vmatpush1.bf16.msra.mxu0 0
      %6979 = vmatprep.subr.bf16.mxu0 0
      %6980 = vmatpush1.bf16.msra.mxu0 0
      %6981 = vmatprep.subr.bf16.mxu0 0
      %6982 = vmatpush1.bf16.msra.mxu0 0
      %6983 = vmatprep.subr.bf16.mxu0 0
      %6984 = vmatpush1.bf16.msra.mxu0 0
      %6985 = vmatprep.subr.bf16.mxu0 0
      %6986 = vmatpush1.bf16.msra.mxu0 0
      %6987 = vmatprep.subr.bf16.mxu0 0
      %6988 = vmatpush1.bf16.msra.mxu0 0
      %6989 = vmatprep.subr.bf16.mxu0 0
      %6990 = vmatpush1.bf16.msra.mxu0 0
      %6991 = vmatprep.subr.bf16.mxu0 0
      %6992 = vmatpush1.bf16.msra.mxu0 0
      %6993 = vmatprep.subr.bf16.mxu0 0
      %6994 = vmatpush1.bf16.msra.mxu0 0
      %6995 = vmatprep.subr.bf16.mxu0 0
      %6996 = vmatpush1.bf16.msra.mxu0 0
      %6997 = vmatprep.subr.bf16.mxu0 0
      %6998 = vmatpush1.bf16.msra.mxu0 0
      %6999 = vmatprep.subr.bf16.mxu0 0
      %7000 = vmatpush1.bf16.msra.mxu0 0
      %7001 = vmatprep.subr.bf16.mxu0 0
      %7002 = vmatpush1.bf16.msra.mxu0 0
      %7003 = vmatprep.subr.bf16.mxu0 0
      %7004 = vmatpush1.bf16.msra.mxu0 0
      %7005 = vmatprep.subr.bf16.mxu0 0
      %7006 = vmatpush1.bf16.msra.mxu0 0
      %7007 = vmatprep.mubr.bf16.mxu0 0
      %7008 = vmatmul.mubr.bf16.gmra.mrb[0].mxu0 %v6907
      %v7009 = vpop.f32.mrb[0].mxu0
      %v7010 = vadd.f32 0.0, %v7009
      %v7011 = vpop.f32.mrb[0].mxu0
      %v7012 = vadd.f32 0.0, %v7011
      %v7013 = vpop.f32.mrb[0].mxu0
      %v7014 = vadd.f32 0.0, %v7013
      %v7015 = vpop.f32.mrb[0].mxu0
      %v7016 = vadd.f32 0.0, %v7015
      %7017 = vmatprep.mubr.bf16.mxu0 0
      %7018 = vmatmul.mubr.bf16.gmra.mrb[0].mxu0 %v6910
      %v7019 = vpop.f32.mrb[0].mxu0
      %v7020 = vadd.f32 0.0, %v7019
      %v7021 = vpop.f32.mrb[0].mxu0
      %v7022 = vadd.f32 0.0, %v7021
      %v7023 = vpop.f32.mrb[0].mxu0
      %v7024 = vpop.f32.mrb[0].mxu0
      %7025 = vdwg.mxu0
      %v7026 = vadd.f32 %v6869, %v6959
      %v7027 = vadd.f32 %v6870, %v6961
      %v7028 = vadd.f32 %v6871, %v7010
      %v7029 = vadd.f32 %v6872, %v7012
      %v7030 = vadd.f32 %v6873, %v6963
      %v7031 = vadd.f32 %v6874, %v6965
      %v7032 = vadd.f32 %v6875, %v7014
      %v7033 = vadd.f32 %v6876, %v7016
      %v7034 = vadd.f32 %v6877, %v6969
      %v7035 = vadd.f32 %v6878, %v6971
      %v7036 = vadd.f32 %v6879, %v7020
      %v7037 = vadd.f32 %v6880, %v7022
      %v7038 = vld [vmem:[%s2763] sm:$0xf]
      %v7039 = vld [vmem:[%s2763 + $0x4] sm:$0xf]
      %v7040 = vld [vmem:[%s2763 + $0x8] sm:$0xf]
      %v7044 = vunpack.c.l.b16 %v7038
      %v7045 = vunpack.c.l.b16 %v7039
      %v7046 = vunpack.c.l.b16 %v7040
      %v7047 = vpack.c.b16 %v7045, %v7044
      %v7048 = vpack.c.b16 %v7046, %v7046
      %7049 = vrot.lane.b32.xlu0 %v4573, 7
      %v7050 = vpop.permute.xlu0 %7049
      %7051 = vrot.lane.b32.xlu0 %v4574, 7
      %v7052 = vpop.permute.xlu0 %7051
      %7053 = vrot.lane.b32.xlu0 %v4575, 7
      %v7054 = vpop.permute.xlu0 %7053
      %7055 = vrot.lane.b32.xlu0 %v4576, 7
      %v7056 = vpop.permute.xlu0 %7055
      %7057 = vrot.lane.b32.xlu0 %v4577, 7
      %v7058 = vpop.permute.xlu0 %7057
      %v7059 = vsel %vm2785, %v7050, %v7052
      %v7060 = vsel %vm2785, %v7052, %v7054
      %v7061 = vsel %vm2785, %v7054, %v7056
      %v7062 = vsel %vm2785, %v7056, %v7058
      %v7064 = vsel %vm287, %v7047, 0
      %v7067 = vsel %vm287, %v7048, 0
      %v7070 = vsel %vm294, %v7059, 0
      %v7073 = vsel %vm294, %v7060, 0
      %v7076 = vsel %vm294, %v7061, 0
      %v7079 = vsel %vm294, %v7062, 0
      %7081 = vmatprep.subr.bf16.mxu0 %v7073
      %7082 = vmatpush1.bf16.msra.mxu0 %v7070
      %7083 = vmatprep.subr.bf16.mxu0 0
      %7084 = vmatpush1.bf16.msra.mxu0 0
      %7085 = vmatprep.subr.bf16.mxu0 0
      %7086 = vmatpush1.bf16.msra.mxu0 0
      %7087 = vmatprep.subr.bf16.mxu0 0
      %7088 = vmatpush1.bf16.msra.mxu0 0
      %7089 = vmatprep.subr.bf16.mxu0 0
      %7090 = vmatpush1.bf16.msra.mxu0 0
      %7091 = vmatprep.subr.bf16.mxu0 0
      %7092 = vmatpush1.bf16.msra.mxu0 0
      %7093 = vmatprep.subr.bf16.mxu0 0
      %7094 = vmatpush1.bf16.msra.mxu0 0
      %7095 = vmatprep.subr.bf16.mxu0 0
      %7096 = vmatpush1.bf16.msra.mxu0 0
      %7097 = vmatprep.subr.bf16.mxu0 0
      %7098 = vmatpush1.bf16.msra.mxu0 0
      %7099 = vmatprep.subr.bf16.mxu0 0
      %7100 = vmatpush1.bf16.msra.mxu0 0
      %7101 = vmatprep.subr.bf16.mxu0 0
      %7102 = vmatpush1.bf16.msra.mxu0 0
      %7103 = vmatprep.subr.bf16.mxu0 0
      %7104 = vmatpush1.bf16.msra.mxu0 0
      %7105 = vmatprep.subr.bf16.mxu0 0
      %7106 = vmatpush1.bf16.msra.mxu0 0
      %7107 = vmatprep.subr.bf16.mxu0 0
      %7108 = vmatpush1.bf16.msra.mxu0 0
      %7109 = vmatprep.subr.bf16.mxu0 0
      %7110 = vmatpush1.bf16.msra.mxu0 0
      %7111 = vmatprep.subr.bf16.mxu0 0
      %7112 = vmatpush1.bf16.msra.mxu0 0
      %7113 = vmatprep.mubr.bf16.mxu0 0
      %7114 = vmatmul.mubr.bf16.gmra.mrb[0].mxu0 %v7064
      %v7115 = vpop.f32.mrb[0].mxu0
      %v7116 = vadd.f32 0.0, %v7115
      %v7117 = vpop.f32.mrb[0].mxu0
      %v7118 = vadd.f32 0.0, %v7117
      %v7119 = vpop.f32.mrb[0].mxu0
      %v7120 = vadd.f32 0.0, %v7119
      %v7121 = vpop.f32.mrb[0].mxu0
      %v7122 = vadd.f32 0.0, %v7121
      %7123 = vmatprep.mubr.bf16.mxu0 0
      %7124 = vmatmul.mubr.bf16.gmra.mrb[0].mxu0 %v7067
      %v7125 = vpop.f32.mrb[0].mxu0
      %v7126 = vadd.f32 0.0, %v7125
      %v7127 = vpop.f32.mrb[0].mxu0
      %v7128 = vadd.f32 0.0, %v7127
      %v7129 = vpop.f32.mrb[0].mxu0
      %v7130 = vpop.f32.mrb[0].mxu0
      %7131 = vdwg.mxu0
      %7132 = vmatprep.subr.bf16.mxu0 %v7079
      %7133 = vmatpush1.bf16.msra.mxu0 %v7076
      %7134 = vmatprep.subr.bf16.mxu0 0
      %7135 = vmatpush1.bf16.msra.mxu0 0
      %7136 = vmatprep.subr.bf16.mxu0 0
      %7137 = vmatpush1.bf16.msra.mxu0 0
      %7138 = vmatprep.subr.bf16.mxu0 0
      %7139 = vmatpush1.bf16.msra.mxu0 0
      %7140 = vmatprep.subr.bf16.mxu0 0
      %7141 = vmatpush1.bf16.msra.mxu0 0
      %7142 = vmatprep.subr.bf16.mxu0 0
      %7143 = vmatpush1.bf16.msra.mxu0 0
      %7144 = vmatprep.subr.bf16.mxu0 0
      %7145 = vmatpush1.bf16.msra.mxu0 0
      %7146 = vmatprep.subr.bf16.mxu0 0
      %7147 = vmatpush1.bf16.msra.mxu0 0
      %7148 = vmatprep.subr.bf16.mxu0 0
      %7149 = vmatpush1.bf16.msra.mxu0 0
      %7150 = vmatprep.subr.bf16.mxu0 0
      %7151 = vmatpush1.bf16.msra.mxu0 0
      %7152 = vmatprep.subr.bf16.mxu0 0
      %7153 = vmatpush1.bf16.msra.mxu0 0
      %7154 = vmatprep.subr.bf16.mxu0 0
      %7155 = vmatpush1.bf16.msra.mxu0 0
      %7156 = vmatprep.subr.bf16.mxu0 0
      %7157 = vmatpush1.bf16.msra.mxu0 0
      %7158 = vmatprep.subr.bf16.mxu0 0
      %7159 = vmatpush1.bf16.msra.mxu0 0
      %7160 = vmatprep.subr.bf16.mxu0 0
      %7161 = vmatpush1.bf16.msra.mxu0 0
      %7162 = vmatprep.subr.bf16.mxu0 0
      %7163 = vmatpush1.bf16.msra.mxu0 0
      %7164 = vmatprep.mubr.bf16.mxu0 0
      %7165 = vmatmul.mubr.bf16.gmra.mrb[0].mxu0 %v7064
      %v7166 = vpop.f32.mrb[0].mxu0
      %v7167 = vadd.f32 0.0, %v7166
      %v7168 = vpop.f32.mrb[0].mxu0
      %v7169 = vadd.f32 0.0, %v7168
      %v7170 = vpop.f32.mrb[0].mxu0
      %v7171 = vadd.f32 0.0, %v7170
      %v7172 = vpop.f32.mrb[0].mxu0
      %v7173 = vadd.f32 0.0, %v7172
      %7174 = vmatprep.mubr.bf16.mxu0 0
      %7175 = vmatmul.mubr.bf16.gmra.mrb[0].mxu0 %v7067
      %v7176 = vpop.f32.mrb[0].mxu0
      %v7177 = vadd.f32 0.0, %v7176
      %v7178 = vpop.f32.mrb[0].mxu0
      %v7179 = vadd.f32 0.0, %v7178
      %v7180 = vpop.f32.mrb[0].mxu0
      %v7181 = vpop.f32.mrb[0].mxu0
      %7182 = vdwg.mxu0
      %v7183 = vadd.f32 %v7026, %v7116
      %v7184 = vadd.f32 %v7027, %v7118
      %v7185 = vadd.f32 %v7028, %v7167
      %v7186 = vadd.f32 %v7029, %v7169
      %v7187 = vadd.f32 %v7030, %v7120
      %v7188 = vadd.f32 %v7031, %v7122
      %v7189 = vadd.f32 %v7032, %v7171
      %v7190 = vadd.f32 %v7033, %v7173
      %v7191 = vadd.f32 %v7034, %v7126
      %v7192 = vadd.f32 %v7035, %v7128
      %v7193 = vadd.f32 %v7036, %v7177
      %v7194 = vadd.f32 %v7037, %v7179
      %v7195 = vld [vmem:[%s2922] sm:$0xf]
      %v7196 = vld [vmem:[%s2922 + $0x4] sm:$0xf]
      %v7197 = vld [vmem:[%s2922 + $0x8] sm:$0xf]
      %v7201 = vunpack.c.l.b16 %v7195
      %v7202 = vunpack.c.l.b16 %v7196
      %v7203 = vunpack.c.l.b16 %v7197
      %v7204 = vpack.c.b16 %v7202, %v7201
      %v7205 = vpack.c.b16 %v7203, %v7203
      %7206 = vrot.lane.b32.xlu0 %v4573, 6
      %v7207 = vpop.permute.xlu0 %7206
      %7208 = vrot.lane.b32.xlu0 %v4574, 6
      %v7209 = vpop.permute.xlu0 %7208
      %7210 = vrot.lane.b32.xlu0 %v4575, 6
      %v7211 = vpop.permute.xlu0 %7210
      %7212 = vrot.lane.b32.xlu0 %v4576, 6
      %v7213 = vpop.permute.xlu0 %7212
      %7214 = vrot.lane.b32.xlu0 %v4577, 6
      %v7215 = vpop.permute.xlu0 %7214
      %v7216 = vsel %vm2944, %v7207, %v7209
      %v7217 = vsel %vm2944, %v7209, %v7211
      %v7218 = vsel %vm2944, %v7211, %v7213
      %v7219 = vsel %vm2944, %v7213, %v7215
      %v7221 = vsel %vm287, %v7204, 0
      %v7224 = vsel %vm287, %v7205, 0
      %v7227 = vsel %vm294, %v7216, 0
      %v7230 = vsel %vm294, %v7217, 0
      %v7233 = vsel %vm294, %v7218, 0
      %v7236 = vsel %vm294, %v7219, 0
      %7238 = vmatprep.subr.bf16.mxu0 %v7230
      %7239 = vmatpush1.bf16.msra.mxu0 %v7227
      %7240 = vmatprep.subr.bf16.mxu0 0
      %7241 = vmatpush1.bf16.msra.mxu0 0
      %7242 = vmatprep.subr.bf16.mxu0 0
      %7243 = vmatpush1.bf16.msra.mxu0 0
      %7244 = vmatprep.subr.bf16.mxu0 0
      %7245 = vmatpush1.bf16.msra.mxu0 0
      %7246 = vmatprep.subr.bf16.mxu0 0
      %7247 = vmatpush1.bf16.msra.mxu0 0
      %7248 = vmatprep.subr.bf16.mxu0 0
      %7249 = vmatpush1.bf16.msra.mxu0 0
      %7250 = vmatprep.subr.bf16.mxu0 0
      %7251 = vmatpush1.bf16.msra.mxu0 0
      %7252 = vmatprep.subr.bf16.mxu0 0
      %7253 = vmatpush1.bf16.msra.mxu0 0
      %7254 = vmatprep.subr.bf16.mxu0 0
      %7255 = vmatpush1.bf16.msra.mxu0 0
      %7256 = vmatprep.subr.bf16.mxu0 0
      %7257 = vmatpush1.bf16.msra.mxu0 0
      %7258 = vmatprep.subr.bf16.mxu0 0
      %7259 = vmatpush1.bf16.msra.mxu0 0
      %7260 = vmatprep.subr.bf16.mxu0 0
      %7261 = vmatpush1.bf16.msra.mxu0 0
      %7262 = vmatprep.subr.bf16.mxu0 0
      %7263 = vmatpush1.bf16.msra.mxu0 0
      %7264 = vmatprep.subr.bf16.mxu0 0
      %7265 = vmatpush1.bf16.msra.mxu0 0
      %7266 = vmatprep.subr.bf16.mxu0 0
      %7267 = vmatpush1.bf16.msra.mxu0 0
      %7268 = vmatprep.subr.bf16.mxu0 0
      %7269 = vmatpush1.bf16.msra.mxu0 0
      %7270 = vmatprep.mubr.bf16.mxu0 0
      %7271 = vmatmul.mubr.bf16.gmra.mrb[0].mxu0 %v7221
      %v7272 = vpop.f32.mrb[0].mxu0
      %v7273 = vadd.f32 0.0, %v7272
      %v7274 = vpop.f32.mrb[0].mxu0
      %v7275 = vadd.f32 0.0, %v7274
      %v7276 = vpop.f32.mrb[0].mxu0
      %v7277 = vadd.f32 0.0, %v7276
      %v7278 = vpop.f32.mrb[0].mxu0
      %v7279 = vadd.f32 0.0, %v7278
      %7280 = vmatprep.mubr.bf16.mxu0 0
      %7281 = vmatmul.mubr.bf16.gmra.mrb[0].mxu0 %v7224
      %v7282 = vpop.f32.mrb[0].mxu0
      %v7283 = vadd.f32 0.0, %v7282
      %v7284 = vpop.f32.mrb[0].mxu0
      %v7285 = vadd.f32 0.0, %v7284
      %v7286 = vpop.f32.mrb[0].mxu0
      %v7287 = vpop.f32.mrb[0].mxu0
      %7288 = vdwg.mxu0
      %7289 = vmatprep.subr.bf16.mxu0 %v7236
      %7290 = vmatpush1.bf16.msra.mxu0 %v7233
      %7291 = vmatprep.subr.bf16.mxu0 0
      %7292 = vmatpush1.bf16.msra.mxu0 0
      %7293 = vmatprep.subr.bf16.mxu0 0
      %7294 = vmatpush1.bf16.msra.mxu0 0
      %7295 = vmatprep.subr.bf16.mxu0 0
      %7296 = vmatpush1.bf16.msra.mxu0 0
      %7297 = vmatprep.subr.bf16.mxu0 0
      %7298 = vmatpush1.bf16.msra.mxu0 0
      %7299 = vmatprep.subr.bf16.mxu0 0
      %7300 = vmatpush1.bf16.msra.mxu0 0
      %7301 = vmatprep.subr.bf16.mxu0 0
      %7302 = vmatpush1.bf16.msra.mxu0 0
      %7303 = vmatprep.subr.bf16.mxu0 0
      %7304 = vmatpush1.bf16.msra.mxu0 0
      %7305 = vmatprep.subr.bf16.mxu0 0
      %7306 = vmatpush1.bf16.msra.mxu0 0
      %7307 = vmatprep.subr.bf16.mxu0 0
      %7308 = vmatpush1.bf16.msra.mxu0 0
      %7309 = vmatprep.subr.bf16.mxu0 0
      %7310 = vmatpush1.bf16.msra.mxu0 0
      %7311 = vmatprep.subr.bf16.mxu0 0
      %7312 = vmatpush1.bf16.msra.mxu0 0
      %7313 = vmatprep.subr.bf16.mxu0 0
      %7314 = vmatpush1.bf16.msra.mxu0 0
      %7315 = vmatprep.subr.bf16.mxu0 0
      %7316 = vmatpush1.bf16.msra.mxu0 0
      %7317 = vmatprep.subr.bf16.mxu0 0
      %7318 = vmatpush1.bf16.msra.mxu0 0
      %7319 = vmatprep.subr.bf16.mxu0 0
      %7320 = vmatpush1.bf16.msra.mxu0 0
      %7321 = vmatprep.mubr.bf16.mxu0 0
      %7322 = vmatmul.mubr.bf16.gmra.mrb[0].mxu0 %v7221
      %v7323 = vpop.f32.mrb[0].mxu0
      %v7324 = vadd.f32 0.0, %v7323
      %v7325 = vpop.f32.mrb[0].mxu0
      %v7326 = vadd.f32 0.0, %v7325
      %v7327 = vpop.f32.mrb[0].mxu0
      %v7328 = vadd.f32 0.0, %v7327
      %v7329 = vpop.f32.mrb[0].mxu0
      %v7330 = vadd.f32 0.0, %v7329
      %7331 = vmatprep.mubr.bf16.mxu0 0
      %7332 = vmatmul.mubr.bf16.gmra.mrb[0].mxu0 %v7224
      %v7333 = vpop.f32.mrb[0].mxu0
      %v7334 = vadd.f32 0.0, %v7333
      %v7335 = vpop.f32.mrb[0].mxu0
      %v7336 = vadd.f32 0.0, %v7335
      %v7337 = vpop.f32.mrb[0].mxu0
      %v7338 = vpop.f32.mrb[0].mxu0
      %7339 = vdwg.mxu0
      %v7340 = vadd.f32 %v7183, %v7273
      %v7341 = vadd.f32 %v7184, %v7275
      %v7342 = vadd.f32 %v7185, %v7324
      %v7343 = vadd.f32 %v7186, %v7326
      %v7344 = vadd.f32 %v7187, %v7277
      %v7345 = vadd.f32 %v7188, %v7279
      %v7346 = vadd.f32 %v7189, %v7328
      %v7347 = vadd.f32 %v7190, %v7330
      %v7348 = vadd.f32 %v7191, %v7283
      %v7349 = vadd.f32 %v7192, %v7285
      %v7350 = vadd.f32 %v7193, %v7334
      %v7351 = vadd.f32 %v7194, %v7336
      %v7352 = vld [vmem:[#allocation2 + $0x14] sm:$0xff]
      %v7353 = vld [vmem:[#allocation2 + $0x1c] sm:$0xff]
      %v7354 = vld [vmem:[#allocation2 + $0x24] sm:$0xf]
      %v7355 = vld [vmem:[%s3084] sm:$0xf]
      %v7356 = vld [vmem:[%s3084 + $0x4] sm:$0xf]
      %v7357 = vld [vmem:[%s3084 + $0x8] sm:$0xf]
      %v7361 = vunpack.c.l.b16 %v7355
      %v7362 = vunpack.c.l.b16 %v7356
      %v7363 = vunpack.c.l.b16 %v7357
      %v7364 = vpack.c.b16 %v7362, %v7361
      %v7365 = vpack.c.b16 %v7363, %v7363
      %v7369 = vunpack.c.l.b16 %v7352
      %v7370 = vunpack.c.h.b16 %v7352
      %v7371 = vunpack.c.l.b16 %v7353
      %v7372 = vunpack.c.h.b16 %v7353
      %v7373 = vunpack.c.l.b16 %v7354
      %v7374 = vpack.c.b16 %v7369, %v7369
      %v7375 = vpack.c.b16 %v7370, %v7370
      %v7376 = vpack.c.b16 %v7371, %v7371
      %v7377 = vpack.c.b16 %v7372, %v7372
      %v7378 = vpack.c.b16 %v7373, %v7373
      %7379 = vrot.lane.b32.xlu0 %v7374, 56
      %v7380 = vpop.permute.xlu0 %7379
      %7381 = vrot.lane.b32.xlu0 %v7375, 56
      %v7382 = vpop.permute.xlu0 %7381
      %7383 = vrot.lane.b32.xlu0 %v7376, 56
      %v7384 = vpop.permute.xlu0 %7383
      %7385 = vrot.lane.b32.xlu0 %v7377, 56
      %v7386 = vpop.permute.xlu0 %7385
      %7387 = vrot.lane.b32.xlu0 %v7378, 56
      %v7388 = vpop.permute.xlu0 %7387
      %v7389 = vsel %vm3119, %v7380, %v7382
      %v7390 = vsel %vm3119, %v7382, %v7384
      %v7391 = vsel %vm3119, %v7384, %v7386
      %v7392 = vsel %vm3119, %v7386, %v7388
      %v7394 = vsel %vm287, %v7364, 0
      %v7397 = vsel %vm287, %v7365, 0
      %v7400 = vsel %vm294, %v7389, 0
      %v7403 = vsel %vm294, %v7390, 0
      %v7406 = vsel %vm294, %v7391, 0
      %v7409 = vsel %vm294, %v7392, 0
      %7411 = vmatprep.subr.bf16.mxu0 %v7403
      %7412 = vmatpush1.bf16.msra.mxu0 %v7400
      %7413 = vmatprep.subr.bf16.mxu0 0
      %7414 = vmatpush1.bf16.msra.mxu0 0
      %7415 = vmatprep.subr.bf16.mxu0 0
      %7416 = vmatpush1.bf16.msra.mxu0 0
      %7417 = vmatprep.subr.bf16.mxu0 0
      %7418 = vmatpush1.bf16.msra.mxu0 0
      %7419 = vmatprep.subr.bf16.mxu0 0
      %7420 = vmatpush1.bf16.msra.mxu0 0
      %7421 = vmatprep.subr.bf16.mxu0 0
      %7422 = vmatpush1.bf16.msra.mxu0 0
      %7423 = vmatprep.subr.bf16.mxu0 0
      %7424 = vmatpush1.bf16.msra.mxu0 0
      %7425 = vmatprep.subr.bf16.mxu0 0
      %7426 = vmatpush1.bf16.msra.mxu0 0
      %7427 = vmatprep.subr.bf16.mxu0 0
      %7428 = vmatpush1.bf16.msra.mxu0 0
      %7429 = vmatprep.subr.bf16.mxu0 0
      %7430 = vmatpush1.bf16.msra.mxu0 0
      %7431 = vmatprep.subr.bf16.mxu0 0
      %7432 = vmatpush1.bf16.msra.mxu0 0
      %7433 = vmatprep.subr.bf16.mxu0 0
      %7434 = vmatpush1.bf16.msra.mxu0 0
      %7435 = vmatprep.subr.bf16.mxu0 0
      %7436 = vmatpush1.bf16.msra.mxu0 0
      %7437 = vmatprep.subr.bf16.mxu0 0
      %7438 = vmatpush1.bf16.msra.mxu0 0
      %7439 = vmatprep.subr.bf16.mxu0 0
      %7440 = vmatpush1.bf16.msra.mxu0 0
      %7441 = vmatprep.subr.bf16.mxu0 0
      %7442 = vmatpush1.bf16.msra.mxu0 0
      %7443 = vmatprep.mubr.bf16.mxu0 0
      %7444 = vmatmul.mubr.bf16.gmra.mrb[0].mxu0 %v7394
      %v7445 = vpop.f32.mrb[0].mxu0
      %v7446 = vadd.f32 0.0, %v7445
      %v7447 = vpop.f32.mrb[0].mxu0
      %v7448 = vadd.f32 0.0, %v7447
      %v7449 = vpop.f32.mrb[0].mxu0
      %v7450 = vadd.f32 0.0, %v7449
      %v7451 = vpop.f32.mrb[0].mxu0
      %v7452 = vadd.f32 0.0, %v7451
      %7453 = vmatprep.mubr.bf16.mxu0 0
      %7454 = vmatmul.mubr.bf16.gmra.mrb[0].mxu0 %v7397
      %v7455 = vpop.f32.mrb[0].mxu0
      %v7456 = vadd.f32 0.0, %v7455
      %v7457 = vpop.f32.mrb[0].mxu0
      %v7458 = vadd.f32 0.0, %v7457
      %v7459 = vpop.f32.mrb[0].mxu0
      %v7460 = vpop.f32.mrb[0].mxu0
      %7461 = vdwg.mxu0
      %7462 = vmatprep.subr.bf16.mxu0 %v7409
      %7463 = vmatpush1.bf16.msra.mxu0 %v7406
      %7464 = vmatprep.subr.bf16.mxu0 0
      %7465 = vmatpush1.bf16.msra.mxu0 0
      %7466 = vmatprep.subr.bf16.mxu0 0
      %7467 = vmatpush1.bf16.msra.mxu0 0
      %7468 = vmatprep.subr.bf16.mxu0 0
      %7469 = vmatpush1.bf16.msra.mxu0 0
      %7470 = vmatprep.subr.bf16.mxu0 0
      %7471 = vmatpush1.bf16.msra.mxu0 0
      %7472 = vmatprep.subr.bf16.mxu0 0
      %7473 = vmatpush1.bf16.msra.mxu0 0
      %7474 = vmatprep.subr.bf16.mxu0 0
      %7475 = vmatpush1.bf16.msra.mxu0 0
      %7476 = vmatprep.subr.bf16.mxu0 0
      %7477 = vmatpush1.bf16.msra.mxu0 0
      %7478 = vmatprep.subr.bf16.mxu0 0
      %7479 = vmatpush1.bf16.msra.mxu0 0
      %7480 = vmatprep.subr.bf16.mxu0 0
      %7481 = vmatpush1.bf16.msra.mxu0 0
      %7482 = vmatprep.subr.bf16.mxu0 0
      %7483 = vmatpush1.bf16.msra.mxu0 0
      %7484 = vmatprep.subr.bf16.mxu0 0
      %7485 = vmatpush1.bf16.msra.mxu0 0
      %7486 = vmatprep.subr.bf16.mxu0 0
      %7487 = vmatpush1.bf16.msra.mxu0 0
      %7488 = vmatprep.subr.bf16.mxu0 0
      %7489 = vmatpush1.bf16.msra.mxu0 0
      %7490 = vmatprep.subr.bf16.mxu0 0
      %7491 = vmatpush1.bf16.msra.mxu0 0
      %7492 = vmatprep.subr.bf16.mxu0 0
      %7493 = vmatpush1.bf16.msra.mxu0 0
      %7494 = vmatprep.mubr.bf16.mxu0 0
      %7495 = vmatmul.mubr.bf16.gmra.mrb[0].mxu0 %v7394
      %v7496 = vpop.f32.mrb[0].mxu0
      %v7497 = vadd.f32 0.0, %v7496
      %v7498 = vpop.f32.mrb[0].mxu0
      %v7499 = vadd.f32 0.0, %v7498
      %v7500 = vpop.f32.mrb[0].mxu0
      %v7501 = vadd.f32 0.0, %v7500
      %v7502 = vpop.f32.mrb[0].mxu0
      %v7503 = vadd.f32 0.0, %v7502
      %7504 = vmatprep.mubr.bf16.mxu0 0
      %7505 = vmatmul.mubr.bf16.gmra.mrb[0].mxu0 %v7397
      %v7506 = vpop.f32.mrb[0].mxu0
      %v7507 = vadd.f32 0.0, %v7506
      %v7508 = vpop.f32.mrb[0].mxu0
      %v7509 = vadd.f32 0.0, %v7508
      %v7510 = vpop.f32.mrb[0].mxu0
      %v7511 = vpop.f32.mrb[0].mxu0
      %7512 = vdwg.mxu0
      %v7513 = vadd.f32 %v7340, %v7446
      %v7514 = vadd.f32 %v7341, %v7448
      %v7515 = vadd.f32 %v7342, %v7497
      %v7516 = vadd.f32 %v7343, %v7499
      %v7517 = vadd.f32 %v7344, %v7450
      %v7518 = vadd.f32 %v7345, %v7452
      %v7519 = vadd.f32 %v7346, %v7501
      %v7520 = vadd.f32 %v7347, %v7503
      %v7521 = vadd.f32 %v7348, %v7456
      %v7522 = vadd.f32 %v7349, %v7458
      %v7523 = vadd.f32 %v7350, %v7507
      %v7524 = vadd.f32 %v7351, %v7509
      %v7525 = vld [vmem:[%s3256] sm:$0xf]
      %v7526 = vld [vmem:[%s3256 + $0x4] sm:$0xf]
      %v7527 = vld [vmem:[%s3256 + $0x8] sm:$0xf]
      %v7531 = vunpack.c.l.b16 %v7525
      %v7532 = vunpack.c.l.b16 %v7526
      %v7533 = vunpack.c.l.b16 %v7527
      %v7534 = vpack.c.b16 %v7532, %v7531
      %v7535 = vpack.c.b16 %v7533, %v7533
      %7536 = vrot.lane.b32.xlu0 %v7374, 55
      %v7537 = vpop.permute.xlu0 %7536
      %7538 = vrot.lane.b32.xlu0 %v7375, 55
      %v7539 = vpop.permute.xlu0 %7538
      %7540 = vrot.lane.b32.xlu0 %v7376, 55
      %v7541 = vpop.permute.xlu0 %7540
      %7542 = vrot.lane.b32.xlu0 %v7377, 55
      %v7543 = vpop.permute.xlu0 %7542
      %7544 = vrot.lane.b32.xlu0 %v7378, 55
      %v7545 = vpop.permute.xlu0 %7544
      %v7546 = vsel %vm3278, %v7537, %v7539
      %v7547 = vsel %vm3278, %v7539, %v7541
      %v7548 = vsel %vm3278, %v7541, %v7543
      %v7549 = vsel %vm3278, %v7543, %v7545
      %v7551 = vsel %vm287, %v7534, 0
      %v7554 = vsel %vm287, %v7535, 0
      %v7557 = vsel %vm294, %v7546, 0
      %v7560 = vsel %vm294, %v7547, 0
      %v7563 = vsel %vm294, %v7548, 0
      %v7566 = vsel %vm294, %v7549, 0
      %7568 = vmatprep.subr.bf16.mxu0 %v7560
      %7569 = vmatpush1.bf16.msra.mxu0 %v7557
      %7570 = vmatprep.subr.bf16.mxu0 0
      %7571 = vmatpush1.bf16.msra.mxu0 0
      %7572 = vmatprep.subr.bf16.mxu0 0
      %7573 = vmatpush1.bf16.msra.mxu0 0
      %7574 = vmatprep.subr.bf16.mxu0 0
      %7575 = vmatpush1.bf16.msra.mxu0 0
      %7576 = vmatprep.subr.bf16.mxu0 0
      %7577 = vmatpush1.bf16.msra.mxu0 0
      %7578 = vmatprep.subr.bf16.mxu0 0
      %7579 = vmatpush1.bf16.msra.mxu0 0
      %7580 = vmatprep.subr.bf16.mxu0 0
      %7581 = vmatpush1.bf16.msra.mxu0 0
      %7582 = vmatprep.subr.bf16.mxu0 0
      %7583 = vmatpush1.bf16.msra.mxu0 0
      %7584 = vmatprep.subr.bf16.mxu0 0
      %7585 = vmatpush1.bf16.msra.mxu0 0
      %7586 = vmatprep.subr.bf16.mxu0 0
      %7587 = vmatpush1.bf16.msra.mxu0 0
      %7588 = vmatprep.subr.bf16.mxu0 0
      %7589 = vmatpush1.bf16.msra.mxu0 0
      %7590 = vmatprep.subr.bf16.mxu0 0
      %7591 = vmatpush1.bf16.msra.mxu0 0
      %7592 = vmatprep.subr.bf16.mxu0 0
      %7593 = vmatpush1.bf16.msra.mxu0 0
      %7594 = vmatprep.subr.bf16.mxu0 0
      %7595 = vmatpush1.bf16.msra.mxu0 0
      %7596 = vmatprep.subr.bf16.mxu0 0
      %7597 = vmatpush1.bf16.msra.mxu0 0
      %7598 = vmatprep.subr.bf16.mxu0 0
      %7599 = vmatpush1.bf16.msra.mxu0 0
      %7600 = vmatprep.mubr.bf16.mxu0 0
      %7601 = vmatmul.mubr.bf16.gmra.mrb[0].mxu0 %v7551
      %v7602 = vpop.f32.mrb[0].mxu0
      %v7603 = vadd.f32 0.0, %v7602
      %v7604 = vpop.f32.mrb[0].mxu0
      %v7605 = vadd.f32 0.0, %v7604
      %v7606 = vpop.f32.mrb[0].mxu0
      %v7607 = vadd.f32 0.0, %v7606
      %v7608 = vpop.f32.mrb[0].mxu0
      %v7609 = vadd.f32 0.0, %v7608
      %7610 = vmatprep.mubr.bf16.mxu0 0
      %7611 = vmatmul.mubr.bf16.gmra.mrb[0].mxu0 %v7554
      %v7612 = vpop.f32.mrb[0].mxu0
      %v7613 = vadd.f32 0.0, %v7612
      %v7614 = vpop.f32.mrb[0].mxu0
      %v7615 = vadd.f32 0.0, %v7614
      %v7616 = vpop.f32.mrb[0].mxu0
      %v7617 = vpop.f32.mrb[0].mxu0
      %7618 = vdwg.mxu0
      %7619 = vmatprep.subr.bf16.mxu0 %v7566
      %7620 = vmatpush1.bf16.msra.mxu0 %v7563
      %7621 = vmatprep.subr.bf16.mxu0 0
      %7622 = vmatpush1.bf16.msra.mxu0 0
      %7623 = vmatprep.subr.bf16.mxu0 0
      %7624 = vmatpush1.bf16.msra.mxu0 0
      %7625 = vmatprep.subr.bf16.mxu0 0
      %7626 = vmatpush1.bf16.msra.mxu0 0
      %7627 = vmatprep.subr.bf16.mxu0 0
      %7628 = vmatpush1.bf16.msra.mxu0 0
      %7629 = vmatprep.subr.bf16.mxu0 0
      %7630 = vmatpush1.bf16.msra.mxu0 0
      %7631 = vmatprep.subr.bf16.mxu0 0
      %7632 = vmatpush1.bf16.msra.mxu0 0
      %7633 = vmatprep.subr.bf16.mxu0 0
      %7634 = vmatpush1.bf16.msra.mxu0 0
      %7635 = vmatprep.subr.bf16.mxu0 0
      %7636 = vmatpush1.bf16.msra.mxu0 0
      %7637 = vmatprep.subr.bf16.mxu0 0
      %7638 = vmatpush1.bf16.msra.mxu0 0
      %7639 = vmatprep.subr.bf16.mxu0 0
      %7640 = vmatpush1.bf16.msra.mxu0 0
      %7641 = vmatprep.subr.bf16.mxu0 0
      %7642 = vmatpush1.bf16.msra.mxu0 0
      %7643 = vmatprep.subr.bf16.mxu0 0
      %7644 = vmatpush1.bf16.msra.mxu0 0
      %7645 = vmatprep.subr.bf16.mxu0 0
      %7646 = vmatpush1.bf16.msra.mxu0 0
      %7647 = vmatprep.subr.bf16.mxu0 0
      %7648 = vmatpush1.bf16.msra.mxu0 0
      %7649 = vmatprep.subr.bf16.mxu0 0
      %7650 = vmatpush1.bf16.msra.mxu0 0
      %7651 = vmatprep.mubr.bf16.mxu0 0
      %7652 = vmatmul.mubr.bf16.gmra.mrb[0].mxu0 %v7551
      %v7653 = vpop.f32.mrb[0].mxu0
      %v7654 = vadd.f32 0.0, %v7653
      %v7655 = vpop.f32.mrb[0].mxu0
      %v7656 = vadd.f32 0.0, %v7655
      %v7657 = vpop.f32.mrb[0].mxu0
      %v7658 = vadd.f32 0.0, %v7657
      %v7659 = vpop.f32.mrb[0].mxu0
      %v7660 = vadd.f32 0.0, %v7659
      %7661 = vmatprep.mubr.bf16.mxu0 0
      %7662 = vmatmul.mubr.bf16.gmra.mrb[0].mxu0 %v7554
      %v7663 = vpop.f32.mrb[0].mxu0
      %v7664 = vadd.f32 0.0, %v7663
      %v7665 = vpop.f32.mrb[0].mxu0
      %v7666 = vadd.f32 0.0, %v7665
      %v7667 = vpop.f32.mrb[0].mxu0
      %v7668 = vpop.f32.mrb[0].mxu0
      %7669 = vdwg.mxu0
      %v7670 = vadd.f32 %v7513, %v7603
      %v7671 = vadd.f32 %v7514, %v7605
      %v7672 = vadd.f32 %v7515, %v7654
      %v7673 = vadd.f32 %v7516, %v7656
      %v7674 = vadd.f32 %v7517, %v7607
      %v7675 = vadd.f32 %v7518, %v7609
      %v7676 = vadd.f32 %v7519, %v7658
      %v7677 = vadd.f32 %v7520, %v7660
      %v7678 = vadd.f32 %v7521, %v7613
      %v7679 = vadd.f32 %v7522, %v7615
      %v7680 = vadd.f32 %v7523, %v7664
      %v7681 = vadd.f32 %v7524, %v7666
      %v7682 = vld [vmem:[%s3415] sm:$0xf]
      %v7683 = vld [vmem:[%s3415 + $0x4] sm:$0xf]
      %v7684 = vld [vmem:[%s3415 + $0x8] sm:$0xf]
      %v7688 = vunpack.c.l.b16 %v7682
      %v7689 = vunpack.c.l.b16 %v7683
      %v7690 = vunpack.c.l.b16 %v7684
      %v7691 = vpack.c.b16 %v7689, %v7688
      %v7692 = vpack.c.b16 %v7690, %v7690
      %7693 = vrot.lane.b32.xlu0 %v7374, 54
      %v7694 = vpop.permute.xlu0 %7693
      %7695 = vrot.lane.b32.xlu0 %v7375, 54
      %v7696 = vpop.permute.xlu0 %7695
      %7697 = vrot.lane.b32.xlu0 %v7376, 54
      %v7698 = vpop.permute.xlu0 %7697
      %7699 = vrot.lane.b32.xlu0 %v7377, 54
      %v7700 = vpop.permute.xlu0 %7699
      %7701 = vrot.lane.b32.xlu0 %v7378, 54
      %v7702 = vpop.permute.xlu0 %7701
      %v7703 = vsel %vm3437, %v7694, %v7696
      %v7704 = vsel %vm3437, %v7696, %v7698
      %v7705 = vsel %vm3437, %v7698, %v7700
      %v7706 = vsel %vm3437, %v7700, %v7702
      %v7708 = vsel %vm287, %v7691, 0
      %v7711 = vsel %vm287, %v7692, 0
      %v7714 = vsel %vm294, %v7703, 0
      %v7717 = vsel %vm294, %v7704, 0
      %v7720 = vsel %vm294, %v7705, 0
      %v7723 = vsel %vm294, %v7706, 0
      %7725 = vmatprep.subr.bf16.mxu0 %v7717
      %7726 = vmatpush1.bf16.msra.mxu0 %v7714
      %7727 = vmatprep.subr.bf16.mxu0 0
      %7728 = vmatpush1.bf16.msra.mxu0 0
      %7729 = vmatprep.subr.bf16.mxu0 0
      %7730 = vmatpush1.bf16.msra.mxu0 0
      %7731 = vmatprep.subr.bf16.mxu0 0
      %7732 = vmatpush1.bf16.msra.mxu0 0
      %7733 = vmatprep.subr.bf16.mxu0 0
      %7734 = vmatpush1.bf16.msra.mxu0 0
      %7735 = vmatprep.subr.bf16.mxu0 0
      %7736 = vmatpush1.bf16.msra.mxu0 0
      %7737 = vmatprep.subr.bf16.mxu0 0
      %7738 = vmatpush1.bf16.msra.mxu0 0
      %7739 = vmatprep.subr.bf16.mxu0 0
      %7740 = vmatpush1.bf16.msra.mxu0 0
      %7741 = vmatprep.subr.bf16.mxu0 0
      %7742 = vmatpush1.bf16.msra.mxu0 0
      %7743 = vmatprep.subr.bf16.mxu0 0
      %7744 = vmatpush1.bf16.msra.mxu0 0
      %7745 = vmatprep.subr.bf16.mxu0 0
      %7746 = vmatpush1.bf16.msra.mxu0 0
      %7747 = vmatprep.subr.bf16.mxu0 0
      %7748 = vmatpush1.bf16.msra.mxu0 0
      %7749 = vmatprep.subr.bf16.mxu0 0
      %7750 = vmatpush1.bf16.msra.mxu0 0
      %7751 = vmatprep.subr.bf16.mxu0 0
      %7752 = vmatpush1.bf16.msra.mxu0 0
      %7753 = vmatprep.subr.bf16.mxu0 0
      %7754 = vmatpush1.bf16.msra.mxu0 0
      %7755 = vmatprep.subr.bf16.mxu0 0
      %7756 = vmatpush1.bf16.msra.mxu0 0
      %7757 = vmatprep.mubr.bf16.mxu0 0
      %7758 = vmatmul.mubr.bf16.gmra.mrb[0].mxu0 %v7708
      %v7759 = vpop.f32.mrb[0].mxu0
      %v7760 = vadd.f32 0.0, %v7759
      %v7761 = vpop.f32.mrb[0].mxu0
      %v7762 = vadd.f32 0.0, %v7761
      %v7763 = vpop.f32.mrb[0].mxu0
      %v7764 = vadd.f32 0.0, %v7763
      %v7765 = vpop.f32.mrb[0].mxu0
      %v7766 = vadd.f32 0.0, %v7765
      %7767 = vmatprep.mubr.bf16.mxu0 0
      %7768 = vmatmul.mubr.bf16.gmra.mrb[0].mxu0 %v7711
      %v7769 = vpop.f32.mrb[0].mxu0
      %v7770 = vadd.f32 0.0, %v7769
      %v7771 = vpop.f32.mrb[0].mxu0
      %v7772 = vadd.f32 0.0, %v7771
      %v7773 = vpop.f32.mrb[0].mxu0
      %v7774 = vpop.f32.mrb[0].mxu0
      %7775 = vdwg.mxu0
      %7776 = vmatprep.subr.bf16.mxu0 %v7723
      %7777 = vmatpush1.bf16.msra.mxu0 %v7720
      %7778 = vmatprep.subr.bf16.mxu0 0
      %7779 = vmatpush1.bf16.msra.mxu0 0
      %7780 = vmatprep.subr.bf16.mxu0 0
      %7781 = vmatpush1.bf16.msra.mxu0 0
      %7782 = vmatprep.subr.bf16.mxu0 0
      %7783 = vmatpush1.bf16.msra.mxu0 0
      %7784 = vmatprep.subr.bf16.mxu0 0
      %7785 = vmatpush1.bf16.msra.mxu0 0
      %7786 = vmatprep.subr.bf16.mxu0 0
      %7787 = vmatpush1.bf16.msra.mxu0 0
      %7788 = vmatprep.subr.bf16.mxu0 0
      %7789 = vmatpush1.bf16.msra.mxu0 0
      %7790 = vmatprep.subr.bf16.mxu0 0
      %7791 = vmatpush1.bf16.msra.mxu0 0
      %7792 = vmatprep.subr.bf16.mxu0 0
      %7793 = vmatpush1.bf16.msra.mxu0 0
      %7794 = vmatprep.subr.bf16.mxu0 0
      %7795 = vmatpush1.bf16.msra.mxu0 0
      %7796 = vmatprep.subr.bf16.mxu0 0
      %7797 = vmatpush1.bf16.msra.mxu0 0
      %7798 = vmatprep.subr.bf16.mxu0 0
      %7799 = vmatpush1.bf16.msra.mxu0 0
      %7800 = vmatprep.subr.bf16.mxu0 0
      %7801 = vmatpush1.bf16.msra.mxu0 0
      %7802 = vmatprep.subr.bf16.mxu0 0
      %7803 = vmatpush1.bf16.msra.mxu0 0
      %7804 = vmatprep.subr.bf16.mxu0 0
      %7805 = vmatpush1.bf16.msra.mxu0 0
      %7806 = vmatprep.subr.bf16.mxu0 0
      %7807 = vmatpush1.bf16.msra.mxu0 0
      %7808 = vmatprep.mubr.bf16.mxu0 0
      %7809 = vmatmul.mubr.bf16.gmra.mrb[0].mxu0 %v7708
      %v7810 = vpop.f32.mrb[0].mxu0
      %v7811 = vadd.f32 0.0, %v7810
      %v7812 = vpop.f32.mrb[0].mxu0
      %v7813 = vadd.f32 0.0, %v7812
      %v7814 = vpop.f32.mrb[0].mxu0
      %v7815 = vadd.f32 0.0, %v7814
      %v7816 = vpop.f32.mrb[0].mxu0
      %v7817 = vadd.f32 0.0, %v7816
      %7818 = vmatprep.mubr.bf16.mxu0 0
      %7819 = vmatmul.mubr.bf16.gmra.mrb[0].mxu0 %v7711
      %v7820 = vpop.f32.mrb[0].mxu0
      %v7821 = vadd.f32 0.0, %v7820
      %v7822 = vpop.f32.mrb[0].mxu0
      %v7823 = vadd.f32 0.0, %v7822
      %v7824 = vpop.f32.mrb[0].mxu0
      %v7825 = vpop.f32.mrb[0].mxu0
      %7826 = vdwg.mxu0
      %v7827 = vadd.f32 %v7670, %v7760
      %v7828 = vadd.f32 %v7671, %v7762
      %v7829 = vadd.f32 %v7672, %v7811
      %v7830 = vadd.f32 %v7673, %v7813
      %v7831 = vadd.f32 %v7674, %v7764
      %v7832 = vadd.f32 %v7675, %v7766
      %v7833 = vadd.f32 %v7676, %v7815
      %v7834 = vadd.f32 %v7677, %v7817
      %v7835 = vadd.f32 %v7678, %v7770
      %v7836 = vadd.f32 %v7679, %v7772
      %v7837 = vadd.f32 %v7680, %v7821
      %v7838 = vadd.f32 %v7681, %v7823
      %v7839 = vld [vmem:[%s3574] sm:$0xf]
      %v7840 = vld [vmem:[%s3574 + $0x4] sm:$0xf]
      %v7841 = vld [vmem:[%s3574 + $0x8] sm:$0xf]
      %v7845 = vunpack.c.l.b16 %v7839
      %v7846 = vunpack.c.l.b16 %v7840
      %v7847 = vunpack.c.l.b16 %v7841
      %v7848 = vpack.c.b16 %v7846, %v7845
      %v7849 = vpack.c.b16 %v7847, %v7847
      %7850 = vrot.lane.b32.xlu0 %v7374, 46
      %v7851 = vpop.permute.xlu0 %7850
      %7852 = vrot.lane.b32.xlu0 %v7375, 46
      %v7853 = vpop.permute.xlu0 %7852
      %7854 = vrot.lane.b32.xlu0 %v7376, 46
      %v7855 = vpop.permute.xlu0 %7854
      %7856 = vrot.lane.b32.xlu0 %v7377, 46
      %v7857 = vpop.permute.xlu0 %7856
      %7858 = vrot.lane.b32.xlu0 %v7378, 46
      %v7859 = vpop.permute.xlu0 %7858
      %v7860 = vsel %vm3596, %v7851, %v7853
      %v7861 = vsel %vm3596, %v7853, %v7855
      %v7862 = vsel %vm3596, %v7855, %v7857
      %v7863 = vsel %vm3596, %v7857, %v7859
      %v7865 = vsel %vm287, %v7848, 0
      %v7868 = vsel %vm287, %v7849, 0
      %v7871 = vsel %vm294, %v7860, 0
      %v7874 = vsel %vm294, %v7861, 0
      %v7877 = vsel %vm294, %v7862, 0
      %v7880 = vsel %vm294, %v7863, 0
      %7882 = vmatprep.subr.bf16.mxu0 %v7874
      %7883 = vmatpush1.bf16.msra.mxu0 %v7871
      %7884 = vmatprep.subr.bf16.mxu0 0
      %7885 = vmatpush1.bf16.msra.mxu0 0
      %7886 = vmatprep.subr.bf16.mxu0 0
      %7887 = vmatpush1.bf16.msra.mxu0 0
      %7888 = vmatprep.subr.bf16.mxu0 0
      %7889 = vmatpush1.bf16.msra.mxu0 0
      %7890 = vmatprep.subr.bf16.mxu0 0
      %7891 = vmatpush1.bf16.msra.mxu0 0
      %7892 = vmatprep.subr.bf16.mxu0 0
      %7893 = vmatpush1.bf16.msra.mxu0 0
      %7894 = vmatprep.subr.bf16.mxu0 0
      %7895 = vmatpush1.bf16.msra.mxu0 0
      %7896 = vmatprep.subr.bf16.mxu0 0
      %7897 = vmatpush1.bf16.msra.mxu0 0
      %7898 = vmatprep.subr.bf16.mxu0 0
      %7899 = vmatpush1.bf16.msra.mxu0 0
      %7900 = vmatprep.subr.bf16.mxu0 0
      %7901 = vmatpush1.bf16.msra.mxu0 0
      %7902 = vmatprep.subr.bf16.mxu0 0
      %7903 = vmatpush1.bf16.msra.mxu0 0
      %7904 = vmatprep.subr.bf16.mxu0 0
      %7905 = vmatpush1.bf16.msra.mxu0 0
      %7906 = vmatprep.subr.bf16.mxu0 0
      %7907 = vmatpush1.bf16.msra.mxu0 0
      %7908 = vmatprep.subr.bf16.mxu0 0
      %7909 = vmatpush1.bf16.msra.mxu0 0
      %7910 = vmatprep.subr.bf16.mxu0 0
      %7911 = vmatpush1.bf16.msra.mxu0 0
      %7912 = vmatprep.subr.bf16.mxu0 0
      %7913 = vmatpush1.bf16.msra.mxu0 0
      %7914 = vmatprep.mubr.bf16.mxu0 0
      %7915 = vmatmul.mubr.bf16.gmra.mrb[0].mxu0 %v7865
      %v7916 = vpop.f32.mrb[0].mxu0
      %v7917 = vadd.f32 0.0, %v7916
      %v7918 = vpop.f32.mrb[0].mxu0
      %v7919 = vadd.f32 0.0, %v7918
      %v7920 = vpop.f32.mrb[0].mxu0
      %v7921 = vadd.f32 0.0, %v7920
      %v7922 = vpop.f32.mrb[0].mxu0
      %v7923 = vadd.f32 0.0, %v7922
      %7924 = vmatprep.mubr.bf16.mxu0 0
      %7925 = vmatmul.mubr.bf16.gmra.mrb[0].mxu0 %v7868
      %v7926 = vpop.f32.mrb[0].mxu0
      %v7927 = vadd.f32 0.0, %v7926
      %v7928 = vpop.f32.mrb[0].mxu0
      %v7929 = vadd.f32 0.0, %v7928
      %v7930 = vpop.f32.mrb[0].mxu0
      %v7931 = vpop.f32.mrb[0].mxu0
      %7932 = vdwg.mxu0
      %7933 = vmatprep.subr.bf16.mxu0 %v7880
      %7934 = vmatpush1.bf16.msra.mxu0 %v7877
      %7935 = vmatprep.subr.bf16.mxu0 0
      %7936 = vmatpush1.bf16.msra.mxu0 0
      %7937 = vmatprep.subr.bf16.mxu0 0
      %7938 = vmatpush1.bf16.msra.mxu0 0
      %7939 = vmatprep.subr.bf16.mxu0 0
      %7940 = vmatpush1.bf16.msra.mxu0 0
      %7941 = vmatprep.subr.bf16.mxu0 0
      %7942 = vmatpush1.bf16.msra.mxu0 0
      %7943 = vmatprep.subr.bf16.mxu0 0
      %7944 = vmatpush1.bf16.msra.mxu0 0
      %7945 = vmatprep.subr.bf16.mxu0 0
      %7946 = vmatpush1.bf16.msra.mxu0 0
      %7947 = vmatprep.subr.bf16.mxu0 0
      %7948 = vmatpush1.bf16.msra.mxu0 0
      %7949 = vmatprep.subr.bf16.mxu0 0
      %7950 = vmatpush1.bf16.msra.mxu0 0
      %7951 = vmatprep.subr.bf16.mxu0 0
      %7952 = vmatpush1.bf16.msra.mxu0 0
      %7953 = vmatprep.subr.bf16.mxu0 0
      %7954 = vmatpush1.bf16.msra.mxu0 0
      %7955 = vmatprep.subr.bf16.mxu0 0
      %7956 = vmatpush1.bf16.msra.mxu0 0
      %7957 = vmatprep.subr.bf16.mxu0 0
      %7958 = vmatpush1.bf16.msra.mxu0 0
      %7959 = vmatprep.subr.bf16.mxu0 0
      %7960 = vmatpush1.bf16.msra.mxu0 0
      %7961 = vmatprep.subr.bf16.mxu0 0
      %7962 = vmatpush1.bf16.msra.mxu0 0
      %7963 = vmatprep.subr.bf16.mxu0 0
      %7964 = vmatpush1.bf16.msra.mxu0 0
      %7965 = vmatprep.mubr.bf16.mxu0 0
      %7966 = vmatmul.mubr.bf16.gmra.mrb[0].mxu0 %v7865
      %v7967 = vpop.f32.mrb[0].mxu0
      %v7968 = vadd.f32 0.0, %v7967
      %v7969 = vpop.f32.mrb[0].mxu0
      %v7970 = vadd.f32 0.0, %v7969
      %v7971 = vpop.f32.mrb[0].mxu0
      %v7972 = vadd.f32 0.0, %v7971
      %v7973 = vpop.f32.mrb[0].mxu0
      %v7974 = vadd.f32 0.0, %v7973
      %7975 = vmatprep.mubr.bf16.mxu0 0
      %7976 = vmatmul.mubr.bf16.gmra.mrb[0].mxu0 %v7868
      %v7977 = vpop.f32.mrb[0].mxu0
      %v7978 = vadd.f32 0.0, %v7977
      %v7979 = vpop.f32.mrb[0].mxu0
      %v7980 = vadd.f32 0.0, %v7979
      %v7981 = vpop.f32.mrb[0].mxu0
      %v7982 = vpop.f32.mrb[0].mxu0
      %7983 = vdwg.mxu0
      %v7984 = vadd.f32 %v7827, %v7917
      %v7985 = vadd.f32 %v7828, %v7919
      %v7986 = vadd.f32 %v7829, %v7968
      %v7987 = vadd.f32 %v7830, %v7970
      %v7988 = vadd.f32 %v7831, %v7921
      %v7989 = vadd.f32 %v7832, %v7923
      %v7990 = vadd.f32 %v7833, %v7972
      %v7991 = vadd.f32 %v7834, %v7974
      %v7992 = vadd.f32 %v7835, %v7927
      %v7993 = vadd.f32 %v7836, %v7929
      %v7994 = vadd.f32 %v7837, %v7978
      %v7995 = vadd.f32 %v7838, %v7980
      %v7996 = vld [vmem:[%s3733] sm:$0xf]
      %v7997 = vld [vmem:[%s3733 + $0x4] sm:$0xf]
      %v7998 = vld [vmem:[%s3733 + $0x8] sm:$0xf]
      %v8002 = vunpack.c.l.b16 %v7996
      %v8003 = vunpack.c.l.b16 %v7997
      %v8004 = vunpack.c.l.b16 %v7998
      %v8005 = vpack.c.b16 %v8003, %v8002
      %v8006 = vpack.c.b16 %v8004, %v8004
      %8007 = vrot.lane.b32.xlu0 %v7374, 45
      %v8008 = vpop.permute.xlu0 %8007
      %8009 = vrot.lane.b32.xlu0 %v7375, 45
      %v8010 = vpop.permute.xlu0 %8009
      %8011 = vrot.lane.b32.xlu0 %v7376, 45
      %v8012 = vpop.permute.xlu0 %8011
      %8013 = vrot.lane.b32.xlu0 %v7377, 45
      %v8014 = vpop.permute.xlu0 %8013
      %8015 = vrot.lane.b32.xlu0 %v7378, 45
      %v8016 = vpop.permute.xlu0 %8015
      %v8017 = vsel %vm3755, %v8008, %v8010
      %v8018 = vsel %vm3755, %v8010, %v8012
      %v8019 = vsel %vm3755, %v8012, %v8014
      %v8020 = vsel %vm3755, %v8014, %v8016
      %v8022 = vsel %vm287, %v8005, 0
      %v8025 = vsel %vm287, %v8006, 0
      %v8028 = vsel %vm294, %v8017, 0
      %v8031 = vsel %vm294, %v8018, 0
      %v8034 = vsel %vm294, %v8019, 0
      %v8037 = vsel %vm294, %v8020, 0
      %8039 = vmatprep.subr.bf16.mxu0 %v8031
      %8040 = vmatpush1.bf16.msra.mxu0 %v8028
      %8041 = vmatprep.subr.bf16.mxu0 0
      %8042 = vmatpush1.bf16.msra.mxu0 0
      %8043 = vmatprep.subr.bf16.mxu0 0
      %8044 = vmatpush1.bf16.msra.mxu0 0
      %8045 = vmatprep.subr.bf16.mxu0 0
      %8046 = vmatpush1.bf16.msra.mxu0 0
      %8047 = vmatprep.subr.bf16.mxu0 0
      %8048 = vmatpush1.bf16.msra.mxu0 0
      %8049 = vmatprep.subr.bf16.mxu0 0
      %8050 = vmatpush1.bf16.msra.mxu0 0
      %8051 = vmatprep.subr.bf16.mxu0 0
      %8052 = vmatpush1.bf16.msra.mxu0 0
      %8053 = vmatprep.subr.bf16.mxu0 0
      %8054 = vmatpush1.bf16.msra.mxu0 0
      %8055 = vmatprep.subr.bf16.mxu0 0
      %8056 = vmatpush1.bf16.msra.mxu0 0
      %8057 = vmatprep.subr.bf16.mxu0 0
      %8058 = vmatpush1.bf16.msra.mxu0 0
      %8059 = vmatprep.subr.bf16.mxu0 0
      %8060 = vmatpush1.bf16.msra.mxu0 0
      %8061 = vmatprep.subr.bf16.mxu0 0
      %8062 = vmatpush1.bf16.msra.mxu0 0
      %8063 = vmatprep.subr.bf16.mxu0 0
      %8064 = vmatpush1.bf16.msra.mxu0 0
      %8065 = vmatprep.subr.bf16.mxu0 0
      %8066 = vmatpush1.bf16.msra.mxu0 0
      %8067 = vmatprep.subr.bf16.mxu0 0
      %8068 = vmatpush1.bf16.msra.mxu0 0
      %8069 = vmatprep.subr.bf16.mxu0 0
      %8070 = vmatpush1.bf16.msra.mxu0 0
      %8071 = vmatprep.mubr.bf16.mxu0 0
      %8072 = vmatmul.mubr.bf16.gmra.mrb[0].mxu0 %v8022
      %v8073 = vpop.f32.mrb[0].mxu0
      %v8074 = vadd.f32 0.0, %v8073
      %v8075 = vpop.f32.mrb[0].mxu0
      %v8076 = vadd.f32 0.0, %v8075
      %v8077 = vpop.f32.mrb[0].mxu0
      %v8078 = vadd.f32 0.0, %v8077
      %v8079 = vpop.f32.mrb[0].mxu0
      %v8080 = vadd.f32 0.0, %v8079
      %8081 = vmatprep.mubr.bf16.mxu0 0
      %8082 = vmatmul.mubr.bf16.gmra.mrb[0].mxu0 %v8025
      %v8083 = vpop.f32.mrb[0].mxu0
      %v8084 = vadd.f32 0.0, %v8083
      %v8085 = vpop.f32.mrb[0].mxu0
      %v8086 = vadd.f32 0.0, %v8085
      %v8087 = vpop.f32.mrb[0].mxu0
      %v8088 = vpop.f32.mrb[0].mxu0
      %8089 = vdwg.mxu0
      %8090 = vmatprep.subr.bf16.mxu0 %v8037
      %8091 = vmatpush1.bf16.msra.mxu0 %v8034
      %8092 = vmatprep.subr.bf16.mxu0 0
      %8093 = vmatpush1.bf16.msra.mxu0 0
      %8094 = vmatprep.subr.bf16.mxu0 0
      %8095 = vmatpush1.bf16.msra.mxu0 0
      %8096 = vmatprep.subr.bf16.mxu0 0
      %8097 = vmatpush1.bf16.msra.mxu0 0
      %8098 = vmatprep.subr.bf16.mxu0 0
      %8099 = vmatpush1.bf16.msra.mxu0 0
      %8100 = vmatprep.subr.bf16.mxu0 0
      %8101 = vmatpush1.bf16.msra.mxu0 0
      %8102 = vmatprep.subr.bf16.mxu0 0
      %8103 = vmatpush1.bf16.msra.mxu0 0
      %8104 = vmatprep.subr.bf16.mxu0 0
      %8105 = vmatpush1.bf16.msra.mxu0 0
      %8106 = vmatprep.subr.bf16.mxu0 0
      %8107 = vmatpush1.bf16.msra.mxu0 0
      %8108 = vmatprep.subr.bf16.mxu0 0
      %8109 = vmatpush1.bf16.msra.mxu0 0
      %8110 = vmatprep.subr.bf16.mxu0 0
      %8111 = vmatpush1.bf16.msra.mxu0 0
      %8112 = vmatprep.subr.bf16.mxu0 0
      %8113 = vmatpush1.bf16.msra.mxu0 0
      %8114 = vmatprep.subr.bf16.mxu0 0
      %8115 = vmatpush1.bf16.msra.mxu0 0
      %8116 = vmatprep.subr.bf16.mxu0 0
      %8117 = vmatpush1.bf16.msra.mxu0 0
      %8118 = vmatprep.subr.bf16.mxu0 0
      %8119 = vmatpush1.bf16.msra.mxu0 0
      %8120 = vmatprep.subr.bf16.mxu0 0
      %8121 = vmatpush1.bf16.msra.mxu0 0
      %8122 = vmatprep.mubr.bf16.mxu0 0
      %8123 = vmatmul.mubr.bf16.gmra.mrb[0].mxu0 %v8022
      %v8124 = vpop.f32.mrb[0].mxu0
      %v8125 = vadd.f32 0.0, %v8124
      %v8126 = vpop.f32.mrb[0].mxu0
      %v8127 = vadd.f32 0.0, %v8126
      %v8128 = vpop.f32.mrb[0].mxu0
      %v8129 = vadd.f32 0.0, %v8128
      %v8130 = vpop.f32.mrb[0].mxu0
      %v8131 = vadd.f32 0.0, %v8130
      %8132 = vmatprep.mubr.bf16.mxu0 0
      %8133 = vmatmul.mubr.bf16.gmra.mrb[0].mxu0 %v8025
      %v8134 = vpop.f32.mrb[0].mxu0
      %v8135 = vadd.f32 0.0, %v8134
      %v8136 = vpop.f32.mrb[0].mxu0
      %v8137 = vadd.f32 0.0, %v8136
      %v8138 = vpop.f32.mrb[0].mxu0
      %v8139 = vpop.f32.mrb[0].mxu0
      %8140 = vdwg.mxu0
      %v8141 = vadd.f32 %v7984, %v8074
      %v8142 = vadd.f32 %v7985, %v8076
      %v8143 = vadd.f32 %v7986, %v8125
      %v8144 = vadd.f32 %v7987, %v8127
      %v8145 = vadd.f32 %v7988, %v8078
      %v8146 = vadd.f32 %v7989, %v8080
      %v8147 = vadd.f32 %v7990, %v8129
      %v8148 = vadd.f32 %v7991, %v8131
      %v8149 = vadd.f32 %v7992, %v8084
      %v8150 = vadd.f32 %v7993, %v8086
      %v8151 = vadd.f32 %v7994, %v8135
      %v8152 = vadd.f32 %v7995, %v8137
      %v8153 = vld [vmem:[%s3892] sm:$0xf]
      %v8154 = vld [vmem:[%s3892 + $0x4] sm:$0xf]
      %v8155 = vld [vmem:[%s3892 + $0x8] sm:$0xf]
      %v8159 = vunpack.c.l.b16 %v8153
      %v8160 = vunpack.c.l.b16 %v8154
      %v8161 = vunpack.c.l.b16 %v8155
      %v8162 = vpack.c.b16 %v8160, %v8159
      %v8163 = vpack.c.b16 %v8161, %v8161
      %8164 = vrot.lane.b32.xlu0 %v7374, 44
      %v8165 = vpop.permute.xlu0 %8164
      %8166 = vrot.lane.b32.xlu0 %v7375, 44
      %v8167 = vpop.permute.xlu0 %8166
      %8168 = vrot.lane.b32.xlu0 %v7376, 44
      %v8169 = vpop.permute.xlu0 %8168
      %8170 = vrot.lane.b32.xlu0 %v7377, 44
      %v8171 = vpop.permute.xlu0 %8170
      %8172 = vrot.lane.b32.xlu0 %v7378, 44
      %v8173 = vpop.permute.xlu0 %8172
      %v8174 = vsel %vm3914, %v8165, %v8167
      %v8175 = vsel %vm3914, %v8167, %v8169
      %v8176 = vsel %vm3914, %v8169, %v8171
      %v8177 = vsel %vm3914, %v8171, %v8173
      %v8179 = vsel %vm287, %v8162, 0
      %v8182 = vsel %vm287, %v8163, 0
      %v8185 = vsel %vm294, %v8174, 0
      %v8188 = vsel %vm294, %v8175, 0
      %v8191 = vsel %vm294, %v8176, 0
      %v8194 = vsel %vm294, %v8177, 0
      %8196 = vmatprep.subr.bf16.mxu0 %v8188
      %8197 = vmatpush1.bf16.msra.mxu0 %v8185
      %8198 = vmatprep.subr.bf16.mxu0 0
      %8199 = vmatpush1.bf16.msra.mxu0 0
      %8200 = vmatprep.subr.bf16.mxu0 0
      %8201 = vmatpush1.bf16.msra.mxu0 0
      %8202 = vmatprep.subr.bf16.mxu0 0
      %8203 = vmatpush1.bf16.msra.mxu0 0
      %8204 = vmatprep.subr.bf16.mxu0 0
      %8205 = vmatpush1.bf16.msra.mxu0 0
      %8206 = vmatprep.subr.bf16.mxu0 0
      %8207 = vmatpush1.bf16.msra.mxu0 0
      %8208 = vmatprep.subr.bf16.mxu0 0
      %8209 = vmatpush1.bf16.msra.mxu0 0
      %8210 = vmatprep.subr.bf16.mxu0 0
      %8211 = vmatpush1.bf16.msra.mxu0 0
      %8212 = vmatprep.subr.bf16.mxu0 0
      %8213 = vmatpush1.bf16.msra.mxu0 0
      %8214 = vmatprep.subr.bf16.mxu0 0
      %8215 = vmatpush1.bf16.msra.mxu0 0
      %8216 = vmatprep.subr.bf16.mxu0 0
      %8217 = vmatpush1.bf16.msra.mxu0 0
      %8218 = vmatprep.subr.bf16.mxu0 0
      %8219 = vmatpush1.bf16.msra.mxu0 0
      %8220 = vmatprep.subr.bf16.mxu0 0
      %8221 = vmatpush1.bf16.msra.mxu0 0
      %8222 = vmatprep.subr.bf16.mxu0 0
      %8223 = vmatpush1.bf16.msra.mxu0 0
      %8224 = vmatprep.subr.bf16.mxu0 0
      %8225 = vmatpush1.bf16.msra.mxu0 0
      %8226 = vmatprep.subr.bf16.mxu0 0
      %8227 = vmatpush1.bf16.msra.mxu0 0
      %8228 = vmatprep.mubr.bf16.mxu0 0
      %8229 = vmatmul.mubr.bf16.gmra.mrb[0].mxu0 %v8179
      %v8230 = vpop.f32.mrb[0].mxu0
      %v8231 = vadd.f32 0.0, %v8230
      %v8232 = vpop.f32.mrb[0].mxu0
      %v8233 = vadd.f32 0.0, %v8232
      %v8234 = vpop.f32.mrb[0].mxu0
      %v8235 = vadd.f32 0.0, %v8234
      %v8236 = vpop.f32.mrb[0].mxu0
      %v8237 = vadd.f32 0.0, %v8236
      %8238 = vmatprep.mubr.bf16.mxu0 0
      %8239 = vmatmul.mubr.bf16.gmra.mrb[0].mxu0 %v8182
      %v8240 = vpop.f32.mrb[0].mxu0
      %v8241 = vadd.f32 0.0, %v8240
      %v8242 = vpop.f32.mrb[0].mxu0
      %v8243 = vadd.f32 0.0, %v8242
      %v8244 = vpop.f32.mrb[0].mxu0
      %v8245 = vpop.f32.mrb[0].mxu0
      %8246 = vdwg.mxu0
      %8247 = vmatprep.subr.bf16.mxu0 %v8194
      %8248 = vmatpush1.bf16.msra.mxu0 %v8191
      %8249 = vmatprep.subr.bf16.mxu0 0
      %8250 = vmatpush1.bf16.msra.mxu0 0
      %8251 = vmatprep.subr.bf16.mxu0 0
      %8252 = vmatpush1.bf16.msra.mxu0 0
      %8253 = vmatprep.subr.bf16.mxu0 0
      %8254 = vmatpush1.bf16.msra.mxu0 0
      %8255 = vmatprep.subr.bf16.mxu0 0
      %8256 = vmatpush1.bf16.msra.mxu0 0
      %8257 = vmatprep.subr.bf16.mxu0 0
      %8258 = vmatpush1.bf16.msra.mxu0 0
      %8259 = vmatprep.subr.bf16.mxu0 0
      %8260 = vmatpush1.bf16.msra.mxu0 0
      %8261 = vmatprep.subr.bf16.mxu0 0
      %8262 = vmatpush1.bf16.msra.mxu0 0
      %8263 = vmatprep.subr.bf16.mxu0 0
      %8264 = vmatpush1.bf16.msra.mxu0 0
      %8265 = vmatprep.subr.bf16.mxu0 0
      %8266 = vmatpush1.bf16.msra.mxu0 0
      %8267 = vmatprep.subr.bf16.mxu0 0
      %8268 = vmatpush1.bf16.msra.mxu0 0
      %8269 = vmatprep.subr.bf16.mxu0 0
      %8270 = vmatpush1.bf16.msra.mxu0 0
      %8271 = vmatprep.subr.bf16.mxu0 0
      %8272 = vmatpush1.bf16.msra.mxu0 0
      %8273 = vmatprep.subr.bf16.mxu0 0
      %8274 = vmatpush1.bf16.msra.mxu0 0
      %8275 = vmatprep.subr.bf16.mxu0 0
      %8276 = vmatpush1.bf16.msra.mxu0 0
      %8277 = vmatprep.subr.bf16.mxu0 0
      %8278 = vmatpush1.bf16.msra.mxu0 0
      %8279 = vmatprep.mubr.bf16.mxu0 0
      %8280 = vmatmul.mubr.bf16.gmra.mrb[0].mxu0 %v8179
      %v8281 = vpop.f32.mrb[0].mxu0
      %v8282 = vadd.f32 0.0, %v8281
      %v8283 = vpop.f32.mrb[0].mxu0
      %v8284 = vadd.f32 0.0, %v8283
      %v8285 = vpop.f32.mrb[0].mxu0
      %v8286 = vadd.f32 0.0, %v8285
      %v8287 = vpop.f32.mrb[0].mxu0
      %v8288 = vadd.f32 0.0, %v8287
      %8289 = vmatprep.mubr.bf16.mxu0 0
      %8290 = vmatmul.mubr.bf16.gmra.mrb[0].mxu0 %v8182
      %v8291 = vpop.f32.mrb[0].mxu0
      %v8292 = vadd.f32 0.0, %v8291
      %v8293 = vpop.f32.mrb[0].mxu0
      %v8294 = vadd.f32 0.0, %v8293
      %v8295 = vpop.f32.mrb[0].mxu0
      %v8296 = vpop.f32.mrb[0].mxu0
      %8297 = vdwg.mxu0
      %v8298 = vadd.f32 %v8141, %v8231
      %v8299 = vadd.f32 %v8142, %v8233
      %v8300 = vadd.f32 %v8143, %v8282
      %v8301 = vadd.f32 %v8144, %v8284
      %v8302 = vadd.f32 %v8145, %v8235
      %v8303 = vadd.f32 %v8146, %v8237
      %v8304 = vadd.f32 %v8147, %v8286
      %v8305 = vadd.f32 %v8148, %v8288
      %v8306 = vadd.f32 %v8149, %v8241
      %v8307 = vadd.f32 %v8150, %v8243
      %v8308 = vadd.f32 %v8151, %v8292
      %v8309 = vadd.f32 %v8152, %v8294
      %v8310 = vld [vmem:[%s4051] sm:$0xf]
      %v8311 = vld [vmem:[%s4051 + $0x4] sm:$0xf]
      %v8312 = vld [vmem:[%s4051 + $0x8] sm:$0xf]
      %v8316 = vunpack.c.l.b16 %v8310
      %v8317 = vunpack.c.l.b16 %v8311
      %v8318 = vunpack.c.l.b16 %v8312
      %v8319 = vpack.c.b16 %v8317, %v8316
      %v8320 = vpack.c.b16 %v8318, %v8318
      %8321 = vrot.lane.b32.xlu0 %v7374, 36
      %v8322 = vpop.permute.xlu0 %8321
      %8323 = vrot.lane.b32.xlu0 %v7375, 36
      %v8324 = vpop.permute.xlu0 %8323
      %8325 = vrot.lane.b32.xlu0 %v7376, 36
      %v8326 = vpop.permute.xlu0 %8325
      %8327 = vrot.lane.b32.xlu0 %v7377, 36
      %v8328 = vpop.permute.xlu0 %8327
      %8329 = vrot.lane.b32.xlu0 %v7378, 36
      %v8330 = vpop.permute.xlu0 %8329
      %v8331 = vsel %vm4073, %v8322, %v8324
      %v8332 = vsel %vm4073, %v8324, %v8326
      %v8333 = vsel %vm4073, %v8326, %v8328
      %v8334 = vsel %vm4073, %v8328, %v8330
      %v8336 = vsel %vm287, %v8319, 0
      %v8339 = vsel %vm287, %v8320, 0
      %v8342 = vsel %vm294, %v8331, 0
      %v8345 = vsel %vm294, %v8332, 0
      %v8348 = vsel %vm294, %v8333, 0
      %v8351 = vsel %vm294, %v8334, 0
      %8353 = vmatprep.subr.bf16.mxu0 %v8345
      %8354 = vmatpush1.bf16.msra.mxu0 %v8342
      %8355 = vmatprep.subr.bf16.mxu0 0
      %8356 = vmatpush1.bf16.msra.mxu0 0
      %8357 = vmatprep.subr.bf16.mxu0 0
      %8358 = vmatpush1.bf16.msra.mxu0 0
      %8359 = vmatprep.subr.bf16.mxu0 0
      %8360 = vmatpush1.bf16.msra.mxu0 0
      %8361 = vmatprep.subr.bf16.mxu0 0
      %8362 = vmatpush1.bf16.msra.mxu0 0
      %8363 = vmatprep.subr.bf16.mxu0 0
      %8364 = vmatpush1.bf16.msra.mxu0 0
      %8365 = vmatprep.subr.bf16.mxu0 0
      %8366 = vmatpush1.bf16.msra.mxu0 0
      %8367 = vmatprep.subr.bf16.mxu0 0
      %8368 = vmatpush1.bf16.msra.mxu0 0
      %8369 = vmatprep.subr.bf16.mxu0 0
      %8370 = vmatpush1.bf16.msra.mxu0 0
      %8371 = vmatprep.subr.bf16.mxu0 0
      %8372 = vmatpush1.bf16.msra.mxu0 0
      %8373 = vmatprep.subr.bf16.mxu0 0
      %8374 = vmatpush1.bf16.msra.mxu0 0
      %8375 = vmatprep.subr.bf16.mxu0 0
      %8376 = vmatpush1.bf16.msra.mxu0 0
      %8377 = vmatprep.subr.bf16.mxu0 0
      %8378 = vmatpush1.bf16.msra.mxu0 0
      %8379 = vmatprep.subr.bf16.mxu0 0
      %8380 = vmatpush1.bf16.msra.mxu0 0
      %8381 = vmatprep.subr.bf16.mxu0 0
      %8382 = vmatpush1.bf16.msra.mxu0 0
      %8383 = vmatprep.subr.bf16.mxu0 0
      %8384 = vmatpush1.bf16.msra.mxu0 0
      %8385 = vmatprep.mubr.bf16.mxu0 0
      %8386 = vmatmul.mubr.bf16.gmra.mrb[0].mxu0 %v8336
      %v8387 = vpop.f32.mrb[0].mxu0
      %v8388 = vadd.f32 0.0, %v8387
      %v8389 = vpop.f32.mrb[0].mxu0
      %v8390 = vadd.f32 0.0, %v8389
      %v8391 = vpop.f32.mrb[0].mxu0
      %v8392 = vadd.f32 0.0, %v8391
      %v8393 = vpop.f32.mrb[0].mxu0
      %v8394 = vadd.f32 0.0, %v8393
      %8395 = vmatprep.mubr.bf16.mxu0 0
      %8396 = vmatmul.mubr.bf16.gmra.mrb[0].mxu0 %v8339
      %v8397 = vpop.f32.mrb[0].mxu0
      %v8398 = vadd.f32 0.0, %v8397
      %v8399 = vpop.f32.mrb[0].mxu0
      %v8400 = vadd.f32 0.0, %v8399
      %v8401 = vpop.f32.mrb[0].mxu0
      %v8402 = vpop.f32.mrb[0].mxu0
      %8403 = vdwg.mxu0
      %8404 = vmatprep.subr.bf16.mxu0 %v8351
      %8405 = vmatpush1.bf16.msra.mxu0 %v8348
      %8406 = vmatprep.subr.bf16.mxu0 0
      %8407 = vmatpush1.bf16.msra.mxu0 0
      %8408 = vmatprep.subr.bf16.mxu0 0
      %8409 = vmatpush1.bf16.msra.mxu0 0
      %8410 = vmatprep.subr.bf16.mxu0 0
      %8411 = vmatpush1.bf16.msra.mxu0 0
      %8412 = vmatprep.subr.bf16.mxu0 0
      %8413 = vmatpush1.bf16.msra.mxu0 0
      %8414 = vmatprep.subr.bf16.mxu0 0
      %8415 = vmatpush1.bf16.msra.mxu0 0
      %8416 = vmatprep.subr.bf16.mxu0 0
      %8417 = vmatpush1.bf16.msra.mxu0 0
      %8418 = vmatprep.subr.bf16.mxu0 0
      %8419 = vmatpush1.bf16.msra.mxu0 0
      %8420 = vmatprep.subr.bf16.mxu0 0
      %8421 = vmatpush1.bf16.msra.mxu0 0
      %8422 = vmatprep.subr.bf16.mxu0 0
      %8423 = vmatpush1.bf16.msra.mxu0 0
      %8424 = vmatprep.subr.bf16.mxu0 0
      %8425 = vmatpush1.bf16.msra.mxu0 0
      %8426 = vmatprep.subr.bf16.mxu0 0
      %8427 = vmatpush1.bf16.msra.mxu0 0
      %8428 = vmatprep.subr.bf16.mxu0 0
      %8429 = vmatpush1.bf16.msra.mxu0 0
      %8430 = vmatprep.subr.bf16.mxu0 0
      %8431 = vmatpush1.bf16.msra.mxu0 0
      %8432 = vmatprep.subr.bf16.mxu0 0
      %8433 = vmatpush1.bf16.msra.mxu0 0
      %8434 = vmatprep.subr.bf16.mxu0 0
      %8435 = vmatpush1.bf16.msra.mxu0 0
      %8436 = vmatprep.mubr.bf16.mxu0 0
      %8437 = vmatmul.mubr.bf16.gmra.mrb[0].mxu0 %v8336
      %v8438 = vpop.f32.mrb[0].mxu0
      %v8439 = vadd.f32 0.0, %v8438
      %v8440 = vpop.f32.mrb[0].mxu0
      %v8441 = vadd.f32 0.0, %v8440
      %v8442 = vpop.f32.mrb[0].mxu0
      %v8443 = vadd.f32 0.0, %v8442
      %v8444 = vpop.f32.mrb[0].mxu0
      %v8445 = vadd.f32 0.0, %v8444
      %8446 = vmatprep.mubr.bf16.mxu0 0
      %8447 = vmatmul.mubr.bf16.gmra.mrb[0].mxu0 %v8339
      %v8448 = vpop.f32.mrb[0].mxu0
      %v8449 = vadd.f32 0.0, %v8448
      %v8450 = vpop.f32.mrb[0].mxu0
      %v8451 = vadd.f32 0.0, %v8450
      %v8452 = vpop.f32.mrb[0].mxu0
      %v8453 = vpop.f32.mrb[0].mxu0
      %8454 = vdwg.mxu0
      %v8455 = vadd.f32 %v8298, %v8388
      %v8456 = vadd.f32 %v8299, %v8390
      %v8457 = vadd.f32 %v8300, %v8439
      %v8458 = vadd.f32 %v8301, %v8441
      %v8459 = vadd.f32 %v8302, %v8392
      %v8460 = vadd.f32 %v8303, %v8394
      %v8461 = vadd.f32 %v8304, %v8443
      %v8462 = vadd.f32 %v8305, %v8445
      %v8463 = vadd.f32 %v8306, %v8398
      %v8464 = vadd.f32 %v8307, %v8400
      %v8465 = vadd.f32 %v8308, %v8449
      %v8466 = vadd.f32 %v8309, %v8451
      %v8467 = vld [vmem:[%s4210] sm:$0xf]
      %v8468 = vld [vmem:[%s4210 + $0x4] sm:$0xf]
      %v8469 = vld [vmem:[%s4210 + $0x8] sm:$0xf]
      %v8473 = vunpack.c.l.b16 %v8467
      %v8474 = vunpack.c.l.b16 %v8468
      %v8475 = vunpack.c.l.b16 %v8469
      %v8476 = vpack.c.b16 %v8474, %v8473
      %v8477 = vpack.c.b16 %v8475, %v8475
      %8478 = vrot.lane.b32.xlu0 %v7374, 35
      %v8479 = vpop.permute.xlu0 %8478
      %8480 = vrot.lane.b32.xlu0 %v7375, 35
      %v8481 = vpop.permute.xlu0 %8480
      %8482 = vrot.lane.b32.xlu0 %v7376, 35
      %v8483 = vpop.permute.xlu0 %8482
      %8484 = vrot.lane.b32.xlu0 %v7377, 35
      %v8485 = vpop.permute.xlu0 %8484
      %8486 = vrot.lane.b32.xlu0 %v7378, 35
      %v8487 = vpop.permute.xlu0 %8486
      %v8488 = vsel %vm4232, %v8479, %v8481
      %v8489 = vsel %vm4232, %v8481, %v8483
      %v8490 = vsel %vm4232, %v8483, %v8485
      %v8491 = vsel %vm4232, %v8485, %v8487
      %v8493 = vsel %vm287, %v8476, 0
      %v8496 = vsel %vm287, %v8477, 0
      %v8499 = vsel %vm294, %v8488, 0
      %v8502 = vsel %vm294, %v8489, 0
      %v8505 = vsel %vm294, %v8490, 0
      %v8508 = vsel %vm294, %v8491, 0
      %8510 = vmatprep.subr.bf16.mxu0 %v8502
      %8511 = vmatpush1.bf16.msra.mxu0 %v8499
      %8512 = vmatprep.subr.bf16.mxu0 0
      %8513 = vmatpush1.bf16.msra.mxu0 0
      %8514 = vmatprep.subr.bf16.mxu0 0
      %8515 = vmatpush1.bf16.msra.mxu0 0
      %8516 = vmatprep.subr.bf16.mxu0 0
      %8517 = vmatpush1.bf16.msra.mxu0 0
      %8518 = vmatprep.subr.bf16.mxu0 0
      %8519 = vmatpush1.bf16.msra.mxu0 0
      %8520 = vmatprep.subr.bf16.mxu0 0
      %8521 = vmatpush1.bf16.msra.mxu0 0
      %8522 = vmatprep.subr.bf16.mxu0 0
      %8523 = vmatpush1.bf16.msra.mxu0 0
      %8524 = vmatprep.subr.bf16.mxu0 0
      %8525 = vmatpush1.bf16.msra.mxu0 0
      %8526 = vmatprep.subr.bf16.mxu0 0
      %8527 = vmatpush1.bf16.msra.mxu0 0
      %8528 = vmatprep.subr.bf16.mxu0 0
      %8529 = vmatpush1.bf16.msra.mxu0 0
      %8530 = vmatprep.subr.bf16.mxu0 0
      %8531 = vmatpush1.bf16.msra.mxu0 0
      %8532 = vmatprep.subr.bf16.mxu0 0
      %8533 = vmatpush1.bf16.msra.mxu0 0
      %8534 = vmatprep.subr.bf16.mxu0 0
      %8535 = vmatpush1.bf16.msra.mxu0 0
      %8536 = vmatprep.subr.bf16.mxu0 0
      %8537 = vmatpush1.bf16.msra.mxu0 0
      %8538 = vmatprep.subr.bf16.mxu0 0
      %8539 = vmatpush1.bf16.msra.mxu0 0
      %8540 = vmatprep.subr.bf16.mxu0 0
      %8541 = vmatpush1.bf16.msra.mxu0 0
      %8542 = vmatprep.mubr.bf16.mxu0 0
      %8543 = vmatmul.mubr.bf16.gmra.mrb[0].mxu0 %v8493
      %v8544 = vpop.f32.mrb[0].mxu0
      %v8545 = vadd.f32 0.0, %v8544
      %v8546 = vpop.f32.mrb[0].mxu0
      %v8547 = vadd.f32 0.0, %v8546
      %v8548 = vpop.f32.mrb[0].mxu0
      %v8549 = vadd.f32 0.0, %v8548
      %v8550 = vpop.f32.mrb[0].mxu0
      %v8551 = vadd.f32 0.0, %v8550
      %8552 = vmatprep.mubr.bf16.mxu0 0
      %8553 = vmatmul.mubr.bf16.gmra.mrb[0].mxu0 %v8496
      %v8554 = vpop.f32.mrb[0].mxu0
      %v8555 = vadd.f32 0.0, %v8554
      %v8556 = vpop.f32.mrb[0].mxu0
      %v8557 = vadd.f32 0.0, %v8556
      %v8558 = vpop.f32.mrb[0].mxu0
      %v8559 = vpop.f32.mrb[0].mxu0
      %8560 = vdwg.mxu0
      %8561 = vmatprep.subr.bf16.mxu0 %v8508
      %8562 = vmatpush1.bf16.msra.mxu0 %v8505
      %8563 = vmatprep.subr.bf16.mxu0 0
      %8564 = vmatpush1.bf16.msra.mxu0 0
      %8565 = vmatprep.subr.bf16.mxu0 0
      %8566 = vmatpush1.bf16.msra.mxu0 0
      %8567 = vmatprep.subr.bf16.mxu0 0
      %8568 = vmatpush1.bf16.msra.mxu0 0
      %8569 = vmatprep.subr.bf16.mxu0 0
      %8570 = vmatpush1.bf16.msra.mxu0 0
      %8571 = vmatprep.subr.bf16.mxu0 0
      %8572 = vmatpush1.bf16.msra.mxu0 0
      %8573 = vmatprep.subr.bf16.mxu0 0
      %8574 = vmatpush1.bf16.msra.mxu0 0
      %8575 = vmatprep.subr.bf16.mxu0 0
      %8576 = vmatpush1.bf16.msra.mxu0 0
      %8577 = vmatprep.subr.bf16.mxu0 0
      %8578 = vmatpush1.bf16.msra.mxu0 0
      %8579 = vmatprep.subr.bf16.mxu0 0
      %8580 = vmatpush1.bf16.msra.mxu0 0
      %8581 = vmatprep.subr.bf16.mxu0 0
      %8582 = vmatpush1.bf16.msra.mxu0 0
      %8583 = vmatprep.subr.bf16.mxu0 0
      %8584 = vmatpush1.bf16.msra.mxu0 0
      %8585 = vmatprep.subr.bf16.mxu0 0
      %8586 = vmatpush1.bf16.msra.mxu0 0
      %8587 = vmatprep.subr.bf16.mxu0 0
      %8588 = vmatpush1.bf16.msra.mxu0 0
      %8589 = vmatprep.subr.bf16.mxu0 0
      %8590 = vmatpush1.bf16.msra.mxu0 0
      %8591 = vmatprep.subr.bf16.mxu0 0
      %8592 = vmatpush1.bf16.msra.mxu0 0
      %8593 = vmatprep.mubr.bf16.mxu0 0
      %8594 = vmatmul.mubr.bf16.gmra.mrb[0].mxu0 %v8493
      %v8595 = vpop.f32.mrb[0].mxu0
      %v8596 = vadd.f32 0.0, %v8595
      %v8597 = vpop.f32.mrb[0].mxu0
      %v8598 = vadd.f32 0.0, %v8597
      %v8599 = vpop.f32.mrb[0].mxu0
      %v8600 = vadd.f32 0.0, %v8599
      %v8601 = vpop.f32.mrb[0].mxu0
      %v8602 = vadd.f32 0.0, %v8601
      %8603 = vmatprep.mubr.bf16.mxu0 0
      %8604 = vmatmul.mubr.bf16.gmra.mrb[0].mxu0 %v8496
      %v8605 = vpop.f32.mrb[0].mxu0
      %v8606 = vadd.f32 0.0, %v8605
      %v8607 = vpop.f32.mrb[0].mxu0
      %v8608 = vadd.f32 0.0, %v8607
      %v8609 = vpop.f32.mrb[0].mxu0
      %v8610 = vpop.f32.mrb[0].mxu0
      %8611 = vdwg.mxu0
      %v8612 = vadd.f32 %v8455, %v8545
      %v8613 = vadd.f32 %v8456, %v8547
      %v8614 = vadd.f32 %v8457, %v8596
      %v8615 = vadd.f32 %v8458, %v8598
      %v8616 = vadd.f32 %v8459, %v8549
      %v8617 = vadd.f32 %v8460, %v8551
      %v8618 = vadd.f32 %v8461, %v8600
      %v8619 = vadd.f32 %v8462, %v8602
      %v8620 = vadd.f32 %v8463, %v8555
      %v8621 = vadd.f32 %v8464, %v8557
      %v8622 = vadd.f32 %v8465, %v8606
      %v8623 = vadd.f32 %v8466, %v8608
      %v8624 = vld [vmem:[%s4369] sm:$0xf]
      %v8625 = vld [vmem:[%s4369 + $0x4] sm:$0xf]
      %v8626 = vld [vmem:[%s4369 + $0x8] sm:$0xf]
      %v8630 = vunpack.c.l.b16 %v8624
      %v8631 = vunpack.c.l.b16 %v8625
      %v8632 = vunpack.c.l.b16 %v8626
      %v8633 = vpack.c.b16 %v8631, %v8630
      %v8634 = vpack.c.b16 %v8632, %v8632
      %8635 = vrot.lane.b32.xlu0 %v7374, 34
      %v8636 = vpop.permute.xlu0 %8635
      %8637 = vrot.lane.b32.xlu0 %v7375, 34
      %v8638 = vpop.permute.xlu0 %8637
      %8639 = vrot.lane.b32.xlu0 %v7376, 34
      %v8640 = vpop.permute.xlu0 %8639
      %8641 = vrot.lane.b32.xlu0 %v7377, 34
      %v8642 = vpop.permute.xlu0 %8641
      %8643 = vrot.lane.b32.xlu0 %v7378, 34
      %v8644 = vpop.permute.xlu0 %8643
      %v8645 = vsel %vm4391, %v8636, %v8638
      %v8646 = vsel %vm4391, %v8638, %v8640
      %v8647 = vsel %vm4391, %v8640, %v8642
      %v8648 = vsel %vm4391, %v8642, %v8644
      %v8650 = vsel %vm287, %v8633, 0
      %v8653 = vsel %vm287, %v8634, 0
      %v8656 = vsel %vm294, %v8645, 0
      %v8659 = vsel %vm294, %v8646, 0
      %v8662 = vsel %vm294, %v8647, 0
      %v8665 = vsel %vm294, %v8648, 0
      %8667 = vmatprep.subr.bf16.mxu0 %v8659
      %8668 = vmatpush1.bf16.msra.mxu0 %v8656
      %8669 = vmatprep.subr.bf16.mxu0 0
      %8670 = vmatpush1.bf16.msra.mxu0 0
      %8671 = vmatprep.subr.bf16.mxu0 0
      %8672 = vmatpush1.bf16.msra.mxu0 0
      %8673 = vmatprep.subr.bf16.mxu0 0
      %8674 = vmatpush1.bf16.msra.mxu0 0
      %8675 = vmatprep.subr.bf16.mxu0 0
      %8676 = vmatpush1.bf16.msra.mxu0 0
      %8677 = vmatprep.subr.bf16.mxu0 0
      %8678 = vmatpush1.bf16.msra.mxu0 0
      %8679 = vmatprep.subr.bf16.mxu0 0
      %8680 = vmatpush1.bf16.msra.mxu0 0
      %8681 = vmatprep.subr.bf16.mxu0 0
      %8682 = vmatpush1.bf16.msra.mxu0 0
      %8683 = vmatprep.subr.bf16.mxu0 0
      %8684 = vmatpush1.bf16.msra.mxu0 0
      %8685 = vmatprep.subr.bf16.mxu0 0
      %8686 = vmatpush1.bf16.msra.mxu0 0
      %8687 = vmatprep.subr.bf16.mxu0 0
      %8688 = vmatpush1.bf16.msra.mxu0 0
      %8689 = vmatprep.subr.bf16.mxu0 0
      %8690 = vmatpush1.bf16.msra.mxu0 0
      %8691 = vmatprep.subr.bf16.mxu0 0
      %8692 = vmatpush1.bf16.msra.mxu0 0
      %8693 = vmatprep.subr.bf16.mxu0 0
      %8694 = vmatpush1.bf16.msra.mxu0 0
      %8695 = vmatprep.subr.bf16.mxu0 0
      %8696 = vmatpush1.bf16.msra.mxu0 0
      %8697 = vmatprep.subr.bf16.mxu0 0
      %8698 = vmatpush1.bf16.msra.mxu0 0
      %8699 = vmatprep.mubr.bf16.mxu0 0
      %8700 = vmatmul.mubr.bf16.gmra.mrb[0].mxu0 %v8650
      %v8701 = vpop.f32.mrb[0].mxu0
      %v8702 = vadd.f32 0.0, %v8701
      %v8703 = vpop.f32.mrb[0].mxu0
      %v8704 = vadd.f32 0.0, %v8703
      %v8705 = vpop.f32.mrb[0].mxu0
      %v8706 = vadd.f32 0.0, %v8705
      %v8707 = vpop.f32.mrb[0].mxu0
      %v8708 = vadd.f32 0.0, %v8707
      %8709 = vmatprep.mubr.bf16.mxu0 0
      %8710 = vmatmul.mubr.bf16.gmra.mrb[0].mxu0 %v8653
      %v8711 = vpop.f32.mrb[0].mxu0
      %v8712 = vadd.f32 0.0, %v8711
      %v8713 = vpop.f32.mrb[0].mxu0
      %v8714 = vadd.f32 0.0, %v8713
      %v8715 = vpop.f32.mrb[0].mxu0
      %v8716 = vpop.f32.mrb[0].mxu0
      %8717 = vdwg.mxu0
      %8718 = vmatprep.subr.bf16.mxu0 %v8665
      %8719 = vmatpush1.bf16.msra.mxu0 %v8662
      %8720 = vmatprep.subr.bf16.mxu0 0
      %8721 = vmatpush1.bf16.msra.mxu0 0
      %8722 = vmatprep.subr.bf16.mxu0 0
      %8723 = vmatpush1.bf16.msra.mxu0 0
      %8724 = vmatprep.subr.bf16.mxu0 0
      %8725 = vmatpush1.bf16.msra.mxu0 0
      %8726 = vmatprep.subr.bf16.mxu0 0
      %8727 = vmatpush1.bf16.msra.mxu0 0
      %8728 = vmatprep.subr.bf16.mxu0 0
      %8729 = vmatpush1.bf16.msra.mxu0 0
      %8730 = vmatprep.subr.bf16.mxu0 0
      %8731 = vmatpush1.bf16.msra.mxu0 0
      %8732 = vmatprep.subr.bf16.mxu0 0
      %8733 = vmatpush1.bf16.msra.mxu0 0
      %8734 = vmatprep.subr.bf16.mxu0 0
      %8735 = vmatpush1.bf16.msra.mxu0 0
      %8736 = vmatprep.subr.bf16.mxu0 0
      %8737 = vmatpush1.bf16.msra.mxu0 0
      %8738 = vmatprep.subr.bf16.mxu0 0
      %8739 = vmatpush1.bf16.msra.mxu0 0
      %8740 = vmatprep.subr.bf16.mxu0 0
      %8741 = vmatpush1.bf16.msra.mxu0 0
      %8742 = vmatprep.subr.bf16.mxu0 0
      %8743 = vmatpush1.bf16.msra.mxu0 0
      %8744 = vmatprep.subr.bf16.mxu0 0
      %8745 = vmatpush1.bf16.msra.mxu0 0
      %8746 = vmatprep.subr.bf16.mxu0 0
      %8747 = vmatpush1.bf16.msra.mxu0 0
      %8748 = vmatprep.subr.bf16.mxu0 0
      %8749 = vmatpush1.bf16.msra.mxu0 0
      %8750 = vmatprep.mubr.bf16.mxu0 0
      %8751 = vmatmul.mubr.bf16.gmra.mrb[0].mxu0 %v8650
      %v8752 = vpop.f32.mrb[0].mxu0
      %v8753 = vadd.f32 0.0, %v8752
      %v8754 = vpop.f32.mrb[0].mxu0
      %v8755 = vadd.f32 0.0, %v8754
      %v8756 = vpop.f32.mrb[0].mxu0
      %v8757 = vadd.f32 0.0, %v8756
      %v8758 = vpop.f32.mrb[0].mxu0
      %v8759 = vadd.f32 0.0, %v8758
      %8760 = vmatprep.mubr.bf16.mxu0 0
      %8761 = vmatmul.mubr.bf16.gmra.mrb[0].mxu0 %v8653
      %v8762 = vpop.f32.mrb[0].mxu0
      %v8763 = vadd.f32 0.0, %v8762
      %v8764 = vpop.f32.mrb[0].mxu0
      %v8765 = vadd.f32 0.0, %v8764
      %v8766 = vpop.f32.mrb[0].mxu0
      %v8767 = vpop.f32.mrb[0].mxu0
      %8768 = vdwg.mxu0
      %v8769 = vadd.f32 %v8612, %v8702
      %v8770 = vadd.f32 %v8613, %v8704
      %v8771 = vadd.f32 %v8614, %v8753
      %v8772 = vadd.f32 %v8615, %v8755
      %v8773 = vadd.f32 %v8616, %v8706
      %v8774 = vadd.f32 %v8617, %v8708
      %v8775 = vadd.f32 %v8618, %v8757
      %v8776 = vadd.f32 %v8619, %v8759
      %v8777 = vadd.f32 %v8620, %v8712
      %v8778 = vadd.f32 %v8621, %v8714
      %v8779 = vadd.f32 %v8622, %v8763
      %v8780 = vadd.f32 %v8623, %v8765
      %v8781 = vmul.f32 %v8773, %v8777
      %v8782 = vmul.f32 %v8774, %v8778
      %v8783 = vmul.f32 %v8775, %v8779
      %v8784 = vmul.f32 %v8776, %v8780
      %v8785 = vadd.f32 %v8769, %v8781
      %v8786 = vadd.f32 %v8770, %v8782
      %v8787 = vadd.f32 %v8771, %v8783
      %v8788 = vadd.f32 %v8772, %v8784
      %v8789 = vmul.f32 %v8785, 1.442695
      %v8790 = vpow.pop %v8789
      %v8791 = vmul.f32 %v8786, 1.442695
      %v8792 = vpow.pop %v8791
      %v8793 = vmul.f32 %v8787, 1.442695
      %v8794 = vpow.pop %v8793
      %v8795 = vmul.f32 %v8788, 1.442695
      %v8796 = vpow.pop %v8795
      %8797 = vst [vmem:[%s228 + $0x20] sm:$0xff] %v8790
      %8798 = vst [vmem:[%s228 + $0x28] sm:$0xff] %v8792
      %8799 = vst [vmem:[%s228 + $0x30] sm:$0xff] %v8794
      %8800 = vst [vmem:[%s228 + $0x38] sm:$0xff] %v8796
      %s8801 = smul.u32 8, %s14
      %p8802 = scmp.lt.s32.totalorder %s8801, 15
      %s8803 = scalar_select %p8802, %s8801, 15
      %s8804 = smul.addr %s8803, 8
      %s8805 = scalar_lea.vmem %s3, %s8804
      // Predicated region
      $region33: #{manifold_valued_volterra.1} parent=31 // pred_check
        %p8806 = pneg %p109
      $region34: #{manifold_valued_volterra.1} parent=31 // pred_check_branch
        %8808 = sbr.rel (%p8806) target = $region36
      $region35: #{manifold_valued_volterra.1} parent=31 // pred_region
        %s8809 = smul.u32 8, %s14
      $region36: #{manifold_valued_volterra.1} parent=31 // pred_fallthru
        _
    $region32: #{manifold_valued_volterra.1} parent=5 // pred_fallthru
      _
    %p8810 = scmp.le.s32.totalorder 2, %s9
    // Predicated region
    $region37: #{manifold_valued_volterra.1} parent=5 // pred_check
      %p8811 = pneg %p8810
    $region38: #{manifold_valued_volterra.1} parent=5 // pred_check_branch
      %8813 = sbr.rel (%p8811) target = $region40
    $region39: #{manifold_valued_volterra.1} parent=5 // pred_region
      %s8814 = ssub.s32 %s9, 2
      // Predicated region
      $region41: #{manifold_valued_volterra.1} parent=39 // pred_check
        %p8815 = pneg %p115
      $region42: #{manifold_valued_volterra.1} parent=39 // pred_check_branch
        %8817 = sbr.rel (%p8815) target = $region44
      $region43: #{manifold_valued_volterra.1} parent=39 // pred_region
        %s8818 = smul.u32 8, %s15
        %p8819 = scmp.lt.s32.totalorder %s8818, 15
        %s8820 = scalar_select %p8819, %s8818, 15
        %s8821 = smul.addr %s8820, 8
        %s8822 = scalar_lea.vmem %s3, %s8821
      $region44: #{manifold_valued_volterra.1} parent=39 // pred_fallthru
        _
    $region40: #{manifold_valued_volterra.1} parent=5 // pred_fallthru
      _
  $region6: #{manifold_valued_volterra.1} parent=0 // loop_footer
    %s13 = sadd.s32 1, %s9
  $region7: #{manifold_valued_volterra.1} parent=0 // loop_footer_branch
    %8 = sbr.rel target = $region3
  $region8: #{manifold_valued_volterra.1} parent=0 // loop_exit
    _

</llo_original>
